<compile_context>
chip_gen: v7x
topology: tpu7x:2x2x1
jax: 0.10.0
libtpu: 0.0.40
codegen_flags: <defaults>
</compile_context>

<pallas_src>
import numpy as np
import jax
import jax.numpy as jnp
from jax.experimental import pallas as pl
from jax.experimental.pallas import tpu as pltpu

_VMEM_LIMIT = 32 * 1024 * 1024   # safe on v5e/v6e (128 MiB phys) and v7x (64 MiB)


# --------------------------------------------------------------------------
# Kernel 1: ConvTranspose2d(kernel=2, stride=2) as a row-tiled matmul.
#   out[n, 2i+a, 2j+b, co] = sum_ci x[n, i, j, ci] * W[ci, co, a, b] + bias[co]
#   (stride == kernel  ->  no overlap, every output pixel gets exactly one tap)
# --------------------------------------------------------------------------
def _convt_matmul_kernel(x_ref, w_ref, b_ref, o_ref):
    # x_ref: (TM, Cin)   w_ref: (Cin, 4*Cout)   b_ref: (1, 4*Cout)
    o_ref[...] = (
        jnp.dot(x_ref[...], w_ref[...], preferred_element_type=jnp.float32)
        + b_ref[...]
    ).astype(o_ref.dtype)


def conv_transpose_2x2_s2(x_nhwc, w, b, *, block_rows=512):
    """x_nhwc: (N,H,W,Cin). w: (Cin,Cout,2,2) (PyTorch layout). b: (Cout,)."""
    N, H, W, Cin = x_nhwc.shape
    Cout = w.shape[1]
    M = N * H * W
    # (Cin, Cout, 2, 2) -> (Cin, 2, 2, Cout) -> (Cin, 4*Cout)  (flat = (a,b,co))
    w_r = jnp.transpose(w, (0, 2, 3, 1)).reshape(Cin, 4 * Cout)
    b_r = jnp.tile(b, 4).reshape(1, 4 * Cout)
    x_flat = x_nhwc.reshape(M, Cin)

    assert block_rows % 8 == 0
    tm = M if M <= block_rows else block_rows      # TM == M or a multiple of 8
    grid_m = pl.cdiv(M, tm)

    out = pl.pallas_call(
        _convt_matmul_kernel,
        out_shape=jax.ShapeDtypeStruct((M, 4 * Cout), jnp.float32),
        grid=(grid_m,),
        in_specs=[
            pl.BlockSpec((tm, Cin), lambda i: (i, 0)),
            pl.BlockSpec((Cin, 4 * Cout), lambda i: (0, 0)),
            pl.BlockSpec((1, 4 * Cout), lambda i: (0, 0)),
        ],
        out_specs=pl.BlockSpec((tm, 4 * Cout), lambda i: (i, 0)),
        compiler_params=pltpu.CompilerParams(
            dimension_semantics=("parallel",),
            vmem_limit_bytes=_VMEM_LIMIT),
    )(x_flat, w_r, b_r)

    # (N, H, W, a, b, Cout) -> (N, H, a, W, b, Cout) -> (N, 2H, 2W, Cout)
    out = out.reshape(N, H, W, 2, 2, Cout)
    out = jnp.transpose(out, (0, 1, 3, 2, 4, 5)).reshape(N, 2 * H, 2 * W, Cout)
    return out


# --------------------------------------------------------------------------
# Kernel 2: fused concat + zero-pad + depthwise 3x3 + pointwise 1x1
#           + BatchNorm (inference) + ReLU.   One grid step per batch element.
# --------------------------------------------------------------------------
def _fused_dwpw_bn_relu_kernel(up_ref, sk_ref, wdw_ref, bdw_ref, wpw_ref,
                               bpw_ref, scale_ref, shift_ref, o_ref, xs_ref):
    # up_ref / sk_ref : (1, Ho, Wo, Cout) — the two halves of the concat
    # xs_ref          : VMEM scratch (Ho+2, Wo+2, 2*Cout), zero-padded concat
    Hp, Wp, C2 = xs_ref.shape
    Ho, Wo = Hp - 2, Wp - 2
    Cout = o_ref.shape[-1]

    # Fused channel-concat + 'same' zero-padding, entirely in VMEM.
    xs_ref[...] = jnp.zeros_like(xs_ref)
    xs_ref[1:Ho + 1, 1:Wo + 1, 0:Cout] = up_ref[0]
    xs_ref[1:Ho + 1, 1:Wo + 1, Cout:C2] = sk_ref[0]

    # Depthwise 3x3: 9 shifted taps read directly from the scratch ref (VPU).
    wdw = wdw_ref[...]                                   # (3, 3, C2)
    acc = jnp.zeros((Ho, Wo, C2), jnp.float32)
    for kh in range(3):
        for kw in range(3):
            acc = acc + xs_ref[kh:kh + Ho, kw:kw + Wo, :] * wdw[kh, kw, :]
    acc = acc + bdw_ref[0]                               # (C2,) broadcast

    # Pointwise 1x1 conv == channel matmul (MXU), folded BN + ReLU.
    y = jnp.dot(acc.reshape(Ho * Wo, C2), wpw_ref[...],
                preferred_element_type=jnp.float32) + bpw_ref[...]
    y = jnp.maximum(y * scale_ref[...] + shift_ref[...], 0.0)
    o_ref[0] = y.reshape(Ho, Wo, Cout).astype(o_ref.dtype)


def fused_dsconv_bn_relu(up_nhwc, skip_nhwc, w_dw, b_dw, w_pw, b_pw,
                         gamma, beta, mean, var, eps=1e-5):
    """up_nhwc, skip_nhwc: (N, Ho, Wo, Cout) each (concat halves)."""
    N, Ho, Wo, Cout = up_nhwc.shape
    C2 = 2 * Cout
    Hp, Wp = Ho + 2, Wo + 2

    wdw = jnp.transpose(w_dw[:, 0, :, :], (1, 2, 0))               # (3,3,C2)
    bdw = b_dw.reshape(1, C2)
    wpw = jnp.transpose(w_pw[:, :, 0, 0], (1, 0))                  # (C2, Cout)
    bpw = b_pw.reshape(1, Cout)
    inv = gamma / jnp.sqrt(var + eps)
    scale = inv.reshape(1, Cout)
    shift = (beta - mean * inv).reshape(1, Cout)

    out = pl.pallas_call(
        _fused_dwpw_bn_relu_kernel,
        out_shape=jax.ShapeDtypeStruct((N, Ho, Wo, Cout), jnp.float32),
        grid=(N,),
        in_specs=[
            pl.BlockSpec((1, Ho, Wo, Cout), lambda n: (n, 0, 0, 0)),
            pl.BlockSpec((1, Ho, Wo, Cout), lambda n: (n, 0, 0, 0)),
            pl.BlockSpec((3, 3, C2), lambda n: (0, 0, 0)),
            pl.BlockSpec((1, C2), lambda n: (0, 0)),
            pl.BlockSpec((C2, Cout), lambda n: (0, 0)),
            pl.BlockSpec((1, Cout), lambda n: (0, 0)),
            pl.BlockSpec((1, Cout), lambda n: (0, 0)),
            pl.BlockSpec((1, Cout), lambda n: (0, 0)),
        ],
        out_specs=pl.BlockSpec((1, Ho, Wo, Cout), lambda n: (n, 0, 0, 0)),
        scratch_shapes=[pltpu.VMEM((Hp, Wp, C2), jnp.float32)],
        compiler_params=pltpu.CompilerParams(
            dimension_semantics=("parallel",),
            vmem_limit_bytes=_VMEM_LIMIT),
    )(up_nhwc, skip_nhwc, wdw, bdw, wpw, bpw, scale, shift)
    return out


# --------------------------------------------------------------------------
# Bilinear resize (align_corners=False), exact PyTorch index math, expressed
# as two small resize matrices (JAX glue around the Pallas kernels).
# --------------------------------------------------------------------------
def _bilinear_matrix(out_size, in_size):
    scale = in_size / out_size
    i = np.arange(out_size, dtype=np.float64)
    src = (i + 0.5) * scale - 0.5
    src = np.maximum(src, 0.0)                  # PyTorch clamps negative src
    i0 = np.minimum(np.floor(src).astype(np.int64), in_size - 1)
    i1 = np.minimum(i0 + 1, in_size - 1)
    lam1 = src - i0
    lam0 = 1.0 - lam1
    R = np.zeros((out_size, in_size), np.float32)
    R[np.arange(out_size), i0] += lam0.astype(np.float32)
    R[np.arange(out_size), i1] += lam1.astype(np.float32)
    return R


def bilinear_resize_nhwc(skip_nhwc, Ho, Wo):
    N, Hs, Ws, C = skip_nhwc.shape
    Rh = jnp.asarray(_bilinear_matrix(Ho, Hs))
    Rw = jnp.asarray(_bilinear_matrix(Wo, Ws))
    t = jnp.einsum('Hh,nhwc->nHwc', Rh, skip_nhwc, precision='highest')
    return jnp.einsum('Ww,nHwc->nHWc', Rw, t, precision='highest')


# --------------------------------------------------------------------------
# Full EfficientUpsample forward pass.
# --------------------------------------------------------------------------
def efficient_upsample_forward(params, x_nchw, skip_nchw):
    x = jnp.transpose(x_nchw, (0, 2, 3, 1))          # NCHW -> NHWC
    skip = jnp.transpose(skip_nchw, (0, 2, 3, 1))

    up = conv_transpose_2x2_s2(x, params['up_w'], params['up_b'])
    N, Ho, Wo, Cout = up.shape
    skip_i = bilinear_resize_nhwc(skip, Ho, Wo)

    out = fused_dsconv_bn_relu(
        up, skip_i,
        params['dw_w'], params['dw_b'],
        params['pw_w'], params['pw_b'],
        params['bn_gamma'], params['bn_beta'],
        params['bn_mean'], params['bn_var'],
    )
    return jnp.transpose(out, (0, 3, 1, 2))          # NHWC -> NCHW


# --------------------------------------------------------------------------
# Pure-JAX reference (numerics self-check only).
# --------------------------------------------------------------------------
def _reference_forward(params, x_nchw, skip_nchw, eps=1e-5):
    x = jnp.transpose(x_nchw, (0, 2, 3, 1))
    skip = jnp.transpose(skip_nchw, (0, 2, 3, 1))
    N, H, W, Cin = x.shape
    Cout = params['up_w'].shape[1]
    up = jnp.einsum('nijc,coab->niajbo', x, params['up_w'],
                    precision='highest').reshape(N, 2 * H, 2 * W, Cout)
    up = up + params['up_b']
    sk = bilinear_resize_nhwc(skip, 2 * H, 2 * W)
    cat = jnp.concatenate([up, sk], axis=-1)
    catp = jnp.pad(cat, ((0, 0), (1, 1), (1, 1), (0, 0)))
    wdw = params['dw_w'][:, 0]                                   # (C2, 3, 3)
    dw = jnp.zeros_like(cat)
    for kh in range(3):
        for kw in range(3):
            dw = dw + catp[:, kh:kh + 2 * H, kw:kw + 2 * W, :] * wdw[:, kh, kw]
    dw = dw + params['dw_b']
    pw = jnp.einsum('nhwc,oc->nhwo', dw, params['pw_w'][:, :, 0, 0],
                    precision='highest') + params['pw_b']
    inv = params['bn_gamma'] / jnp.sqrt(params['bn_var'] + eps)
    y = jnp.maximum((pw - params['bn_mean']) * inv + params['bn_beta'], 0.0)
    return jnp.transpose(y, (0, 3, 1, 2))


if __name__ == "__main__":
    key = jax.random.PRNGKey(0)
    N, Cin, Cout = 4, 8, 4
    Hx, Wx = 16, 16      # input spatial -> upsampled to 32x32 (M=1024 -> 2 row tiles)
    Hs, Ws = 24, 24      # skip spatial (bilinearly resized to 32x32)

    keys = jax.random.split(key, 12)
    params = {
        # ConvTranspose2d(Cin, Cout, 2, 2): weight (Cin, Cout, 2, 2)
        'up_w': 0.1 * jax.random.normal(keys[0], (Cin, Cout, 2, 2), jnp.float32),
        'up_b': 0.1 * jax.random.normal(keys[1], (Cout,), jnp.float32),
        # depthwise Conv2d(2*Cout, 2*Cout, 3, pad=1, groups=2*Cout)
        'dw_w': 0.1 * jax.random.normal(keys[2], (2 * Cout, 1, 3, 3), jnp.float32),
        'dw_b': 0.1 * jax.random.normal(keys[3], (2 * Cout,), jnp.float32),
        # pointwise Conv2d(2*Cout, Cout, 1)
        'pw_w': 0.1 * jax.random.normal(keys[4], (Cout, 2 * Cout, 1, 1), jnp.float32),
        'pw_b': 0.1 * jax.random.normal(keys[5], (Cout,), jnp.float32),
        # BatchNorm2d(Cout) — inference-mode parameters / running stats
        'bn_gamma': 1.0 + 0.05 * jax.random.normal(keys[6], (Cout,), jnp.float32),
        'bn_beta': 0.05 * jax.random.normal(keys[7], (Cout,), jnp.float32),
        'bn_mean': 0.05 * jax.random.normal(keys[8], (Cout,), jnp.float32),
        'bn_var': 0.9 + 0.1 * jnp.abs(jax.random.normal(keys[9], (Cout,), jnp.float32)),
    }

    x = jax.random.normal(keys[10], (N, Cin, Hx, Wx), jnp.float32)
    skip = jax.random.normal(keys[11], (N, Cout, Hs, Ws), jnp.float32)

    fwd = jax.jit(efficient_upsample_forward)
    out = jax.block_until_ready(fwd(params, x, skip))

    assert out.shape == (N, Cout, 2 * Hx, 2 * Wx), out.shape
    assert bool(jnp.all(out >= 0.0))                 # ReLU output
    ref = _reference_forward(params, x, skip)
    err = float(jnp.max(jnp.abs(out - ref)))
    assert err < 1e-2, f"max abs err vs reference: {err}"
    print("KERNEL_OK")
</pallas_src>

<mosaic_0001>
module attributes {stable_mosaic.version = 11 : i64} {
  func.func @_convt_matmul_kernel(%arg0: i32, %arg1: memref<512x8xf32, #tpu.memory_space<vmem>>, %arg2: memref<8x16xf32, #tpu.memory_space<vmem>>, %arg3: memref<1x16xf32, #tpu.memory_space<vmem>>, %arg4: memref<512x16xf32, #tpu.memory_space<vmem>>) attributes {dimension_semantics = [#tpu.dimension_semantics<parallel>], iteration_bounds = array<i64: 2>, scalar_prefetch = 0 : i64, scratch_operands = 0 : i64, tpu.core_type = #tpu.core_type<tc>, window_params = [{transform_indices = @transform_0, window_bounds = array<i64: 512, 8>}, {pipeline_mode = #tpu.pipeline_mode<synchronous>, transform_indices = @transform_1, window_bounds = array<i64: 8, 16>}, {pipeline_mode = #tpu.pipeline_mode<synchronous>, transform_indices = @transform_2, window_bounds = array<i64: 1, 16>}, {transform_indices = @transform_3, window_bounds = array<i64: 512, 16>}]} {
    %c0 = arith.constant 0 : index
    %c0_0 = arith.constant 0 : index
    %0 = vector.load %arg1[%c0, %c0_0] : memref<512x8xf32, #tpu.memory_space<vmem>>, vector<512x8xf32>
    %c0_1 = arith.constant 0 : index
    %c0_2 = arith.constant 0 : index
    %1 = vector.load %arg2[%c0_1, %c0_2] : memref<8x16xf32, #tpu.memory_space<vmem>>, vector<8x16xf32>
    %cst = arith.constant dense<0.000000e+00> : vector<512x16xf32>
    %2 = tpu.matmul %0, %1, %cst {dimension_numbers = #tpu.dot_dimension_numbers<[1], [0], [0], [1], [0, 0, 1, 1], [], []>} : vector<512x8xf32>, vector<8x16xf32>, vector<512x16xf32> -> vector<512x16xf32>
    %c0_3 = arith.constant 0 : index
    %c0_4 = arith.constant 0 : index
    %3 = vector.load %arg3[%c0_3, %c0_4] : memref<1x16xf32, #tpu.memory_space<vmem>>, vector<1x16xf32>
    %4 = vector.broadcast %3 : vector<1x16xf32> to vector<512x16xf32>
    %5 = arith.addf %2, %4 : vector<512x16xf32>
    %c0_5 = arith.constant 0 : index
    %c0_6 = arith.constant 0 : index
    %6 = vector.load %arg4[%c0_5, %c0_6] : memref<512x16xf32, #tpu.memory_space<vmem>>, vector<512x16xf32>
    tpu.vector_store %arg4[%c0_5, %c0_6], %5 {strides = array<i32>} : memref<512x16xf32, #tpu.memory_space<vmem>>, vector<512x16xf32>,
    return
  }
  func.func @transform_0(%arg0: i32) -> (i32, i32) {
    %c0_i32 = arith.constant 0 : i32
    %c0_i32_0 = arith.constant 0 : i32
    return %arg0, %c0_i32 : i32, i32
  }
  func.func @transform_1(%arg0: i32) -> (i32, i32) {
    %c0_i32 = arith.constant 0 : i32
    %c0_i32_0 = arith.constant 0 : i32
    %c0_i32_1 = arith.constant 0 : i32
    return %c0_i32, %c0_i32_0 : i32, i32
  }
  func.func @transform_2(%arg0: i32) -> (i32, i32) {
    %c0_i32 = arith.constant 0 : i32
    %c0_i32_0 = arith.constant 0 : i32
    %c0_i32_1 = arith.constant 0 : i32
    return %c0_i32, %c0_i32_0 : i32, i32
  }
  func.func @transform_3(%arg0: i32) -> (i32, i32) {
    %c0_i32 = arith.constant 0 : i32
    %c0_i32_0 = arith.constant 0 : i32
    return %arg0, %c0_i32 : i32, i32
  }
}

module attributes {stable_mosaic.version = 11 : i64} {
  func.func @_fused_dwpw_bn_relu_kernel(%arg0: i32, %arg1: memref<1x32x32x4xf32, #tpu.memory_space<vmem>>, %arg2: memref<1x32x32x4xf32, #tpu.memory_space<vmem>>, %arg3: memref<3x3x8xf32, #tpu.memory_space<vmem>>, %arg4: memref<1x8xf32, #tpu.memory_space<vmem>>, %arg5: memref<8x4xf32, #tpu.memory_space<vmem>>, %arg6: memref<1x4xf32, #tpu.memory_space<vmem>>, %arg7: memref<1x4xf32, #tpu.memory_space<vmem>>, %arg8: memref<1x4xf32, #tpu.memory_space<vmem>>, %arg9: memref<1x32x32x4xf32, #tpu.memory_space<vmem>>, %arg10: memref<34x34x8xf32, #tpu.memory_space<vmem>>) attributes {dimension_semantics = [#tpu.dimension_semantics<parallel>], iteration_bounds = array<i64: 4>, scalar_prefetch = 0 : i64, scratch_operands = 1 : i64, tpu.core_type = #tpu.core_type<tc>, window_params = [{transform_indices = @transform_0, window_bounds = array<i64: 1, 32, 32, 4>}, {transform_indices = @transform_1, window_bounds = array<i64: 1, 32, 32, 4>}, {pipeline_mode = #tpu.pipeline_mode<synchronous>, transform_indices = @transform_2, window_bounds = array<i64: 3, 3, 8>}, {pipeline_mode = #tpu.pipeline_mode<synchronous>, transform_indices = @transform_3, window_bounds = array<i64: 1, 8>}, {pipeline_mode = #tpu.pipeline_mode<synchronous>, transform_indices = @transform_4, window_bounds = array<i64: 8, 4>}, {pipeline_mode = #tpu.pipeline_mode<synchronous>, transform_indices = @transform_5, window_bounds = array<i64: 1, 4>}, {pipeline_mode = #tpu.pipeline_mode<synchronous>, transform_indices = @transform_6, window_bounds = array<i64: 1, 4>}, {pipeline_mode = #tpu.pipeline_mode<synchronous>, transform_indices = @transform_7, window_bounds = array<i64: 1, 4>}, {transform_indices = @transform_8, window_bounds = array<i64: 1, 32, 32, 4>}]} {
    %cst = arith.constant 0.000000e+00 : f32
    %0 = vector.broadcast %cst : f32 to vector<34x34x8xf32>
    %c0 = arith.constant 0 : index
    %c0_0 = arith.constant 0 : index
    %c0_1 = arith.constant 0 : index
    %1 = vector.load %arg10[%c0, %c0_0, %c0_1] : memref<34x34x8xf32, #tpu.memory_space<vmem>>, vector<34x34x8xf32>
    tpu.vector_store %arg10[%c0, %c0_0, %c0_1], %0 {strides = array<i32>} : memref<34x34x8xf32, #tpu.memory_space<vmem>>, vector<34x34x8xf32>,
    %c0_2 = arith.constant 0 : index
    %c0_3 = arith.constant 0 : index
    %c0_4 = arith.constant 0 : index
    %c0_5 = arith.constant 0 : index
    %2 = vector.load %arg1[%c0_2, %c0_3, %c0_4, %c0_5] : memref<1x32x32x4xf32, #tpu.memory_space<vmem>>, vector<1x32x32x4xf32>
    %3 = vector.shape_cast %2 : vector<1x32x32x4xf32> to vector<32x32x4xf32>
    %c1 = arith.constant 1 : index
    %c1_6 = arith.constant 1 : index
    %c0_7 = arith.constant 0 : index
    %4 = vector.load %arg10[%c1, %c1_6, %c0_7] : memref<34x34x8xf32, #tpu.memory_space<vmem>>, vector<32x32x4xf32>
    tpu.vector_store %arg10[%c1, %c1_6, %c0_7], %3 {strides = array<i32>} : memref<34x34x8xf32, #tpu.memory_space<vmem>>, vector<32x32x4xf32>,
    %c0_8 = arith.constant 0 : index
    %c0_9 = arith.constant 0 : index
    %c0_10 = arith.constant 0 : index
    %c0_11 = arith.constant 0 : index
    %5 = vector.load %arg2[%c0_8, %c0_9, %c0_10, %c0_11] : memref<1x32x32x4xf32, #tpu.memory_space<vmem>>, vector<1x32x32x4xf32>
    %6 = vector.shape_cast %5 : vector<1x32x32x4xf32> to vector<32x32x4xf32>
    %c1_12 = arith.constant 1 : index
    %c1_13 = arith.constant 1 : index
    %c4 = arith.constant 4 : index
    %7 = vector.load %arg10[%c1_12, %c1_13, %c4] : memref<34x34x8xf32, #tpu.memory_space<vmem>>, vector<32x32x4xf32>
    tpu.vector_store %arg10[%c1_12, %c1_13, %c4], %6 {strides = array<i32>} : memref<34x34x8xf32, #tpu.memory_space<vmem>>, vector<32x32x4xf32>,
    %c0_14 = arith.constant 0 : index
    %c0_15 = arith.constant 0 : index
    %c0_16 = arith.constant 0 : index
    %8 = vector.load %arg3[%c0_14, %c0_15, %c0_16] : memref<3x3x8xf32, #tpu.memory_space<vmem>>, vector<3x3x8xf32>
    %cst_17 = arith.constant 0.000000e+00 : f32
    %9 = vector.broadcast %cst_17 : f32 to vector<32x32x8xf32>
    %c0_18 = arith.constant 0 : index
    %c0_19 = arith.constant 0 : index
    %c0_20 = arith.constant 0 : index
    %10 = vector.load %arg10[%c0_18, %c0_19, %c0_20] : memref<34x34x8xf32, #tpu.memory_space<vmem>>, vector<32x32x8xf32>
    %11 = vector.extract_strided_slice %8 {offsets = [0, 0, 0], sizes = [1, 1, 8], strides = [1, 1, 1]} : vector<3x3x8xf32> to vector<1x1x8xf32>
    %12 = vector.shape_cast %11 : vector<1x1x8xf32> to vector<8xf32>
    %13 = vector.shape_cast %12 : vector<8xf32> to vector<1x1x8xf32>
    %14 = vector.broadcast %13 : vector<1x1x8xf32> to vector<32x32x8xf32>
    %15 = arith.mulf %10, %14 : vector<32x32x8xf32>
    %16 = arith.addf %9, %15 : vector<32x32x8xf32>
    %c0_21 = arith.constant 0 : index
    %c1_22 = arith.constant 1 : index
    %c0_23 = arith.constant 0 : index
    %17 = vector.load %arg10[%c0_21, %c1_22, %c0_23] : memref<34x34x8xf32, #tpu.memory_space<vmem>>, vector<32x32x8xf32>
    %18 = vector.extract_strided_slice %8 {offsets = [0, 1, 0], sizes = [1, 1, 8], strides = [1, 1, 1]} : vector<3x3x8xf32> to vector<1x1x8xf32>
    %19 = vector.shape_cast %18 : vector<1x1x8xf32> to vector<8xf32>
    %20 = vector.shape_cast %19 : vector<8xf32> to vector<1x1x8xf32>
    %21 = vector.broadcast %20 : vector<1x1x8xf32> to vector<32x32x8xf32>
    %22 = arith.mulf %17, %21 : vector<32x32x8xf32>
    %23 = arith.addf %16, %22 : vector<32x32x8xf32>
    %c0_24 = arith.constant 0 : index
    %c2 = arith.constant 2 : index
    %c0_25 = arith.constant 0 : index
    %24 = vector.load %arg10[%c0_24, %c2, %c0_25] : memref<34x34x8xf32, #tpu.memory_space<vmem>>, vector<32x32x8xf32>
    %25 = vector.extract_strided_slice %8 {offsets = [0, 2, 0], sizes = [1, 1, 8], strides = [1, 1, 1]} : vector<3x3x8xf32> to vector<1x1x8xf32>
    %26 = vector.shape_cast %25 : vector<1x1x8xf32> to vector<8xf32>
    %27 = vector.shape_cast %26 : vector<8xf32> to vector<1x1x8xf32>
    %28 = vector.broadcast %27 : vector<1x1x8xf32> to vector<32x32x8xf32>
    %29 = arith.mulf %24, %28 : vector<32x32x8xf32>
    %30 = arith.addf %23, %29 : vector<32x32x8xf32>
    %c1_26 = arith.constant 1 : index
    %c0_27 = arith.constant 0 : index
    %c0_28 = arith.constant 0 : index
    %31 = vector.load %arg10[%c1_26, %c0_27, %c0_28] : memref<34x34x8xf32, #tpu.memory_space<vmem>>, vector<32x32x8xf32>
    %32 = vector.extract_strided_slice %8 {offsets = [1, 0, 0], sizes = [1, 1, 8], strides = [1, 1, 1]} : vector<3x3x8xf32> to vector<1x1x8xf32>
    %33 = vector.shape_cast %32 : vector<1x1x8xf32> to vector<8xf32>
    %34 = vector.shape_cast %33 : vector<8xf32> to vector<1x1x8xf32>
    %35 = vector.broadcast %34 : vector<1x1x8xf32> to vector<32x32x8xf32>
    %36 = arith.mulf %31, %35 : vector<32x32x8xf32>
    %37 = arith.addf %30, %36 : vector<32x32x8xf32>
    %c1_29 = arith.constant 1 : index
    %c1_30 = arith.constant 1 : index
    %c0_31 = arith.constant 0 : index
    %38 = vector.load %arg10[%c1_29, %c1_30, %c0_31] : memref<34x34x8xf32, #tpu.memory_space<vmem>>, vector<32x32x8xf32>
    %39 = vector.extract_strided_slice %8 {offsets = [1, 1, 0], sizes = [1, 1, 8], strides = [1, 1, 1]} : vector<3x3x8xf32> to vector<1x1x8xf32>
    %40 = vector.shape_cast %39 : vector<1x1x8xf32> to vector<8xf32>
    %41 = vector.shape_cast %40 : vector<8xf32> to vector<1x1x8xf32>
    %42 = vector.broadcast %41 : vector<1x1x8xf32> to vector<32x32x8xf32>
    %43 = arith.mulf %38, %42 : vector<32x32x8xf32>
    %44 = arith.addf %37, %43 : vector<32x32x8xf32>
    %c1_32 = arith.constant 1 : index
    %c2_33 = arith.constant 2 : index
    %c0_34 = arith.constant 0 : index
    %45 = vector.load %arg10[%c1_32, %c2_33, %c0_34] : memref<34x34x8xf32, #tpu.memory_space<vmem>>, vector<32x32x8xf32>
    %46 = vector.extract_strided_slice %8 {offsets = [1, 2, 0], sizes = [1, 1, 8], strides = [1, 1, 1]} : vector<3x3x8xf32> to vector<1x1x8xf32>
    %47 = vector.shape_cast %46 : vector<1x1x8xf32> to vector<8xf32>
    %48 = vector.shape_cast %47 : vector<8xf32> to vector<1x1x8xf32>
    %49 = vector.broadcast %48 : vector<1x1x8xf32> to vector<32x32x8xf32>
    %50 = arith.mulf %45, %49 : vector<32x32x8xf32>
    %51 = arith.addf %44, %50 : vector<32x32x8xf32>
    %c2_35 = arith.constant 2 : index
    %c0_36 = arith.constant 0 : index
    %c0_37 = arith.constant 0 : index
    %52 = vector.load %arg10[%c2_35, %c0_36, %c0_37] : memref<34x34x8xf32, #tpu.memory_space<vmem>>, vector<32x32x8xf32>
    %53 = vector.extract_strided_slice %8 {offsets = [2, 0, 0], sizes = [1, 1, 8], strides = [1, 1, 1]} : vector<3x3x8xf32> to vector<1x1x8xf32>
    %54 = vector.shape_cast %53 : vector<1x1x8xf32> to vector<8xf32>
    %55 = vector.shape_cast %54 : vector<8xf32> to vector<1x1x8xf32>
    %56 = vector.broadcast %55 : vector<1x1x8xf32> to vector<32x32x8xf32>
    %57 = arith.mulf %52, %56 : vector<32x32x8xf32>
    %58 = arith.addf %51, %57 : vector<32x32x8xf32>
    %c2_38 = arith.constant 2 : index
    %c1_39 = arith.constant 1 : index
    %c0_40 = arith.constant 0 : index
    %59 = vector.load %arg10[%c2_38, %c1_39, %c0_40] : memref<34x34x8xf32, #tpu.memory_space<vmem>>, vector<32x32x8xf32>
    %60 = vector.extract_strided_slice %8 {offsets = [2, 1, 0], sizes = [1, 1, 8], strides = [1, 1, 1]} : vector<3x3x8xf32> to vector<1x1x8xf32>
    %61 = vector.shape_cast %60 : vector<1x1x8xf32> to vector<8xf32>
    %62 = vector.shape_cast %61 : vector<8xf32> to vector<1x1x8xf32>
    %63 = vector.broadcast %62 : vector<1x1x8xf32> to vector<32x32x8xf32>
    %64 = arith.mulf %59, %63 : vector<32x32x8xf32>
    %65 = arith.addf %58, %64 : vector<32x32x8xf32>
    %c2_41 = arith.constant 2 : index
    %c2_42 = arith.constant 2 : index
    %c0_43 = arith.constant 0 : index
    %66 = vector.load %arg10[%c2_41, %c2_42, %c0_43] : memref<34x34x8xf32, #tpu.memory_space<vmem>>, vector<32x32x8xf32>
    %67 = vector.extract_strided_slice %8 {offsets = [2, 2, 0], sizes = [1, 1, 8], strides = [1, 1, 1]} : vector<3x3x8xf32> to vector<1x1x8xf32>
    %68 = vector.shape_cast %67 : vector<1x1x8xf32> to vector<8xf32>
    %69 = vector.shape_cast %68 : vector<8xf32> to vector<1x1x8xf32>
    %70 = vector.broadcast %69 : vector<1x1x8xf32> to vector<32x32x8xf32>
    %71 = arith.mulf %66, %70 : vector<32x32x8xf32>
    %72 = arith.addf %65, %71 : vector<32x32x8xf32>
    %c0_44 = arith.constant 0 : index
    %c0_45 = arith.constant 0 : index
    %73 = vector.load %arg4[%c0_44, %c0_45] : memref<1x8xf32, #tpu.memory_space<vmem>>, vector<1x8xf32>
    %74 = vector.shape_cast %73 : vector<1x8xf32> to vector<8xf32>
    %75 = vector.shape_cast %74 : vector<8xf32> to vector<1x1x8xf32>
    %76 = vector.broadcast %75 : vector<1x1x8xf32> to vector<32x32x8xf32>
    %77 = arith.addf %72, %76 : vector<32x32x8xf32>
    %78 = vector.shape_cast %77 : vector<32x32x8xf32> to vector<1024x8xf32>
    %c0_46 = arith.constant 0 : index
    %c0_47 = arith.constant 0 : index
    %79 = vector.load %arg5[%c0_46, %c0_47] : memref<8x4xf32, #tpu.memory_space<vmem>>, vector<8x4xf32>
    %cst_48 = arith.constant dense<0.000000e+00> : vector<1024x4xf32>
    %80 = tpu.matmul %78, %79, %cst_48 {dimension_numbers = #tpu.dot_dimension_numbers<[1], [0], [0], [1], [0, 0, 1, 1], [], []>} : vector<1024x8xf32>, vector<8x4xf32>, vector<1024x4xf32> -> vector<1024x4xf32>
    %c0_49 = arith.constant 0 : index
    %c0_50 = arith.constant 0 : index
    %81 = vector.load %arg6[%c0_49, %c0_50] : memref<1x4xf32, #tpu.memory_space<vmem>>, vector<1x4xf32>
    %82 = vector.broadcast %81 : vector<1x4xf32> to vector<1024x4xf32>
    %83 = arith.addf %80, %82 : vector<1024x4xf32>
    %c0_51 = arith.constant 0 : index
    %c0_52 = arith.constant 0 : index
    %84 = vector.load %arg7[%c0_51, %c0_52] : memref<1x4xf32, #tpu.memory_space<vmem>>, vector<1x4xf32>
    %85 = vector.broadcast %84 : vector<1x4xf32> to vector<1024x4xf32>
    %86 = arith.mulf %83, %85 : vector<1024x4xf32>
    %c0_53 = arith.constant 0 : index
    %c0_54 = arith.constant 0 : index
    %87 = vector.load %arg8[%c0_53, %c0_54] : memref<1x4xf32, #tpu.memory_space<vmem>>, vector<1x4xf32>
    %88 = vector.broadcast %87 : vector<1x4xf32> to vector<1024x4xf32>
    %89 = arith.addf %86, %88 : vector<1024x4xf32>
    %cst_55 = arith.constant 0.000000e+00 : f32
    %90 = vector.broadcast %cst_55 : f32 to vector<1024x4xf32>
    %91 = arith.maximumf %89, %90 : vector<1024x4xf32>
    %92 = vector.shape_cast %91 : vector<1024x4xf32> to vector<32x32x4xf32>
    %c0_56 = arith.constant 0 : index
    %c0_57 = arith.constant 0 : index
    %c0_58 = arith.constant 0 : index
    %c0_59 = arith.constant 0 : index
    %93 = vector.load %arg9[%c0_56, %c0_57, %c0_58, %c0_59] : memref<1x32x32x4xf32, #tpu.memory_space<vmem>>, vector<1x32x32x4xf32>
    %94 = vector.shape_cast %93 : vector<1x32x32x4xf32> to vector<32x32x4xf32>
    %95 = vector.shape_cast %92 : vector<32x32x4xf32> to vector<1x32x32x4xf32>
    tpu.vector_store %arg9[%c0_56, %c0_57, %c0_58, %c0_59], %95 {strides = array<i32>} : memref<1x32x32x4xf32, #tpu.memory_space<vmem>>, vector<1x32x32x4xf32>,
    return
  }
  func.func @transform_0(%arg0: i32) -> (i32, i32, i32, i32) {
    %c0_i32 = arith.constant 0 : i32
    %c0_i32_0 = arith.constant 0 : i32
    %c0_i32_1 = arith.constant 0 : i32
    %c0_i32_2 = arith.constant 0 : i32
    return %arg0, %c0_i32, %c0_i32_0, %c0_i32_1 : i32, i32, i32, i32
  }
  func.func @transform_1(%arg0: i32) -> (i32, i32, i32, i32) {
    %c0_i32 = arith.constant 0 : i32
    %c0_i32_0 = arith.constant 0 : i32
    %c0_i32_1 = arith.constant 0 : i32
    %c0_i32_2 = arith.constant 0 : i32
    return %arg0, %c0_i32, %c0_i32_0, %c0_i32_1 : i32, i32, i32, i32
  }
  func.func @transform_2(%arg0: i32) -> (i32, i32, i32) {
    %c0_i32 = arith.constant 0 : i32
    %c0_i32_0 = arith.constant 0 : i32
    %c0_i32_1 = arith.constant 0 : i32
    %c0_i32_2 = arith.constant 0 : i32
    return %c0_i32, %c0_i32_0, %c0_i32_1 : i32, i32, i32
  }
  func.func @transform_3(%arg0: i32) -> (i32, i32) {
    %c0_i32 = arith.constant 0 : i32
    %c0_i32_0 = arith.constant 0 : i32
    %c0_i32_1 = arith.constant 0 : i32
    return %c0_i32, %c0_i32_0 : i32, i32
  }
  func.func @transform_4(%arg0: i32) -> (i32, i32) {
    %c0_i32 = arith.constant 0 : i32
    %c0_i32_0 = arith.constant 0 : i32
    %c0_i32_1 = arith.constant 0 : i32
    return %c0_i32, %c0_i32_0 : i32, i32
  }
  func.func @transform_5(%arg0: i32) -> (i32, i32) {
    %c0_i32 = arith.constant 0 : i32
    %c0_i32_0 = arith.constant 0 : i32
    %c0_i32_1 = arith.constant 0 : i32
    return %c0_i32, %c0_i32_0 : i32, i32
  }
  func.func @transform_6(%arg0: i32) -> (i32, i32) {
    %c0_i32 = arith.constant 0 : i32
    %c0_i32_0 = arith.constant 0 : i32
    %c0_i32_1 = arith.constant 0 : i32
    return %c0_i32, %c0_i32_0 : i32, i32
  }
  func.func @transform_7(%arg0: i32) -> (i32, i32) {
    %c0_i32 = arith.constant 0 : i32
    %c0_i32_0 = arith.constant 0 : i32
    %c0_i32_1 = arith.constant 0 : i32
    return %c0_i32, %c0_i32_0 : i32, i32
  }
  func.func @transform_8(%arg0: i32) -> (i32, i32, i32, i32) {
    %c0_i32 = arith.constant 0 : i32
    %c0_i32_0 = arith.constant 0 : i32
    %c0_i32_1 = arith.constant 0 : i32
    %c0_i32_2 = arith.constant 0 : i32
    return %arg0, %c0_i32, %c0_i32_0, %c0_i32_1 : i32, i32, i32, i32
  }
}

</mosaic_0001>

<llo_original>
// kernel: tile.9
$region0: #{tile.9}
  %s0 = inlined_call_operand.vmem [shape: f32[4,4], index: 0, kind: input, shape index: {}]
  %s1 = inlined_call_operand.vmem [shape: f32[1,16], index: 1, kind: output, shape index: {}]
  $region1: #{tile.9} parent=0
    #allocation0 [shape = 'u8[4096]{0}', space=vmem, size = 0x1000, scoped, tag = 'scoped mem for output reshape']
    #allocation1 [shape = 'u8[4096]{0}', space=vmem, size = 0x1000, scoped, tag = 'scoped mem for input reshape']
    %s3 = sshllo.u32 0, 4
    %v4 = vld [vmem:[%s0] sm:%s3]
    %5 = vst [vmem:[#allocation1] sm:%s3] %v4
    %v6 = vld [vmem:[#allocation1] sm:$0x1]
    %vm7 = vcmask 31744
    %8 = vst.msk [vmem:[#allocation0] sm:$0x1] %vm7, %v6
    %s9 = scalar_lea.vmem [#allocation1], 3
    %v10 = vld [vmem:[%s9] sm:$0x1]
    %11 = vrot.lane.b32.xlu0 %v10, 12
    %v12 = vpop.permute.xlu0 %11
    %vm13 = vcmask 130144
    %14 = vst.msk [vmem:[#allocation0] sm:$0x1] %vm13, %v12
    %s15 = scalar_lea.vmem [#allocation1], 2
    %v16 = vld [vmem:[%s15] sm:$0x1]
    %17 = vrot.lane.b32.xlu0 %v16, 8
    %v18 = vpop.permute.xlu0 %17
    %vm19 = vcmask 97344
    %20 = vst.msk [vmem:[#allocation0] sm:$0x1] %vm19, %v18
    %s21 = scalar_lea.vmem [#allocation1], 1
    %v22 = vld [vmem:[%s21] sm:$0x1]
    %23 = vrot.lane.b32.xlu0 %v22, 4
    %v24 = vpop.permute.xlu0 %23
    %vm25 = vcmask 64544
    %26 = vst.msk [vmem:[#allocation0] sm:$0x1] %vm25, %v24
    %s28 = sshllo.u32 0, 1
    %v30 = vld [vmem:[#allocation0] sm:%s28]
    %s31 = sshllo.u32 0, 1
    %32 = vst [vmem:[%s1] sm:%s31] %v30

// kernel: tile.8
$region0: #{tile.8}
  #allocation2 [shape = 's32[1]{0}', space=sflag, size = 0x4, scoped, tag = 'scoped memory for tile.8']
  %s0 = inlined_call_operand.hbm [shape: f32[4], index: 0, kind: input, shape index: {}]
  %s1 = inlined_call_operand.vmem [shape: f32[4,4], index: 1, kind: output, shape index: {}]
  $region1: #{tile.8} parent=0
    #allocation0 [shape = 'u8[512]{0}', space=vmem, size = 0x400, scoped, tag = 'operand span for operand 0']
    #allocation1 [shape = 's32[1]{0}', space=sflag, size = 0x4, scoped, tag = 'scoped memory for tile.8']
    %2 = vsyncpa [#allocation1], 0
    // Predicated region
    $region2: #{tile.8} parent=1 // pred_check
      _
    $region3: #{tile.8} parent=1 // pred_check_branch
      %4 = sbr.rel (0) target = $region5
    $region4: #{tile.8} parent=1 // pred_region
      %s6 = ssub.s32 16, 16
      %7 = vsyncadd [#allocation1], %s6
      %s9 = sshll.u32 [#allocation0], 4
      %s10 = int_to_ptr.vmem [resolvable:$true] %s9
      %12 = dma.hbm_to_vmem [thread:$0]  %s0, 16, %s10, [#allocation1]
    $region5: #{tile.8} parent=1 // pred_fallthru
      _
    // Predicated region
    $region6: #{tile.8} parent=1 // pred_check
      _
    $region7: #{tile.8} parent=1 // pred_check_branch
      %14 = sbr.rel (0) target = $region9
    $region8: #{tile.8} parent=1 // pred_region
      %15 = dma.done [#allocation1], 16
    $region9: #{tile.8} parent=1 // pred_fallthru
      _
    %v16 = vld [vmem:[#allocation0] ss:$0 sm:$0xff]
    %17 = vst [vmem:[%s1] sm:$0xf] %v16
    %18 = vsyncpa [#allocation1], 1

// kernel: efficient_upsample_forward.2
$region0: #{efficient_upsample_forward.2}
  #allocation0 [shape = 'u32[]', space=smem, size = 0x4, offset = 0x4, fixed_abs, tag = 'smem constant byte address 0x4 - core index']
  #allocation1 [shape = 'u32[144,128]{1,0:T(1,128)}', space=vmem, size = 0x12000, scoped, tag = 'internal scratch']
  %s0 = inlined_call_operand.vmem [shape: f32[1024,8], index: 0, kind: input, shape index: {}]
  %s1 = inlined_call_operand.vmem [shape: f32[8,16], index: 1, kind: input, shape index: {}]
  %s2 = inlined_call_operand.vmem [shape: f32[1,16], index: 2, kind: input, shape index: {}]
  %s3 = inlined_call_operand.vmem [shape: f32[1024,16], index: 3, kind: output, shape index: {}]
  %s4 = sld [smem:[#allocation0]]
  $region45: #{efficient_upsample_forward.2} parent=0
    _
  %s6 = ssub.s32 1, %s4
  %s7 = scalar_select 0, %s6, %s4
  loop: start=0, step=1, limit=4
  $region2: #{efficient_upsample_forward.2} parent=0 // loop_pre_header
    _
  $region3: #{efficient_upsample_forward.2} parent=0 // loop_header
    %s9 = sphi 0, %s13
    %p10 = scmp.ge.s32.totalorder %s9, 4
    %s19 = sphi 0, %s21
    %s22 = sphi 0, %s19
    %s23 = sphi 0, %s22
    %s39 = sphi 0, %s23
    %s43 = sphi 0, %s43
    %s45 = sphi 0, %s43
    %s46 = sphi 0, %s45
    %s60 = sphi 0, %s46
    %s64 = sphi 0, %s64
    %s66 = sphi 0, %s64
    %s67 = sphi 0, %s66
    %s81 = sphi 0, %s67
    %s87 = sphi 0, %s89
    %s90 = sphi 0, %s87
    %s91 = sphi 0, %s90
    %s107 = sphi 0, %s91
  $region4: #{efficient_upsample_forward.2} parent=0 // loop_header_branch
    %12 = sbr.rel (%p10) target = $region8
  $region5: #{efficient_upsample_forward.2} parent=0 // loop_body
    %s14 = ssub.s32 %s9, 1
    %s15 = ssub.s32 %s9, 2
    %s16 = sadd.s32 %s9, 1
    %s17 = ssub.s32 %s9, %s16
    %p18 = scmp.eq.s32.totalorder %s17, 0
    %s20 = sadd.s32 %s19, 1
    %s21 = scalar_select %p18, %s19, %s20
    %p24 = pneg %p18
    %p25 = scmp.eq.s32.totalorder %s9, 1
    %p26 = por %p24, %p25
    %p27 = scmp.ne.s32.totalorder %s19, %s22
    %p28 = scmp.eq.s32.totalorder %s9, 0
    %p29 = por %p27, %p28
    %p30 = scmp.ne.s32.totalorder %s19, %s22
    %p31 = scmp.eq.s32.totalorder %s14, 1
    %p32 = por %p30, %p31
    %p33 = scmp.ne.s32.totalorder %s22, %s23
    %p34 = scmp.eq.s32.totalorder %s14, 0
    %p35 = por %p33, %p34
    %p36 = scmp.ne.s32.totalorder %s22, %s23
    %p37 = scmp.eq.s32.totalorder %s15, 1
    %p38 = por %p36, %p37
    %p40 = scmp.ne.s32.totalorder %s23, %s39
    %p41 = scmp.eq.s32.totalorder %s15, 0
    %p42 = por %p40, %p41
    %s44 = sadd.s32 %s43, 1
    %p47 = scmp.eq.s32.totalorder %s9, 1
    %p48 = scmp.ne.s32.totalorder %s43, %s45
    %p49 = scmp.eq.s32.totalorder %s9, 0
    %p50 = por %p48, %p49
    %p51 = scmp.ne.s32.totalorder %s43, %s45
    %p52 = scmp.eq.s32.totalorder %s14, 1
    %p53 = por %p51, %p52
    %p54 = scmp.ne.s32.totalorder %s45, %s46
    %p55 = scmp.eq.s32.totalorder %s14, 0
    %p56 = por %p54, %p55
    %p57 = scmp.ne.s32.totalorder %s45, %s46
    %p58 = scmp.eq.s32.totalorder %s15, 1
    %p59 = por %p57, %p58
    %p61 = scmp.ne.s32.totalorder %s46, %s60
    %p62 = scmp.eq.s32.totalorder %s15, 0
    %p63 = por %p61, %p62
    %s65 = sadd.s32 %s64, 1
    %p68 = scmp.eq.s32.totalorder %s9, 1
    %p69 = scmp.ne.s32.totalorder %s64, %s66
    %p70 = scmp.eq.s32.totalorder %s9, 0
    %p71 = por %p69, %p70
    %p72 = scmp.ne.s32.totalorder %s64, %s66
    %p73 = scmp.eq.s32.totalorder %s14, 1
    %p74 = por %p72, %p73
    %p75 = scmp.ne.s32.totalorder %s66, %s67
    %p76 = scmp.eq.s32.totalorder %s14, 0
    %p77 = por %p75, %p76
    %p78 = scmp.ne.s32.totalorder %s66, %s67
    %p79 = scmp.eq.s32.totalorder %s15, 1
    %p80 = por %p78, %p79
    %p82 = scmp.ne.s32.totalorder %s67, %s81
    %p83 = scmp.eq.s32.totalorder %s15, 0
    %p84 = por %p82, %p83
    %s85 = ssub.s32 %s9, %s16
    %p86 = scmp.eq.s32.totalorder %s85, 0
    %s88 = sadd.s32 %s87, 1
    %s89 = scalar_select %p86, %s87, %s88
    %p92 = pneg %p86
    %p93 = scmp.eq.s32.totalorder %s9, 1
    %p94 = por %p92, %p93
    %p95 = scmp.ne.s32.totalorder %s87, %s90
    %p96 = scmp.eq.s32.totalorder %s9, 0
    %p97 = por %p95, %p96
    %p98 = scmp.ne.s32.totalorder %s87, %s90
    %p99 = scmp.eq.s32.totalorder %s14, 1
    %p100 = por %p98, %p99
    %p101 = scmp.ne.s32.totalorder %s90, %s91
    %p102 = scmp.eq.s32.totalorder %s14, 0
    %p103 = por %p101, %p102
    %p104 = scmp.ne.s32.totalorder %s90, %s91
    %p105 = scmp.eq.s32.totalorder %s15, 1
    %p106 = por %p104, %p105
    %p108 = scmp.ne.s32.totalorder %s91, %s107
    %p109 = scmp.eq.s32.totalorder %s15, 0
    %p110 = por %p108, %p109
    %p111 = scmp.le.s32.totalorder 1, %s9
    %p112 = scmp.lt.s32.totalorder %s9, 3
    %p113 = pnand %p111, %p112
    %p114 = pneg %p113
    // Predicated region
    $region9: #{efficient_upsample_forward.2} parent=5 // pred_check
      _
    $region10: #{efficient_upsample_forward.2} parent=5 // pred_check_branch
      %116 = sbr.rel (%p113) target = $region12
    $region11: #{efficient_upsample_forward.2} parent=5 // pred_region
      %s117 = ssub.s32 %s9, 1
      // Predicated region
      $region13: #{efficient_upsample_forward.2} parent=11 // pred_check
        %p118 = pneg %p56
      $region14: #{efficient_upsample_forward.2} parent=11 // pred_check_branch
        %120 = sbr.rel (%p118) target = $region16
      $region15: #{efficient_upsample_forward.2} parent=11 // pred_region
        _
      $region16: #{efficient_upsample_forward.2} parent=11 // pred_fallthru
        _
      // Predicated region
      $region17: #{efficient_upsample_forward.2} parent=11 // pred_check
        %p121 = pneg %p77
      $region18: #{efficient_upsample_forward.2} parent=11 // pred_check_branch
        %123 = sbr.rel (%p121) target = $region20
      $region19: #{efficient_upsample_forward.2} parent=11 // pred_region
        _
      $region20: #{efficient_upsample_forward.2} parent=11 // pred_fallthru
        _
    $region12: #{efficient_upsample_forward.2} parent=5 // pred_fallthru
      _
    %p124 = scmp.lt.s32.totalorder %s9, 2
    // Predicated region
    $region21: #{efficient_upsample_forward.2} parent=5 // pred_check
      %p125 = pneg %p124
    $region22: #{efficient_upsample_forward.2} parent=5 // pred_check_branch
      %127 = sbr.rel (%p125) target = $region24
    $region23: #{efficient_upsample_forward.2} parent=5 // pred_region
      // Predicated region
      $region25: #{efficient_upsample_forward.2} parent=23 // pred_check
        %p128 = pneg %p29
      $region26: #{efficient_upsample_forward.2} parent=23 // pred_check_branch
        %130 = sbr.rel (%p128) target = $region28
      $region27: #{efficient_upsample_forward.2} parent=23 // pred_region
        %s131 = smul.u32 64, %s9
        %p132 = scmp.lt.s32.totalorder %s131, 127
        %s133 = scalar_select %p132, %s131, 127
        %s134 = smul.addr %s133, 8
        %s135 = scalar_lea.vmem %s0, %s134
        %s136 = smul.u32 64, %s9
      $region28: #{efficient_upsample_forward.2} parent=23 // pred_fallthru
        _
    $region24: #{efficient_upsample_forward.2} parent=5 // pred_fallthru
      _
    %p137 = scmp.le.s32.totalorder 1, %s9
    %p138 = scmp.lt.s32.totalorder %s9, 3
    %p139 = pnand %p137, %p138
    %p140 = pneg %p139
    // Predicated region
    $region29: #{efficient_upsample_forward.2} parent=5 // pred_check
      _
    $region30: #{efficient_upsample_forward.2} parent=5 // pred_check_branch
      %142 = sbr.rel (%p139) target = $region32
    $region31: #{efficient_upsample_forward.2} parent=5 // pred_region
      %s143 = ssub.s32 %s9, 1
      %s144 = smul.u32 64, %s14
      %p145 = scmp.lt.s32.totalorder %s144, 127
      %s146 = scalar_select %p145, %s144, 127
      %s147 = smul.addr %s146, 8
      %s148 = scalar_lea.vmem %s0, %s147
      %p149 = pneg %p35
      %p150 = pneg %p32
      %p151 = pneg %p56
      %p152 = pneg %p53
      %p153 = pneg %p77
      %p154 = pneg %p74
      %p155 = pneg %p103
      %p156 = pneg %p100
      %s157 = smul.u32 64, %s14
      %p158 = scmp.lt.s32.totalorder %s157, 127
      %s159 = scalar_select %p158, %s157, 127
      %s160 = smul.addr %s159, 8
      %s161 = scalar_lea.vmem %s3, %s160
      %s162 = smul.u32 64, %s14
      %p163 = scmp.lt.s32.totalorder %s162, 127
      %s164 = scalar_select %p163, %s162, 127
      %s165 = smul.addr %s164, 8
      %s166 = scalar_lea.vmem %s0, %s165
      %s167 = smul.u32 64, %s14
      %s168 = smul.u32 64, %s14
      %p169 = scmp.lt.s32.totalorder %s168, 127
      %s170 = scalar_select %p169, %s168, 127
      %s171 = smul.addr %s170, 8
      %s172 = scalar_lea.vmem %s3, %s171
      %s173 = smul.u32 64, %s14
      %v174 = vld [vmem:[%s166] sm:$0xff]
      %v175 = vld [vmem:[%s166 + $0x8] sm:$0xff]
      %v176 = vld [vmem:[%s166 + $0x10] sm:$0xff]
      %v177 = vld [vmem:[%s166 + $0x18] sm:$0xff]
      %v178 = vld [vmem:[%s166 + $0x20] sm:$0xff]
      %v179 = vld [vmem:[%s166 + $0x28] sm:$0xff]
      %v180 = vld [vmem:[%s166 + $0x30] sm:$0xff]
      %v181 = vld [vmem:[%s166 + $0x38] sm:$0xff]
      %v182 = vld [vmem:[%s166 + $0x40] sm:$0xff]
      %v183 = vld [vmem:[%s166 + $0x48] sm:$0xff]
      %v184 = vld [vmem:[%s166 + $0x50] sm:$0xff]
      %v185 = vld [vmem:[%s166 + $0x58] sm:$0xff]
      %v186 = vld [vmem:[%s166 + $0x60] sm:$0xff]
      %v187 = vld [vmem:[%s166 + $0x68] sm:$0xff]
      %v188 = vld [vmem:[%s166 + $0x70] sm:$0xff]
      %v189 = vld [vmem:[%s166 + $0x78] sm:$0xff]
      %v190 = vld [vmem:[%s166 + $0x80] sm:$0xff]
      %v191 = vld [vmem:[%s166 + $0x88] sm:$0xff]
      %v192 = vld [vmem:[%s166 + $0x90] sm:$0xff]
      %v193 = vld [vmem:[%s166 + $0x98] sm:$0xff]
      %v194 = vld [vmem:[%s166 + $0xa0] sm:$0xff]
      %v195 = vld [vmem:[%s166 + $0xa8] sm:$0xff]
      %v196 = vld [vmem:[%s166 + $0xb0] sm:$0xff]
      %v197 = vld [vmem:[%s166 + $0xb8] sm:$0xff]
      %v198 = vld [vmem:[%s166 + $0xc0] sm:$0xff]
      %v199 = vld [vmem:[%s166 + $0xc8] sm:$0xff]
      %v200 = vld [vmem:[%s166 + $0xd0] sm:$0xff]
      %v201 = vld [vmem:[%s166 + $0xd8] sm:$0xff]
      %v202 = vld [vmem:[%s166 + $0xe0] sm:$0xff]
      %v203 = vld [vmem:[%s166 + $0xe8] sm:$0xff]
      %v204 = vld [vmem:[%s166 + $0xf0] sm:$0xff]
      %v205 = vld [vmem:[%s166 + $0xf8] sm:$0xff]
      %v206 = vld [vmem:[%s166 + $0x100] sm:$0xff]
      %v207 = vld [vmem:[%s166 + $0x108] sm:$0xff]
      %v208 = vld [vmem:[%s166 + $0x110] sm:$0xff]
      %v209 = vld [vmem:[%s166 + $0x118] sm:$0xff]
      %v210 = vld [vmem:[%s166 + $0x120] sm:$0xff]
      %v211 = vld [vmem:[%s166 + $0x128] sm:$0xff]
      %v212 = vld [vmem:[%s166 + $0x130] sm:$0xff]
      %v213 = vld [vmem:[%s166 + $0x138] sm:$0xff]
      %v214 = vld [vmem:[%s166 + $0x140] sm:$0xff]
      %v215 = vld [vmem:[%s166 + $0x148] sm:$0xff]
      %v216 = vld [vmem:[%s166 + $0x150] sm:$0xff]
      %v217 = vld [vmem:[%s166 + $0x158] sm:$0xff]
      %v218 = vld [vmem:[%s166 + $0x160] sm:$0xff]
      %v219 = vld [vmem:[%s166 + $0x168] sm:$0xff]
      %v220 = vld [vmem:[%s166 + $0x170] sm:$0xff]
      %v221 = vld [vmem:[%s166 + $0x178] sm:$0xff]
      %v222 = vld [vmem:[%s166 + $0x180] sm:$0xff]
      %v223 = vld [vmem:[%s166 + $0x188] sm:$0xff]
      %v224 = vld [vmem:[%s166 + $0x190] sm:$0xff]
      %v225 = vld [vmem:[%s166 + $0x198] sm:$0xff]
      %v226 = vld [vmem:[%s166 + $0x1a0] sm:$0xff]
      %v227 = vld [vmem:[%s166 + $0x1a8] sm:$0xff]
      %v228 = vld [vmem:[%s166 + $0x1b0] sm:$0xff]
      %v229 = vld [vmem:[%s166 + $0x1b8] sm:$0xff]
      %v230 = vld [vmem:[%s166 + $0x1c0] sm:$0xff]
      %v231 = vld [vmem:[%s166 + $0x1c8] sm:$0xff]
      %v232 = vld [vmem:[%s166 + $0x1d0] sm:$0xff]
      %v233 = vld [vmem:[%s166 + $0x1d8] sm:$0xff]
      %v234 = vld [vmem:[%s166 + $0x1e0] sm:$0xff]
      %v235 = vld [vmem:[%s166 + $0x1e8] sm:$0xff]
      %v236 = vld [vmem:[%s166 + $0x1f0] sm:$0xff]
      %v237 = vld [vmem:[%s166 + $0x1f8] sm:$0xff]
      %v238 = vld [vmem:[%s1] sm:$0xff]
      %v239 = vld [vmem:[%s2] sm:$0x1]
      %v241 = vlaneseq
      %v242 = vshrl.u32 %v241, 7
      %v243 = vsub.s32 0, %v242
      %v244 = vrot.slane %v239, %v243
      %vm246 = vcmask 64512
      %v248 = vsel %vm246, %v174, 0
      %v251 = vsel %vm246, %v175, 0
      %v254 = vsel %vm246, %v176, 0
      %v257 = vsel %vm246, %v177, 0
      %v260 = vsel %vm246, %v178, 0
      %v263 = vsel %vm246, %v179, 0
      %v266 = vsel %vm246, %v180, 0
      %v269 = vsel %vm246, %v181, 0
      %v272 = vsel %vm246, %v182, 0
      %v275 = vsel %vm246, %v183, 0
      %v278 = vsel %vm246, %v184, 0
      %v281 = vsel %vm246, %v185, 0
      %v284 = vsel %vm246, %v186, 0
      %v287 = vsel %vm246, %v187, 0
      %v290 = vsel %vm246, %v188, 0
      %v293 = vsel %vm246, %v189, 0
      %v296 = vsel %vm246, %v190, 0
      %v299 = vsel %vm246, %v191, 0
      %v302 = vsel %vm246, %v192, 0
      %v305 = vsel %vm246, %v193, 0
      %v308 = vsel %vm246, %v194, 0
      %v311 = vsel %vm246, %v195, 0
      %v314 = vsel %vm246, %v196, 0
      %v317 = vsel %vm246, %v197, 0
      %v320 = vsel %vm246, %v198, 0
      %v323 = vsel %vm246, %v199, 0
      %v326 = vsel %vm246, %v200, 0
      %v329 = vsel %vm246, %v201, 0
      %v332 = vsel %vm246, %v202, 0
      %v335 = vsel %vm246, %v203, 0
      %v338 = vsel %vm246, %v204, 0
      %v341 = vsel %vm246, %v205, 0
      %v344 = vsel %vm246, %v206, 0
      %v347 = vsel %vm246, %v207, 0
      %v350 = vsel %vm246, %v208, 0
      %v353 = vsel %vm246, %v209, 0
      %v356 = vsel %vm246, %v210, 0
      %v359 = vsel %vm246, %v211, 0
      %v362 = vsel %vm246, %v212, 0
      %v365 = vsel %vm246, %v213, 0
      %v368 = vsel %vm246, %v214, 0
      %v371 = vsel %vm246, %v215, 0
      %v374 = vsel %vm246, %v216, 0
      %v377 = vsel %vm246, %v217, 0
      %v380 = vsel %vm246, %v218, 0
      %v383 = vsel %vm246, %v219, 0
      %v386 = vsel %vm246, %v220, 0
      %v389 = vsel %vm246, %v221, 0
      %v392 = vsel %vm246, %v222, 0
      %v395 = vsel %vm246, %v223, 0
      %v398 = vsel %vm246, %v224, 0
      %v401 = vsel %vm246, %v225, 0
      %v404 = vsel %vm246, %v226, 0
      %v407 = vsel %vm246, %v227, 0
      %v410 = vsel %vm246, %v228, 0
      %v413 = vsel %vm246, %v229, 0
      %v416 = vsel %vm246, %v230, 0
      %v419 = vsel %vm246, %v231, 0
      %v422 = vsel %vm246, %v232, 0
      %v425 = vsel %vm246, %v233, 0
      %v428 = vsel %vm246, %v234, 0
      %v431 = vsel %vm246, %v235, 0
      %v434 = vsel %vm246, %v236, 0
      %v437 = vsel %vm246, %v237, 0
      %439 = vmatprep.subr.mxu0 0.0
      %440 = vmatpush1.msra.mxu0 %v238
      %441 = vmatprep.subr.mxu0 0.0
      %442 = vmatpush1.msra.mxu0 0.0
      %443 = vmatprep.subr.mxu0 0.0
      %444 = vmatpush1.msra.mxu0 0.0
      %445 = vmatprep.subr.mxu0 0.0
      %446 = vmatpush1.msra.mxu0 0.0
      %447 = vmatprep.subr.mxu0 0.0
      %448 = vmatpush1.msra.mxu0 0.0
      %449 = vmatprep.subr.mxu0 0.0
      %450 = vmatpush1.msra.mxu0 0.0
      %451 = vmatprep.subr.mxu0 0.0
      %452 = vmatpush1.msra.mxu0 0.0
      %453 = vmatprep.subr.mxu0 0.0
      %454 = vmatpush1.msra.mxu0 0.0
      %455 = vmatprep.subr.mxu0 0.0
      %456 = vmatpush1.msra.mxu0 0.0
      %457 = vmatprep.subr.mxu0 0.0
      %458 = vmatpush1.msra.mxu0 0.0
      %459 = vmatprep.subr.mxu0 0.0
      %460 = vmatpush1.msra.mxu0 0.0
      %461 = vmatprep.subr.mxu0 0.0
      %462 = vmatpush1.msra.mxu0 0.0
      %463 = vmatprep.subr.mxu0 0.0
      %464 = vmatpush1.msra.mxu0 0.0
      %465 = vmatprep.subr.mxu0 0.0
      %466 = vmatpush1.msra.mxu0 0.0
      %467 = vmatprep.subr.mxu0 0.0
      %468 = vmatpush1.msra.mxu0 0.0
      %469 = vmatprep.subr.mxu0 0.0
      %470 = vmatpush1.msra.mxu0 0.0
      %471 = vmatprep.subr.mxu0 0.0
      %472 = vmatpush1.msra.mxu0 0.0
      %473 = vmatprep.subr.mxu0 0.0
      %474 = vmatpush1.msra.mxu0 0.0
      %475 = vmatprep.subr.mxu0 0.0
      %476 = vmatpush1.msra.mxu0 0.0
      %477 = vmatprep.subr.mxu0 0.0
      %478 = vmatpush1.msra.mxu0 0.0
      %479 = vmatprep.subr.mxu0 0.0
      %480 = vmatpush1.msra.mxu0 0.0
      %481 = vmatprep.subr.mxu0 0.0
      %482 = vmatpush1.msra.mxu0 0.0
      %483 = vmatprep.subr.mxu0 0.0
      %484 = vmatpush1.msra.mxu0 0.0
      %485 = vmatprep.subr.mxu0 0.0
      %486 = vmatpush1.msra.mxu0 0.0
      %487 = vmatprep.subr.mxu0 0.0
      %488 = vmatpush1.msra.mxu0 0.0
      %489 = vmatprep.subr.mxu0 0.0
      %490 = vmatpush1.msra.mxu0 0.0
      %491 = vmatprep.subr.mxu0 0.0
      %492 = vmatpush1.msra.mxu0 0.0
      %493 = vmatprep.subr.mxu0 0.0
      %494 = vmatpush1.msra.mxu0 0.0
      %495 = vmatprep.subr.mxu0 0.0
      %496 = vmatpush1.msra.mxu0 0.0
      %497 = vmatprep.subr.mxu0 0.0
      %498 = vmatpush1.msra.mxu0 0.0
      %499 = vmatprep.subr.mxu0 0.0
      %500 = vmatpush1.msra.mxu0 0.0
      %501 = vmatprep.subr.mxu0 0.0
      %502 = vmatpush1.msra.mxu0 0.0
      %503 = vmatprep.mubr.f32.mxu0 0.0
      %504 = vmatmul.mubr.f32.gmra.mrb[0].mxu0 %v248
      %v505 = vpop.f32.mrb[0].mxu0
      %v506 = vadd.f32 %v244, %v505
      %v507 = vpop.f32.mrb[0].mxu0
      %508 = vmatprep.mubr.f32.mxu0 0.0
      %509 = vmatmul.mubr.f32.gmra.mrb[0].mxu0 %v251
      %v510 = vpop.f32.mrb[0].mxu0
      %v511 = vadd.f32 %v244, %v510
      %v512 = vpop.f32.mrb[0].mxu0
      %513 = vmatprep.mubr.f32.mxu0 0.0
      %514 = vmatmul.mubr.f32.gmra.mrb[0].mxu0 %v254
      %v515 = vpop.f32.mrb[0].mxu0
      %v516 = vadd.f32 %v244, %v515
      %v517 = vpop.f32.mrb[0].mxu0
      %518 = vmatprep.mubr.f32.mxu0 0.0
      %519 = vmatmul.mubr.f32.gmra.mrb[0].mxu0 %v257
      %v520 = vpop.f32.mrb[0].mxu0
      %v521 = vadd.f32 %v244, %v520
      %v522 = vpop.f32.mrb[0].mxu0
      %523 = vmatprep.mubr.f32.mxu0 0.0
      %524 = vmatmul.mubr.f32.gmra.mrb[0].mxu0 %v260
      %v525 = vpop.f32.mrb[0].mxu0
      %v526 = vadd.f32 %v244, %v525
      %v527 = vpop.f32.mrb[0].mxu0
      %528 = vmatprep.mubr.f32.mxu0 0.0
      %529 = vmatmul.mubr.f32.gmra.mrb[0].mxu0 %v263
      %v530 = vpop.f32.mrb[0].mxu0
      %v531 = vadd.f32 %v244, %v530
      %v532 = vpop.f32.mrb[0].mxu0
      %533 = vmatprep.mubr.f32.mxu0 0.0
      %534 = vmatmul.mubr.f32.gmra.mrb[0].mxu0 %v266
      %v535 = vpop.f32.mrb[0].mxu0
      %v536 = vadd.f32 %v244, %v535
      %v537 = vpop.f32.mrb[0].mxu0
      %538 = vmatprep.mubr.f32.mxu0 0.0
      %539 = vmatmul.mubr.f32.gmra.mrb[0].mxu0 %v269
      %v540 = vpop.f32.mrb[0].mxu0
      %v541 = vadd.f32 %v244, %v540
      %v542 = vpop.f32.mrb[0].mxu0
      %543 = vmatprep.mubr.f32.mxu0 0.0
      %544 = vmatmul.mubr.f32.gmra.mrb[0].mxu0 %v272
      %v545 = vpop.f32.mrb[0].mxu0
      %v546 = vadd.f32 %v244, %v545
      %v547 = vpop.f32.mrb[0].mxu0
      %548 = vmatprep.mubr.f32.mxu0 0.0
      %549 = vmatmul.mubr.f32.gmra.mrb[0].mxu0 %v275
      %v550 = vpop.f32.mrb[0].mxu0
      %v551 = vadd.f32 %v244, %v550
      %v552 = vpop.f32.mrb[0].mxu0
      %553 = vmatprep.mubr.f32.mxu0 0.0
      %554 = vmatmul.mubr.f32.gmra.mrb[0].mxu0 %v278
      %v555 = vpop.f32.mrb[0].mxu0
      %v556 = vadd.f32 %v244, %v555
      %v557 = vpop.f32.mrb[0].mxu0
      %558 = vmatprep.mubr.f32.mxu0 0.0
      %559 = vmatmul.mubr.f32.gmra.mrb[0].mxu0 %v281
      %v560 = vpop.f32.mrb[0].mxu0
      %v561 = vadd.f32 %v244, %v560
      %v562 = vpop.f32.mrb[0].mxu0
      %563 = vmatprep.mubr.f32.mxu0 0.0
      %564 = vmatmul.mubr.f32.gmra.mrb[0].mxu0 %v284
      %v565 = vpop.f32.mrb[0].mxu0
      %v566 = vadd.f32 %v244, %v565
      %v567 = vpop.f32.mrb[0].mxu0
      %568 = vmatprep.mubr.f32.mxu0 0.0
      %569 = vmatmul.mubr.f32.gmra.mrb[0].mxu0 %v287
      %v570 = vpop.f32.mrb[0].mxu0
      %v571 = vadd.f32 %v244, %v570
      %v572 = vpop.f32.mrb[0].mxu0
      %573 = vmatprep.mubr.f32.mxu0 0.0
      %574 = vmatmul.mubr.f32.gmra.mrb[0].mxu0 %v290
      %v575 = vpop.f32.mrb[0].mxu0
      %v576 = vadd.f32 %v244, %v575
      %v577 = vpop.f32.mrb[0].mxu0
      %578 = vmatprep.mubr.f32.mxu0 0.0
      %579 = vmatmul.mubr.f32.gmra.mrb[0].mxu0 %v293
      %v580 = vpop.f32.mrb[0].mxu0
      %v581 = vadd.f32 %v244, %v580
      %v582 = vpop.f32.mrb[0].mxu0
      %583 = vmatprep.mubr.f32.mxu0 0.0
      %584 = vmatmul.mubr.f32.gmra.mrb[0].mxu0 %v296
      %v585 = vpop.f32.mrb[0].mxu0
      %v586 = vadd.f32 %v244, %v585
      %v587 = vpop.f32.mrb[0].mxu0
      %588 = vmatprep.mubr.f32.mxu0 0.0
      %589 = vmatmul.mubr.f32.gmra.mrb[0].mxu0 %v299
      %v590 = vpop.f32.mrb[0].mxu0
      %v591 = vadd.f32 %v244, %v590
      %v592 = vpop.f32.mrb[0].mxu0
      %593 = vmatprep.mubr.f32.mxu0 0.0
      %594 = vmatmul.mubr.f32.gmra.mrb[0].mxu0 %v302
      %v595 = vpop.f32.mrb[0].mxu0
      %v596 = vadd.f32 %v244, %v595
      %v597 = vpop.f32.mrb[0].mxu0
      %598 = vmatprep.mubr.f32.mxu0 0.0
      %599 = vmatmul.mubr.f32.gmra.mrb[0].mxu0 %v305
      %v600 = vpop.f32.mrb[0].mxu0
      %v601 = vadd.f32 %v244, %v600
      %v602 = vpop.f32.mrb[0].mxu0
      %603 = vmatprep.mubr.f32.mxu0 0.0
      %604 = vmatmul.mubr.f32.gmra.mrb[0].mxu0 %v308
      %v605 = vpop.f32.mrb[0].mxu0
      %v606 = vadd.f32 %v244, %v605
      %v607 = vpop.f32.mrb[0].mxu0
      %608 = vmatprep.mubr.f32.mxu0 0.0
      %609 = vmatmul.mubr.f32.gmra.mrb[0].mxu0 %v311
      %v610 = vpop.f32.mrb[0].mxu0
      %v611 = vadd.f32 %v244, %v610
      %v612 = vpop.f32.mrb[0].mxu0
      %613 = vmatprep.mubr.f32.mxu0 0.0
      %614 = vmatmul.mubr.f32.gmra.mrb[0].mxu0 %v314
      %v615 = vpop.f32.mrb[0].mxu0
      %v616 = vadd.f32 %v244, %v615
      %v617 = vpop.f32.mrb[0].mxu0
      %618 = vmatprep.mubr.f32.mxu0 0.0
      %619 = vmatmul.mubr.f32.gmra.mrb[0].mxu0 %v317
      %v620 = vpop.f32.mrb[0].mxu0
      %v621 = vadd.f32 %v244, %v620
      %v622 = vpop.f32.mrb[0].mxu0
      %623 = vmatprep.mubr.f32.mxu0 0.0
      %624 = vmatmul.mubr.f32.gmra.mrb[0].mxu0 %v320
      %v625 = vpop.f32.mrb[0].mxu0
      %v626 = vadd.f32 %v244, %v625
      %v627 = vpop.f32.mrb[0].mxu0
      %628 = vmatprep.mubr.f32.mxu0 0.0
      %629 = vmatmul.mubr.f32.gmra.mrb[0].mxu0 %v323
      %v630 = vpop.f32.mrb[0].mxu0
      %v631 = vadd.f32 %v244, %v630
      %v632 = vpop.f32.mrb[0].mxu0
      %633 = vmatprep.mubr.f32.mxu0 0.0
      %634 = vmatmul.mubr.f32.gmra.mrb[0].mxu0 %v326
      %v635 = vpop.f32.mrb[0].mxu0
      %v636 = vadd.f32 %v244, %v635
      %v637 = vpop.f32.mrb[0].mxu0
      %638 = vmatprep.mubr.f32.mxu0 0.0
      %639 = vmatmul.mubr.f32.gmra.mrb[0].mxu0 %v329
      %v640 = vpop.f32.mrb[0].mxu0
      %v641 = vadd.f32 %v244, %v640
      %v642 = vpop.f32.mrb[0].mxu0
      %643 = vmatprep.mubr.f32.mxu0 0.0
      %644 = vmatmul.mubr.f32.gmra.mrb[0].mxu0 %v332
      %v645 = vpop.f32.mrb[0].mxu0
      %v646 = vadd.f32 %v244, %v645
      %v647 = vpop.f32.mrb[0].mxu0
      %648 = vmatprep.mubr.f32.mxu0 0.0
      %649 = vmatmul.mubr.f32.gmra.mrb[0].mxu0 %v335
      %v650 = vpop.f32.mrb[0].mxu0
      %v651 = vadd.f32 %v244, %v650
      %v652 = vpop.f32.mrb[0].mxu0
      %653 = vmatprep.mubr.f32.mxu0 0.0
      %654 = vmatmul.mubr.f32.gmra.mrb[0].mxu0 %v338
      %v655 = vpop.f32.mrb[0].mxu0
      %v656 = vadd.f32 %v244, %v655
      %v657 = vpop.f32.mrb[0].mxu0
      %658 = vmatprep.mubr.f32.mxu0 0.0
      %659 = vmatmul.mubr.f32.gmra.mrb[0].mxu0 %v341
      %v660 = vpop.f32.mrb[0].mxu0
      %v661 = vadd.f32 %v244, %v660
      %v662 = vpop.f32.mrb[0].mxu0
      %663 = vmatprep.mubr.f32.mxu0 0.0
      %664 = vmatmul.mubr.f32.gmra.mrb[0].mxu0 %v344
      %v665 = vpop.f32.mrb[0].mxu0
      %v666 = vadd.f32 %v244, %v665
      %v667 = vpop.f32.mrb[0].mxu0
      %668 = vmatprep.mubr.f32.mxu0 0.0
      %669 = vmatmul.mubr.f32.gmra.mrb[0].mxu0 %v347
      %v670 = vpop.f32.mrb[0].mxu0
      %v671 = vadd.f32 %v244, %v670
      %v672 = vpop.f32.mrb[0].mxu0
      %673 = vmatprep.mubr.f32.mxu0 0.0
      %674 = vmatmul.mubr.f32.gmra.mrb[0].mxu0 %v350
      %v675 = vpop.f32.mrb[0].mxu0
      %v676 = vadd.f32 %v244, %v675
      %v677 = vpop.f32.mrb[0].mxu0
      %678 = vmatprep.mubr.f32.mxu0 0.0
      %679 = vmatmul.mubr.f32.gmra.mrb[0].mxu0 %v353
      %v680 = vpop.f32.mrb[0].mxu0
      %v681 = vadd.f32 %v244, %v680
      %v682 = vpop.f32.mrb[0].mxu0
      %683 = vmatprep.mubr.f32.mxu0 0.0
      %684 = vmatmul.mubr.f32.gmra.mrb[0].mxu0 %v356
      %v685 = vpop.f32.mrb[0].mxu0
      %v686 = vadd.f32 %v244, %v685
      %v687 = vpop.f32.mrb[0].mxu0
      %688 = vmatprep.mubr.f32.mxu0 0.0
      %689 = vmatmul.mubr.f32.gmra.mrb[0].mxu0 %v359
      %v690 = vpop.f32.mrb[0].mxu0
      %v691 = vadd.f32 %v244, %v690
      %v692 = vpop.f32.mrb[0].mxu0
      %693 = vmatprep.mubr.f32.mxu0 0.0
      %694 = vmatmul.mubr.f32.gmra.mrb[0].mxu0 %v362
      %v695 = vpop.f32.mrb[0].mxu0
      %v696 = vadd.f32 %v244, %v695
      %v697 = vpop.f32.mrb[0].mxu0
      %698 = vmatprep.mubr.f32.mxu0 0.0
      %699 = vmatmul.mubr.f32.gmra.mrb[0].mxu0 %v365
      %v700 = vpop.f32.mrb[0].mxu0
      %v701 = vadd.f32 %v244, %v700
      %v702 = vpop.f32.mrb[0].mxu0
      %703 = vmatprep.mubr.f32.mxu0 0.0
      %704 = vmatmul.mubr.f32.gmra.mrb[0].mxu0 %v368
      %v705 = vpop.f32.mrb[0].mxu0
      %v706 = vadd.f32 %v244, %v705
      %v707 = vpop.f32.mrb[0].mxu0
      %708 = vmatprep.mubr.f32.mxu0 0.0
      %709 = vmatmul.mubr.f32.gmra.mrb[0].mxu0 %v371
      %v710 = vpop.f32.mrb[0].mxu0
      %v711 = vadd.f32 %v244, %v710
      %v712 = vpop.f32.mrb[0].mxu0
      %713 = vmatprep.mubr.f32.mxu0 0.0
      %714 = vmatmul.mubr.f32.gmra.mrb[0].mxu0 %v374
      %v715 = vpop.f32.mrb[0].mxu0
      %v716 = vadd.f32 %v244, %v715
      %v717 = vpop.f32.mrb[0].mxu0
      %718 = vmatprep.mubr.f32.mxu0 0.0
      %719 = vmatmul.mubr.f32.gmra.mrb[0].mxu0 %v377
      %v720 = vpop.f32.mrb[0].mxu0
      %v721 = vadd.f32 %v244, %v720
      %v722 = vpop.f32.mrb[0].mxu0
      %723 = vmatprep.mubr.f32.mxu0 0.0
      %724 = vmatmul.mubr.f32.gmra.mrb[0].mxu0 %v380
      %v725 = vpop.f32.mrb[0].mxu0
      %v726 = vadd.f32 %v244, %v725
      %v727 = vpop.f32.mrb[0].mxu0
      %728 = vmatprep.mubr.f32.mxu0 0.0
      %729 = vmatmul.mubr.f32.gmra.mrb[0].mxu0 %v383
      %v730 = vpop.f32.mrb[0].mxu0
      %v731 = vadd.f32 %v244, %v730
      %v732 = vpop.f32.mrb[0].mxu0
      %733 = vmatprep.mubr.f32.mxu0 0.0
      %734 = vmatmul.mubr.f32.gmra.mrb[0].mxu0 %v386
      %v735 = vpop.f32.mrb[0].mxu0
      %v736 = vadd.f32 %v244, %v735
      %v737 = vpop.f32.mrb[0].mxu0
      %738 = vmatprep.mubr.f32.mxu0 0.0
      %739 = vmatmul.mubr.f32.gmra.mrb[0].mxu0 %v389
      %v740 = vpop.f32.mrb[0].mxu0
      %v741 = vadd.f32 %v244, %v740
      %v742 = vpop.f32.mrb[0].mxu0
      %743 = vmatprep.mubr.f32.mxu0 0.0
      %744 = vmatmul.mubr.f32.gmra.mrb[0].mxu0 %v392
      %v745 = vpop.f32.mrb[0].mxu0
      %v746 = vadd.f32 %v244, %v745
      %v747 = vpop.f32.mrb[0].mxu0
      %748 = vmatprep.mubr.f32.mxu0 0.0
      %749 = vmatmul.mubr.f32.gmra.mrb[0].mxu0 %v395
      %v750 = vpop.f32.mrb[0].mxu0
      %v751 = vadd.f32 %v244, %v750
      %v752 = vpop.f32.mrb[0].mxu0
      %753 = vmatprep.mubr.f32.mxu0 0.0
      %754 = vmatmul.mubr.f32.gmra.mrb[0].mxu0 %v398
      %v755 = vpop.f32.mrb[0].mxu0
      %v756 = vadd.f32 %v244, %v755
      %v757 = vpop.f32.mrb[0].mxu0
      %758 = vmatprep.mubr.f32.mxu0 0.0
      %759 = vmatmul.mubr.f32.gmra.mrb[0].mxu0 %v401
      %v760 = vpop.f32.mrb[0].mxu0
      %v761 = vadd.f32 %v244, %v760
      %v762 = vpop.f32.mrb[0].mxu0
      %763 = vmatprep.mubr.f32.mxu0 0.0
      %764 = vmatmul.mubr.f32.gmra.mrb[0].mxu0 %v404
      %v765 = vpop.f32.mrb[0].mxu0
      %v766 = vadd.f32 %v244, %v765
      %v767 = vpop.f32.mrb[0].mxu0
      %768 = vmatprep.mubr.f32.mxu0 0.0
      %769 = vmatmul.mubr.f32.gmra.mrb[0].mxu0 %v407
      %v770 = vpop.f32.mrb[0].mxu0
      %v771 = vadd.f32 %v244, %v770
      %v772 = vpop.f32.mrb[0].mxu0
      %773 = vmatprep.mubr.f32.mxu0 0.0
      %774 = vmatmul.mubr.f32.gmra.mrb[0].mxu0 %v410
      %v775 = vpop.f32.mrb[0].mxu0
      %v776 = vadd.f32 %v244, %v775
      %v777 = vpop.f32.mrb[0].mxu0
      %778 = vmatprep.mubr.f32.mxu0 0.0
      %779 = vmatmul.mubr.f32.gmra.mrb[0].mxu0 %v413
      %v780 = vpop.f32.mrb[0].mxu0
      %v781 = vadd.f32 %v244, %v780
      %v782 = vpop.f32.mrb[0].mxu0
      %783 = vmatprep.mubr.f32.mxu0 0.0
      %784 = vmatmul.mubr.f32.gmra.mrb[0].mxu0 %v416
      %v785 = vpop.f32.mrb[0].mxu0
      %v786 = vadd.f32 %v244, %v785
      %v787 = vpop.f32.mrb[0].mxu0
      %788 = vmatprep.mubr.f32.mxu0 0.0
      %789 = vmatmul.mubr.f32.gmra.mrb[0].mxu0 %v419
      %v790 = vpop.f32.mrb[0].mxu0
      %v791 = vadd.f32 %v244, %v790
      %v792 = vpop.f32.mrb[0].mxu0
      %793 = vmatprep.mubr.f32.mxu0 0.0
      %794 = vmatmul.mubr.f32.gmra.mrb[0].mxu0 %v422
      %v795 = vpop.f32.mrb[0].mxu0
      %v796 = vadd.f32 %v244, %v795
      %v797 = vpop.f32.mrb[0].mxu0
      %798 = vmatprep.mubr.f32.mxu0 0.0
      %799 = vmatmul.mubr.f32.gmra.mrb[0].mxu0 %v425
      %v800 = vpop.f32.mrb[0].mxu0
      %v801 = vadd.f32 %v244, %v800
      %v802 = vpop.f32.mrb[0].mxu0
      %803 = vmatprep.mubr.f32.mxu0 0.0
      %804 = vmatmul.mubr.f32.gmra.mrb[0].mxu0 %v428
      %v805 = vpop.f32.mrb[0].mxu0
      %v806 = vadd.f32 %v244, %v805
      %v807 = vpop.f32.mrb[0].mxu0
      %808 = vmatprep.mubr.f32.mxu0 0.0
      %809 = vmatmul.mubr.f32.gmra.mrb[0].mxu0 %v431
      %v810 = vpop.f32.mrb[0].mxu0
      %v811 = vadd.f32 %v244, %v810
      %v812 = vpop.f32.mrb[0].mxu0
      %813 = vmatprep.mubr.f32.mxu0 0.0
      %814 = vmatmul.mubr.f32.gmra.mrb[0].mxu0 %v434
      %v815 = vpop.f32.mrb[0].mxu0
      %v816 = vadd.f32 %v244, %v815
      %v817 = vpop.f32.mrb[0].mxu0
      %818 = vmatprep.mubr.f32.mxu0 0.0
      %819 = vmatmul.mubr.f32.gmra.mrb[0].mxu0 %v437
      %v820 = vpop.f32.mrb[0].mxu0
      %v821 = vadd.f32 %v244, %v820
      %v822 = vpop.f32.mrb[0].mxu0
      %823 = vdwg.mxu0
      %vm824 = vcmask 130048
      %825 = vst.msk [vmem:[%s172] sm:$0xff] %vm824, %v506
      %826 = vst.msk [vmem:[%s172 + $0x8] sm:$0xff] %vm824, %v511
      %827 = vst.msk [vmem:[%s172 + $0x10] sm:$0xff] %vm824, %v516
      %828 = vst.msk [vmem:[%s172 + $0x18] sm:$0xff] %vm824, %v521
      %829 = vst.msk [vmem:[%s172 + $0x20] sm:$0xff] %vm824, %v526
      %830 = vst.msk [vmem:[%s172 + $0x28] sm:$0xff] %vm824, %v531
      %831 = vst.msk [vmem:[%s172 + $0x30] sm:$0xff] %vm824, %v536
      %832 = vst.msk [vmem:[%s172 + $0x38] sm:$0xff] %vm824, %v541
      %833 = vst.msk [vmem:[%s172 + $0x40] sm:$0xff] %vm824, %v546
      %834 = vst.msk [vmem:[%s172 + $0x48] sm:$0xff] %vm824, %v551
      %835 = vst.msk [vmem:[%s172 + $0x50] sm:$0xff] %vm824, %v556
      %836 = vst.msk [vmem:[%s172 + $0x58] sm:$0xff] %vm824, %v561
      %837 = vst.msk [vmem:[%s172 + $0x60] sm:$0xff] %vm824, %v566
      %838 = vst.msk [vmem:[%s172 + $0x68] sm:$0xff] %vm824, %v571
      %839 = vst.msk [vmem:[%s172 + $0x70] sm:$0xff] %vm824, %v576
      %840 = vst.msk [vmem:[%s172 + $0x78] sm:$0xff] %vm824, %v581
      %841 = vst.msk [vmem:[%s172 + $0x80] sm:$0xff] %vm824, %v586
      %842 = vst.msk [vmem:[%s172 + $0x88] sm:$0xff] %vm824, %v591
      %843 = vst.msk [vmem:[%s172 + $0x90] sm:$0xff] %vm824, %v596
      %844 = vst.msk [vmem:[%s172 + $0x98] sm:$0xff] %vm824, %v601
      %845 = vst.msk [vmem:[%s172 + $0xa0] sm:$0xff] %vm824, %v606
      %846 = vst.msk [vmem:[%s172 + $0xa8] sm:$0xff] %vm824, %v611
      %847 = vst.msk [vmem:[%s172 + $0xb0] sm:$0xff] %vm824, %v616
      %848 = vst.msk [vmem:[%s172 + $0xb8] sm:$0xff] %vm824, %v621
      %849 = vst.msk [vmem:[%s172 + $0xc0] sm:$0xff] %vm824, %v626
      %850 = vst.msk [vmem:[%s172 + $0xc8] sm:$0xff] %vm824, %v631
      %851 = vst.msk [vmem:[%s172 + $0xd0] sm:$0xff] %vm824, %v636
      %852 = vst.msk [vmem:[%s172 + $0xd8] sm:$0xff] %vm824, %v641
      %853 = vst.msk [vmem:[%s172 + $0xe0] sm:$0xff] %vm824, %v646
      %854 = vst.msk [vmem:[%s172 + $0xe8] sm:$0xff] %vm824, %v651
      %855 = vst.msk [vmem:[%s172 + $0xf0] sm:$0xff] %vm824, %v656
      %856 = vst.msk [vmem:[%s172 + $0xf8] sm:$0xff] %vm824, %v661
      %857 = vst.msk [vmem:[%s172 + $0x100] sm:$0xff] %vm824, %v666
      %858 = vst.msk [vmem:[%s172 + $0x108] sm:$0xff] %vm824, %v671
      %859 = vst.msk [vmem:[%s172 + $0x110] sm:$0xff] %vm824, %v676
      %860 = vst.msk [vmem:[%s172 + $0x118] sm:$0xff] %vm824, %v681
      %861 = vst.msk [vmem:[%s172 + $0x120] sm:$0xff] %vm824, %v686
      %862 = vst.msk [vmem:[%s172 + $0x128] sm:$0xff] %vm824, %v691
      %863 = vst.msk [vmem:[%s172 + $0x130] sm:$0xff] %vm824, %v696
      %864 = vst.msk [vmem:[%s172 + $0x138] sm:$0xff] %vm824, %v701
      %865 = vst.msk [vmem:[%s172 + $0x140] sm:$0xff] %vm824, %v706
      %866 = vst.msk [vmem:[%s172 + $0x148] sm:$0xff] %vm824, %v711
      %867 = vst.msk [vmem:[%s172 + $0x150] sm:$0xff] %vm824, %v716
      %868 = vst.msk [vmem:[%s172 + $0x158] sm:$0xff] %vm824, %v721
      %869 = vst.msk [vmem:[%s172 + $0x160] sm:$0xff] %vm824, %v726
      %870 = vst.msk [vmem:[%s172 + $0x168] sm:$0xff] %vm824, %v731
      %871 = vst.msk [vmem:[%s172 + $0x170] sm:$0xff] %vm824, %v736
      %872 = vst.msk [vmem:[%s172 + $0x178] sm:$0xff] %vm824, %v741
      %873 = vst.msk [vmem:[%s172 + $0x180] sm:$0xff] %vm824, %v746
      %874 = vst.msk [vmem:[%s172 + $0x188] sm:$0xff] %vm824, %v751
      %875 = vst.msk [vmem:[%s172 + $0x190] sm:$0xff] %vm824, %v756
      %876 = vst.msk [vmem:[%s172 + $0x198] sm:$0xff] %vm824, %v761
      %877 = vst.msk [vmem:[%s172 + $0x1a0] sm:$0xff] %vm824, %v766
      %878 = vst.msk [vmem:[%s172 + $0x1a8] sm:$0xff] %vm824, %v771
      %879 = vst.msk [vmem:[%s172 + $0x1b0] sm:$0xff] %vm824, %v776
      %880 = vst.msk [vmem:[%s172 + $0x1b8] sm:$0xff] %vm824, %v781
      %881 = vst.msk [vmem:[%s172 + $0x1c0] sm:$0xff] %vm824, %v786
      %882 = vst.msk [vmem:[%s172 + $0x1c8] sm:$0xff] %vm824, %v791
      %883 = vst.msk [vmem:[%s172 + $0x1d0] sm:$0xff] %vm824, %v796
      %884 = vst.msk [vmem:[%s172 + $0x1d8] sm:$0xff] %vm824, %v801
      %885 = vst.msk [vmem:[%s172 + $0x1e0] sm:$0xff] %vm824, %v806
      %886 = vst.msk [vmem:[%s172 + $0x1e8] sm:$0xff] %vm824, %v811
      %887 = vst.msk [vmem:[%s172 + $0x1f0] sm:$0xff] %vm824, %v816
      %888 = vst.msk [vmem:[%s172 + $0x1f8] sm:$0xff] %vm824, %v821
      %s889 = smul.u32 64, %s14
      %p890 = scmp.lt.s32.totalorder %s889, 127
      %s891 = scalar_select %p890, %s889, 127
      %s892 = smul.addr %s891, 8
      %s893 = scalar_lea.vmem %s3, %s892
      // Predicated region
      $region33: #{efficient_upsample_forward.2} parent=31 // pred_check
        %p894 = pneg %p100
      $region34: #{efficient_upsample_forward.2} parent=31 // pred_check_branch
        %896 = sbr.rel (%p894) target = $region36
      $region35: #{efficient_upsample_forward.2} parent=31 // pred_region
        %s897 = smul.u32 64, %s14
      $region36: #{efficient_upsample_forward.2} parent=31 // pred_fallthru
        _
    $region32: #{efficient_upsample_forward.2} parent=5 // pred_fallthru
      _
    %p898 = scmp.le.s32.totalorder 2, %s9
    // Predicated region
    $region37: #{efficient_upsample_forward.2} parent=5 // pred_check
      %p899 = pneg %p898
    $region38: #{efficient_upsample_forward.2} parent=5 // pred_check_branch
      %901 = sbr.rel (%p899) target = $region40
    $region39: #{efficient_upsample_forward.2} parent=5 // pred_region
      %s902 = ssub.s32 %s9, 2
      // Predicated region
      $region41: #{efficient_upsample_forward.2} parent=39 // pred_check
        %p903 = pneg %p106
      $region42: #{efficient_upsample_forward.2} parent=39 // pred_check_branch
        %905 = sbr.rel (%p903) target = $region44
      $region43: #{efficient_upsample_forward.2} parent=39 // pred_region
        %s906 = smul.u32 64, %s15
        %p907 = scmp.lt.s32.totalorder %s906, 127
        %s908 = scalar_select %p907, %s906, 127
        %s909 = smul.addr %s908, 8
        %s910 = scalar_lea.vmem %s3, %s909
      $region44: #{efficient_upsample_forward.2} parent=39 // pred_fallthru
        _
    $region40: #{efficient_upsample_forward.2} parent=5 // pred_fallthru
      _
  $region6: #{efficient_upsample_forward.2} parent=0 // loop_footer
    %s13 = sadd.s32 1, %s9
  $region7: #{efficient_upsample_forward.2} parent=0 // loop_footer_branch
    %8 = sbr.rel target = $region3
  $region8: #{efficient_upsample_forward.2} parent=0 // loop_exit
    _

// kernel: efficient_upsample_forward.3
$region0: #{efficient_upsample_forward.3}
  #allocation0 [shape = 'u32[]', space=smem, size = 0x4, offset = 0x4, fixed_abs, tag = 'smem constant byte address 0x4 - core index']
  #allocation1 [shape = 'u32[144,128]{1,0:T(1,128)}', space=vmem, size = 0x12000, scoped, tag = 'internal scratch']
  #allocation2 [shape = 'f32[34,34,8]{2,1,0:T(8,128)}', space=vmem, size = 0xaa000, scoped, tag = 'scratch operand']
  %s0 = inlined_call_operand.vmem [shape: f32[4,32,32,4], index: 0, kind: input, shape index: {}]
  %s1 = inlined_call_operand.vmem [shape: f32[4,32,32,4], index: 1, kind: input, shape index: {}]
  %s2 = inlined_call_operand.vmem [shape: f32[3,3,8], index: 2, kind: input, shape index: {}]
  %s3 = inlined_call_operand.vmem [shape: f32[1,8], index: 3, kind: input, shape index: {}]
  %s4 = inlined_call_operand.vmem [shape: f32[8,4], index: 4, kind: input, shape index: {}]
  %s5 = inlined_call_operand.vmem [shape: f32[1,4], index: 5, kind: input, shape index: {}]
  %s6 = inlined_call_operand.vmem [shape: f32[1,4], index: 6, kind: input, shape index: {}]
  %s7 = inlined_call_operand.vmem [shape: f32[1,4], index: 7, kind: input, shape index: {}]
  %s8 = inlined_call_operand.vmem [shape: f32[4,32,32,4], index: 8, kind: output, shape index: {}]
  %s9 = sld [smem:[#allocation0]]
  $region65: #{efficient_upsample_forward.3} parent=0
    _
  %s11 = ssub.s32 1, %s9
  %s12 = scalar_select 0, %s11, %s9
  loop: start=0, step=1, limit=6
  $region2: #{efficient_upsample_forward.3} parent=0 // loop_pre_header
    _
  $region3: #{efficient_upsample_forward.3} parent=0 // loop_header
    %s14 = sphi 0, %s18
    %p15 = scmp.ge.s32.totalorder %s14, 6
    %s24 = sphi 0, %s26
    %s27 = sphi 0, %s24
    %s28 = sphi 0, %s27
    %s44 = sphi 0, %s28
    %s50 = sphi 0, %s52
    %s53 = sphi 0, %s50
    %s54 = sphi 0, %s53
    %s70 = sphi 0, %s54
    %s74 = sphi 0, %s74
    %s76 = sphi 0, %s74
    %s77 = sphi 0, %s76
    %s91 = sphi 0, %s77
    %s95 = sphi 0, %s95
    %s97 = sphi 0, %s95
    %s98 = sphi 0, %s97
    %s112 = sphi 0, %s98
    %s116 = sphi 0, %s116
    %s118 = sphi 0, %s116
    %s119 = sphi 0, %s118
    %s133 = sphi 0, %s119
    %s137 = sphi 0, %s137
    %s139 = sphi 0, %s137
    %s140 = sphi 0, %s139
    %s154 = sphi 0, %s140
    %s158 = sphi 0, %s158
    %s160 = sphi 0, %s158
    %s161 = sphi 0, %s160
    %s175 = sphi 0, %s161
    %s179 = sphi 0, %s179
    %s181 = sphi 0, %s179
    %s182 = sphi 0, %s181
    %s196 = sphi 0, %s182
    %s202 = sphi 0, %s204
    %s205 = sphi 0, %s202
    %s206 = sphi 0, %s205
    %s222 = sphi 0, %s206
  $region4: #{efficient_upsample_forward.3} parent=0 // loop_header_branch
    %17 = sbr.rel (%p15) target = $region8
  $region5: #{efficient_upsample_forward.3} parent=0 // loop_body
    %s19 = ssub.s32 %s14, 1
    %s20 = ssub.s32 %s14, 2
    %s21 = sadd.s32 %s14, 1
    %s22 = ssub.s32 %s14, %s21
    %p23 = scmp.eq.s32.totalorder %s22, 0
    %s25 = sadd.s32 %s24, 1
    %s26 = scalar_select %p23, %s24, %s25
    %p29 = pneg %p23
    %p30 = scmp.eq.s32.totalorder %s14, 3
    %p31 = por %p29, %p30
    %p32 = scmp.ne.s32.totalorder %s24, %s27
    %p33 = scmp.eq.s32.totalorder %s14, 0
    %p34 = por %p32, %p33
    %p35 = scmp.ne.s32.totalorder %s24, %s27
    %p36 = scmp.eq.s32.totalorder %s19, 3
    %p37 = por %p35, %p36
    %p38 = scmp.ne.s32.totalorder %s27, %s28
    %p39 = scmp.eq.s32.totalorder %s19, 0
    %p40 = por %p38, %p39
    %p41 = scmp.ne.s32.totalorder %s27, %s28
    %p42 = scmp.eq.s32.totalorder %s20, 3
    %p43 = por %p41, %p42
    %p45 = scmp.ne.s32.totalorder %s28, %s44
    %p46 = scmp.eq.s32.totalorder %s20, 0
    %p47 = por %p45, %p46
    %s48 = ssub.s32 %s14, %s21
    %p49 = scmp.eq.s32.totalorder %s48, 0
    %s51 = sadd.s32 %s50, 1
    %s52 = scalar_select %p49, %s50, %s51
    %p55 = pneg %p49
    %p56 = scmp.eq.s32.totalorder %s14, 3
    %p57 = por %p55, %p56
    %p58 = scmp.ne.s32.totalorder %s50, %s53
    %p59 = scmp.eq.s32.totalorder %s14, 0
    %p60 = por %p58, %p59
    %p61 = scmp.ne.s32.totalorder %s50, %s53
    %p62 = scmp.eq.s32.totalorder %s19, 3
    %p63 = por %p61, %p62
    %p64 = scmp.ne.s32.totalorder %s53, %s54
    %p65 = scmp.eq.s32.totalorder %s19, 0
    %p66 = por %p64, %p65
    %p67 = scmp.ne.s32.totalorder %s53, %s54
    %p68 = scmp.eq.s32.totalorder %s20, 3
    %p69 = por %p67, %p68
    %p71 = scmp.ne.s32.totalorder %s54, %s70
    %p72 = scmp.eq.s32.totalorder %s20, 0
    %p73 = por %p71, %p72
    %s75 = sadd.s32 %s74, 1
    %p78 = scmp.eq.s32.totalorder %s14, 3
    %p79 = scmp.ne.s32.totalorder %s74, %s76
    %p80 = scmp.eq.s32.totalorder %s14, 0
    %p81 = por %p79, %p80
    %p82 = scmp.ne.s32.totalorder %s74, %s76
    %p83 = scmp.eq.s32.totalorder %s19, 3
    %p84 = por %p82, %p83
    %p85 = scmp.ne.s32.totalorder %s76, %s77
    %p86 = scmp.eq.s32.totalorder %s19, 0
    %p87 = por %p85, %p86
    %p88 = scmp.ne.s32.totalorder %s76, %s77
    %p89 = scmp.eq.s32.totalorder %s20, 3
    %p90 = por %p88, %p89
    %p92 = scmp.ne.s32.totalorder %s77, %s91
    %p93 = scmp.eq.s32.totalorder %s20, 0
    %p94 = por %p92, %p93
    %s96 = sadd.s32 %s95, 1
    %p99 = scmp.eq.s32.totalorder %s14, 3
    %p100 = scmp.ne.s32.totalorder %s95, %s97
    %p101 = scmp.eq.s32.totalorder %s14, 0
    %p102 = por %p100, %p101
    %p103 = scmp.ne.s32.totalorder %s95, %s97
    %p104 = scmp.eq.s32.totalorder %s19, 3
    %p105 = por %p103, %p104
    %p106 = scmp.ne.s32.totalorder %s97, %s98
    %p107 = scmp.eq.s32.totalorder %s19, 0
    %p108 = por %p106, %p107
    %p109 = scmp.ne.s32.totalorder %s97, %s98
    %p110 = scmp.eq.s32.totalorder %s20, 3
    %p111 = por %p109, %p110
    %p113 = scmp.ne.s32.totalorder %s98, %s112
    %p114 = scmp.eq.s32.totalorder %s20, 0
    %p115 = por %p113, %p114
    %s117 = sadd.s32 %s116, 1
    %p120 = scmp.eq.s32.totalorder %s14, 3
    %p121 = scmp.ne.s32.totalorder %s116, %s118
    %p122 = scmp.eq.s32.totalorder %s14, 0
    %p123 = por %p121, %p122
    %p124 = scmp.ne.s32.totalorder %s116, %s118
    %p125 = scmp.eq.s32.totalorder %s19, 3
    %p126 = por %p124, %p125
    %p127 = scmp.ne.s32.totalorder %s118, %s119
    %p128 = scmp.eq.s32.totalorder %s19, 0
    %p129 = por %p127, %p128
    %p130 = scmp.ne.s32.totalorder %s118, %s119
    %p131 = scmp.eq.s32.totalorder %s20, 3
    %p132 = por %p130, %p131
    %p134 = scmp.ne.s32.totalorder %s119, %s133
    %p135 = scmp.eq.s32.totalorder %s20, 0
    %p136 = por %p134, %p135
    %s138 = sadd.s32 %s137, 1
    %p141 = scmp.eq.s32.totalorder %s14, 3
    %p142 = scmp.ne.s32.totalorder %s137, %s139
    %p143 = scmp.eq.s32.totalorder %s14, 0
    %p144 = por %p142, %p143
    %p145 = scmp.ne.s32.totalorder %s137, %s139
    %p146 = scmp.eq.s32.totalorder %s19, 3
    %p147 = por %p145, %p146
    %p148 = scmp.ne.s32.totalorder %s139, %s140
    %p149 = scmp.eq.s32.totalorder %s19, 0
    %p150 = por %p148, %p149
    %p151 = scmp.ne.s32.totalorder %s139, %s140
    %p152 = scmp.eq.s32.totalorder %s20, 3
    %p153 = por %p151, %p152
    %p155 = scmp.ne.s32.totalorder %s140, %s154
    %p156 = scmp.eq.s32.totalorder %s20, 0
    %p157 = por %p155, %p156
    %s159 = sadd.s32 %s158, 1
    %p162 = scmp.eq.s32.totalorder %s14, 3
    %p163 = scmp.ne.s32.totalorder %s158, %s160
    %p164 = scmp.eq.s32.totalorder %s14, 0
    %p165 = por %p163, %p164
    %p166 = scmp.ne.s32.totalorder %s158, %s160
    %p167 = scmp.eq.s32.totalorder %s19, 3
    %p168 = por %p166, %p167
    %p169 = scmp.ne.s32.totalorder %s160, %s161
    %p170 = scmp.eq.s32.totalorder %s19, 0
    %p171 = por %p169, %p170
    %p172 = scmp.ne.s32.totalorder %s160, %s161
    %p173 = scmp.eq.s32.totalorder %s20, 3
    %p174 = por %p172, %p173
    %p176 = scmp.ne.s32.totalorder %s161, %s175
    %p177 = scmp.eq.s32.totalorder %s20, 0
    %p178 = por %p176, %p177
    %s180 = sadd.s32 %s179, 1
    %p183 = scmp.eq.s32.totalorder %s14, 3
    %p184 = scmp.ne.s32.totalorder %s179, %s181
    %p185 = scmp.eq.s32.totalorder %s14, 0
    %p186 = por %p184, %p185
    %p187 = scmp.ne.s32.totalorder %s179, %s181
    %p188 = scmp.eq.s32.totalorder %s19, 3
    %p189 = por %p187, %p188
    %p190 = scmp.ne.s32.totalorder %s181, %s182
    %p191 = scmp.eq.s32.totalorder %s19, 0
    %p192 = por %p190, %p191
    %p193 = scmp.ne.s32.totalorder %s181, %s182
    %p194 = scmp.eq.s32.totalorder %s20, 3
    %p195 = por %p193, %p194
    %p197 = scmp.ne.s32.totalorder %s182, %s196
    %p198 = scmp.eq.s32.totalorder %s20, 0
    %p199 = por %p197, %p198
    %s200 = ssub.s32 %s14, %s21
    %p201 = scmp.eq.s32.totalorder %s200, 0
    %s203 = sadd.s32 %s202, 1
    %s204 = scalar_select %p201, %s202, %s203
    %p207 = pneg %p201
    %p208 = scmp.eq.s32.totalorder %s14, 3
    %p209 = por %p207, %p208
    %p210 = scmp.ne.s32.totalorder %s202, %s205
    %p211 = scmp.eq.s32.totalorder %s14, 0
    %p212 = por %p210, %p211
    %p213 = scmp.ne.s32.totalorder %s202, %s205
    %p214 = scmp.eq.s32.totalorder %s19, 3
    %p215 = por %p213, %p214
    %p216 = scmp.ne.s32.totalorder %s205, %s206
    %p217 = scmp.eq.s32.totalorder %s19, 0
    %p218 = por %p216, %p217
    %p219 = scmp.ne.s32.totalorder %s205, %s206
    %p220 = scmp.eq.s32.totalorder %s20, 3
    %p221 = por %p219, %p220
    %p223 = scmp.ne.s32.totalorder %s206, %s222
    %p224 = scmp.eq.s32.totalorder %s20, 0
    %p225 = por %p223, %p224
    %p226 = scmp.le.s32.totalorder 1, %s14
    %p227 = scmp.lt.s32.totalorder %s14, 5
    %p228 = pnand %p226, %p227
    %p229 = pneg %p228
    // Predicated region
    $region9: #{efficient_upsample_forward.3} parent=5 // pred_check
      _
    $region10: #{efficient_upsample_forward.3} parent=5 // pred_check_branch
      %231 = sbr.rel (%p228) target = $region12
    $region11: #{efficient_upsample_forward.3} parent=5 // pred_region
      %s232 = ssub.s32 %s14, 1
      // Predicated region
      $region13: #{efficient_upsample_forward.3} parent=11 // pred_check
        %p233 = pneg %p87
      $region14: #{efficient_upsample_forward.3} parent=11 // pred_check_branch
        %235 = sbr.rel (%p233) target = $region16
      $region15: #{efficient_upsample_forward.3} parent=11 // pred_region
        _
      $region16: #{efficient_upsample_forward.3} parent=11 // pred_fallthru
        _
      // Predicated region
      $region17: #{efficient_upsample_forward.3} parent=11 // pred_check
        %p236 = pneg %p108
      $region18: #{efficient_upsample_forward.3} parent=11 // pred_check_branch
        %238 = sbr.rel (%p236) target = $region20
      $region19: #{efficient_upsample_forward.3} parent=11 // pred_region
        _
      $region20: #{efficient_upsample_forward.3} parent=11 // pred_fallthru
        _
      // Predicated region
      $region21: #{efficient_upsample_forward.3} parent=11 // pred_check
        %p239 = pneg %p129
      $region22: #{efficient_upsample_forward.3} parent=11 // pred_check_branch
        %241 = sbr.rel (%p239) target = $region24
      $region23: #{efficient_upsample_forward.3} parent=11 // pred_region
        _
      $region24: #{efficient_upsample_forward.3} parent=11 // pred_fallthru
        _
      // Predicated region
      $region25: #{efficient_upsample_forward.3} parent=11 // pred_check
        %p242 = pneg %p150
      $region26: #{efficient_upsample_forward.3} parent=11 // pred_check_branch
        %244 = sbr.rel (%p242) target = $region28
      $region27: #{efficient_upsample_forward.3} parent=11 // pred_region
        _
      $region28: #{efficient_upsample_forward.3} parent=11 // pred_fallthru
        _
      // Predicated region
      $region29: #{efficient_upsample_forward.3} parent=11 // pred_check
        %p245 = pneg %p171
      $region30: #{efficient_upsample_forward.3} parent=11 // pred_check_branch
        %247 = sbr.rel (%p245) target = $region32
      $region31: #{efficient_upsample_forward.3} parent=11 // pred_region
        _
      $region32: #{efficient_upsample_forward.3} parent=11 // pred_fallthru
        _
      // Predicated region
      $region33: #{efficient_upsample_forward.3} parent=11 // pred_check
        %p248 = pneg %p192
      $region34: #{efficient_upsample_forward.3} parent=11 // pred_check_branch
        %250 = sbr.rel (%p248) target = $region36
      $region35: #{efficient_upsample_forward.3} parent=11 // pred_region
        _
      $region36: #{efficient_upsample_forward.3} parent=11 // pred_fallthru
        _
    $region12: #{efficient_upsample_forward.3} parent=5 // pred_fallthru
      _
    %p251 = scmp.lt.s32.totalorder %s14, 4
    // Predicated region
    $region37: #{efficient_upsample_forward.3} parent=5 // pred_check
      %p252 = pneg %p251
    $region38: #{efficient_upsample_forward.3} parent=5 // pred_check_branch
      %254 = sbr.rel (%p252) target = $region40
    $region39: #{efficient_upsample_forward.3} parent=5 // pred_region
      // Predicated region
      $region41: #{efficient_upsample_forward.3} parent=39 // pred_check
        %p255 = pneg %p34
      $region42: #{efficient_upsample_forward.3} parent=39 // pred_check_branch
        %257 = sbr.rel (%p255) target = $region44
      $region43: #{efficient_upsample_forward.3} parent=39 // pred_region
        %p258 = scmp.lt.s32.totalorder %s14, 3
        %s259 = scalar_select %p258, %s14, 3
        %s260 = smul.addr %s259, 128
        %s261 = smul.addr %s260, 8
        %s262 = scalar_lea.vmem %s0, %s261
      $region44: #{efficient_upsample_forward.3} parent=39 // pred_fallthru
        _
      // Predicated region
      $region45: #{efficient_upsample_forward.3} parent=39 // pred_check
        %p263 = pneg %p60
      $region46: #{efficient_upsample_forward.3} parent=39 // pred_check_branch
        %265 = sbr.rel (%p263) target = $region48
      $region47: #{efficient_upsample_forward.3} parent=39 // pred_region
        %p266 = scmp.lt.s32.totalorder %s14, 3
        %s267 = scalar_select %p266, %s14, 3
        %s268 = smul.addr %s267, 128
        %s269 = smul.addr %s268, 8
        %s270 = scalar_lea.vmem %s1, %s269
      $region48: #{efficient_upsample_forward.3} parent=39 // pred_fallthru
        _
    $region40: #{efficient_upsample_forward.3} parent=5 // pred_fallthru
      _
    %p271 = scmp.le.s32.totalorder 1, %s14
    %p272 = scmp.lt.s32.totalorder %s14, 5
    %p273 = pnand %p271, %p272
    %p274 = pneg %p273
    // Predicated region
    $region49: #{efficient_upsample_forward.3} parent=5 // pred_check
      _
    $region50: #{efficient_upsample_forward.3} parent=5 // pred_check_branch
      %276 = sbr.rel (%p273) target = $region52
    $region51: #{efficient_upsample_forward.3} parent=5 // pred_region
      %s277 = ssub.s32 %s14, 1
      %p278 = scmp.lt.s32.totalorder %s19, 3
      %s279 = scalar_select %p278, %s19, 3
      %s280 = smul.addr %s279, 128
      %s281 = smul.addr %s280, 8
      %s282 = scalar_lea.vmem %s0, %s281
      %p283 = pneg %p40
      %p284 = pneg %p37
      %p285 = scmp.lt.s32.totalorder %s19, 3
      %s286 = scalar_select %p285, %s19, 3
      %s287 = smul.addr %s286, 128
      %s288 = smul.addr %s287, 8
      %s289 = scalar_lea.vmem %s1, %s288
      %p290 = pneg %p66
      %p291 = pneg %p63
      %p292 = pneg %p87
      %p293 = pneg %p84
      %p294 = pneg %p108
      %p295 = pneg %p105
      %p296 = pneg %p129
      %p297 = pneg %p126
      %p298 = pneg %p150
      %p299 = pneg %p147
      %p300 = pneg %p171
      %p301 = pneg %p168
      %p302 = pneg %p192
      %p303 = pneg %p189
      %p304 = pneg %p218
      %p305 = pneg %p215
      %p306 = scmp.lt.s32.totalorder %s19, 3
      %s307 = scalar_select %p306, %s19, 3
      %s308 = smul.addr %s307, 128
      %s309 = smul.addr %s308, 8
      %s310 = scalar_lea.vmem %s8, %s309
      %p311 = scmp.lt.s32.totalorder %s19, 3
      %s312 = scalar_select %p311, %s19, 3
      %s313 = smul.addr %s312, 128
      %s314 = smul.addr %s313, 8
      %s315 = scalar_lea.vmem %s0, %s314
      %p316 = scmp.lt.s32.totalorder %s19, 3
      %s317 = scalar_select %p316, %s19, 3
      %s318 = smul.addr %s317, 128
      %s319 = smul.addr %s318, 8
      %s320 = scalar_lea.vmem %s1, %s319
      %p321 = scmp.lt.s32.totalorder %s19, 3
      %s322 = scalar_select %p321, %s19, 3
      %s323 = smul.addr %s322, 128
      %s324 = smul.addr %s323, 8
      %s325 = scalar_lea.vmem %s8, %s324
      %vm326 = vcmask 64512
      %327 = vst.msk [vmem:[#allocation2] sm:$0xff] %vm326, 0.0
      %328 = vst.msk [vmem:[#allocation2 + $0x8] sm:$0xff] %vm326, 0.0
      %329 = vst.msk [vmem:[#allocation2 + $0x10] sm:$0xff] %vm326, 0.0
      %330 = vst.msk [vmem:[#allocation2 + $0x18] sm:$0xff] %vm326, 0.0
      %vm331 = vcmask 58368
      %332 = vst.msk [vmem:[#allocation2 + $0x20] sm:$0x3] %vm331, 0.0
      %333 = vst.msk [vmem:[#allocation2 + $0x28] sm:$0xff] %vm326, 0.0
      %334 = vst.msk [vmem:[#allocation2 + $0x30] sm:$0xff] %vm326, 0.0
      %335 = vst.msk [vmem:[#allocation2 + $0x38] sm:$0xff] %vm326, 0.0
      %336 = vst.msk [vmem:[#allocation2 + $0x40] sm:$0xff] %vm326, 0.0
      %337 = vst.msk [vmem:[#allocation2 + $0x48] sm:$0x3] %vm331, 0.0
      %338 = vst.msk [vmem:[#allocation2 + $0x50] sm:$0xff] %vm326, 0.0
      %339 = vst.msk [vmem:[#allocation2 + $0x58] sm:$0xff] %vm326, 0.0
      %340 = vst.msk [vmem:[#allocation2 + $0x60] sm:$0xff] %vm326, 0.0
      %341 = vst.msk [vmem:[#allocation2 + $0x68] sm:$0xff] %vm326, 0.0
      %342 = vst.msk [vmem:[#allocation2 + $0x70] sm:$0x3] %vm331, 0.0
      %343 = vst.msk [vmem:[#allocation2 + $0x78] sm:$0xff] %vm326, 0.0
      %344 = vst.msk [vmem:[#allocation2 + $0x80] sm:$0xff] %vm326, 0.0
      %345 = vst.msk [vmem:[#allocation2 + $0x88] sm:$0xff] %vm326, 0.0
      %346 = vst.msk [vmem:[#allocation2 + $0x90] sm:$0xff] %vm326, 0.0
      %347 = vst.msk [vmem:[#allocation2 + $0x98] sm:$0x3] %vm331, 0.0
      %348 = vst.msk [vmem:[#allocation2 + $0xa0] sm:$0xff] %vm326, 0.0
      %349 = vst.msk [vmem:[#allocation2 + $0xa8] sm:$0xff] %vm326, 0.0
      %350 = vst.msk [vmem:[#allocation2 + $0xb0] sm:$0xff] %vm326, 0.0
      %351 = vst.msk [vmem:[#allocation2 + $0xb8] sm:$0xff] %vm326, 0.0
      %352 = vst.msk [vmem:[#allocation2 + $0xc0] sm:$0x3] %vm331, 0.0
      %353 = vst.msk [vmem:[#allocation2 + $0xc8] sm:$0xff] %vm326, 0.0
      %354 = vst.msk [vmem:[#allocation2 + $0xd0] sm:$0xff] %vm326, 0.0
      %355 = vst.msk [vmem:[#allocation2 + $0xd8] sm:$0xff] %vm326, 0.0
      %356 = vst.msk [vmem:[#allocation2 + $0xe0] sm:$0xff] %vm326, 0.0
      %357 = vst.msk [vmem:[#allocation2 + $0xe8] sm:$0x3] %vm331, 0.0
      %358 = vst.msk [vmem:[#allocation2 + $0xf0] sm:$0xff] %vm326, 0.0
      %359 = vst.msk [vmem:[#allocation2 + $0xf8] sm:$0xff] %vm326, 0.0
      %360 = vst.msk [vmem:[#allocation2 + $0x100] sm:$0xff] %vm326, 0.0
      %361 = vst.msk [vmem:[#allocation2 + $0x108] sm:$0xff] %vm326, 0.0
      %362 = vst.msk [vmem:[#allocation2 + $0x110] sm:$0x3] %vm331, 0.0
      %363 = vst.msk [vmem:[#allocation2 + $0x118] sm:$0xff] %vm326, 0.0
      %364 = vst.msk [vmem:[#allocation2 + $0x120] sm:$0xff] %vm326, 0.0
      %365 = vst.msk [vmem:[#allocation2 + $0x128] sm:$0xff] %vm326, 0.0
      %366 = vst.msk [vmem:[#allocation2 + $0x130] sm:$0xff] %vm326, 0.0
      %367 = vst.msk [vmem:[#allocation2 + $0x138] sm:$0x3] %vm331, 0.0
      %368 = vst.msk [vmem:[#allocation2 + $0x140] sm:$0xff] %vm326, 0.0
      %369 = vst.msk [vmem:[#allocation2 + $0x148] sm:$0xff] %vm326, 0.0
      %370 = vst.msk [vmem:[#allocation2 + $0x150] sm:$0xff] %vm326, 0.0
      %371 = vst.msk [vmem:[#allocation2 + $0x158] sm:$0xff] %vm326, 0.0
      %372 = vst.msk [vmem:[#allocation2 + $0x160] sm:$0x3] %vm331, 0.0
      %373 = vst.msk [vmem:[#allocation2 + $0x168] sm:$0xff] %vm326, 0.0
      %374 = vst.msk [vmem:[#allocation2 + $0x170] sm:$0xff] %vm326, 0.0
      %375 = vst.msk [vmem:[#allocation2 + $0x178] sm:$0xff] %vm326, 0.0
      %376 = vst.msk [vmem:[#allocation2 + $0x180] sm:$0xff] %vm326, 0.0
      %377 = vst.msk [vmem:[#allocation2 + $0x188] sm:$0x3] %vm331, 0.0
      %378 = vst.msk [vmem:[#allocation2 + $0x190] sm:$0xff] %vm326, 0.0
      %379 = vst.msk [vmem:[#allocation2 + $0x198] sm:$0xff] %vm326, 0.0
      %380 = vst.msk [vmem:[#allocation2 + $0x1a0] sm:$0xff] %vm326, 0.0
      %381 = vst.msk [vmem:[#allocation2 + $0x1a8] sm:$0xff] %vm326, 0.0
      %382 = vst.msk [vmem:[#allocation2 + $0x1b0] sm:$0x3] %vm331, 0.0
      %383 = vst.msk [vmem:[#allocation2 + $0x1b8] sm:$0xff] %vm326, 0.0
      %384 = vst.msk [vmem:[#allocation2 + $0x1c0] sm:$0xff] %vm326, 0.0
      %385 = vst.msk [vmem:[#allocation2 + $0x1c8] sm:$0xff] %vm326, 0.0
      %386 = vst.msk [vmem:[#allocation2 + $0x1d0] sm:$0xff] %vm326, 0.0
      %387 = vst.msk [vmem:[#allocation2 + $0x1d8] sm:$0x3] %vm331, 0.0
      %388 = vst.msk [vmem:[#allocation2 + $0x1e0] sm:$0xff] %vm326, 0.0
      %389 = vst.msk [vmem:[#allocation2 + $0x1e8] sm:$0xff] %vm326, 0.0
      %390 = vst.msk [vmem:[#allocation2 + $0x1f0] sm:$0xff] %vm326, 0.0
      %391 = vst.msk [vmem:[#allocation2 + $0x1f8] sm:$0xff] %vm326, 0.0
      %392 = vst.msk [vmem:[#allocation2 + $0x200] sm:$0x3] %vm331, 0.0
      %393 = vst.msk [vmem:[#allocation2 + $0x208] sm:$0xff] %vm326, 0.0
      %394 = vst.msk [vmem:[#allocation2 + $0x210] sm:$0xff] %vm326, 0.0
      %395 = vst.msk [vmem:[#allocation2 + $0x218] sm:$0xff] %vm326, 0.0
      %396 = vst.msk [vmem:[#allocation2 + $0x220] sm:$0xff] %vm326, 0.0
      %397 = vst.msk [vmem:[#allocation2 + $0x228] sm:$0x3] %vm331, 0.0
      %398 = vst.msk [vmem:[#allocation2 + $0x230] sm:$0xff] %vm326, 0.0
      %399 = vst.msk [vmem:[#allocation2 + $0x238] sm:$0xff] %vm326, 0.0
      %400 = vst.msk [vmem:[#allocation2 + $0x240] sm:$0xff] %vm326, 0.0
      %401 = vst.msk [vmem:[#allocation2 + $0x248] sm:$0xff] %vm326, 0.0
      %402 = vst.msk [vmem:[#allocation2 + $0x250] sm:$0x3] %vm331, 0.0
      %403 = vst.msk [vmem:[#allocation2 + $0x258] sm:$0xff] %vm326, 0.0
      %404 = vst.msk [vmem:[#allocation2 + $0x260] sm:$0xff] %vm326, 0.0
      %405 = vst.msk [vmem:[#allocation2 + $0x268] sm:$0xff] %vm326, 0.0
      %406 = vst.msk [vmem:[#allocation2 + $0x270] sm:$0xff] %vm326, 0.0
      %407 = vst.msk [vmem:[#allocation2 + $0x278] sm:$0x3] %vm331, 0.0
      %408 = vst.msk [vmem:[#allocation2 + $0x280] sm:$0xff] %vm326, 0.0
      %409 = vst.msk [vmem:[#allocation2 + $0x288] sm:$0xff] %vm326, 0.0
      %410 = vst.msk [vmem:[#allocation2 + $0x290] sm:$0xff] %vm326, 0.0
      %411 = vst.msk [vmem:[#allocation2 + $0x298] sm:$0xff] %vm326, 0.0
      %412 = vst.msk [vmem:[#allocation2 + $0x2a0] sm:$0x3] %vm331, 0.0
      %413 = vst.msk [vmem:[#allocation2 + $0x2a8] sm:$0xff] %vm326, 0.0
      %414 = vst.msk [vmem:[#allocation2 + $0x2b0] sm:$0xff] %vm326, 0.0
      %415 = vst.msk [vmem:[#allocation2 + $0x2b8] sm:$0xff] %vm326, 0.0
      %416 = vst.msk [vmem:[#allocation2 + $0x2c0] sm:$0xff] %vm326, 0.0
      %417 = vst.msk [vmem:[#allocation2 + $0x2c8] sm:$0x3] %vm331, 0.0
      %418 = vst.msk [vmem:[#allocation2 + $0x2d0] sm:$0xff] %vm326, 0.0
      %419 = vst.msk [vmem:[#allocation2 + $0x2d8] sm:$0xff] %vm326, 0.0
      %420 = vst.msk [vmem:[#allocation2 + $0x2e0] sm:$0xff] %vm326, 0.0
      %421 = vst.msk [vmem:[#allocation2 + $0x2e8] sm:$0xff] %vm326, 0.0
      %422 = vst.msk [vmem:[#allocation2 + $0x2f0] sm:$0x3] %vm331, 0.0
      %423 = vst.msk [vmem:[#allocation2 + $0x2f8] sm:$0xff] %vm326, 0.0
      %424 = vst.msk [vmem:[#allocation2 + $0x300] sm:$0xff] %vm326, 0.0
      %425 = vst.msk [vmem:[#allocation2 + $0x308] sm:$0xff] %vm326, 0.0
      %426 = vst.msk [vmem:[#allocation2 + $0x310] sm:$0xff] %vm326, 0.0
      %427 = vst.msk [vmem:[#allocation2 + $0x318] sm:$0x3] %vm331, 0.0
      %428 = vst.msk [vmem:[#allocation2 + $0x320] sm:$0xff] %vm326, 0.0
      %429 = vst.msk [vmem:[#allocation2 + $0x328] sm:$0xff] %vm326, 0.0
      %430 = vst.msk [vmem:[#allocation2 + $0x330] sm:$0xff] %vm326, 0.0
      %431 = vst.msk [vmem:[#allocation2 + $0x338] sm:$0xff] %vm326, 0.0
      %432 = vst.msk [vmem:[#allocation2 + $0x340] sm:$0x3] %vm331, 0.0
      %433 = vst.msk [vmem:[#allocation2 + $0x348] sm:$0xff] %vm326, 0.0
      %434 = vst.msk [vmem:[#allocation2 + $0x350] sm:$0xff] %vm326, 0.0
      %435 = vst.msk [vmem:[#allocation2 + $0x358] sm:$0xff] %vm326, 0.0
      %436 = vst.msk [vmem:[#allocation2 + $0x360] sm:$0xff] %vm326, 0.0
      %437 = vst.msk [vmem:[#allocation2 + $0x368] sm:$0x3] %vm331, 0.0
      %438 = vst.msk [vmem:[#allocation2 + $0x370] sm:$0xff] %vm326, 0.0
      %439 = vst.msk [vmem:[#allocation2 + $0x378] sm:$0xff] %vm326, 0.0
      %440 = vst.msk [vmem:[#allocation2 + $0x380] sm:$0xff] %vm326, 0.0
      %441 = vst.msk [vmem:[#allocation2 + $0x388] sm:$0xff] %vm326, 0.0
      %442 = vst.msk [vmem:[#allocation2 + $0x390] sm:$0x3] %vm331, 0.0
      %443 = vst.msk [vmem:[#allocation2 + $0x398] sm:$0xff] %vm326, 0.0
      %444 = vst.msk [vmem:[#allocation2 + $0x3a0] sm:$0xff] %vm326, 0.0
      %445 = vst.msk [vmem:[#allocation2 + $0x3a8] sm:$0xff] %vm326, 0.0
      %446 = vst.msk [vmem:[#allocation2 + $0x3b0] sm:$0xff] %vm326, 0.0
      %447 = vst.msk [vmem:[#allocation2 + $0x3b8] sm:$0x3] %vm331, 0.0
      %448 = vst.msk [vmem:[#allocation2 + $0x3c0] sm:$0xff] %vm326, 0.0
      %449 = vst.msk [vmem:[#allocation2 + $0x3c8] sm:$0xff] %vm326, 0.0
      %450 = vst.msk [vmem:[#allocation2 + $0x3d0] sm:$0xff] %vm326, 0.0
      %451 = vst.msk [vmem:[#allocation2 + $0x3d8] sm:$0xff] %vm326, 0.0
      %452 = vst.msk [vmem:[#allocation2 + $0x3e0] sm:$0x3] %vm331, 0.0
      %453 = vst.msk [vmem:[#allocation2 + $0x3e8] sm:$0xff] %vm326, 0.0
      %454 = vst.msk [vmem:[#allocation2 + $0x3f0] sm:$0xff] %vm326, 0.0
      %455 = vst.msk [vmem:[#allocation2 + $0x3f8] sm:$0xff] %vm326, 0.0
      %456 = vst.msk [vmem:[#allocation2 + $0x400] sm:$0xff] %vm326, 0.0
      %457 = vst.msk [vmem:[#allocation2 + $0x408] sm:$0x3] %vm331, 0.0
      %458 = vst.msk [vmem:[#allocation2 + $0x410] sm:$0xff] %vm326, 0.0
      %459 = vst.msk [vmem:[#allocation2 + $0x418] sm:$0xff] %vm326, 0.0
      %460 = vst.msk [vmem:[#allocation2 + $0x420] sm:$0xff] %vm326, 0.0
      %461 = vst.msk [vmem:[#allocation2 + $0x428] sm:$0xff] %vm326, 0.0
      %462 = vst.msk [vmem:[#allocation2 + $0x430] sm:$0x3] %vm331, 0.0
      %463 = vst.msk [vmem:[#allocation2 + $0x438] sm:$0xff] %vm326, 0.0
      %464 = vst.msk [vmem:[#allocation2 + $0x440] sm:$0xff] %vm326, 0.0
      %465 = vst.msk [vmem:[#allocation2 + $0x448] sm:$0xff] %vm326, 0.0
      %466 = vst.msk [vmem:[#allocation2 + $0x450] sm:$0xff] %vm326, 0.0
      %467 = vst.msk [vmem:[#allocation2 + $0x458] sm:$0x3] %vm331, 0.0
      %468 = vst.msk [vmem:[#allocation2 + $0x460] sm:$0xff] %vm326, 0.0
      %469 = vst.msk [vmem:[#allocation2 + $0x468] sm:$0xff] %vm326, 0.0
      %470 = vst.msk [vmem:[#allocation2 + $0x470] sm:$0xff] %vm326, 0.0
      %471 = vst.msk [vmem:[#allocation2 + $0x478] sm:$0xff] %vm326, 0.0
      %472 = vst.msk [vmem:[#allocation2 + $0x480] sm:$0x3] %vm331, 0.0
      %473 = vst.msk [vmem:[#allocation2 + $0x488] sm:$0xff] %vm326, 0.0
      %474 = vst.msk [vmem:[#allocation2 + $0x490] sm:$0xff] %vm326, 0.0
      %475 = vst.msk [vmem:[#allocation2 + $0x498] sm:$0xff] %vm326, 0.0
      %476 = vst.msk [vmem:[#allocation2 + $0x4a0] sm:$0xff] %vm326, 0.0
      %477 = vst.msk [vmem:[#allocation2 + $0x4a8] sm:$0x3] %vm331, 0.0
      %478 = vst.msk [vmem:[#allocation2 + $0x4b0] sm:$0xff] %vm326, 0.0
      %479 = vst.msk [vmem:[#allocation2 + $0x4b8] sm:$0xff] %vm326, 0.0
      %480 = vst.msk [vmem:[#allocation2 + $0x4c0] sm:$0xff] %vm326, 0.0
      %481 = vst.msk [vmem:[#allocation2 + $0x4c8] sm:$0xff] %vm326, 0.0
      %482 = vst.msk [vmem:[#allocation2 + $0x4d0] sm:$0x3] %vm331, 0.0
      %483 = vst.msk [vmem:[#allocation2 + $0x4d8] sm:$0xff] %vm326, 0.0
      %484 = vst.msk [vmem:[#allocation2 + $0x4e0] sm:$0xff] %vm326, 0.0
      %485 = vst.msk [vmem:[#allocation2 + $0x4e8] sm:$0xff] %vm326, 0.0
      %486 = vst.msk [vmem:[#allocation2 + $0x4f0] sm:$0xff] %vm326, 0.0
      %487 = vst.msk [vmem:[#allocation2 + $0x4f8] sm:$0x3] %vm331, 0.0
      %488 = vst.msk [vmem:[#allocation2 + $0x500] sm:$0xff] %vm326, 0.0
      %489 = vst.msk [vmem:[#allocation2 + $0x508] sm:$0xff] %vm326, 0.0
      %490 = vst.msk [vmem:[#allocation2 + $0x510] sm:$0xff] %vm326, 0.0
      %491 = vst.msk [vmem:[#allocation2 + $0x518] sm:$0xff] %vm326, 0.0
      %492 = vst.msk [vmem:[#allocation2 + $0x520] sm:$0x3] %vm331, 0.0
      %493 = vst.msk [vmem:[#allocation2 + $0x528] sm:$0xff] %vm326, 0.0
      %494 = vst.msk [vmem:[#allocation2 + $0x530] sm:$0xff] %vm326, 0.0
      %495 = vst.msk [vmem:[#allocation2 + $0x538] sm:$0xff] %vm326, 0.0
      %496 = vst.msk [vmem:[#allocation2 + $0x540] sm:$0xff] %vm326, 0.0
      %497 = vst.msk [vmem:[#allocation2 + $0x548] sm:$0x3] %vm331, 0.0
      %v498 = vld [vmem:[%s315] sm:$0xff]
      %v499 = vld [vmem:[%s315 + $0x8] sm:$0xff]
      %v500 = vld [vmem:[%s315 + $0x10] sm:$0xff]
      %v501 = vld [vmem:[%s315 + $0x18] sm:$0xff]
      %v502 = vld [vmem:[%s315 + $0x20] sm:$0xff]
      %v503 = vld [vmem:[%s315 + $0x28] sm:$0xff]
      %v504 = vld [vmem:[%s315 + $0x30] sm:$0xff]
      %v505 = vld [vmem:[%s315 + $0x38] sm:$0xff]
      %v506 = vld [vmem:[%s315 + $0x40] sm:$0xff]
      %v507 = vld [vmem:[%s315 + $0x48] sm:$0xff]
      %v508 = vld [vmem:[%s315 + $0x50] sm:$0xff]
      %v509 = vld [vmem:[%s315 + $0x58] sm:$0xff]
      %v510 = vld [vmem:[%s315 + $0x60] sm:$0xff]
      %v511 = vld [vmem:[%s315 + $0x68] sm:$0xff]
      %v512 = vld [vmem:[%s315 + $0x70] sm:$0xff]
      %v513 = vld [vmem:[%s315 + $0x78] sm:$0xff]
      %v514 = vld [vmem:[%s315 + $0x80] sm:$0xff]
      %v515 = vld [vmem:[%s315 + $0x88] sm:$0xff]
      %v516 = vld [vmem:[%s315 + $0x90] sm:$0xff]
      %v517 = vld [vmem:[%s315 + $0x98] sm:$0xff]
      %v518 = vld [vmem:[%s315 + $0xa0] sm:$0xff]
      %v519 = vld [vmem:[%s315 + $0xa8] sm:$0xff]
      %v520 = vld [vmem:[%s315 + $0xb0] sm:$0xff]
      %v521 = vld [vmem:[%s315 + $0xb8] sm:$0xff]
      %v522 = vld [vmem:[%s315 + $0xc0] sm:$0xff]
      %v523 = vld [vmem:[%s315 + $0xc8] sm:$0xff]
      %v524 = vld [vmem:[%s315 + $0xd0] sm:$0xff]
      %v525 = vld [vmem:[%s315 + $0xd8] sm:$0xff]
      %v526 = vld [vmem:[%s315 + $0xe0] sm:$0xff]
      %v527 = vld [vmem:[%s315 + $0xe8] sm:$0xff]
      %v528 = vld [vmem:[%s315 + $0xf0] sm:$0xff]
      %v529 = vld [vmem:[%s315 + $0xf8] sm:$0xff]
      %v530 = vld [vmem:[%s315 + $0x100] sm:$0xff]
      %v531 = vld [vmem:[%s315 + $0x108] sm:$0xff]
      %v532 = vld [vmem:[%s315 + $0x110] sm:$0xff]
      %v533 = vld [vmem:[%s315 + $0x118] sm:$0xff]
      %v534 = vld [vmem:[%s315 + $0x120] sm:$0xff]
      %v535 = vld [vmem:[%s315 + $0x128] sm:$0xff]
      %v536 = vld [vmem:[%s315 + $0x130] sm:$0xff]
      %v537 = vld [vmem:[%s315 + $0x138] sm:$0xff]
      %v538 = vld [vmem:[%s315 + $0x140] sm:$0xff]
      %v539 = vld [vmem:[%s315 + $0x148] sm:$0xff]
      %v540 = vld [vmem:[%s315 + $0x150] sm:$0xff]
      %v541 = vld [vmem:[%s315 + $0x158] sm:$0xff]
      %v542 = vld [vmem:[%s315 + $0x160] sm:$0xff]
      %v543 = vld [vmem:[%s315 + $0x168] sm:$0xff]
      %v544 = vld [vmem:[%s315 + $0x170] sm:$0xff]
      %v545 = vld [vmem:[%s315 + $0x178] sm:$0xff]
      %v546 = vld [vmem:[%s315 + $0x180] sm:$0xff]
      %v547 = vld [vmem:[%s315 + $0x188] sm:$0xff]
      %v548 = vld [vmem:[%s315 + $0x190] sm:$0xff]
      %v549 = vld [vmem:[%s315 + $0x198] sm:$0xff]
      %v550 = vld [vmem:[%s315 + $0x1a0] sm:$0xff]
      %v551 = vld [vmem:[%s315 + $0x1a8] sm:$0xff]
      %v552 = vld [vmem:[%s315 + $0x1b0] sm:$0xff]
      %v553 = vld [vmem:[%s315 + $0x1b8] sm:$0xff]
      %v554 = vld [vmem:[%s315 + $0x1c0] sm:$0xff]
      %v555 = vld [vmem:[%s315 + $0x1c8] sm:$0xff]
      %v556 = vld [vmem:[%s315 + $0x1d0] sm:$0xff]
      %v557 = vld [vmem:[%s315 + $0x1d8] sm:$0xff]
      %v558 = vld [vmem:[%s315 + $0x1e0] sm:$0xff]
      %v559 = vld [vmem:[%s315 + $0x1e8] sm:$0xff]
      %v560 = vld [vmem:[%s315 + $0x1f0] sm:$0xff]
      %v561 = vld [vmem:[%s315 + $0x1f8] sm:$0xff]
      %v562 = vld [vmem:[%s315 + $0x200] sm:$0xff]
      %v563 = vld [vmem:[%s315 + $0x208] sm:$0xff]
      %v564 = vld [vmem:[%s315 + $0x210] sm:$0xff]
      %v565 = vld [vmem:[%s315 + $0x218] sm:$0xff]
      %v566 = vld [vmem:[%s315 + $0x220] sm:$0xff]
      %v567 = vld [vmem:[%s315 + $0x228] sm:$0xff]
      %v568 = vld [vmem:[%s315 + $0x230] sm:$0xff]
      %v569 = vld [vmem:[%s315 + $0x238] sm:$0xff]
      %v570 = vld [vmem:[%s315 + $0x240] sm:$0xff]
      %v571 = vld [vmem:[%s315 + $0x248] sm:$0xff]
      %v572 = vld [vmem:[%s315 + $0x250] sm:$0xff]
      %v573 = vld [vmem:[%s315 + $0x258] sm:$0xff]
      %v574 = vld [vmem:[%s315 + $0x260] sm:$0xff]
      %v575 = vld [vmem:[%s315 + $0x268] sm:$0xff]
      %v576 = vld [vmem:[%s315 + $0x270] sm:$0xff]
      %v577 = vld [vmem:[%s315 + $0x278] sm:$0xff]
      %v578 = vld [vmem:[%s315 + $0x280] sm:$0xff]
      %v579 = vld [vmem:[%s315 + $0x288] sm:$0xff]
      %v580 = vld [vmem:[%s315 + $0x290] sm:$0xff]
      %v581 = vld [vmem:[%s315 + $0x298] sm:$0xff]
      %v582 = vld [vmem:[%s315 + $0x2a0] sm:$0xff]
      %v583 = vld [vmem:[%s315 + $0x2a8] sm:$0xff]
      %v584 = vld [vmem:[%s315 + $0x2b0] sm:$0xff]
      %v585 = vld [vmem:[%s315 + $0x2b8] sm:$0xff]
      %v586 = vld [vmem:[%s315 + $0x2c0] sm:$0xff]
      %v587 = vld [vmem:[%s315 + $0x2c8] sm:$0xff]
      %v588 = vld [vmem:[%s315 + $0x2d0] sm:$0xff]
      %v589 = vld [vmem:[%s315 + $0x2d8] sm:$0xff]
      %v590 = vld [vmem:[%s315 + $0x2e0] sm:$0xff]
      %v591 = vld [vmem:[%s315 + $0x2e8] sm:$0xff]
      %v592 = vld [vmem:[%s315 + $0x2f0] sm:$0xff]
      %v593 = vld [vmem:[%s315 + $0x2f8] sm:$0xff]
      %v594 = vld [vmem:[%s315 + $0x300] sm:$0xff]
      %v595 = vld [vmem:[%s315 + $0x308] sm:$0xff]
      %v596 = vld [vmem:[%s315 + $0x310] sm:$0xff]
      %v597 = vld [vmem:[%s315 + $0x318] sm:$0xff]
      %v598 = vld [vmem:[%s315 + $0x320] sm:$0xff]
      %v599 = vld [vmem:[%s315 + $0x328] sm:$0xff]
      %v600 = vld [vmem:[%s315 + $0x330] sm:$0xff]
      %v601 = vld [vmem:[%s315 + $0x338] sm:$0xff]
      %v602 = vld [vmem:[%s315 + $0x340] sm:$0xff]
      %v603 = vld [vmem:[%s315 + $0x348] sm:$0xff]
      %v604 = vld [vmem:[%s315 + $0x350] sm:$0xff]
      %v605 = vld [vmem:[%s315 + $0x358] sm:$0xff]
      %v606 = vld [vmem:[%s315 + $0x360] sm:$0xff]
      %v607 = vld [vmem:[%s315 + $0x368] sm:$0xff]
      %v608 = vld [vmem:[%s315 + $0x370] sm:$0xff]
      %v609 = vld [vmem:[%s315 + $0x378] sm:$0xff]
      %v610 = vld [vmem:[%s315 + $0x380] sm:$0xff]
      %v611 = vld [vmem:[%s315 + $0x388] sm:$0xff]
      %v612 = vld [vmem:[%s315 + $0x390] sm:$0xff]
      %v613 = vld [vmem:[%s315 + $0x398] sm:$0xff]
      %v614 = vld [vmem:[%s315 + $0x3a0] sm:$0xff]
      %v615 = vld [vmem:[%s315 + $0x3a8] sm:$0xff]
      %v616 = vld [vmem:[%s315 + $0x3b0] sm:$0xff]
      %v617 = vld [vmem:[%s315 + $0x3b8] sm:$0xff]
      %v618 = vld [vmem:[%s315 + $0x3c0] sm:$0xff]
      %v619 = vld [vmem:[%s315 + $0x3c8] sm:$0xff]
      %v620 = vld [vmem:[%s315 + $0x3d0] sm:$0xff]
      %v621 = vld [vmem:[%s315 + $0x3d8] sm:$0xff]
      %v622 = vld [vmem:[%s315 + $0x3e0] sm:$0xff]
      %v623 = vld [vmem:[%s315 + $0x3e8] sm:$0xff]
      %v624 = vld [vmem:[%s315 + $0x3f0] sm:$0xff]
      %v625 = vld [vmem:[%s315 + $0x3f8] sm:$0xff]
      %s626 = scalar_lea.vmem [#allocation2], 40
      %vm627 = vcmask 31744
      %628 = vst.msk [vmem:[%s626 + $0x1] sm:$0xff] %vm627, %v498
      %629 = vst.msk [vmem:[%s626 + $0x9] sm:$0xff] %vm627, %v499
      %630 = vst.msk [vmem:[%s626 + $0x11] sm:$0xff] %vm627, %v500
      %631 = vst.msk [vmem:[%s626 + $0x19] sm:$0xff] %vm627, %v501
      %632 = vst.msk [vmem:[%s626 + $0x29] sm:$0xff] %vm627, %v502
      %633 = vst.msk [vmem:[%s626 + $0x31] sm:$0xff] %vm627, %v503
      %634 = vst.msk [vmem:[%s626 + $0x39] sm:$0xff] %vm627, %v504
      %635 = vst.msk [vmem:[%s626 + $0x41] sm:$0xff] %vm627, %v505
      %636 = vst.msk [vmem:[%s626 + $0x51] sm:$0xff] %vm627, %v506
      %637 = vst.msk [vmem:[%s626 + $0x59] sm:$0xff] %vm627, %v507
      %638 = vst.msk [vmem:[%s626 + $0x61] sm:$0xff] %vm627, %v508
      %639 = vst.msk [vmem:[%s626 + $0x69] sm:$0xff] %vm627, %v509
      %640 = vst.msk [vmem:[%s626 + $0x79] sm:$0xff] %vm627, %v510
      %641 = vst.msk [vmem:[%s626 + $0x81] sm:$0xff] %vm627, %v511
      %642 = vst.msk [vmem:[%s626 + $0x89] sm:$0xff] %vm627, %v512
      %643 = vst.msk [vmem:[%s626 + $0x91] sm:$0xff] %vm627, %v513
      %644 = vst.msk [vmem:[%s626 + $0xa1] sm:$0xff] %vm627, %v514
      %645 = vst.msk [vmem:[%s626 + $0xa9] sm:$0xff] %vm627, %v515
      %646 = vst.msk [vmem:[%s626 + $0xb1] sm:$0xff] %vm627, %v516
      %647 = vst.msk [vmem:[%s626 + $0xb9] sm:$0xff] %vm627, %v517
      %648 = vst.msk [vmem:[%s626 + $0xc9] sm:$0xff] %vm627, %v518
      %649 = vst.msk [vmem:[%s626 + $0xd1] sm:$0xff] %vm627, %v519
      %650 = vst.msk [vmem:[%s626 + $0xd9] sm:$0xff] %vm627, %v520
      %651 = vst.msk [vmem:[%s626 + $0xe1] sm:$0xff] %vm627, %v521
      %652 = vst.msk [vmem:[%s626 + $0xf1] sm:$0xff] %vm627, %v522
      %653 = vst.msk [vmem:[%s626 + $0xf9] sm:$0xff] %vm627, %v523
      %654 = vst.msk [vmem:[%s626 + $0x101] sm:$0xff] %vm627, %v524
      %655 = vst.msk [vmem:[%s626 + $0x109] sm:$0xff] %vm627, %v525
      %656 = vst.msk [vmem:[%s626 + $0x119] sm:$0xff] %vm627, %v526
      %657 = vst.msk [vmem:[%s626 + $0x121] sm:$0xff] %vm627, %v527
      %658 = vst.msk [vmem:[%s626 + $0x129] sm:$0xff] %vm627, %v528
      %659 = vst.msk [vmem:[%s626 + $0x131] sm:$0xff] %vm627, %v529
      %660 = vst.msk [vmem:[%s626 + $0x141] sm:$0xff] %vm627, %v530
      %661 = vst.msk [vmem:[%s626 + $0x149] sm:$0xff] %vm627, %v531
      %662 = vst.msk [vmem:[%s626 + $0x151] sm:$0xff] %vm627, %v532
      %663 = vst.msk [vmem:[%s626 + $0x159] sm:$0xff] %vm627, %v533
      %664 = vst.msk [vmem:[%s626 + $0x169] sm:$0xff] %vm627, %v534
      %665 = vst.msk [vmem:[%s626 + $0x171] sm:$0xff] %vm627, %v535
      %666 = vst.msk [vmem:[%s626 + $0x179] sm:$0xff] %vm627, %v536
      %667 = vst.msk [vmem:[%s626 + $0x181] sm:$0xff] %vm627, %v537
      %668 = vst.msk [vmem:[%s626 + $0x191] sm:$0xff] %vm627, %v538
      %669 = vst.msk [vmem:[%s626 + $0x199] sm:$0xff] %vm627, %v539
      %670 = vst.msk [vmem:[%s626 + $0x1a1] sm:$0xff] %vm627, %v540
      %671 = vst.msk [vmem:[%s626 + $0x1a9] sm:$0xff] %vm627, %v541
      %672 = vst.msk [vmem:[%s626 + $0x1b9] sm:$0xff] %vm627, %v542
      %673 = vst.msk [vmem:[%s626 + $0x1c1] sm:$0xff] %vm627, %v543
      %674 = vst.msk [vmem:[%s626 + $0x1c9] sm:$0xff] %vm627, %v544
      %675 = vst.msk [vmem:[%s626 + $0x1d1] sm:$0xff] %vm627, %v545
      %676 = vst.msk [vmem:[%s626 + $0x1e1] sm:$0xff] %vm627, %v546
      %677 = vst.msk [vmem:[%s626 + $0x1e9] sm:$0xff] %vm627, %v547
      %678 = vst.msk [vmem:[%s626 + $0x1f1] sm:$0xff] %vm627, %v548
      %679 = vst.msk [vmem:[%s626 + $0x1f9] sm:$0xff] %vm627, %v549
      %680 = vst.msk [vmem:[%s626 + $0x209] sm:$0xff] %vm627, %v550
      %681 = vst.msk [vmem:[%s626 + $0x211] sm:$0xff] %vm627, %v551
      %682 = vst.msk [vmem:[%s626 + $0x219] sm:$0xff] %vm627, %v552
      %683 = vst.msk [vmem:[%s626 + $0x221] sm:$0xff] %vm627, %v553
      %684 = vst.msk [vmem:[%s626 + $0x231] sm:$0xff] %vm627, %v554
      %685 = vst.msk [vmem:[%s626 + $0x239] sm:$0xff] %vm627, %v555
      %686 = vst.msk [vmem:[%s626 + $0x241] sm:$0xff] %vm627, %v556
      %687 = vst.msk [vmem:[%s626 + $0x249] sm:$0xff] %vm627, %v557
      %688 = vst.msk [vmem:[%s626 + $0x259] sm:$0xff] %vm627, %v558
      %689 = vst.msk [vmem:[%s626 + $0x261] sm:$0xff] %vm627, %v559
      %690 = vst.msk [vmem:[%s626 + $0x269] sm:$0xff] %vm627, %v560
      %691 = vst.msk [vmem:[%s626 + $0x271] sm:$0xff] %vm627, %v561
      %692 = vst.msk [vmem:[%s626 + $0x281] sm:$0xff] %vm627, %v562
      %693 = vst.msk [vmem:[%s626 + $0x289] sm:$0xff] %vm627, %v563
      %694 = vst.msk [vmem:[%s626 + $0x291] sm:$0xff] %vm627, %v564
      %695 = vst.msk [vmem:[%s626 + $0x299] sm:$0xff] %vm627, %v565
      %696 = vst.msk [vmem:[%s626 + $0x2a9] sm:$0xff] %vm627, %v566
      %697 = vst.msk [vmem:[%s626 + $0x2b1] sm:$0xff] %vm627, %v567
      %698 = vst.msk [vmem:[%s626 + $0x2b9] sm:$0xff] %vm627, %v568
      %699 = vst.msk [vmem:[%s626 + $0x2c1] sm:$0xff] %vm627, %v569
      %700 = vst.msk [vmem:[%s626 + $0x2d1] sm:$0xff] %vm627, %v570
      %701 = vst.msk [vmem:[%s626 + $0x2d9] sm:$0xff] %vm627, %v571
      %702 = vst.msk [vmem:[%s626 + $0x2e1] sm:$0xff] %vm627, %v572
      %703 = vst.msk [vmem:[%s626 + $0x2e9] sm:$0xff] %vm627, %v573
      %704 = vst.msk [vmem:[%s626 + $0x2f9] sm:$0xff] %vm627, %v574
      %705 = vst.msk [vmem:[%s626 + $0x301] sm:$0xff] %vm627, %v575
      %706 = vst.msk [vmem:[%s626 + $0x309] sm:$0xff] %vm627, %v576
      %707 = vst.msk [vmem:[%s626 + $0x311] sm:$0xff] %vm627, %v577
      %708 = vst.msk [vmem:[%s626 + $0x321] sm:$0xff] %vm627, %v578
      %709 = vst.msk [vmem:[%s626 + $0x329] sm:$0xff] %vm627, %v579
      %710 = vst.msk [vmem:[%s626 + $0x331] sm:$0xff] %vm627, %v580
      %711 = vst.msk [vmem:[%s626 + $0x339] sm:$0xff] %vm627, %v581
      %712 = vst.msk [vmem:[%s626 + $0x349] sm:$0xff] %vm627, %v582
      %713 = vst.msk [vmem:[%s626 + $0x351] sm:$0xff] %vm627, %v583
      %714 = vst.msk [vmem:[%s626 + $0x359] sm:$0xff] %vm627, %v584
      %715 = vst.msk [vmem:[%s626 + $0x361] sm:$0xff] %vm627, %v585
      %716 = vst.msk [vmem:[%s626 + $0x371] sm:$0xff] %vm627, %v586
      %717 = vst.msk [vmem:[%s626 + $0x379] sm:$0xff] %vm627, %v587
      %718 = vst.msk [vmem:[%s626 + $0x381] sm:$0xff] %vm627, %v588
      %719 = vst.msk [vmem:[%s626 + $0x389] sm:$0xff] %vm627, %v589
      %720 = vst.msk [vmem:[%s626 + $0x399] sm:$0xff] %vm627, %v590
      %721 = vst.msk [vmem:[%s626 + $0x3a1] sm:$0xff] %vm627, %v591
      %722 = vst.msk [vmem:[%s626 + $0x3a9] sm:$0xff] %vm627, %v592
      %723 = vst.msk [vmem:[%s626 + $0x3b1] sm:$0xff] %vm627, %v593
      %724 = vst.msk [vmem:[%s626 + $0x3c1] sm:$0xff] %vm627, %v594
      %725 = vst.msk [vmem:[%s626 + $0x3c9] sm:$0xff] %vm627, %v595
      %726 = vst.msk [vmem:[%s626 + $0x3d1] sm:$0xff] %vm627, %v596
      %727 = vst.msk [vmem:[%s626 + $0x3d9] sm:$0xff] %vm627, %v597
      %728 = vst.msk [vmem:[%s626 + $0x3e9] sm:$0xff] %vm627, %v598
      %729 = vst.msk [vmem:[%s626 + $0x3f1] sm:$0xff] %vm627, %v599
      %730 = vst.msk [vmem:[%s626 + $0x3f9] sm:$0xff] %vm627, %v600
      %731 = vst.msk [vmem:[%s626 + $0x401] sm:$0xff] %vm627, %v601
      %732 = vst.msk [vmem:[%s626 + $0x411] sm:$0xff] %vm627, %v602
      %733 = vst.msk [vmem:[%s626 + $0x419] sm:$0xff] %vm627, %v603
      %734 = vst.msk [vmem:[%s626 + $0x421] sm:$0xff] %vm627, %v604
      %735 = vst.msk [vmem:[%s626 + $0x429] sm:$0xff] %vm627, %v605
      %736 = vst.msk [vmem:[%s626 + $0x439] sm:$0xff] %vm627, %v606
      %737 = vst.msk [vmem:[%s626 + $0x441] sm:$0xff] %vm627, %v607
      %738 = vst.msk [vmem:[%s626 + $0x449] sm:$0xff] %vm627, %v608
      %739 = vst.msk [vmem:[%s626 + $0x451] sm:$0xff] %vm627, %v609
      %740 = vst.msk [vmem:[%s626 + $0x461] sm:$0xff] %vm627, %v610
      %741 = vst.msk [vmem:[%s626 + $0x469] sm:$0xff] %vm627, %v611
      %742 = vst.msk [vmem:[%s626 + $0x471] sm:$0xff] %vm627, %v612
      %743 = vst.msk [vmem:[%s626 + $0x479] sm:$0xff] %vm627, %v613
      %744 = vst.msk [vmem:[%s626 + $0x489] sm:$0xff] %vm627, %v614
      %745 = vst.msk [vmem:[%s626 + $0x491] sm:$0xff] %vm627, %v615
      %746 = vst.msk [vmem:[%s626 + $0x499] sm:$0xff] %vm627, %v616
      %747 = vst.msk [vmem:[%s626 + $0x4a1] sm:$0xff] %vm627, %v617
      %748 = vst.msk [vmem:[%s626 + $0x4b1] sm:$0xff] %vm627, %v618
      %749 = vst.msk [vmem:[%s626 + $0x4b9] sm:$0xff] %vm627, %v619
      %750 = vst.msk [vmem:[%s626 + $0x4c1] sm:$0xff] %vm627, %v620
      %751 = vst.msk [vmem:[%s626 + $0x4c9] sm:$0xff] %vm627, %v621
      %752 = vst.msk [vmem:[%s626 + $0x4d9] sm:$0xff] %vm627, %v622
      %753 = vst.msk [vmem:[%s626 + $0x4e1] sm:$0xff] %vm627, %v623
      %754 = vst.msk [vmem:[%s626 + $0x4e9] sm:$0xff] %vm627, %v624
      %755 = vst.msk [vmem:[%s626 + $0x4f1] sm:$0xff] %vm627, %v625
      %v756 = vld [vmem:[%s320] sm:$0xff]
      %v757 = vld [vmem:[%s320 + $0x8] sm:$0xff]
      %v758 = vld [vmem:[%s320 + $0x10] sm:$0xff]
      %v759 = vld [vmem:[%s320 + $0x18] sm:$0xff]
      %v760 = vld [vmem:[%s320 + $0x20] sm:$0xff]
      %v761 = vld [vmem:[%s320 + $0x28] sm:$0xff]
      %v762 = vld [vmem:[%s320 + $0x30] sm:$0xff]
      %v763 = vld [vmem:[%s320 + $0x38] sm:$0xff]
      %v764 = vld [vmem:[%s320 + $0x40] sm:$0xff]
      %v765 = vld [vmem:[%s320 + $0x48] sm:$0xff]
      %v766 = vld [vmem:[%s320 + $0x50] sm:$0xff]
      %v767 = vld [vmem:[%s320 + $0x58] sm:$0xff]
      %v768 = vld [vmem:[%s320 + $0x60] sm:$0xff]
      %v769 = vld [vmem:[%s320 + $0x68] sm:$0xff]
      %v770 = vld [vmem:[%s320 + $0x70] sm:$0xff]
      %v771 = vld [vmem:[%s320 + $0x78] sm:$0xff]
      %v772 = vld [vmem:[%s320 + $0x80] sm:$0xff]
      %v773 = vld [vmem:[%s320 + $0x88] sm:$0xff]
      %v774 = vld [vmem:[%s320 + $0x90] sm:$0xff]
      %v775 = vld [vmem:[%s320 + $0x98] sm:$0xff]
      %v776 = vld [vmem:[%s320 + $0xa0] sm:$0xff]
      %v777 = vld [vmem:[%s320 + $0xa8] sm:$0xff]
      %v778 = vld [vmem:[%s320 + $0xb0] sm:$0xff]
      %v779 = vld [vmem:[%s320 + $0xb8] sm:$0xff]
      %v780 = vld [vmem:[%s320 + $0xc0] sm:$0xff]
      %v781 = vld [vmem:[%s320 + $0xc8] sm:$0xff]
      %v782 = vld [vmem:[%s320 + $0xd0] sm:$0xff]
      %v783 = vld [vmem:[%s320 + $0xd8] sm:$0xff]
      %v784 = vld [vmem:[%s320 + $0xe0] sm:$0xff]
      %v785 = vld [vmem:[%s320 + $0xe8] sm:$0xff]
      %v786 = vld [vmem:[%s320 + $0xf0] sm:$0xff]
      %v787 = vld [vmem:[%s320 + $0xf8] sm:$0xff]
      %v788 = vld [vmem:[%s320 + $0x100] sm:$0xff]
      %v789 = vld [vmem:[%s320 + $0x108] sm:$0xff]
      %v790 = vld [vmem:[%s320 + $0x110] sm:$0xff]
      %v791 = vld [vmem:[%s320 + $0x118] sm:$0xff]
      %v792 = vld [vmem:[%s320 + $0x120] sm:$0xff]
      %v793 = vld [vmem:[%s320 + $0x128] sm:$0xff]
      %v794 = vld [vmem:[%s320 + $0x130] sm:$0xff]
      %v795 = vld [vmem:[%s320 + $0x138] sm:$0xff]
      %v796 = vld [vmem:[%s320 + $0x140] sm:$0xff]
      %v797 = vld [vmem:[%s320 + $0x148] sm:$0xff]
      %v798 = vld [vmem:[%s320 + $0x150] sm:$0xff]
      %v799 = vld [vmem:[%s320 + $0x158] sm:$0xff]
      %v800 = vld [vmem:[%s320 + $0x160] sm:$0xff]
      %v801 = vld [vmem:[%s320 + $0x168] sm:$0xff]
      %v802 = vld [vmem:[%s320 + $0x170] sm:$0xff]
      %v803 = vld [vmem:[%s320 + $0x178] sm:$0xff]
      %v804 = vld [vmem:[%s320 + $0x180] sm:$0xff]
      %v805 = vld [vmem:[%s320 + $0x188] sm:$0xff]
      %v806 = vld [vmem:[%s320 + $0x190] sm:$0xff]
      %v807 = vld [vmem:[%s320 + $0x198] sm:$0xff]
      %v808 = vld [vmem:[%s320 + $0x1a0] sm:$0xff]
      %v809 = vld [vmem:[%s320 + $0x1a8] sm:$0xff]
      %v810 = vld [vmem:[%s320 + $0x1b0] sm:$0xff]
      %v811 = vld [vmem:[%s320 + $0x1b8] sm:$0xff]
      %v812 = vld [vmem:[%s320 + $0x1c0] sm:$0xff]
      %v813 = vld [vmem:[%s320 + $0x1c8] sm:$0xff]
      %v814 = vld [vmem:[%s320 + $0x1d0] sm:$0xff]
      %v815 = vld [vmem:[%s320 + $0x1d8] sm:$0xff]
      %v816 = vld [vmem:[%s320 + $0x1e0] sm:$0xff]
      %v817 = vld [vmem:[%s320 + $0x1e8] sm:$0xff]
      %v818 = vld [vmem:[%s320 + $0x1f0] sm:$0xff]
      %v819 = vld [vmem:[%s320 + $0x1f8] sm:$0xff]
      %v820 = vld [vmem:[%s320 + $0x200] sm:$0xff]
      %v821 = vld [vmem:[%s320 + $0x208] sm:$0xff]
      %v822 = vld [vmem:[%s320 + $0x210] sm:$0xff]
      %v823 = vld [vmem:[%s320 + $0x218] sm:$0xff]
      %v824 = vld [vmem:[%s320 + $0x220] sm:$0xff]
      %v825 = vld [vmem:[%s320 + $0x228] sm:$0xff]
      %v826 = vld [vmem:[%s320 + $0x230] sm:$0xff]
      %v827 = vld [vmem:[%s320 + $0x238] sm:$0xff]
      %v828 = vld [vmem:[%s320 + $0x240] sm:$0xff]
      %v829 = vld [vmem:[%s320 + $0x248] sm:$0xff]
      %v830 = vld [vmem:[%s320 + $0x250] sm:$0xff]
      %v831 = vld [vmem:[%s320 + $0x258] sm:$0xff]
      %v832 = vld [vmem:[%s320 + $0x260] sm:$0xff]
      %v833 = vld [vmem:[%s320 + $0x268] sm:$0xff]
      %v834 = vld [vmem:[%s320 + $0x270] sm:$0xff]
      %v835 = vld [vmem:[%s320 + $0x278] sm:$0xff]
      %v836 = vld [vmem:[%s320 + $0x280] sm:$0xff]
      %v837 = vld [vmem:[%s320 + $0x288] sm:$0xff]
      %v838 = vld [vmem:[%s320 + $0x290] sm:$0xff]
      %v839 = vld [vmem:[%s320 + $0x298] sm:$0xff]
      %v840 = vld [vmem:[%s320 + $0x2a0] sm:$0xff]
      %v841 = vld [vmem:[%s320 + $0x2a8] sm:$0xff]
      %v842 = vld [vmem:[%s320 + $0x2b0] sm:$0xff]
      %v843 = vld [vmem:[%s320 + $0x2b8] sm:$0xff]
      %v844 = vld [vmem:[%s320 + $0x2c0] sm:$0xff]
      %v845 = vld [vmem:[%s320 + $0x2c8] sm:$0xff]
      %v846 = vld [vmem:[%s320 + $0x2d0] sm:$0xff]
      %v847 = vld [vmem:[%s320 + $0x2d8] sm:$0xff]
      %v848 = vld [vmem:[%s320 + $0x2e0] sm:$0xff]
      %v849 = vld [vmem:[%s320 + $0x2e8] sm:$0xff]
      %v850 = vld [vmem:[%s320 + $0x2f0] sm:$0xff]
      %v851 = vld [vmem:[%s320 + $0x2f8] sm:$0xff]
      %v852 = vld [vmem:[%s320 + $0x300] sm:$0xff]
      %v853 = vld [vmem:[%s320 + $0x308] sm:$0xff]
      %v854 = vld [vmem:[%s320 + $0x310] sm:$0xff]
      %v855 = vld [vmem:[%s320 + $0x318] sm:$0xff]
      %v856 = vld [vmem:[%s320 + $0x320] sm:$0xff]
      %v857 = vld [vmem:[%s320 + $0x328] sm:$0xff]
      %v858 = vld [vmem:[%s320 + $0x330] sm:$0xff]
      %v859 = vld [vmem:[%s320 + $0x338] sm:$0xff]
      %v860 = vld [vmem:[%s320 + $0x340] sm:$0xff]
      %v861 = vld [vmem:[%s320 + $0x348] sm:$0xff]
      %v862 = vld [vmem:[%s320 + $0x350] sm:$0xff]
      %v863 = vld [vmem:[%s320 + $0x358] sm:$0xff]
      %v864 = vld [vmem:[%s320 + $0x360] sm:$0xff]
      %v865 = vld [vmem:[%s320 + $0x368] sm:$0xff]
      %v866 = vld [vmem:[%s320 + $0x370] sm:$0xff]
      %v867 = vld [vmem:[%s320 + $0x378] sm:$0xff]
      %v868 = vld [vmem:[%s320 + $0x380] sm:$0xff]
      %v869 = vld [vmem:[%s320 + $0x388] sm:$0xff]
      %v870 = vld [vmem:[%s320 + $0x390] sm:$0xff]
      %v871 = vld [vmem:[%s320 + $0x398] sm:$0xff]
      %v872 = vld [vmem:[%s320 + $0x3a0] sm:$0xff]
      %v873 = vld [vmem:[%s320 + $0x3a8] sm:$0xff]
      %v874 = vld [vmem:[%s320 + $0x3b0] sm:$0xff]
      %v875 = vld [vmem:[%s320 + $0x3b8] sm:$0xff]
      %v876 = vld [vmem:[%s320 + $0x3c0] sm:$0xff]
      %v877 = vld [vmem:[%s320 + $0x3c8] sm:$0xff]
      %v878 = vld [vmem:[%s320 + $0x3d0] sm:$0xff]
      %v879 = vld [vmem:[%s320 + $0x3d8] sm:$0xff]
      %v880 = vld [vmem:[%s320 + $0x3e0] sm:$0xff]
      %v881 = vld [vmem:[%s320 + $0x3e8] sm:$0xff]
      %v882 = vld [vmem:[%s320 + $0x3f0] sm:$0xff]
      %v883 = vld [vmem:[%s320 + $0x3f8] sm:$0xff]
      %1012 = vrot.lane.b32.xlu0 %v756, 4
      %v1013 = vpop.permute.xlu0 %1012
      %1014 = vrot.lane.b32.xlu0 %v757, 4
      %v1015 = vpop.permute.xlu0 %1014
      %1016 = vrot.lane.b32.xlu0 %v758, 4
      %v1017 = vpop.permute.xlu0 %1016
      %1018 = vrot.lane.b32.xlu0 %v759, 4
      %v1019 = vpop.permute.xlu0 %1018
      %1020 = vrot.lane.b32.xlu0 %v760, 4
      %v1021 = vpop.permute.xlu0 %1020
      %1022 = vrot.lane.b32.xlu0 %v761, 4
      %v1023 = vpop.permute.xlu0 %1022
      %1024 = vrot.lane.b32.xlu0 %v762, 4
      %v1025 = vpop.permute.xlu0 %1024
      %1026 = vrot.lane.b32.xlu0 %v763, 4
      %v1027 = vpop.permute.xlu0 %1026
      %1028 = vrot.lane.b32.xlu0 %v764, 4
      %v1029 = vpop.permute.xlu0 %1028
      %1030 = vrot.lane.b32.xlu0 %v765, 4
      %v1031 = vpop.permute.xlu0 %1030
      %1032 = vrot.lane.b32.xlu0 %v766, 4
      %v1033 = vpop.permute.xlu0 %1032
      %1034 = vrot.lane.b32.xlu0 %v767, 4
      %v1035 = vpop.permute.xlu0 %1034
      %1036 = vrot.lane.b32.xlu0 %v768, 4
      %v1037 = vpop.permute.xlu0 %1036
      %1038 = vrot.lane.b32.xlu0 %v769, 4
      %v1039 = vpop.permute.xlu0 %1038
      %1040 = vrot.lane.b32.xlu0 %v770, 4
      %v1041 = vpop.permute.xlu0 %1040
      %1042 = vrot.lane.b32.xlu0 %v771, 4
      %v1043 = vpop.permute.xlu0 %1042
      %1044 = vrot.lane.b32.xlu0 %v772, 4
      %v1045 = vpop.permute.xlu0 %1044
      %1046 = vrot.lane.b32.xlu0 %v773, 4
      %v1047 = vpop.permute.xlu0 %1046
      %1048 = vrot.lane.b32.xlu0 %v774, 4
      %v1049 = vpop.permute.xlu0 %1048
      %1050 = vrot.lane.b32.xlu0 %v775, 4
      %v1051 = vpop.permute.xlu0 %1050
      %1052 = vrot.lane.b32.xlu0 %v776, 4
      %v1053 = vpop.permute.xlu0 %1052
      %1054 = vrot.lane.b32.xlu0 %v777, 4
      %v1055 = vpop.permute.xlu0 %1054
      %1056 = vrot.lane.b32.xlu0 %v778, 4
      %v1057 = vpop.permute.xlu0 %1056
      %1058 = vrot.lane.b32.xlu0 %v779, 4
      %v1059 = vpop.permute.xlu0 %1058
      %1060 = vrot.lane.b32.xlu0 %v780, 4
      %v1061 = vpop.permute.xlu0 %1060
      %1062 = vrot.lane.b32.xlu0 %v781, 4
      %v1063 = vpop.permute.xlu0 %1062
      %1064 = vrot.lane.b32.xlu0 %v782, 4
      %v1065 = vpop.permute.xlu0 %1064
      %1066 = vrot.lane.b32.xlu0 %v783, 4
      %v1067 = vpop.permute.xlu0 %1066
      %1068 = vrot.lane.b32.xlu0 %v784, 4
      %v1069 = vpop.permute.xlu0 %1068
      %1070 = vrot.lane.b32.xlu0 %v785, 4
      %v1071 = vpop.permute.xlu0 %1070
      %1072 = vrot.lane.b32.xlu0 %v786, 4
      %v1073 = vpop.permute.xlu0 %1072
      %1074 = vrot.lane.b32.xlu0 %v787, 4
      %v1075 = vpop.permute.xlu0 %1074
      %1076 = vrot.lane.b32.xlu0 %v788, 4
      %v1077 = vpop.permute.xlu0 %1076
      %1078 = vrot.lane.b32.xlu0 %v789, 4
      %v1079 = vpop.permute.xlu0 %1078
      %1080 = vrot.lane.b32.xlu0 %v790, 4
      %v1081 = vpop.permute.xlu0 %1080
      %1082 = vrot.lane.b32.xlu0 %v791, 4
      %v1083 = vpop.permute.xlu0 %1082
      %1084 = vrot.lane.b32.xlu0 %v792, 4
      %v1085 = vpop.permute.xlu0 %1084
      %1086 = vrot.lane.b32.xlu0 %v793, 4
      %v1087 = vpop.permute.xlu0 %1086
      %1088 = vrot.lane.b32.xlu0 %v794, 4
      %v1089 = vpop.permute.xlu0 %1088
      %1090 = vrot.lane.b32.xlu0 %v795, 4
      %v1091 = vpop.permute.xlu0 %1090
      %1092 = vrot.lane.b32.xlu0 %v796, 4
      %v1093 = vpop.permute.xlu0 %1092
      %1094 = vrot.lane.b32.xlu0 %v797, 4
      %v1095 = vpop.permute.xlu0 %1094
      %1096 = vrot.lane.b32.xlu0 %v798, 4
      %v1097 = vpop.permute.xlu0 %1096
      %1098 = vrot.lane.b32.xlu0 %v799, 4
      %v1099 = vpop.permute.xlu0 %1098
      %1100 = vrot.lane.b32.xlu0 %v800, 4
      %v1101 = vpop.permute.xlu0 %1100
      %1102 = vrot.lane.b32.xlu0 %v801, 4
      %v1103 = vpop.permute.xlu0 %1102
      %1104 = vrot.lane.b32.xlu0 %v802, 4
      %v1105 = vpop.permute.xlu0 %1104
      %1106 = vrot.lane.b32.xlu0 %v803, 4
      %v1107 = vpop.permute.xlu0 %1106
      %1108 = vrot.lane.b32.xlu0 %v804, 4
      %v1109 = vpop.permute.xlu0 %1108
      %1110 = vrot.lane.b32.xlu0 %v805, 4
      %v1111 = vpop.permute.xlu0 %1110
      %1112 = vrot.lane.b32.xlu0 %v806, 4
      %v1113 = vpop.permute.xlu0 %1112
      %1114 = vrot.lane.b32.xlu0 %v807, 4
      %v1115 = vpop.permute.xlu0 %1114
      %1116 = vrot.lane.b32.xlu0 %v808, 4
      %v1117 = vpop.permute.xlu0 %1116
      %1118 = vrot.lane.b32.xlu0 %v809, 4
      %v1119 = vpop.permute.xlu0 %1118
      %1120 = vrot.lane.b32.xlu0 %v810, 4
      %v1121 = vpop.permute.xlu0 %1120
      %1122 = vrot.lane.b32.xlu0 %v811, 4
      %v1123 = vpop.permute.xlu0 %1122
      %1124 = vrot.lane.b32.xlu0 %v812, 4
      %v1125 = vpop.permute.xlu0 %1124
      %1126 = vrot.lane.b32.xlu0 %v813, 4
      %v1127 = vpop.permute.xlu0 %1126
      %1128 = vrot.lane.b32.xlu0 %v814, 4
      %v1129 = vpop.permute.xlu0 %1128
      %1130 = vrot.lane.b32.xlu0 %v815, 4
      %v1131 = vpop.permute.xlu0 %1130
      %1132 = vrot.lane.b32.xlu0 %v816, 4
      %v1133 = vpop.permute.xlu0 %1132
      %1134 = vrot.lane.b32.xlu0 %v817, 4
      %v1135 = vpop.permute.xlu0 %1134
      %1136 = vrot.lane.b32.xlu0 %v818, 4
      %v1137 = vpop.permute.xlu0 %1136
      %1138 = vrot.lane.b32.xlu0 %v819, 4
      %v1139 = vpop.permute.xlu0 %1138
      %1140 = vrot.lane.b32.xlu0 %v820, 4
      %v1141 = vpop.permute.xlu0 %1140
      %1142 = vrot.lane.b32.xlu0 %v821, 4
      %v1143 = vpop.permute.xlu0 %1142
      %1144 = vrot.lane.b32.xlu0 %v822, 4
      %v1145 = vpop.permute.xlu0 %1144
      %1146 = vrot.lane.b32.xlu0 %v823, 4
      %v1147 = vpop.permute.xlu0 %1146
      %1148 = vrot.lane.b32.xlu0 %v824, 4
      %v1149 = vpop.permute.xlu0 %1148
      %1150 = vrot.lane.b32.xlu0 %v825, 4
      %v1151 = vpop.permute.xlu0 %1150
      %1152 = vrot.lane.b32.xlu0 %v826, 4
      %v1153 = vpop.permute.xlu0 %1152
      %1154 = vrot.lane.b32.xlu0 %v827, 4
      %v1155 = vpop.permute.xlu0 %1154
      %1156 = vrot.lane.b32.xlu0 %v828, 4
      %v1157 = vpop.permute.xlu0 %1156
      %1158 = vrot.lane.b32.xlu0 %v829, 4
      %v1159 = vpop.permute.xlu0 %1158
      %1160 = vrot.lane.b32.xlu0 %v830, 4
      %v1161 = vpop.permute.xlu0 %1160
      %1162 = vrot.lane.b32.xlu0 %v831, 4
      %v1163 = vpop.permute.xlu0 %1162
      %1164 = vrot.lane.b32.xlu0 %v832, 4
      %v1165 = vpop.permute.xlu0 %1164
      %1166 = vrot.lane.b32.xlu0 %v833, 4
      %v1167 = vpop.permute.xlu0 %1166
      %1168 = vrot.lane.b32.xlu0 %v834, 4
      %v1169 = vpop.permute.xlu0 %1168
      %1170 = vrot.lane.b32.xlu0 %v835, 4
      %v1171 = vpop.permute.xlu0 %1170
      %1172 = vrot.lane.b32.xlu0 %v836, 4
      %v1173 = vpop.permute.xlu0 %1172
      %1174 = vrot.lane.b32.xlu0 %v837, 4
      %v1175 = vpop.permute.xlu0 %1174
      %1176 = vrot.lane.b32.xlu0 %v838, 4
      %v1177 = vpop.permute.xlu0 %1176
      %1178 = vrot.lane.b32.xlu0 %v839, 4
      %v1179 = vpop.permute.xlu0 %1178
      %1180 = vrot.lane.b32.xlu0 %v840, 4
      %v1181 = vpop.permute.xlu0 %1180
      %1182 = vrot.lane.b32.xlu0 %v841, 4
      %v1183 = vpop.permute.xlu0 %1182
      %1184 = vrot.lane.b32.xlu0 %v842, 4
      %v1185 = vpop.permute.xlu0 %1184
      %1186 = vrot.lane.b32.xlu0 %v843, 4
      %v1187 = vpop.permute.xlu0 %1186
      %1188 = vrot.lane.b32.xlu0 %v844, 4
      %v1189 = vpop.permute.xlu0 %1188
      %1190 = vrot.lane.b32.xlu0 %v845, 4
      %v1191 = vpop.permute.xlu0 %1190
      %1192 = vrot.lane.b32.xlu0 %v846, 4
      %v1193 = vpop.permute.xlu0 %1192
      %1194 = vrot.lane.b32.xlu0 %v847, 4
      %v1195 = vpop.permute.xlu0 %1194
      %1196 = vrot.lane.b32.xlu0 %v848, 4
      %v1197 = vpop.permute.xlu0 %1196
      %1198 = vrot.lane.b32.xlu0 %v849, 4
      %v1199 = vpop.permute.xlu0 %1198
      %1200 = vrot.lane.b32.xlu0 %v850, 4
      %v1201 = vpop.permute.xlu0 %1200
      %1202 = vrot.lane.b32.xlu0 %v851, 4
      %v1203 = vpop.permute.xlu0 %1202
      %1204 = vrot.lane.b32.xlu0 %v852, 4
      %v1205 = vpop.permute.xlu0 %1204
      %1206 = vrot.lane.b32.xlu0 %v853, 4
      %v1207 = vpop.permute.xlu0 %1206
      %1208 = vrot.lane.b32.xlu0 %v854, 4
      %v1209 = vpop.permute.xlu0 %1208
      %1210 = vrot.lane.b32.xlu0 %v855, 4
      %v1211 = vpop.permute.xlu0 %1210
      %1212 = vrot.lane.b32.xlu0 %v856, 4
      %v1213 = vpop.permute.xlu0 %1212
      %1214 = vrot.lane.b32.xlu0 %v857, 4
      %v1215 = vpop.permute.xlu0 %1214
      %1216 = vrot.lane.b32.xlu0 %v858, 4
      %v1217 = vpop.permute.xlu0 %1216
      %1218 = vrot.lane.b32.xlu0 %v859, 4
      %v1219 = vpop.permute.xlu0 %1218
      %1220 = vrot.lane.b32.xlu0 %v860, 4
      %v1221 = vpop.permute.xlu0 %1220
      %1222 = vrot.lane.b32.xlu0 %v861, 4
      %v1223 = vpop.permute.xlu0 %1222
      %1224 = vrot.lane.b32.xlu0 %v862, 4
      %v1225 = vpop.permute.xlu0 %1224
      %1226 = vrot.lane.b32.xlu0 %v863, 4
      %v1227 = vpop.permute.xlu0 %1226
      %1228 = vrot.lane.b32.xlu0 %v864, 4
      %v1229 = vpop.permute.xlu0 %1228
      %1230 = vrot.lane.b32.xlu0 %v865, 4
      %v1231 = vpop.permute.xlu0 %1230
      %1232 = vrot.lane.b32.xlu0 %v866, 4
      %v1233 = vpop.permute.xlu0 %1232
      %1234 = vrot.lane.b32.xlu0 %v867, 4
      %v1235 = vpop.permute.xlu0 %1234
      %1236 = vrot.lane.b32.xlu0 %v868, 4
      %v1237 = vpop.permute.xlu0 %1236
      %1238 = vrot.lane.b32.xlu0 %v869, 4
      %v1239 = vpop.permute.xlu0 %1238
      %1240 = vrot.lane.b32.xlu0 %v870, 4
      %v1241 = vpop.permute.xlu0 %1240
      %1242 = vrot.lane.b32.xlu0 %v871, 4
      %v1243 = vpop.permute.xlu0 %1242
      %1244 = vrot.lane.b32.xlu0 %v872, 4
      %v1245 = vpop.permute.xlu0 %1244
      %1246 = vrot.lane.b32.xlu0 %v873, 4
      %v1247 = vpop.permute.xlu0 %1246
      %1248 = vrot.lane.b32.xlu0 %v874, 4
      %v1249 = vpop.permute.xlu0 %1248
      %1250 = vrot.lane.b32.xlu0 %v875, 4
      %v1251 = vpop.permute.xlu0 %1250
      %1252 = vrot.lane.b32.xlu0 %v876, 4
      %v1253 = vpop.permute.xlu0 %1252
      %1254 = vrot.lane.b32.xlu0 %v877, 4
      %v1255 = vpop.permute.xlu0 %1254
      %1256 = vrot.lane.b32.xlu0 %v878, 4
      %v1257 = vpop.permute.xlu0 %1256
      %1258 = vrot.lane.b32.xlu0 %v879, 4
      %v1259 = vpop.permute.xlu0 %1258
      %1260 = vrot.lane.b32.xlu0 %v880, 4
      %v1261 = vpop.permute.xlu0 %1260
      %1262 = vrot.lane.b32.xlu0 %v881, 4
      %v1263 = vpop.permute.xlu0 %1262
      %1264 = vrot.lane.b32.xlu0 %v882, 4
      %v1265 = vpop.permute.xlu0 %1264
      %1266 = vrot.lane.b32.xlu0 %v883, 4
      %v1267 = vpop.permute.xlu0 %1266
      %vm1396 = vcmask 64544
      %1397 = vst.msk [vmem:[%s626 + $0x1] sm:$0xff] %vm1396, %v1013
      %1398 = vst.msk [vmem:[%s626 + $0x9] sm:$0xff] %vm1396, %v1015
      %1399 = vst.msk [vmem:[%s626 + $0x11] sm:$0xff] %vm1396, %v1017
      %1400 = vst.msk [vmem:[%s626 + $0x19] sm:$0xff] %vm1396, %v1019
      %1401 = vst.msk [vmem:[%s626 + $0x29] sm:$0xff] %vm1396, %v1021
      %1402 = vst.msk [vmem:[%s626 + $0x31] sm:$0xff] %vm1396, %v1023
      %1403 = vst.msk [vmem:[%s626 + $0x39] sm:$0xff] %vm1396, %v1025
      %1404 = vst.msk [vmem:[%s626 + $0x41] sm:$0xff] %vm1396, %v1027
      %1405 = vst.msk [vmem:[%s626 + $0x51] sm:$0xff] %vm1396, %v1029
      %1406 = vst.msk [vmem:[%s626 + $0x59] sm:$0xff] %vm1396, %v1031
      %1407 = vst.msk [vmem:[%s626 + $0x61] sm:$0xff] %vm1396, %v1033
      %1408 = vst.msk [vmem:[%s626 + $0x69] sm:$0xff] %vm1396, %v1035
      %1409 = vst.msk [vmem:[%s626 + $0x79] sm:$0xff] %vm1396, %v1037
      %1410 = vst.msk [vmem:[%s626 + $0x81] sm:$0xff] %vm1396, %v1039
      %1411 = vst.msk [vmem:[%s626 + $0x89] sm:$0xff] %vm1396, %v1041
      %1412 = vst.msk [vmem:[%s626 + $0x91] sm:$0xff] %vm1396, %v1043
      %1413 = vst.msk [vmem:[%s626 + $0xa1] sm:$0xff] %vm1396, %v1045
      %1414 = vst.msk [vmem:[%s626 + $0xa9] sm:$0xff] %vm1396, %v1047
      %1415 = vst.msk [vmem:[%s626 + $0xb1] sm:$0xff] %vm1396, %v1049
      %1416 = vst.msk [vmem:[%s626 + $0xb9] sm:$0xff] %vm1396, %v1051
      %1417 = vst.msk [vmem:[%s626 + $0xc9] sm:$0xff] %vm1396, %v1053
      %1418 = vst.msk [vmem:[%s626 + $0xd1] sm:$0xff] %vm1396, %v1055
      %1419 = vst.msk [vmem:[%s626 + $0xd9] sm:$0xff] %vm1396, %v1057
      %1420 = vst.msk [vmem:[%s626 + $0xe1] sm:$0xff] %vm1396, %v1059
      %1421 = vst.msk [vmem:[%s626 + $0xf1] sm:$0xff] %vm1396, %v1061
      %1422 = vst.msk [vmem:[%s626 + $0xf9] sm:$0xff] %vm1396, %v1063
      %1423 = vst.msk [vmem:[%s626 + $0x101] sm:$0xff] %vm1396, %v1065
      %1424 = vst.msk [vmem:[%s626 + $0x109] sm:$0xff] %vm1396, %v1067
      %1425 = vst.msk [vmem:[%s626 + $0x119] sm:$0xff] %vm1396, %v1069
      %1426 = vst.msk [vmem:[%s626 + $0x121] sm:$0xff] %vm1396, %v1071
      %1427 = vst.msk [vmem:[%s626 + $0x129] sm:$0xff] %vm1396, %v1073
      %1428 = vst.msk [vmem:[%s626 + $0x131] sm:$0xff] %vm1396, %v1075
      %1429 = vst.msk [vmem:[%s626 + $0x141] sm:$0xff] %vm1396, %v1077
      %1430 = vst.msk [vmem:[%s626 + $0x149] sm:$0xff] %vm1396, %v1079
      %1431 = vst.msk [vmem:[%s626 + $0x151] sm:$0xff] %vm1396, %v1081
      %1432 = vst.msk [vmem:[%s626 + $0x159] sm:$0xff] %vm1396, %v1083
      %1433 = vst.msk [vmem:[%s626 + $0x169] sm:$0xff] %vm1396, %v1085
      %1434 = vst.msk [vmem:[%s626 + $0x171] sm:$0xff] %vm1396, %v1087
      %1435 = vst.msk [vmem:[%s626 + $0x179] sm:$0xff] %vm1396, %v1089
      %1436 = vst.msk [vmem:[%s626 + $0x181] sm:$0xff] %vm1396, %v1091
      %1437 = vst.msk [vmem:[%s626 + $0x191] sm:$0xff] %vm1396, %v1093
      %1438 = vst.msk [vmem:[%s626 + $0x199] sm:$0xff] %vm1396, %v1095
      %1439 = vst.msk [vmem:[%s626 + $0x1a1] sm:$0xff] %vm1396, %v1097
      %1440 = vst.msk [vmem:[%s626 + $0x1a9] sm:$0xff] %vm1396, %v1099
      %1441 = vst.msk [vmem:[%s626 + $0x1b9] sm:$0xff] %vm1396, %v1101
      %1442 = vst.msk [vmem:[%s626 + $0x1c1] sm:$0xff] %vm1396, %v1103
      %1443 = vst.msk [vmem:[%s626 + $0x1c9] sm:$0xff] %vm1396, %v1105
      %1444 = vst.msk [vmem:[%s626 + $0x1d1] sm:$0xff] %vm1396, %v1107
      %1445 = vst.msk [vmem:[%s626 + $0x1e1] sm:$0xff] %vm1396, %v1109
      %1446 = vst.msk [vmem:[%s626 + $0x1e9] sm:$0xff] %vm1396, %v1111
      %1447 = vst.msk [vmem:[%s626 + $0x1f1] sm:$0xff] %vm1396, %v1113
      %1448 = vst.msk [vmem:[%s626 + $0x1f9] sm:$0xff] %vm1396, %v1115
      %1449 = vst.msk [vmem:[%s626 + $0x209] sm:$0xff] %vm1396, %v1117
      %1450 = vst.msk [vmem:[%s626 + $0x211] sm:$0xff] %vm1396, %v1119
      %1451 = vst.msk [vmem:[%s626 + $0x219] sm:$0xff] %vm1396, %v1121
      %1452 = vst.msk [vmem:[%s626 + $0x221] sm:$0xff] %vm1396, %v1123
      %1453 = vst.msk [vmem:[%s626 + $0x231] sm:$0xff] %vm1396, %v1125
      %1454 = vst.msk [vmem:[%s626 + $0x239] sm:$0xff] %vm1396, %v1127
      %1455 = vst.msk [vmem:[%s626 + $0x241] sm:$0xff] %vm1396, %v1129
      %1456 = vst.msk [vmem:[%s626 + $0x249] sm:$0xff] %vm1396, %v1131
      %1457 = vst.msk [vmem:[%s626 + $0x259] sm:$0xff] %vm1396, %v1133
      %1458 = vst.msk [vmem:[%s626 + $0x261] sm:$0xff] %vm1396, %v1135
      %1459 = vst.msk [vmem:[%s626 + $0x269] sm:$0xff] %vm1396, %v1137
      %1460 = vst.msk [vmem:[%s626 + $0x271] sm:$0xff] %vm1396, %v1139
      %1461 = vst.msk [vmem:[%s626 + $0x281] sm:$0xff] %vm1396, %v1141
      %1462 = vst.msk [vmem:[%s626 + $0x289] sm:$0xff] %vm1396, %v1143
      %1463 = vst.msk [vmem:[%s626 + $0x291] sm:$0xff] %vm1396, %v1145
      %1464 = vst.msk [vmem:[%s626 + $0x299] sm:$0xff] %vm1396, %v1147
      %1465 = vst.msk [vmem:[%s626 + $0x2a9] sm:$0xff] %vm1396, %v1149
      %1466 = vst.msk [vmem:[%s626 + $0x2b1] sm:$0xff] %vm1396, %v1151
      %1467 = vst.msk [vmem:[%s626 + $0x2b9] sm:$0xff] %vm1396, %v1153
      %1468 = vst.msk [vmem:[%s626 + $0x2c1] sm:$0xff] %vm1396, %v1155
      %1469 = vst.msk [vmem:[%s626 + $0x2d1] sm:$0xff] %vm1396, %v1157
      %1470 = vst.msk [vmem:[%s626 + $0x2d9] sm:$0xff] %vm1396, %v1159
      %1471 = vst.msk [vmem:[%s626 + $0x2e1] sm:$0xff] %vm1396, %v1161
      %1472 = vst.msk [vmem:[%s626 + $0x2e9] sm:$0xff] %vm1396, %v1163
      %1473 = vst.msk [vmem:[%s626 + $0x2f9] sm:$0xff] %vm1396, %v1165
      %1474 = vst.msk [vmem:[%s626 + $0x301] sm:$0xff] %vm1396, %v1167
      %1475 = vst.msk [vmem:[%s626 + $0x309] sm:$0xff] %vm1396, %v1169
      %1476 = vst.msk [vmem:[%s626 + $0x311] sm:$0xff] %vm1396, %v1171
      %1477 = vst.msk [vmem:[%s626 + $0x321] sm:$0xff] %vm1396, %v1173
      %1478 = vst.msk [vmem:[%s626 + $0x329] sm:$0xff] %vm1396, %v1175
      %1479 = vst.msk [vmem:[%s626 + $0x331] sm:$0xff] %vm1396, %v1177
      %1480 = vst.msk [vmem:[%s626 + $0x339] sm:$0xff] %vm1396, %v1179
      %1481 = vst.msk [vmem:[%s626 + $0x349] sm:$0xff] %vm1396, %v1181
      %1482 = vst.msk [vmem:[%s626 + $0x351] sm:$0xff] %vm1396, %v1183
      %1483 = vst.msk [vmem:[%s626 + $0x359] sm:$0xff] %vm1396, %v1185
      %1484 = vst.msk [vmem:[%s626 + $0x361] sm:$0xff] %vm1396, %v1187
      %1485 = vst.msk [vmem:[%s626 + $0x371] sm:$0xff] %vm1396, %v1189
      %1486 = vst.msk [vmem:[%s626 + $0x379] sm:$0xff] %vm1396, %v1191
      %1487 = vst.msk [vmem:[%s626 + $0x381] sm:$0xff] %vm1396, %v1193
      %1488 = vst.msk [vmem:[%s626 + $0x389] sm:$0xff] %vm1396, %v1195
      %1489 = vst.msk [vmem:[%s626 + $0x399] sm:$0xff] %vm1396, %v1197
      %1490 = vst.msk [vmem:[%s626 + $0x3a1] sm:$0xff] %vm1396, %v1199
      %1491 = vst.msk [vmem:[%s626 + $0x3a9] sm:$0xff] %vm1396, %v1201
      %1492 = vst.msk [vmem:[%s626 + $0x3b1] sm:$0xff] %vm1396, %v1203
      %1493 = vst.msk [vmem:[%s626 + $0x3c1] sm:$0xff] %vm1396, %v1205
      %1494 = vst.msk [vmem:[%s626 + $0x3c9] sm:$0xff] %vm1396, %v1207
      %1495 = vst.msk [vmem:[%s626 + $0x3d1] sm:$0xff] %vm1396, %v1209
      %1496 = vst.msk [vmem:[%s626 + $0x3d9] sm:$0xff] %vm1396, %v1211
      %1497 = vst.msk [vmem:[%s626 + $0x3e9] sm:$0xff] %vm1396, %v1213
      %1498 = vst.msk [vmem:[%s626 + $0x3f1] sm:$0xff] %vm1396, %v1215
      %1499 = vst.msk [vmem:[%s626 + $0x3f9] sm:$0xff] %vm1396, %v1217
      %1500 = vst.msk [vmem:[%s626 + $0x401] sm:$0xff] %vm1396, %v1219
      %1501 = vst.msk [vmem:[%s626 + $0x411] sm:$0xff] %vm1396, %v1221
      %1502 = vst.msk [vmem:[%s626 + $0x419] sm:$0xff] %vm1396, %v1223
      %1503 = vst.msk [vmem:[%s626 + $0x421] sm:$0xff] %vm1396, %v1225
      %1504 = vst.msk [vmem:[%s626 + $0x429] sm:$0xff] %vm1396, %v1227
      %1505 = vst.msk [vmem:[%s626 + $0x439] sm:$0xff] %vm1396, %v1229
      %1506 = vst.msk [vmem:[%s626 + $0x441] sm:$0xff] %vm1396, %v1231
      %1507 = vst.msk [vmem:[%s626 + $0x449] sm:$0xff] %vm1396, %v1233
      %1508 = vst.msk [vmem:[%s626 + $0x451] sm:$0xff] %vm1396, %v1235
      %1509 = vst.msk [vmem:[%s626 + $0x461] sm:$0xff] %vm1396, %v1237
      %1510 = vst.msk [vmem:[%s626 + $0x469] sm:$0xff] %vm1396, %v1239
      %1511 = vst.msk [vmem:[%s626 + $0x471] sm:$0xff] %vm1396, %v1241
      %1512 = vst.msk [vmem:[%s626 + $0x479] sm:$0xff] %vm1396, %v1243
      %1513 = vst.msk [vmem:[%s626 + $0x489] sm:$0xff] %vm1396, %v1245
      %1514 = vst.msk [vmem:[%s626 + $0x491] sm:$0xff] %vm1396, %v1247
      %1515 = vst.msk [vmem:[%s626 + $0x499] sm:$0xff] %vm1396, %v1249
      %1516 = vst.msk [vmem:[%s626 + $0x4a1] sm:$0xff] %vm1396, %v1251
      %1517 = vst.msk [vmem:[%s626 + $0x4b1] sm:$0xff] %vm1396, %v1253
      %1518 = vst.msk [vmem:[%s626 + $0x4b9] sm:$0xff] %vm1396, %v1255
      %1519 = vst.msk [vmem:[%s626 + $0x4c1] sm:$0xff] %vm1396, %v1257
      %1520 = vst.msk [vmem:[%s626 + $0x4c9] sm:$0xff] %vm1396, %v1259
      %1521 = vst.msk [vmem:[%s626 + $0x4d9] sm:$0xff] %vm1396, %v1261
      %1522 = vst.msk [vmem:[%s626 + $0x4e1] sm:$0xff] %vm1396, %v1263
      %1523 = vst.msk [vmem:[%s626 + $0x4e9] sm:$0xff] %vm1396, %v1265
      %1524 = vst.msk [vmem:[%s626 + $0x4f1] sm:$0xff] %vm1396, %v1267
      %v1525 = vld [vmem:[%s2] sm:$0x7]
      %v1526 = vld [vmem:[%s2 + $0x4] sm:$0x7]
      %v1527 = vld [vmem:[%s2 + $0x8] sm:$0x7]
      %v1528 = vld [vmem:[#allocation2] sm:$0xff]
      %v1529 = vld [vmem:[#allocation2 + $0x8] sm:$0xff]
      %v1530 = vld [vmem:[#allocation2 + $0x10] sm:$0xff]
      %v1531 = vld [vmem:[#allocation2 + $0x18] sm:$0xff]
      %v1532 = vld [vmem:[#allocation2 + $0x28] sm:$0xff]
      %v1533 = vld [vmem:[#allocation2 + $0x30] sm:$0xff]
      %v1534 = vld [vmem:[#allocation2 + $0x38] sm:$0xff]
      %v1535 = vld [vmem:[#allocation2 + $0x40] sm:$0xff]
      %v1536 = vld [vmem:[#allocation2 + $0x50] sm:$0xff]
      %v1537 = vld [vmem:[#allocation2 + $0x58] sm:$0xff]
      %v1538 = vld [vmem:[#allocation2 + $0x60] sm:$0xff]
      %v1539 = vld [vmem:[#allocation2 + $0x68] sm:$0xff]
      %v1540 = vld [vmem:[#allocation2 + $0x78] sm:$0xff]
      %v1541 = vld [vmem:[#allocation2 + $0x80] sm:$0xff]
      %v1542 = vld [vmem:[#allocation2 + $0x88] sm:$0xff]
      %v1543 = vld [vmem:[#allocation2 + $0x90] sm:$0xff]
      %v1544 = vld [vmem:[#allocation2 + $0xa0] sm:$0xff]
      %v1545 = vld [vmem:[#allocation2 + $0xa8] sm:$0xff]
      %v1546 = vld [vmem:[#allocation2 + $0xb0] sm:$0xff]
      %v1547 = vld [vmem:[#allocation2 + $0xb8] sm:$0xff]
      %v1548 = vld [vmem:[#allocation2 + $0xc8] sm:$0xff]
      %v1549 = vld [vmem:[#allocation2 + $0xd0] sm:$0xff]
      %v1550 = vld [vmem:[#allocation2 + $0xd8] sm:$0xff]
      %v1551 = vld [vmem:[#allocation2 + $0xe0] sm:$0xff]
      %v1552 = vld [vmem:[#allocation2 + $0xf0] sm:$0xff]
      %v1553 = vld [vmem:[#allocation2 + $0xf8] sm:$0xff]
      %v1554 = vld [vmem:[#allocation2 + $0x100] sm:$0xff]
      %v1555 = vld [vmem:[#allocation2 + $0x108] sm:$0xff]
      %v1556 = vld [vmem:[#allocation2 + $0x118] sm:$0xff]
      %v1557 = vld [vmem:[#allocation2 + $0x120] sm:$0xff]
      %v1558 = vld [vmem:[#allocation2 + $0x128] sm:$0xff]
      %v1559 = vld [vmem:[#allocation2 + $0x130] sm:$0xff]
      %v1560 = vld [vmem:[#allocation2 + $0x140] sm:$0xff]
      %v1561 = vld [vmem:[#allocation2 + $0x148] sm:$0xff]
      %v1562 = vld [vmem:[#allocation2 + $0x150] sm:$0xff]
      %v1563 = vld [vmem:[#allocation2 + $0x158] sm:$0xff]
      %v1564 = vld [vmem:[#allocation2 + $0x168] sm:$0xff]
      %v1565 = vld [vmem:[#allocation2 + $0x170] sm:$0xff]
      %v1566 = vld [vmem:[#allocation2 + $0x178] sm:$0xff]
      %v1567 = vld [vmem:[#allocation2 + $0x180] sm:$0xff]
      %v1568 = vld [vmem:[#allocation2 + $0x190] sm:$0xff]
      %v1569 = vld [vmem:[#allocation2 + $0x198] sm:$0xff]
      %v1570 = vld [vmem:[#allocation2 + $0x1a0] sm:$0xff]
      %v1571 = vld [vmem:[#allocation2 + $0x1a8] sm:$0xff]
      %v1572 = vld [vmem:[#allocation2 + $0x1b8] sm:$0xff]
      %v1573 = vld [vmem:[#allocation2 + $0x1c0] sm:$0xff]
      %v1574 = vld [vmem:[#allocation2 + $0x1c8] sm:$0xff]
      %v1575 = vld [vmem:[#allocation2 + $0x1d0] sm:$0xff]
      %v1576 = vld [vmem:[#allocation2 + $0x1e0] sm:$0xff]
      %v1577 = vld [vmem:[#allocation2 + $0x1e8] sm:$0xff]
      %v1578 = vld [vmem:[#allocation2 + $0x1f0] sm:$0xff]
      %v1579 = vld [vmem:[#allocation2 + $0x1f8] sm:$0xff]
      %v1580 = vld [vmem:[#allocation2 + $0x208] sm:$0xff]
      %v1581 = vld [vmem:[#allocation2 + $0x210] sm:$0xff]
      %v1582 = vld [vmem:[#allocation2 + $0x218] sm:$0xff]
      %v1583 = vld [vmem:[#allocation2 + $0x220] sm:$0xff]
      %v1584 = vld [vmem:[#allocation2 + $0x230] sm:$0xff]
      %v1585 = vld [vmem:[#allocation2 + $0x238] sm:$0xff]
      %v1586 = vld [vmem:[#allocation2 + $0x240] sm:$0xff]
      %v1587 = vld [vmem:[#allocation2 + $0x248] sm:$0xff]
      %v1588 = vld [vmem:[#allocation2 + $0x258] sm:$0xff]
      %v1589 = vld [vmem:[#allocation2 + $0x260] sm:$0xff]
      %v1590 = vld [vmem:[#allocation2 + $0x268] sm:$0xff]
      %v1591 = vld [vmem:[#allocation2 + $0x270] sm:$0xff]
      %v1592 = vld [vmem:[#allocation2 + $0x280] sm:$0xff]
      %v1593 = vld [vmem:[#allocation2 + $0x288] sm:$0xff]
      %v1594 = vld [vmem:[#allocation2 + $0x290] sm:$0xff]
      %v1595 = vld [vmem:[#allocation2 + $0x298] sm:$0xff]
      %v1596 = vld [vmem:[#allocation2 + $0x2a8] sm:$0xff]
      %v1597 = vld [vmem:[#allocation2 + $0x2b0] sm:$0xff]
      %v1598 = vld [vmem:[#allocation2 + $0x2b8] sm:$0xff]
      %v1599 = vld [vmem:[#allocation2 + $0x2c0] sm:$0xff]
      %v1600 = vld [vmem:[#allocation2 + $0x2d0] sm:$0xff]
      %v1601 = vld [vmem:[#allocation2 + $0x2d8] sm:$0xff]
      %v1602 = vld [vmem:[#allocation2 + $0x2e0] sm:$0xff]
      %v1603 = vld [vmem:[#allocation2 + $0x2e8] sm:$0xff]
      %v1604 = vld [vmem:[#allocation2 + $0x2f8] sm:$0xff]
      %v1605 = vld [vmem:[#allocation2 + $0x300] sm:$0xff]
      %v1606 = vld [vmem:[#allocation2 + $0x308] sm:$0xff]
      %v1607 = vld [vmem:[#allocation2 + $0x310] sm:$0xff]
      %v1608 = vld [vmem:[#allocation2 + $0x320] sm:$0xff]
      %v1609 = vld [vmem:[#allocation2 + $0x328] sm:$0xff]
      %v1610 = vld [vmem:[#allocation2 + $0x330] sm:$0xff]
      %v1611 = vld [vmem:[#allocation2 + $0x338] sm:$0xff]
      %v1612 = vld [vmem:[#allocation2 + $0x348] sm:$0xff]
      %v1613 = vld [vmem:[#allocation2 + $0x350] sm:$0xff]
      %v1614 = vld [vmem:[#allocation2 + $0x358] sm:$0xff]
      %v1615 = vld [vmem:[#allocation2 + $0x360] sm:$0xff]
      %v1616 = vld [vmem:[#allocation2 + $0x370] sm:$0xff]
      %v1617 = vld [vmem:[#allocation2 + $0x378] sm:$0xff]
      %v1618 = vld [vmem:[#allocation2 + $0x380] sm:$0xff]
      %v1619 = vld [vmem:[#allocation2 + $0x388] sm:$0xff]
      %v1620 = vld [vmem:[#allocation2 + $0x398] sm:$0xff]
      %v1621 = vld [vmem:[#allocation2 + $0x3a0] sm:$0xff]
      %v1622 = vld [vmem:[#allocation2 + $0x3a8] sm:$0xff]
      %v1623 = vld [vmem:[#allocation2 + $0x3b0] sm:$0xff]
      %v1624 = vld [vmem:[#allocation2 + $0x3c0] sm:$0xff]
      %v1625 = vld [vmem:[#allocation2 + $0x3c8] sm:$0xff]
      %v1626 = vld [vmem:[#allocation2 + $0x3d0] sm:$0xff]
      %v1627 = vld [vmem:[#allocation2 + $0x3d8] sm:$0xff]
      %v1628 = vld [vmem:[#allocation2 + $0x3e8] sm:$0xff]
      %v1629 = vld [vmem:[#allocation2 + $0x3f0] sm:$0xff]
      %v1630 = vld [vmem:[#allocation2 + $0x3f8] sm:$0xff]
      %v1631 = vld [vmem:[#allocation2 + $0x400] sm:$0xff]
      %v1632 = vld [vmem:[#allocation2 + $0x410] sm:$0xff]
      %v1633 = vld [vmem:[#allocation2 + $0x418] sm:$0xff]
      %v1634 = vld [vmem:[#allocation2 + $0x420] sm:$0xff]
      %v1635 = vld [vmem:[#allocation2 + $0x428] sm:$0xff]
      %v1636 = vld [vmem:[#allocation2 + $0x438] sm:$0xff]
      %v1637 = vld [vmem:[#allocation2 + $0x440] sm:$0xff]
      %v1638 = vld [vmem:[#allocation2 + $0x448] sm:$0xff]
      %v1639 = vld [vmem:[#allocation2 + $0x450] sm:$0xff]
      %v1640 = vld [vmem:[#allocation2 + $0x460] sm:$0xff]
      %v1641 = vld [vmem:[#allocation2 + $0x468] sm:$0xff]
      %v1642 = vld [vmem:[#allocation2 + $0x470] sm:$0xff]
      %v1643 = vld [vmem:[#allocation2 + $0x478] sm:$0xff]
      %v1644 = vld [vmem:[#allocation2 + $0x488] sm:$0xff]
      %v1645 = vld [vmem:[#allocation2 + $0x490] sm:$0xff]
      %v1646 = vld [vmem:[#allocation2 + $0x498] sm:$0xff]
      %v1647 = vld [vmem:[#allocation2 + $0x4a0] sm:$0xff]
      %v1648 = vld [vmem:[#allocation2 + $0x4b0] sm:$0xff]
      %v1649 = vld [vmem:[#allocation2 + $0x4b8] sm:$0xff]
      %v1650 = vld [vmem:[#allocation2 + $0x4c0] sm:$0xff]
      %v1651 = vld [vmem:[#allocation2 + $0x4c8] sm:$0xff]
      %v1652 = vld [vmem:[#allocation2 + $0x4d8] sm:$0xff]
      %v1653 = vld [vmem:[#allocation2 + $0x4e0] sm:$0xff]
      %v1654 = vld [vmem:[#allocation2 + $0x4e8] sm:$0xff]
      %v1655 = vld [vmem:[#allocation2 + $0x4f0] sm:$0xff]
      %v1656 = vlaneseq
      %v1657 = vshrl.u32 %v1656, 7
      %v1658 = vsub.s32 0, %v1657
      %v1659 = vrot.slane %v1525, %v1658
      %v1660 = vmul.f32 %v1528, %v1659
      %v1661 = vmul.f32 %v1529, %v1659
      %v1662 = vmul.f32 %v1530, %v1659
      %v1663 = vmul.f32 %v1531, %v1659
      %v1664 = vmul.f32 %v1532, %v1659
      %v1665 = vmul.f32 %v1533, %v1659
      %v1666 = vmul.f32 %v1534, %v1659
      %v1667 = vmul.f32 %v1535, %v1659
      %v1668 = vmul.f32 %v1536, %v1659
      %v1669 = vmul.f32 %v1537, %v1659
      %v1670 = vmul.f32 %v1538, %v1659
      %v1671 = vmul.f32 %v1539, %v1659
      %v1672 = vmul.f32 %v1540, %v1659
      %v1673 = vmul.f32 %v1541, %v1659
      %v1674 = vmul.f32 %v1542, %v1659
      %v1675 = vmul.f32 %v1543, %v1659
      %v1676 = vmul.f32 %v1544, %v1659
      %v1677 = vmul.f32 %v1545, %v1659
      %v1678 = vmul.f32 %v1546, %v1659
      %v1679 = vmul.f32 %v1547, %v1659
      %v1680 = vmul.f32 %v1548, %v1659
      %v1681 = vmul.f32 %v1549, %v1659
      %v1682 = vmul.f32 %v1550, %v1659
      %v1683 = vmul.f32 %v1551, %v1659
      %v1684 = vmul.f32 %v1552, %v1659
      %v1685 = vmul.f32 %v1553, %v1659
      %v1686 = vmul.f32 %v1554, %v1659
      %v1687 = vmul.f32 %v1555, %v1659
      %v1688 = vmul.f32 %v1556, %v1659
      %v1689 = vmul.f32 %v1557, %v1659
      %v1690 = vmul.f32 %v1558, %v1659
      %v1691 = vmul.f32 %v1559, %v1659
      %v1692 = vmul.f32 %v1560, %v1659
      %v1693 = vmul.f32 %v1561, %v1659
      %v1694 = vmul.f32 %v1562, %v1659
      %v1695 = vmul.f32 %v1563, %v1659
      %v1696 = vmul.f32 %v1564, %v1659
      %v1697 = vmul.f32 %v1565, %v1659
      %v1698 = vmul.f32 %v1566, %v1659
      %v1699 = vmul.f32 %v1567, %v1659
      %v1700 = vmul.f32 %v1568, %v1659
      %v1701 = vmul.f32 %v1569, %v1659
      %v1702 = vmul.f32 %v1570, %v1659
      %v1703 = vmul.f32 %v1571, %v1659
      %v1704 = vmul.f32 %v1572, %v1659
      %v1705 = vmul.f32 %v1573, %v1659
      %v1706 = vmul.f32 %v1574, %v1659
      %v1707 = vmul.f32 %v1575, %v1659
      %v1708 = vmul.f32 %v1576, %v1659
      %v1709 = vmul.f32 %v1577, %v1659
      %v1710 = vmul.f32 %v1578, %v1659
      %v1711 = vmul.f32 %v1579, %v1659
      %v1712 = vmul.f32 %v1580, %v1659
      %v1713 = vmul.f32 %v1581, %v1659
      %v1714 = vmul.f32 %v1582, %v1659
      %v1715 = vmul.f32 %v1583, %v1659
      %v1716 = vmul.f32 %v1584, %v1659
      %v1717 = vmul.f32 %v1585, %v1659
      %v1718 = vmul.f32 %v1586, %v1659
      %v1719 = vmul.f32 %v1587, %v1659
      %v1720 = vmul.f32 %v1588, %v1659
      %v1721 = vmul.f32 %v1589, %v1659
      %v1722 = vmul.f32 %v1590, %v1659
      %v1723 = vmul.f32 %v1591, %v1659
      %v1724 = vmul.f32 %v1592, %v1659
      %v1725 = vmul.f32 %v1593, %v1659
      %v1726 = vmul.f32 %v1594, %v1659
      %v1727 = vmul.f32 %v1595, %v1659
      %v1728 = vmul.f32 %v1596, %v1659
      %v1729 = vmul.f32 %v1597, %v1659
      %v1730 = vmul.f32 %v1598, %v1659
      %v1731 = vmul.f32 %v1599, %v1659
      %v1732 = vmul.f32 %v1600, %v1659
      %v1733 = vmul.f32 %v1601, %v1659
      %v1734 = vmul.f32 %v1602, %v1659
      %v1735 = vmul.f32 %v1603, %v1659
      %v1736 = vmul.f32 %v1604, %v1659
      %v1737 = vmul.f32 %v1605, %v1659
      %v1738 = vmul.f32 %v1606, %v1659
      %v1739 = vmul.f32 %v1607, %v1659
      %v1740 = vmul.f32 %v1608, %v1659
      %v1741 = vmul.f32 %v1609, %v1659
      %v1742 = vmul.f32 %v1610, %v1659
      %v1743 = vmul.f32 %v1611, %v1659
      %v1744 = vmul.f32 %v1612, %v1659
      %v1745 = vmul.f32 %v1613, %v1659
      %v1746 = vmul.f32 %v1614, %v1659
      %v1747 = vmul.f32 %v1615, %v1659
      %v1748 = vmul.f32 %v1616, %v1659
      %v1749 = vmul.f32 %v1617, %v1659
      %v1750 = vmul.f32 %v1618, %v1659
      %v1751 = vmul.f32 %v1619, %v1659
      %v1752 = vmul.f32 %v1620, %v1659
      %v1753 = vmul.f32 %v1621, %v1659
      %v1754 = vmul.f32 %v1622, %v1659
      %v1755 = vmul.f32 %v1623, %v1659
      %v1756 = vmul.f32 %v1624, %v1659
      %v1757 = vmul.f32 %v1625, %v1659
      %v1758 = vmul.f32 %v1626, %v1659
      %v1759 = vmul.f32 %v1627, %v1659
      %v1760 = vmul.f32 %v1628, %v1659
      %v1761 = vmul.f32 %v1629, %v1659
      %v1762 = vmul.f32 %v1630, %v1659
      %v1763 = vmul.f32 %v1631, %v1659
      %v1764 = vmul.f32 %v1632, %v1659
      %v1765 = vmul.f32 %v1633, %v1659
      %v1766 = vmul.f32 %v1634, %v1659
      %v1767 = vmul.f32 %v1635, %v1659
      %v1768 = vmul.f32 %v1636, %v1659
      %v1769 = vmul.f32 %v1637, %v1659
      %v1770 = vmul.f32 %v1638, %v1659
      %v1771 = vmul.f32 %v1639, %v1659
      %v1772 = vmul.f32 %v1640, %v1659
      %v1773 = vmul.f32 %v1641, %v1659
      %v1774 = vmul.f32 %v1642, %v1659
      %v1775 = vmul.f32 %v1643, %v1659
      %v1776 = vmul.f32 %v1644, %v1659
      %v1777 = vmul.f32 %v1645, %v1659
      %v1778 = vmul.f32 %v1646, %v1659
      %v1779 = vmul.f32 %v1647, %v1659
      %v1780 = vmul.f32 %v1648, %v1659
      %v1781 = vmul.f32 %v1649, %v1659
      %v1782 = vmul.f32 %v1650, %v1659
      %v1783 = vmul.f32 %v1651, %v1659
      %v1784 = vmul.f32 %v1652, %v1659
      %v1785 = vmul.f32 %v1653, %v1659
      %v1786 = vmul.f32 %v1654, %v1659
      %v1787 = vmul.f32 %v1655, %v1659
      %v1788 = vadd.f32 %v1660, 0.0
      %v1789 = vadd.f32 %v1661, 0.0
      %v1790 = vadd.f32 %v1662, 0.0
      %v1791 = vadd.f32 %v1663, 0.0
      %v1792 = vadd.f32 %v1664, 0.0
      %v1793 = vadd.f32 %v1665, 0.0
      %v1794 = vadd.f32 %v1666, 0.0
      %v1795 = vadd.f32 %v1667, 0.0
      %v1796 = vadd.f32 %v1668, 0.0
      %v1797 = vadd.f32 %v1669, 0.0
      %v1798 = vadd.f32 %v1670, 0.0
      %v1799 = vadd.f32 %v1671, 0.0
      %v1800 = vadd.f32 %v1672, 0.0
      %v1801 = vadd.f32 %v1673, 0.0
      %v1802 = vadd.f32 %v1674, 0.0
      %v1803 = vadd.f32 %v1675, 0.0
      %v1804 = vadd.f32 %v1676, 0.0
      %v1805 = vadd.f32 %v1677, 0.0
      %v1806 = vadd.f32 %v1678, 0.0
      %v1807 = vadd.f32 %v1679, 0.0
      %v1808 = vadd.f32 %v1680, 0.0
      %v1809 = vadd.f32 %v1681, 0.0
      %v1810 = vadd.f32 %v1682, 0.0
      %v1811 = vadd.f32 %v1683, 0.0
      %v1812 = vadd.f32 %v1684, 0.0
      %v1813 = vadd.f32 %v1685, 0.0
      %v1814 = vadd.f32 %v1686, 0.0
      %v1815 = vadd.f32 %v1687, 0.0
      %v1816 = vadd.f32 %v1688, 0.0
      %v1817 = vadd.f32 %v1689, 0.0
      %v1818 = vadd.f32 %v1690, 0.0
      %v1819 = vadd.f32 %v1691, 0.0
      %v1820 = vadd.f32 %v1692, 0.0
      %v1821 = vadd.f32 %v1693, 0.0
      %v1822 = vadd.f32 %v1694, 0.0
      %v1823 = vadd.f32 %v1695, 0.0
      %v1824 = vadd.f32 %v1696, 0.0
      %v1825 = vadd.f32 %v1697, 0.0
      %v1826 = vadd.f32 %v1698, 0.0
      %v1827 = vadd.f32 %v1699, 0.0
      %v1828 = vadd.f32 %v1700, 0.0
      %v1829 = vadd.f32 %v1701, 0.0
      %v1830 = vadd.f32 %v1702, 0.0
      %v1831 = vadd.f32 %v1703, 0.0
      %v1832 = vadd.f32 %v1704, 0.0
      %v1833 = vadd.f32 %v1705, 0.0
      %v1834 = vadd.f32 %v1706, 0.0
      %v1835 = vadd.f32 %v1707, 0.0
      %v1836 = vadd.f32 %v1708, 0.0
      %v1837 = vadd.f32 %v1709, 0.0
      %v1838 = vadd.f32 %v1710, 0.0
      %v1839 = vadd.f32 %v1711, 0.0
      %v1840 = vadd.f32 %v1712, 0.0
      %v1841 = vadd.f32 %v1713, 0.0
      %v1842 = vadd.f32 %v1714, 0.0
      %v1843 = vadd.f32 %v1715, 0.0
      %v1844 = vadd.f32 %v1716, 0.0
      %v1845 = vadd.f32 %v1717, 0.0
      %v1846 = vadd.f32 %v1718, 0.0
      %v1847 = vadd.f32 %v1719, 0.0
      %v1848 = vadd.f32 %v1720, 0.0
      %v1849 = vadd.f32 %v1721, 0.0
      %v1850 = vadd.f32 %v1722, 0.0
      %v1851 = vadd.f32 %v1723, 0.0
      %v1852 = vadd.f32 %v1724, 0.0
      %v1853 = vadd.f32 %v1725, 0.0
      %v1854 = vadd.f32 %v1726, 0.0
      %v1855 = vadd.f32 %v1727, 0.0
      %v1856 = vadd.f32 %v1728, 0.0
      %v1857 = vadd.f32 %v1729, 0.0
      %v1858 = vadd.f32 %v1730, 0.0
      %v1859 = vadd.f32 %v1731, 0.0
      %v1860 = vadd.f32 %v1732, 0.0
      %v1861 = vadd.f32 %v1733, 0.0
      %v1862 = vadd.f32 %v1734, 0.0
      %v1863 = vadd.f32 %v1735, 0.0
      %v1864 = vadd.f32 %v1736, 0.0
      %v1865 = vadd.f32 %v1737, 0.0
      %v1866 = vadd.f32 %v1738, 0.0
      %v1867 = vadd.f32 %v1739, 0.0
      %v1868 = vadd.f32 %v1740, 0.0
      %v1869 = vadd.f32 %v1741, 0.0
      %v1870 = vadd.f32 %v1742, 0.0
      %v1871 = vadd.f32 %v1743, 0.0
      %v1872 = vadd.f32 %v1744, 0.0
      %v1873 = vadd.f32 %v1745, 0.0
      %v1874 = vadd.f32 %v1746, 0.0
      %v1875 = vadd.f32 %v1747, 0.0
      %v1876 = vadd.f32 %v1748, 0.0
      %v1877 = vadd.f32 %v1749, 0.0
      %v1878 = vadd.f32 %v1750, 0.0
      %v1879 = vadd.f32 %v1751, 0.0
      %v1880 = vadd.f32 %v1752, 0.0
      %v1881 = vadd.f32 %v1753, 0.0
      %v1882 = vadd.f32 %v1754, 0.0
      %v1883 = vadd.f32 %v1755, 0.0
      %v1884 = vadd.f32 %v1756, 0.0
      %v1885 = vadd.f32 %v1757, 0.0
      %v1886 = vadd.f32 %v1758, 0.0
      %v1887 = vadd.f32 %v1759, 0.0
      %v1888 = vadd.f32 %v1760, 0.0
      %v1889 = vadd.f32 %v1761, 0.0
      %v1890 = vadd.f32 %v1762, 0.0
      %v1891 = vadd.f32 %v1763, 0.0
      %v1892 = vadd.f32 %v1764, 0.0
      %v1893 = vadd.f32 %v1765, 0.0
      %v1894 = vadd.f32 %v1766, 0.0
      %v1895 = vadd.f32 %v1767, 0.0
      %v1896 = vadd.f32 %v1768, 0.0
      %v1897 = vadd.f32 %v1769, 0.0
      %v1898 = vadd.f32 %v1770, 0.0
      %v1899 = vadd.f32 %v1771, 0.0
      %v1900 = vadd.f32 %v1772, 0.0
      %v1901 = vadd.f32 %v1773, 0.0
      %v1902 = vadd.f32 %v1774, 0.0
      %v1903 = vadd.f32 %v1775, 0.0
      %v1904 = vadd.f32 %v1776, 0.0
      %v1905 = vadd.f32 %v1777, 0.0
      %v1906 = vadd.f32 %v1778, 0.0
      %v1907 = vadd.f32 %v1779, 0.0
      %v1908 = vadd.f32 %v1780, 0.0
      %v1909 = vadd.f32 %v1781, 0.0
      %v1910 = vadd.f32 %v1782, 0.0
      %v1911 = vadd.f32 %v1783, 0.0
      %v1912 = vadd.f32 %v1784, 0.0
      %v1913 = vadd.f32 %v1785, 0.0
      %v1914 = vadd.f32 %v1786, 0.0
      %v1915 = vadd.f32 %v1787, 0.0
      %v1916 = vld [vmem:[#allocation2 + $0x1] sm:$0xff]
      %v1917 = vld [vmem:[#allocation2 + $0x9] sm:$0xff]
      %v1918 = vld [vmem:[#allocation2 + $0x11] sm:$0xff]
      %v1919 = vld [vmem:[#allocation2 + $0x19] sm:$0xff]
      %v1920 = vld [vmem:[#allocation2 + $0x29] sm:$0xff]
      %v1921 = vld [vmem:[#allocation2 + $0x31] sm:$0xff]
      %v1922 = vld [vmem:[#allocation2 + $0x39] sm:$0xff]
      %v1923 = vld [vmem:[#allocation2 + $0x41] sm:$0xff]
      %v1924 = vld [vmem:[#allocation2 + $0x51] sm:$0xff]
      %v1925 = vld [vmem:[#allocation2 + $0x59] sm:$0xff]
      %v1926 = vld [vmem:[#allocation2 + $0x61] sm:$0xff]
      %v1927 = vld [vmem:[#allocation2 + $0x69] sm:$0xff]
      %v1928 = vld [vmem:[#allocation2 + $0x79] sm:$0xff]
      %v1929 = vld [vmem:[#allocation2 + $0x81] sm:$0xff]
      %v1930 = vld [vmem:[#allocation2 + $0x89] sm:$0xff]
      %v1931 = vld [vmem:[#allocation2 + $0x91] sm:$0xff]
      %v1932 = vld [vmem:[#allocation2 + $0xa1] sm:$0xff]
      %v1933 = vld [vmem:[#allocation2 + $0xa9] sm:$0xff]
      %v1934 = vld [vmem:[#allocation2 + $0xb1] sm:$0xff]
      %v1935 = vld [vmem:[#allocation2 + $0xb9] sm:$0xff]
      %v1936 = vld [vmem:[#allocation2 + $0xc9] sm:$0xff]
      %v1937 = vld [vmem:[#allocation2 + $0xd1] sm:$0xff]
      %v1938 = vld [vmem:[#allocation2 + $0xd9] sm:$0xff]
      %v1939 = vld [vmem:[#allocation2 + $0xe1] sm:$0xff]
      %v1940 = vld [vmem:[#allocation2 + $0xf1] sm:$0xff]
      %v1941 = vld [vmem:[#allocation2 + $0xf9] sm:$0xff]
      %v1942 = vld [vmem:[#allocation2 + $0x101] sm:$0xff]
      %v1943 = vld [vmem:[#allocation2 + $0x109] sm:$0xff]
      %v1944 = vld [vmem:[#allocation2 + $0x119] sm:$0xff]
      %v1945 = vld [vmem:[#allocation2 + $0x121] sm:$0xff]
      %v1946 = vld [vmem:[#allocation2 + $0x129] sm:$0xff]
      %v1947 = vld [vmem:[#allocation2 + $0x131] sm:$0xff]
      %v1948 = vld [vmem:[#allocation2 + $0x141] sm:$0xff]
      %v1949 = vld [vmem:[#allocation2 + $0x149] sm:$0xff]
      %v1950 = vld [vmem:[#allocation2 + $0x151] sm:$0xff]
      %v1951 = vld [vmem:[#allocation2 + $0x159] sm:$0xff]
      %v1952 = vld [vmem:[#allocation2 + $0x169] sm:$0xff]
      %v1953 = vld [vmem:[#allocation2 + $0x171] sm:$0xff]
      %v1954 = vld [vmem:[#allocation2 + $0x179] sm:$0xff]
      %v1955 = vld [vmem:[#allocation2 + $0x181] sm:$0xff]
      %v1956 = vld [vmem:[#allocation2 + $0x191] sm:$0xff]
      %v1957 = vld [vmem:[#allocation2 + $0x199] sm:$0xff]
      %v1958 = vld [vmem:[#allocation2 + $0x1a1] sm:$0xff]
      %v1959 = vld [vmem:[#allocation2 + $0x1a9] sm:$0xff]
      %v1960 = vld [vmem:[#allocation2 + $0x1b9] sm:$0xff]
      %v1961 = vld [vmem:[#allocation2 + $0x1c1] sm:$0xff]
      %v1962 = vld [vmem:[#allocation2 + $0x1c9] sm:$0xff]
      %v1963 = vld [vmem:[#allocation2 + $0x1d1] sm:$0xff]
      %v1964 = vld [vmem:[#allocation2 + $0x1e1] sm:$0xff]
      %v1965 = vld [vmem:[#allocation2 + $0x1e9] sm:$0xff]
      %v1966 = vld [vmem:[#allocation2 + $0x1f1] sm:$0xff]
      %v1967 = vld [vmem:[#allocation2 + $0x1f9] sm:$0xff]
      %v1968 = vld [vmem:[#allocation2 + $0x209] sm:$0xff]
      %v1969 = vld [vmem:[#allocation2 + $0x211] sm:$0xff]
      %v1970 = vld [vmem:[#allocation2 + $0x219] sm:$0xff]
      %v1971 = vld [vmem:[#allocation2 + $0x221] sm:$0xff]
      %v1972 = vld [vmem:[#allocation2 + $0x231] sm:$0xff]
      %v1973 = vld [vmem:[#allocation2 + $0x239] sm:$0xff]
      %v1974 = vld [vmem:[#allocation2 + $0x241] sm:$0xff]
      %v1975 = vld [vmem:[#allocation2 + $0x249] sm:$0xff]
      %v1976 = vld [vmem:[#allocation2 + $0x259] sm:$0xff]
      %v1977 = vld [vmem:[#allocation2 + $0x261] sm:$0xff]
      %v1978 = vld [vmem:[#allocation2 + $0x269] sm:$0xff]
      %v1979 = vld [vmem:[#allocation2 + $0x271] sm:$0xff]
      %v1980 = vld [vmem:[#allocation2 + $0x281] sm:$0xff]
      %v1981 = vld [vmem:[#allocation2 + $0x289] sm:$0xff]
      %v1982 = vld [vmem:[#allocation2 + $0x291] sm:$0xff]
      %v1983 = vld [vmem:[#allocation2 + $0x299] sm:$0xff]
      %v1984 = vld [vmem:[#allocation2 + $0x2a9] sm:$0xff]
      %v1985 = vld [vmem:[#allocation2 + $0x2b1] sm:$0xff]
      %v1986 = vld [vmem:[#allocation2 + $0x2b9] sm:$0xff]
      %v1987 = vld [vmem:[#allocation2 + $0x2c1] sm:$0xff]
      %v1988 = vld [vmem:[#allocation2 + $0x2d1] sm:$0xff]
      %v1989 = vld [vmem:[#allocation2 + $0x2d9] sm:$0xff]
      %v1990 = vld [vmem:[#allocation2 + $0x2e1] sm:$0xff]
      %v1991 = vld [vmem:[#allocation2 + $0x2e9] sm:$0xff]
      %v1992 = vld [vmem:[#allocation2 + $0x2f9] sm:$0xff]
      %v1993 = vld [vmem:[#allocation2 + $0x301] sm:$0xff]
      %v1994 = vld [vmem:[#allocation2 + $0x309] sm:$0xff]
      %v1995 = vld [vmem:[#allocation2 + $0x311] sm:$0xff]
      %v1996 = vld [vmem:[#allocation2 + $0x321] sm:$0xff]
      %v1997 = vld [vmem:[#allocation2 + $0x329] sm:$0xff]
      %v1998 = vld [vmem:[#allocation2 + $0x331] sm:$0xff]
      %v1999 = vld [vmem:[#allocation2 + $0x339] sm:$0xff]
      %v2000 = vld [vmem:[#allocation2 + $0x349] sm:$0xff]
      %v2001 = vld [vmem:[#allocation2 + $0x351] sm:$0xff]
      %v2002 = vld [vmem:[#allocation2 + $0x359] sm:$0xff]
      %v2003 = vld [vmem:[#allocation2 + $0x361] sm:$0xff]
      %v2004 = vld [vmem:[#allocation2 + $0x371] sm:$0xff]
      %v2005 = vld [vmem:[#allocation2 + $0x379] sm:$0xff]
      %v2006 = vld [vmem:[#allocation2 + $0x381] sm:$0xff]
      %v2007 = vld [vmem:[#allocation2 + $0x389] sm:$0xff]
      %v2008 = vld [vmem:[#allocation2 + $0x399] sm:$0xff]
      %v2009 = vld [vmem:[#allocation2 + $0x3a1] sm:$0xff]
      %v2010 = vld [vmem:[#allocation2 + $0x3a9] sm:$0xff]
      %v2011 = vld [vmem:[#allocation2 + $0x3b1] sm:$0xff]
      %v2012 = vld [vmem:[#allocation2 + $0x3c1] sm:$0xff]
      %v2013 = vld [vmem:[#allocation2 + $0x3c9] sm:$0xff]
      %v2014 = vld [vmem:[#allocation2 + $0x3d1] sm:$0xff]
      %v2015 = vld [vmem:[#allocation2 + $0x3d9] sm:$0xff]
      %v2016 = vld [vmem:[#allocation2 + $0x3e9] sm:$0xff]
      %v2017 = vld [vmem:[#allocation2 + $0x3f1] sm:$0xff]
      %v2018 = vld [vmem:[#allocation2 + $0x3f9] sm:$0xff]
      %v2019 = vld [vmem:[#allocation2 + $0x401] sm:$0xff]
      %v2020 = vld [vmem:[#allocation2 + $0x411] sm:$0xff]
      %v2021 = vld [vmem:[#allocation2 + $0x419] sm:$0xff]
      %v2022 = vld [vmem:[#allocation2 + $0x421] sm:$0xff]
      %v2023 = vld [vmem:[#allocation2 + $0x429] sm:$0xff]
      %v2024 = vld [vmem:[#allocation2 + $0x439] sm:$0xff]
      %v2025 = vld [vmem:[#allocation2 + $0x441] sm:$0xff]
      %v2026 = vld [vmem:[#allocation2 + $0x449] sm:$0xff]
      %v2027 = vld [vmem:[#allocation2 + $0x451] sm:$0xff]
      %v2028 = vld [vmem:[#allocation2 + $0x461] sm:$0xff]
      %v2029 = vld [vmem:[#allocation2 + $0x469] sm:$0xff]
      %v2030 = vld [vmem:[#allocation2 + $0x471] sm:$0xff]
      %v2031 = vld [vmem:[#allocation2 + $0x479] sm:$0xff]
      %v2032 = vld [vmem:[#allocation2 + $0x489] sm:$0xff]
      %v2033 = vld [vmem:[#allocation2 + $0x491] sm:$0xff]
      %v2034 = vld [vmem:[#allocation2 + $0x499] sm:$0xff]
      %v2035 = vld [vmem:[#allocation2 + $0x4a1] sm:$0xff]
      %v2036 = vld [vmem:[#allocation2 + $0x4b1] sm:$0xff]
      %v2037 = vld [vmem:[#allocation2 + $0x4b9] sm:$0xff]
      %v2038 = vld [vmem:[#allocation2 + $0x4c1] sm:$0xff]
      %v2039 = vld [vmem:[#allocation2 + $0x4c9] sm:$0xff]
      %v2040 = vld [vmem:[#allocation2 + $0x4d9] sm:$0xff]
      %v2041 = vld [vmem:[#allocation2 + $0x4e1] sm:$0xff]
      %v2042 = vld [vmem:[#allocation2 + $0x4e9] sm:$0xff]
      %v2043 = vld [vmem:[#allocation2 + $0x4f1] sm:$0xff]
      %v2044 = vlaneseq
      %v2045 = vshrl.u32 %v2044, 7
      %v2046 = vsub.s32 1, %v2045
      %v2047 = vrot.slane %v1525, %v2046
      %v2048 = vmul.f32 %v1916, %v2047
      %v2049 = vmul.f32 %v1917, %v2047
      %v2050 = vmul.f32 %v1918, %v2047
      %v2051 = vmul.f32 %v1919, %v2047
      %v2052 = vmul.f32 %v1920, %v2047
      %v2053 = vmul.f32 %v1921, %v2047
      %v2054 = vmul.f32 %v1922, %v2047
      %v2055 = vmul.f32 %v1923, %v2047
      %v2056 = vmul.f32 %v1924, %v2047
      %v2057 = vmul.f32 %v1925, %v2047
      %v2058 = vmul.f32 %v1926, %v2047
      %v2059 = vmul.f32 %v1927, %v2047
      %v2060 = vmul.f32 %v1928, %v2047
      %v2061 = vmul.f32 %v1929, %v2047
      %v2062 = vmul.f32 %v1930, %v2047
      %v2063 = vmul.f32 %v1931, %v2047
      %v2064 = vmul.f32 %v1932, %v2047
      %v2065 = vmul.f32 %v1933, %v2047
      %v2066 = vmul.f32 %v1934, %v2047
      %v2067 = vmul.f32 %v1935, %v2047
      %v2068 = vmul.f32 %v1936, %v2047
      %v2069 = vmul.f32 %v1937, %v2047
      %v2070 = vmul.f32 %v1938, %v2047
      %v2071 = vmul.f32 %v1939, %v2047
      %v2072 = vmul.f32 %v1940, %v2047
      %v2073 = vmul.f32 %v1941, %v2047
      %v2074 = vmul.f32 %v1942, %v2047
      %v2075 = vmul.f32 %v1943, %v2047
      %v2076 = vmul.f32 %v1944, %v2047
      %v2077 = vmul.f32 %v1945, %v2047
      %v2078 = vmul.f32 %v1946, %v2047
      %v2079 = vmul.f32 %v1947, %v2047
      %v2080 = vmul.f32 %v1948, %v2047
      %v2081 = vmul.f32 %v1949, %v2047
      %v2082 = vmul.f32 %v1950, %v2047
      %v2083 = vmul.f32 %v1951, %v2047
      %v2084 = vmul.f32 %v1952, %v2047
      %v2085 = vmul.f32 %v1953, %v2047
      %v2086 = vmul.f32 %v1954, %v2047
      %v2087 = vmul.f32 %v1955, %v2047
      %v2088 = vmul.f32 %v1956, %v2047
      %v2089 = vmul.f32 %v1957, %v2047
      %v2090 = vmul.f32 %v1958, %v2047
      %v2091 = vmul.f32 %v1959, %v2047
      %v2092 = vmul.f32 %v1960, %v2047
      %v2093 = vmul.f32 %v1961, %v2047
      %v2094 = vmul.f32 %v1962, %v2047
      %v2095 = vmul.f32 %v1963, %v2047
      %v2096 = vmul.f32 %v1964, %v2047
      %v2097 = vmul.f32 %v1965, %v2047
      %v2098 = vmul.f32 %v1966, %v2047
      %v2099 = vmul.f32 %v1967, %v2047
      %v2100 = vmul.f32 %v1968, %v2047
      %v2101 = vmul.f32 %v1969, %v2047
      %v2102 = vmul.f32 %v1970, %v2047
      %v2103 = vmul.f32 %v1971, %v2047
      %v2104 = vmul.f32 %v1972, %v2047
      %v2105 = vmul.f32 %v1973, %v2047
      %v2106 = vmul.f32 %v1974, %v2047
      %v2107 = vmul.f32 %v1975, %v2047
      %v2108 = vmul.f32 %v1976, %v2047
      %v2109 = vmul.f32 %v1977, %v2047
      %v2110 = vmul.f32 %v1978, %v2047
      %v2111 = vmul.f32 %v1979, %v2047
      %v2112 = vmul.f32 %v1980, %v2047
      %v2113 = vmul.f32 %v1981, %v2047
      %v2114 = vmul.f32 %v1982, %v2047
      %v2115 = vmul.f32 %v1983, %v2047
      %v2116 = vmul.f32 %v1984, %v2047
      %v2117 = vmul.f32 %v1985, %v2047
      %v2118 = vmul.f32 %v1986, %v2047
      %v2119 = vmul.f32 %v1987, %v2047
      %v2120 = vmul.f32 %v1988, %v2047
      %v2121 = vmul.f32 %v1989, %v2047
      %v2122 = vmul.f32 %v1990, %v2047
      %v2123 = vmul.f32 %v1991, %v2047
      %v2124 = vmul.f32 %v1992, %v2047
      %v2125 = vmul.f32 %v1993, %v2047
      %v2126 = vmul.f32 %v1994, %v2047
      %v2127 = vmul.f32 %v1995, %v2047
      %v2128 = vmul.f32 %v1996, %v2047
      %v2129 = vmul.f32 %v1997, %v2047
      %v2130 = vmul.f32 %v1998, %v2047
      %v2131 = vmul.f32 %v1999, %v2047
      %v2132 = vmul.f32 %v2000, %v2047
      %v2133 = vmul.f32 %v2001, %v2047
      %v2134 = vmul.f32 %v2002, %v2047
      %v2135 = vmul.f32 %v2003, %v2047
      %v2136 = vmul.f32 %v2004, %v2047
      %v2137 = vmul.f32 %v2005, %v2047
      %v2138 = vmul.f32 %v2006, %v2047
      %v2139 = vmul.f32 %v2007, %v2047
      %v2140 = vmul.f32 %v2008, %v2047
      %v2141 = vmul.f32 %v2009, %v2047
      %v2142 = vmul.f32 %v2010, %v2047
      %v2143 = vmul.f32 %v2011, %v2047
      %v2144 = vmul.f32 %v2012, %v2047
      %v2145 = vmul.f32 %v2013, %v2047
      %v2146 = vmul.f32 %v2014, %v2047
      %v2147 = vmul.f32 %v2015, %v2047
      %v2148 = vmul.f32 %v2016, %v2047
      %v2149 = vmul.f32 %v2017, %v2047
      %v2150 = vmul.f32 %v2018, %v2047
      %v2151 = vmul.f32 %v2019, %v2047
      %v2152 = vmul.f32 %v2020, %v2047
      %v2153 = vmul.f32 %v2021, %v2047
      %v2154 = vmul.f32 %v2022, %v2047
      %v2155 = vmul.f32 %v2023, %v2047
      %v2156 = vmul.f32 %v2024, %v2047
      %v2157 = vmul.f32 %v2025, %v2047
      %v2158 = vmul.f32 %v2026, %v2047
      %v2159 = vmul.f32 %v2027, %v2047
      %v2160 = vmul.f32 %v2028, %v2047
      %v2161 = vmul.f32 %v2029, %v2047
      %v2162 = vmul.f32 %v2030, %v2047
      %v2163 = vmul.f32 %v2031, %v2047
      %v2164 = vmul.f32 %v2032, %v2047
      %v2165 = vmul.f32 %v2033, %v2047
      %v2166 = vmul.f32 %v2034, %v2047
      %v2167 = vmul.f32 %v2035, %v2047
      %v2168 = vmul.f32 %v2036, %v2047
      %v2169 = vmul.f32 %v2037, %v2047
      %v2170 = vmul.f32 %v2038, %v2047
      %v2171 = vmul.f32 %v2039, %v2047
      %v2172 = vmul.f32 %v2040, %v2047
      %v2173 = vmul.f32 %v2041, %v2047
      %v2174 = vmul.f32 %v2042, %v2047
      %v2175 = vmul.f32 %v2043, %v2047
      %v2176 = vadd.f32 %v1788, %v2048
      %v2177 = vadd.f32 %v1789, %v2049
      %v2178 = vadd.f32 %v1790, %v2050
      %v2179 = vadd.f32 %v1791, %v2051
      %v2180 = vadd.f32 %v1792, %v2052
      %v2181 = vadd.f32 %v1793, %v2053
      %v2182 = vadd.f32 %v1794, %v2054
      %v2183 = vadd.f32 %v1795, %v2055
      %v2184 = vadd.f32 %v1796, %v2056
      %v2185 = vadd.f32 %v1797, %v2057
      %v2186 = vadd.f32 %v1798, %v2058
      %v2187 = vadd.f32 %v1799, %v2059
      %v2188 = vadd.f32 %v1800, %v2060
      %v2189 = vadd.f32 %v1801, %v2061
      %v2190 = vadd.f32 %v1802, %v2062
      %v2191 = vadd.f32 %v1803, %v2063
      %v2192 = vadd.f32 %v1804, %v2064
      %v2193 = vadd.f32 %v1805, %v2065
      %v2194 = vadd.f32 %v1806, %v2066
      %v2195 = vadd.f32 %v1807, %v2067
      %v2196 = vadd.f32 %v1808, %v2068
      %v2197 = vadd.f32 %v1809, %v2069
      %v2198 = vadd.f32 %v1810, %v2070
      %v2199 = vadd.f32 %v1811, %v2071
      %v2200 = vadd.f32 %v1812, %v2072
      %v2201 = vadd.f32 %v1813, %v2073
      %v2202 = vadd.f32 %v1814, %v2074
      %v2203 = vadd.f32 %v1815, %v2075
      %v2204 = vadd.f32 %v1816, %v2076
      %v2205 = vadd.f32 %v1817, %v2077
      %v2206 = vadd.f32 %v1818, %v2078
      %v2207 = vadd.f32 %v1819, %v2079
      %v2208 = vadd.f32 %v1820, %v2080
      %v2209 = vadd.f32 %v1821, %v2081
      %v2210 = vadd.f32 %v1822, %v2082
      %v2211 = vadd.f32 %v1823, %v2083
      %v2212 = vadd.f32 %v1824, %v2084
      %v2213 = vadd.f32 %v1825, %v2085
      %v2214 = vadd.f32 %v1826, %v2086
      %v2215 = vadd.f32 %v1827, %v2087
      %v2216 = vadd.f32 %v1828, %v2088
      %v2217 = vadd.f32 %v1829, %v2089
      %v2218 = vadd.f32 %v1830, %v2090
      %v2219 = vadd.f32 %v1831, %v2091
      %v2220 = vadd.f32 %v1832, %v2092
      %v2221 = vadd.f32 %v1833, %v2093
      %v2222 = vadd.f32 %v1834, %v2094
      %v2223 = vadd.f32 %v1835, %v2095
      %v2224 = vadd.f32 %v1836, %v2096
      %v2225 = vadd.f32 %v1837, %v2097
      %v2226 = vadd.f32 %v1838, %v2098
      %v2227 = vadd.f32 %v1839, %v2099
      %v2228 = vadd.f32 %v1840, %v2100
      %v2229 = vadd.f32 %v1841, %v2101
      %v2230 = vadd.f32 %v1842, %v2102
      %v2231 = vadd.f32 %v1843, %v2103
      %v2232 = vadd.f32 %v1844, %v2104
      %v2233 = vadd.f32 %v1845, %v2105
      %v2234 = vadd.f32 %v1846, %v2106
      %v2235 = vadd.f32 %v1847, %v2107
      %v2236 = vadd.f32 %v1848, %v2108
      %v2237 = vadd.f32 %v1849, %v2109
      %v2238 = vadd.f32 %v1850, %v2110
      %v2239 = vadd.f32 %v1851, %v2111
      %v2240 = vadd.f32 %v1852, %v2112
      %v2241 = vadd.f32 %v1853, %v2113
      %v2242 = vadd.f32 %v1854, %v2114
      %v2243 = vadd.f32 %v1855, %v2115
      %v2244 = vadd.f32 %v1856, %v2116
      %v2245 = vadd.f32 %v1857, %v2117
      %v2246 = vadd.f32 %v1858, %v2118
      %v2247 = vadd.f32 %v1859, %v2119
      %v2248 = vadd.f32 %v1860, %v2120
      %v2249 = vadd.f32 %v1861, %v2121
      %v2250 = vadd.f32 %v1862, %v2122
      %v2251 = vadd.f32 %v1863, %v2123
      %v2252 = vadd.f32 %v1864, %v2124
      %v2253 = vadd.f32 %v1865, %v2125
      %v2254 = vadd.f32 %v1866, %v2126
      %v2255 = vadd.f32 %v1867, %v2127
      %v2256 = vadd.f32 %v1868, %v2128
      %v2257 = vadd.f32 %v1869, %v2129
      %v2258 = vadd.f32 %v1870, %v2130
      %v2259 = vadd.f32 %v1871, %v2131
      %v2260 = vadd.f32 %v1872, %v2132
      %v2261 = vadd.f32 %v1873, %v2133
      %v2262 = vadd.f32 %v1874, %v2134
      %v2263 = vadd.f32 %v1875, %v2135
      %v2264 = vadd.f32 %v1876, %v2136
      %v2265 = vadd.f32 %v1877, %v2137
      %v2266 = vadd.f32 %v1878, %v2138
      %v2267 = vadd.f32 %v1879, %v2139
      %v2268 = vadd.f32 %v1880, %v2140
      %v2269 = vadd.f32 %v1881, %v2141
      %v2270 = vadd.f32 %v1882, %v2142
      %v2271 = vadd.f32 %v1883, %v2143
      %v2272 = vadd.f32 %v1884, %v2144
      %v2273 = vadd.f32 %v1885, %v2145
      %v2274 = vadd.f32 %v1886, %v2146
      %v2275 = vadd.f32 %v1887, %v2147
      %v2276 = vadd.f32 %v1888, %v2148
      %v2277 = vadd.f32 %v1889, %v2149
      %v2278 = vadd.f32 %v1890, %v2150
      %v2279 = vadd.f32 %v1891, %v2151
      %v2280 = vadd.f32 %v1892, %v2152
      %v2281 = vadd.f32 %v1893, %v2153
      %v2282 = vadd.f32 %v1894, %v2154
      %v2283 = vadd.f32 %v1895, %v2155
      %v2284 = vadd.f32 %v1896, %v2156
      %v2285 = vadd.f32 %v1897, %v2157
      %v2286 = vadd.f32 %v1898, %v2158
      %v2287 = vadd.f32 %v1899, %v2159
      %v2288 = vadd.f32 %v1900, %v2160
      %v2289 = vadd.f32 %v1901, %v2161
      %v2290 = vadd.f32 %v1902, %v2162
      %v2291 = vadd.f32 %v1903, %v2163
      %v2292 = vadd.f32 %v1904, %v2164
      %v2293 = vadd.f32 %v1905, %v2165
      %v2294 = vadd.f32 %v1906, %v2166
      %v2295 = vadd.f32 %v1907, %v2167
      %v2296 = vadd.f32 %v1908, %v2168
      %v2297 = vadd.f32 %v1909, %v2169
      %v2298 = vadd.f32 %v1910, %v2170
      %v2299 = vadd.f32 %v1911, %v2171
      %v2300 = vadd.f32 %v1912, %v2172
      %v2301 = vadd.f32 %v1913, %v2173
      %v2302 = vadd.f32 %v1914, %v2174
      %v2303 = vadd.f32 %v1915, %v2175
      %v2304 = vld [vmem:[#allocation2 + $0x2] sm:$0xff]
      %v2305 = vld [vmem:[#allocation2 + $0xa] sm:$0xff]
      %v2306 = vld [vmem:[#allocation2 + $0x12] sm:$0xff]
      %v2307 = vld [vmem:[#allocation2 + $0x1a] sm:$0xff]
      %v2308 = vld [vmem:[#allocation2 + $0x2a] sm:$0xff]
      %v2309 = vld [vmem:[#allocation2 + $0x32] sm:$0xff]
      %v2310 = vld [vmem:[#allocation2 + $0x3a] sm:$0xff]
      %v2311 = vld [vmem:[#allocation2 + $0x42] sm:$0xff]
      %v2312 = vld [vmem:[#allocation2 + $0x52] sm:$0xff]
      %v2313 = vld [vmem:[#allocation2 + $0x5a] sm:$0xff]
      %v2314 = vld [vmem:[#allocation2 + $0x62] sm:$0xff]
      %v2315 = vld [vmem:[#allocation2 + $0x6a] sm:$0xff]
      %v2316 = vld [vmem:[#allocation2 + $0x7a] sm:$0xff]
      %v2317 = vld [vmem:[#allocation2 + $0x82] sm:$0xff]
      %v2318 = vld [vmem:[#allocation2 + $0x8a] sm:$0xff]
      %v2319 = vld [vmem:[#allocation2 + $0x92] sm:$0xff]
      %v2320 = vld [vmem:[#allocation2 + $0xa2] sm:$0xff]
      %v2321 = vld [vmem:[#allocation2 + $0xaa] sm:$0xff]
      %v2322 = vld [vmem:[#allocation2 + $0xb2] sm:$0xff]
      %v2323 = vld [vmem:[#allocation2 + $0xba] sm:$0xff]
      %v2324 = vld [vmem:[#allocation2 + $0xca] sm:$0xff]
      %v2325 = vld [vmem:[#allocation2 + $0xd2] sm:$0xff]
      %v2326 = vld [vmem:[#allocation2 + $0xda] sm:$0xff]
      %v2327 = vld [vmem:[#allocation2 + $0xe2] sm:$0xff]
      %v2328 = vld [vmem:[#allocation2 + $0xf2] sm:$0xff]
      %v2329 = vld [vmem:[#allocation2 + $0xfa] sm:$0xff]
      %v2330 = vld [vmem:[#allocation2 + $0x102] sm:$0xff]
      %v2331 = vld [vmem:[#allocation2 + $0x10a] sm:$0xff]
      %v2332 = vld [vmem:[#allocation2 + $0x11a] sm:$0xff]
      %v2333 = vld [vmem:[#allocation2 + $0x122] sm:$0xff]
      %v2334 = vld [vmem:[#allocation2 + $0x12a] sm:$0xff]
      %v2335 = vld [vmem:[#allocation2 + $0x132] sm:$0xff]
      %v2336 = vld [vmem:[#allocation2 + $0x142] sm:$0xff]
      %v2337 = vld [vmem:[#allocation2 + $0x14a] sm:$0xff]
      %v2338 = vld [vmem:[#allocation2 + $0x152] sm:$0xff]
      %v2339 = vld [vmem:[#allocation2 + $0x15a] sm:$0xff]
      %v2340 = vld [vmem:[#allocation2 + $0x16a] sm:$0xff]
      %v2341 = vld [vmem:[#allocation2 + $0x172] sm:$0xff]
      %v2342 = vld [vmem:[#allocation2 + $0x17a] sm:$0xff]
      %v2343 = vld [vmem:[#allocation2 + $0x182] sm:$0xff]
      %v2344 = vld [vmem:[#allocation2 + $0x192] sm:$0xff]
      %v2345 = vld [vmem:[#allocation2 + $0x19a] sm:$0xff]
      %v2346 = vld [vmem:[#allocation2 + $0x1a2] sm:$0xff]
      %v2347 = vld [vmem:[#allocation2 + $0x1aa] sm:$0xff]
      %v2348 = vld [vmem:[#allocation2 + $0x1ba] sm:$0xff]
      %v2349 = vld [vmem:[#allocation2 + $0x1c2] sm:$0xff]
      %v2350 = vld [vmem:[#allocation2 + $0x1ca] sm:$0xff]
      %v2351 = vld [vmem:[#allocation2 + $0x1d2] sm:$0xff]
      %v2352 = vld [vmem:[#allocation2 + $0x1e2] sm:$0xff]
      %v2353 = vld [vmem:[#allocation2 + $0x1ea] sm:$0xff]
      %v2354 = vld [vmem:[#allocation2 + $0x1f2] sm:$0xff]
      %v2355 = vld [vmem:[#allocation2 + $0x1fa] sm:$0xff]
      %v2356 = vld [vmem:[#allocation2 + $0x20a] sm:$0xff]
      %v2357 = vld [vmem:[#allocation2 + $0x212] sm:$0xff]
      %v2358 = vld [vmem:[#allocation2 + $0x21a] sm:$0xff]
      %v2359 = vld [vmem:[#allocation2 + $0x222] sm:$0xff]
      %v2360 = vld [vmem:[#allocation2 + $0x232] sm:$0xff]
      %v2361 = vld [vmem:[#allocation2 + $0x23a] sm:$0xff]
      %v2362 = vld [vmem:[#allocation2 + $0x242] sm:$0xff]
      %v2363 = vld [vmem:[#allocation2 + $0x24a] sm:$0xff]
      %v2364 = vld [vmem:[#allocation2 + $0x25a] sm:$0xff]
      %v2365 = vld [vmem:[#allocation2 + $0x262] sm:$0xff]
      %v2366 = vld [vmem:[#allocation2 + $0x26a] sm:$0xff]
      %v2367 = vld [vmem:[#allocation2 + $0x272] sm:$0xff]
      %v2368 = vld [vmem:[#allocation2 + $0x282] sm:$0xff]
      %v2369 = vld [vmem:[#allocation2 + $0x28a] sm:$0xff]
      %v2370 = vld [vmem:[#allocation2 + $0x292] sm:$0xff]
      %v2371 = vld [vmem:[#allocation2 + $0x29a] sm:$0xff]
      %v2372 = vld [vmem:[#allocation2 + $0x2aa] sm:$0xff]
      %v2373 = vld [vmem:[#allocation2 + $0x2b2] sm:$0xff]
      %v2374 = vld [vmem:[#allocation2 + $0x2ba] sm:$0xff]
      %v2375 = vld [vmem:[#allocation2 + $0x2c2] sm:$0xff]
      %v2376 = vld [vmem:[#allocation2 + $0x2d2] sm:$0xff]
      %v2377 = vld [vmem:[#allocation2 + $0x2da] sm:$0xff]
      %v2378 = vld [vmem:[#allocation2 + $0x2e2] sm:$0xff]
      %v2379 = vld [vmem:[#allocation2 + $0x2ea] sm:$0xff]
      %v2380 = vld [vmem:[#allocation2 + $0x2fa] sm:$0xff]
      %v2381 = vld [vmem:[#allocation2 + $0x302] sm:$0xff]
      %v2382 = vld [vmem:[#allocation2 + $0x30a] sm:$0xff]
      %v2383 = vld [vmem:[#allocation2 + $0x312] sm:$0xff]
      %v2384 = vld [vmem:[#allocation2 + $0x322] sm:$0xff]
      %v2385 = vld [vmem:[#allocation2 + $0x32a] sm:$0xff]
      %v2386 = vld [vmem:[#allocation2 + $0x332] sm:$0xff]
      %v2387 = vld [vmem:[#allocation2 + $0x33a] sm:$0xff]
      %v2388 = vld [vmem:[#allocation2 + $0x34a] sm:$0xff]
      %v2389 = vld [vmem:[#allocation2 + $0x352] sm:$0xff]
      %v2390 = vld [vmem:[#allocation2 + $0x35a] sm:$0xff]
      %v2391 = vld [vmem:[#allocation2 + $0x362] sm:$0xff]
      %v2392 = vld [vmem:[#allocation2 + $0x372] sm:$0xff]
      %v2393 = vld [vmem:[#allocation2 + $0x37a] sm:$0xff]
      %v2394 = vld [vmem:[#allocation2 + $0x382] sm:$0xff]
      %v2395 = vld [vmem:[#allocation2 + $0x38a] sm:$0xff]
      %v2396 = vld [vmem:[#allocation2 + $0x39a] sm:$0xff]
      %v2397 = vld [vmem:[#allocation2 + $0x3a2] sm:$0xff]
      %v2398 = vld [vmem:[#allocation2 + $0x3aa] sm:$0xff]
      %v2399 = vld [vmem:[#allocation2 + $0x3b2] sm:$0xff]
      %v2400 = vld [vmem:[#allocation2 + $0x3c2] sm:$0xff]
      %v2401 = vld [vmem:[#allocation2 + $0x3ca] sm:$0xff]
      %v2402 = vld [vmem:[#allocation2 + $0x3d2] sm:$0xff]
      %v2403 = vld [vmem:[#allocation2 + $0x3da] sm:$0xff]
      %v2404 = vld [vmem:[#allocation2 + $0x3ea] sm:$0xff]
      %v2405 = vld [vmem:[#allocation2 + $0x3f2] sm:$0xff]
      %v2406 = vld [vmem:[#allocation2 + $0x3fa] sm:$0xff]
      %v2407 = vld [vmem:[#allocation2 + $0x402] sm:$0xff]
      %v2408 = vld [vmem:[#allocation2 + $0x412] sm:$0xff]
      %v2409 = vld [vmem:[#allocation2 + $0x41a] sm:$0xff]
      %v2410 = vld [vmem:[#allocation2 + $0x422] sm:$0xff]
      %v2411 = vld [vmem:[#allocation2 + $0x42a] sm:$0xff]
      %v2412 = vld [vmem:[#allocation2 + $0x43a] sm:$0xff]
      %v2413 = vld [vmem:[#allocation2 + $0x442] sm:$0xff]
      %v2414 = vld [vmem:[#allocation2 + $0x44a] sm:$0xff]
      %v2415 = vld [vmem:[#allocation2 + $0x452] sm:$0xff]
      %v2416 = vld [vmem:[#allocation2 + $0x462] sm:$0xff]
      %v2417 = vld [vmem:[#allocation2 + $0x46a] sm:$0xff]
      %v2418 = vld [vmem:[#allocation2 + $0x472] sm:$0xff]
      %v2419 = vld [vmem:[#allocation2 + $0x47a] sm:$0xff]
      %v2420 = vld [vmem:[#allocation2 + $0x48a] sm:$0xff]
      %v2421 = vld [vmem:[#allocation2 + $0x492] sm:$0xff]
      %v2422 = vld [vmem:[#allocation2 + $0x49a] sm:$0xff]
      %v2423 = vld [vmem:[#allocation2 + $0x4a2] sm:$0xff]
      %v2424 = vld [vmem:[#allocation2 + $0x4b2] sm:$0xff]
      %v2425 = vld [vmem:[#allocation2 + $0x4ba] sm:$0xff]
      %v2426 = vld [vmem:[#allocation2 + $0x4c2] sm:$0xff]
      %v2427 = vld [vmem:[#allocation2 + $0x4ca] sm:$0xff]
      %v2428 = vld [vmem:[#allocation2 + $0x4da] sm:$0xff]
      %v2429 = vld [vmem:[#allocation2 + $0x4e2] sm:$0xff]
      %v2430 = vld [vmem:[#allocation2 + $0x4ea] sm:$0xff]
      %v2431 = vld [vmem:[#allocation2 + $0x4f2] sm:$0xff]
      %v2432 = vlaneseq
      %v2433 = vshrl.u32 %v2432, 7
      %v2434 = vsub.s32 2, %v2433
      %v2435 = vrot.slane %v1525, %v2434
      %v2436 = vmul.f32 %v2304, %v2435
      %v2437 = vmul.f32 %v2305, %v2435
      %v2438 = vmul.f32 %v2306, %v2435
      %v2439 = vmul.f32 %v2307, %v2435
      %v2440 = vmul.f32 %v2308, %v2435
      %v2441 = vmul.f32 %v2309, %v2435
      %v2442 = vmul.f32 %v2310, %v2435
      %v2443 = vmul.f32 %v2311, %v2435
      %v2444 = vmul.f32 %v2312, %v2435
      %v2445 = vmul.f32 %v2313, %v2435
      %v2446 = vmul.f32 %v2314, %v2435
      %v2447 = vmul.f32 %v2315, %v2435
      %v2448 = vmul.f32 %v2316, %v2435
      %v2449 = vmul.f32 %v2317, %v2435
      %v2450 = vmul.f32 %v2318, %v2435
      %v2451 = vmul.f32 %v2319, %v2435
      %v2452 = vmul.f32 %v2320, %v2435
      %v2453 = vmul.f32 %v2321, %v2435
      %v2454 = vmul.f32 %v2322, %v2435
      %v2455 = vmul.f32 %v2323, %v2435
      %v2456 = vmul.f32 %v2324, %v2435
      %v2457 = vmul.f32 %v2325, %v2435
      %v2458 = vmul.f32 %v2326, %v2435
      %v2459 = vmul.f32 %v2327, %v2435
      %v2460 = vmul.f32 %v2328, %v2435
      %v2461 = vmul.f32 %v2329, %v2435
      %v2462 = vmul.f32 %v2330, %v2435
      %v2463 = vmul.f32 %v2331, %v2435
      %v2464 = vmul.f32 %v2332, %v2435
      %v2465 = vmul.f32 %v2333, %v2435
      %v2466 = vmul.f32 %v2334, %v2435
      %v2467 = vmul.f32 %v2335, %v2435
      %v2468 = vmul.f32 %v2336, %v2435
      %v2469 = vmul.f32 %v2337, %v2435
      %v2470 = vmul.f32 %v2338, %v2435
      %v2471 = vmul.f32 %v2339, %v2435
      %v2472 = vmul.f32 %v2340, %v2435
      %v2473 = vmul.f32 %v2341, %v2435
      %v2474 = vmul.f32 %v2342, %v2435
      %v2475 = vmul.f32 %v2343, %v2435
      %v2476 = vmul.f32 %v2344, %v2435
      %v2477 = vmul.f32 %v2345, %v2435
      %v2478 = vmul.f32 %v2346, %v2435
      %v2479 = vmul.f32 %v2347, %v2435
      %v2480 = vmul.f32 %v2348, %v2435
      %v2481 = vmul.f32 %v2349, %v2435
      %v2482 = vmul.f32 %v2350, %v2435
      %v2483 = vmul.f32 %v2351, %v2435
      %v2484 = vmul.f32 %v2352, %v2435
      %v2485 = vmul.f32 %v2353, %v2435
      %v2486 = vmul.f32 %v2354, %v2435
      %v2487 = vmul.f32 %v2355, %v2435
      %v2488 = vmul.f32 %v2356, %v2435
      %v2489 = vmul.f32 %v2357, %v2435
      %v2490 = vmul.f32 %v2358, %v2435
      %v2491 = vmul.f32 %v2359, %v2435
      %v2492 = vmul.f32 %v2360, %v2435
      %v2493 = vmul.f32 %v2361, %v2435
      %v2494 = vmul.f32 %v2362, %v2435
      %v2495 = vmul.f32 %v2363, %v2435
      %v2496 = vmul.f32 %v2364, %v2435
      %v2497 = vmul.f32 %v2365, %v2435
      %v2498 = vmul.f32 %v2366, %v2435
      %v2499 = vmul.f32 %v2367, %v2435
      %v2500 = vmul.f32 %v2368, %v2435
      %v2501 = vmul.f32 %v2369, %v2435
      %v2502 = vmul.f32 %v2370, %v2435
      %v2503 = vmul.f32 %v2371, %v2435
      %v2504 = vmul.f32 %v2372, %v2435
      %v2505 = vmul.f32 %v2373, %v2435
      %v2506 = vmul.f32 %v2374, %v2435
      %v2507 = vmul.f32 %v2375, %v2435
      %v2508 = vmul.f32 %v2376, %v2435
      %v2509 = vmul.f32 %v2377, %v2435
      %v2510 = vmul.f32 %v2378, %v2435
      %v2511 = vmul.f32 %v2379, %v2435
      %v2512 = vmul.f32 %v2380, %v2435
      %v2513 = vmul.f32 %v2381, %v2435
      %v2514 = vmul.f32 %v2382, %v2435
      %v2515 = vmul.f32 %v2383, %v2435
      %v2516 = vmul.f32 %v2384, %v2435
      %v2517 = vmul.f32 %v2385, %v2435
      %v2518 = vmul.f32 %v2386, %v2435
      %v2519 = vmul.f32 %v2387, %v2435
      %v2520 = vmul.f32 %v2388, %v2435
      %v2521 = vmul.f32 %v2389, %v2435
      %v2522 = vmul.f32 %v2390, %v2435
      %v2523 = vmul.f32 %v2391, %v2435
      %v2524 = vmul.f32 %v2392, %v2435
      %v2525 = vmul.f32 %v2393, %v2435
      %v2526 = vmul.f32 %v2394, %v2435
      %v2527 = vmul.f32 %v2395, %v2435
      %v2528 = vmul.f32 %v2396, %v2435
      %v2529 = vmul.f32 %v2397, %v2435
      %v2530 = vmul.f32 %v2398, %v2435
      %v2531 = vmul.f32 %v2399, %v2435
      %v2532 = vmul.f32 %v2400, %v2435
      %v2533 = vmul.f32 %v2401, %v2435
      %v2534 = vmul.f32 %v2402, %v2435
      %v2535 = vmul.f32 %v2403, %v2435
      %v2536 = vmul.f32 %v2404, %v2435
      %v2537 = vmul.f32 %v2405, %v2435
      %v2538 = vmul.f32 %v2406, %v2435
      %v2539 = vmul.f32 %v2407, %v2435
      %v2540 = vmul.f32 %v2408, %v2435
      %v2541 = vmul.f32 %v2409, %v2435
      %v2542 = vmul.f32 %v2410, %v2435
      %v2543 = vmul.f32 %v2411, %v2435
      %v2544 = vmul.f32 %v2412, %v2435
      %v2545 = vmul.f32 %v2413, %v2435
      %v2546 = vmul.f32 %v2414, %v2435
      %v2547 = vmul.f32 %v2415, %v2435
      %v2548 = vmul.f32 %v2416, %v2435
      %v2549 = vmul.f32 %v2417, %v2435
      %v2550 = vmul.f32 %v2418, %v2435
      %v2551 = vmul.f32 %v2419, %v2435
      %v2552 = vmul.f32 %v2420, %v2435
      %v2553 = vmul.f32 %v2421, %v2435
      %v2554 = vmul.f32 %v2422, %v2435
      %v2555 = vmul.f32 %v2423, %v2435
      %v2556 = vmul.f32 %v2424, %v2435
      %v2557 = vmul.f32 %v2425, %v2435
      %v2558 = vmul.f32 %v2426, %v2435
      %v2559 = vmul.f32 %v2427, %v2435
      %v2560 = vmul.f32 %v2428, %v2435
      %v2561 = vmul.f32 %v2429, %v2435
      %v2562 = vmul.f32 %v2430, %v2435
      %v2563 = vmul.f32 %v2431, %v2435
      %v2564 = vadd.f32 %v2176, %v2436
      %v2565 = vadd.f32 %v2177, %v2437
      %v2566 = vadd.f32 %v2178, %v2438
      %v2567 = vadd.f32 %v2179, %v2439
      %v2568 = vadd.f32 %v2180, %v2440
      %v2569 = vadd.f32 %v2181, %v2441
      %v2570 = vadd.f32 %v2182, %v2442
      %v2571 = vadd.f32 %v2183, %v2443
      %v2572 = vadd.f32 %v2184, %v2444
      %v2573 = vadd.f32 %v2185, %v2445
      %v2574 = vadd.f32 %v2186, %v2446
      %v2575 = vadd.f32 %v2187, %v2447
      %v2576 = vadd.f32 %v2188, %v2448
      %v2577 = vadd.f32 %v2189, %v2449
      %v2578 = vadd.f32 %v2190, %v2450
      %v2579 = vadd.f32 %v2191, %v2451
      %v2580 = vadd.f32 %v2192, %v2452
      %v2581 = vadd.f32 %v2193, %v2453
      %v2582 = vadd.f32 %v2194, %v2454
      %v2583 = vadd.f32 %v2195, %v2455
      %v2584 = vadd.f32 %v2196, %v2456
      %v2585 = vadd.f32 %v2197, %v2457
      %v2586 = vadd.f32 %v2198, %v2458
      %v2587 = vadd.f32 %v2199, %v2459
      %v2588 = vadd.f32 %v2200, %v2460
      %v2589 = vadd.f32 %v2201, %v2461
      %v2590 = vadd.f32 %v2202, %v2462
      %v2591 = vadd.f32 %v2203, %v2463
      %v2592 = vadd.f32 %v2204, %v2464
      %v2593 = vadd.f32 %v2205, %v2465
      %v2594 = vadd.f32 %v2206, %v2466
      %v2595 = vadd.f32 %v2207, %v2467
      %v2596 = vadd.f32 %v2208, %v2468
      %v2597 = vadd.f32 %v2209, %v2469
      %v2598 = vadd.f32 %v2210, %v2470
      %v2599 = vadd.f32 %v2211, %v2471
      %v2600 = vadd.f32 %v2212, %v2472
      %v2601 = vadd.f32 %v2213, %v2473
      %v2602 = vadd.f32 %v2214, %v2474
      %v2603 = vadd.f32 %v2215, %v2475
      %v2604 = vadd.f32 %v2216, %v2476
      %v2605 = vadd.f32 %v2217, %v2477
      %v2606 = vadd.f32 %v2218, %v2478
      %v2607 = vadd.f32 %v2219, %v2479
      %v2608 = vadd.f32 %v2220, %v2480
      %v2609 = vadd.f32 %v2221, %v2481
      %v2610 = vadd.f32 %v2222, %v2482
      %v2611 = vadd.f32 %v2223, %v2483
      %v2612 = vadd.f32 %v2224, %v2484
      %v2613 = vadd.f32 %v2225, %v2485
      %v2614 = vadd.f32 %v2226, %v2486
      %v2615 = vadd.f32 %v2227, %v2487
      %v2616 = vadd.f32 %v2228, %v2488
      %v2617 = vadd.f32 %v2229, %v2489
      %v2618 = vadd.f32 %v2230, %v2490
      %v2619 = vadd.f32 %v2231, %v2491
      %v2620 = vadd.f32 %v2232, %v2492
      %v2621 = vadd.f32 %v2233, %v2493
      %v2622 = vadd.f32 %v2234, %v2494
      %v2623 = vadd.f32 %v2235, %v2495
      %v2624 = vadd.f32 %v2236, %v2496
      %v2625 = vadd.f32 %v2237, %v2497
      %v2626 = vadd.f32 %v2238, %v2498
      %v2627 = vadd.f32 %v2239, %v2499
      %v2628 = vadd.f32 %v2240, %v2500
      %v2629 = vadd.f32 %v2241, %v2501
      %v2630 = vadd.f32 %v2242, %v2502
      %v2631 = vadd.f32 %v2243, %v2503
      %v2632 = vadd.f32 %v2244, %v2504
      %v2633 = vadd.f32 %v2245, %v2505
      %v2634 = vadd.f32 %v2246, %v2506
      %v2635 = vadd.f32 %v2247, %v2507
      %v2636 = vadd.f32 %v2248, %v2508
      %v2637 = vadd.f32 %v2249, %v2509
      %v2638 = vadd.f32 %v2250, %v2510
      %v2639 = vadd.f32 %v2251, %v2511
      %v2640 = vadd.f32 %v2252, %v2512
      %v2641 = vadd.f32 %v2253, %v2513
      %v2642 = vadd.f32 %v2254, %v2514
      %v2643 = vadd.f32 %v2255, %v2515
      %v2644 = vadd.f32 %v2256, %v2516
      %v2645 = vadd.f32 %v2257, %v2517
      %v2646 = vadd.f32 %v2258, %v2518
      %v2647 = vadd.f32 %v2259, %v2519
      %v2648 = vadd.f32 %v2260, %v2520
      %v2649 = vadd.f32 %v2261, %v2521
      %v2650 = vadd.f32 %v2262, %v2522
      %v2651 = vadd.f32 %v2263, %v2523
      %v2652 = vadd.f32 %v2264, %v2524
      %v2653 = vadd.f32 %v2265, %v2525
      %v2654 = vadd.f32 %v2266, %v2526
      %v2655 = vadd.f32 %v2267, %v2527
      %v2656 = vadd.f32 %v2268, %v2528
      %v2657 = vadd.f32 %v2269, %v2529
      %v2658 = vadd.f32 %v2270, %v2530
      %v2659 = vadd.f32 %v2271, %v2531
      %v2660 = vadd.f32 %v2272, %v2532
      %v2661 = vadd.f32 %v2273, %v2533
      %v2662 = vadd.f32 %v2274, %v2534
      %v2663 = vadd.f32 %v2275, %v2535
      %v2664 = vadd.f32 %v2276, %v2536
      %v2665 = vadd.f32 %v2277, %v2537
      %v2666 = vadd.f32 %v2278, %v2538
      %v2667 = vadd.f32 %v2279, %v2539
      %v2668 = vadd.f32 %v2280, %v2540
      %v2669 = vadd.f32 %v2281, %v2541
      %v2670 = vadd.f32 %v2282, %v2542
      %v2671 = vadd.f32 %v2283, %v2543
      %v2672 = vadd.f32 %v2284, %v2544
      %v2673 = vadd.f32 %v2285, %v2545
      %v2674 = vadd.f32 %v2286, %v2546
      %v2675 = vadd.f32 %v2287, %v2547
      %v2676 = vadd.f32 %v2288, %v2548
      %v2677 = vadd.f32 %v2289, %v2549
      %v2678 = vadd.f32 %v2290, %v2550
      %v2679 = vadd.f32 %v2291, %v2551
      %v2680 = vadd.f32 %v2292, %v2552
      %v2681 = vadd.f32 %v2293, %v2553
      %v2682 = vadd.f32 %v2294, %v2554
      %v2683 = vadd.f32 %v2295, %v2555
      %v2684 = vadd.f32 %v2296, %v2556
      %v2685 = vadd.f32 %v2297, %v2557
      %v2686 = vadd.f32 %v2298, %v2558
      %v2687 = vadd.f32 %v2299, %v2559
      %v2688 = vadd.f32 %v2300, %v2560
      %v2689 = vadd.f32 %v2301, %v2561
      %v2690 = vadd.f32 %v2302, %v2562
      %v2691 = vadd.f32 %v2303, %v2563
      %v2692 = vld [vmem:[%s626] sm:$0xff]
      %v2693 = vld [vmem:[%s626 + $0x8] sm:$0xff]
      %v2694 = vld [vmem:[%s626 + $0x10] sm:$0xff]
      %v2695 = vld [vmem:[%s626 + $0x18] sm:$0xff]
      %v2696 = vld [vmem:[%s626 + $0x28] sm:$0xff]
      %v2697 = vld [vmem:[%s626 + $0x30] sm:$0xff]
      %v2698 = vld [vmem:[%s626 + $0x38] sm:$0xff]
      %v2699 = vld [vmem:[%s626 + $0x40] sm:$0xff]
      %v2700 = vld [vmem:[%s626 + $0x50] sm:$0xff]
      %v2701 = vld [vmem:[%s626 + $0x58] sm:$0xff]
      %v2702 = vld [vmem:[%s626 + $0x60] sm:$0xff]
      %v2703 = vld [vmem:[%s626 + $0x68] sm:$0xff]
      %v2704 = vld [vmem:[%s626 + $0x78] sm:$0xff]
      %v2705 = vld [vmem:[%s626 + $0x80] sm:$0xff]
      %v2706 = vld [vmem:[%s626 + $0x88] sm:$0xff]
      %v2707 = vld [vmem:[%s626 + $0x90] sm:$0xff]
      %v2708 = vld [vmem:[%s626 + $0xa0] sm:$0xff]
      %v2709 = vld [vmem:[%s626 + $0xa8] sm:$0xff]
      %v2710 = vld [vmem:[%s626 + $0xb0] sm:$0xff]
      %v2711 = vld [vmem:[%s626 + $0xb8] sm:$0xff]
      %v2712 = vld [vmem:[%s626 + $0xc8] sm:$0xff]
      %v2713 = vld [vmem:[%s626 + $0xd0] sm:$0xff]
      %v2714 = vld [vmem:[%s626 + $0xd8] sm:$0xff]
      %v2715 = vld [vmem:[%s626 + $0xe0] sm:$0xff]
      %v2716 = vld [vmem:[%s626 + $0xf0] sm:$0xff]
      %v2717 = vld [vmem:[%s626 + $0xf8] sm:$0xff]
      %v2718 = vld [vmem:[%s626 + $0x100] sm:$0xff]
      %v2719 = vld [vmem:[%s626 + $0x108] sm:$0xff]
      %v2720 = vld [vmem:[%s626 + $0x118] sm:$0xff]
      %v2721 = vld [vmem:[%s626 + $0x120] sm:$0xff]
      %v2722 = vld [vmem:[%s626 + $0x128] sm:$0xff]
      %v2723 = vld [vmem:[%s626 + $0x130] sm:$0xff]
      %v2724 = vld [vmem:[%s626 + $0x140] sm:$0xff]
      %v2725 = vld [vmem:[%s626 + $0x148] sm:$0xff]
      %v2726 = vld [vmem:[%s626 + $0x150] sm:$0xff]
      %v2727 = vld [vmem:[%s626 + $0x158] sm:$0xff]
      %v2728 = vld [vmem:[%s626 + $0x168] sm:$0xff]
      %v2729 = vld [vmem:[%s626 + $0x170] sm:$0xff]
      %v2730 = vld [vmem:[%s626 + $0x178] sm:$0xff]
      %v2731 = vld [vmem:[%s626 + $0x180] sm:$0xff]
      %v2732 = vld [vmem:[%s626 + $0x190] sm:$0xff]
      %v2733 = vld [vmem:[%s626 + $0x198] sm:$0xff]
      %v2734 = vld [vmem:[%s626 + $0x1a0] sm:$0xff]
      %v2735 = vld [vmem:[%s626 + $0x1a8] sm:$0xff]
      %v2736 = vld [vmem:[%s626 + $0x1b8] sm:$0xff]
      %v2737 = vld [vmem:[%s626 + $0x1c0] sm:$0xff]
      %v2738 = vld [vmem:[%s626 + $0x1c8] sm:$0xff]
      %v2739 = vld [vmem:[%s626 + $0x1d0] sm:$0xff]
      %v2740 = vld [vmem:[%s626 + $0x1e0] sm:$0xff]
      %v2741 = vld [vmem:[%s626 + $0x1e8] sm:$0xff]
      %v2742 = vld [vmem:[%s626 + $0x1f0] sm:$0xff]
      %v2743 = vld [vmem:[%s626 + $0x1f8] sm:$0xff]
      %v2744 = vld [vmem:[%s626 + $0x208] sm:$0xff]
      %v2745 = vld [vmem:[%s626 + $0x210] sm:$0xff]
      %v2746 = vld [vmem:[%s626 + $0x218] sm:$0xff]
      %v2747 = vld [vmem:[%s626 + $0x220] sm:$0xff]
      %v2748 = vld [vmem:[%s626 + $0x230] sm:$0xff]
      %v2749 = vld [vmem:[%s626 + $0x238] sm:$0xff]
      %v2750 = vld [vmem:[%s626 + $0x240] sm:$0xff]
      %v2751 = vld [vmem:[%s626 + $0x248] sm:$0xff]
      %v2752 = vld [vmem:[%s626 + $0x258] sm:$0xff]
      %v2753 = vld [vmem:[%s626 + $0x260] sm:$0xff]
      %v2754 = vld [vmem:[%s626 + $0x268] sm:$0xff]
      %v2755 = vld [vmem:[%s626 + $0x270] sm:$0xff]
      %v2756 = vld [vmem:[%s626 + $0x280] sm:$0xff]
      %v2757 = vld [vmem:[%s626 + $0x288] sm:$0xff]
      %v2758 = vld [vmem:[%s626 + $0x290] sm:$0xff]
      %v2759 = vld [vmem:[%s626 + $0x298] sm:$0xff]
      %v2760 = vld [vmem:[%s626 + $0x2a8] sm:$0xff]
      %v2761 = vld [vmem:[%s626 + $0x2b0] sm:$0xff]
      %v2762 = vld [vmem:[%s626 + $0x2b8] sm:$0xff]
      %v2763 = vld [vmem:[%s626 + $0x2c0] sm:$0xff]
      %v2764 = vld [vmem:[%s626 + $0x2d0] sm:$0xff]
      %v2765 = vld [vmem:[%s626 + $0x2d8] sm:$0xff]
      %v2766 = vld [vmem:[%s626 + $0x2e0] sm:$0xff]
      %v2767 = vld [vmem:[%s626 + $0x2e8] sm:$0xff]
      %v2768 = vld [vmem:[%s626 + $0x2f8] sm:$0xff]
      %v2769 = vld [vmem:[%s626 + $0x300] sm:$0xff]
      %v2770 = vld [vmem:[%s626 + $0x308] sm:$0xff]
      %v2771 = vld [vmem:[%s626 + $0x310] sm:$0xff]
      %v2772 = vld [vmem:[%s626 + $0x320] sm:$0xff]
      %v2773 = vld [vmem:[%s626 + $0x328] sm:$0xff]
      %v2774 = vld [vmem:[%s626 + $0x330] sm:$0xff]
      %v2775 = vld [vmem:[%s626 + $0x338] sm:$0xff]
      %v2776 = vld [vmem:[%s626 + $0x348] sm:$0xff]
      %v2777 = vld [vmem:[%s626 + $0x350] sm:$0xff]
      %v2778 = vld [vmem:[%s626 + $0x358] sm:$0xff]
      %v2779 = vld [vmem:[%s626 + $0x360] sm:$0xff]
      %v2780 = vld [vmem:[%s626 + $0x370] sm:$0xff]
      %v2781 = vld [vmem:[%s626 + $0x378] sm:$0xff]
      %v2782 = vld [vmem:[%s626 + $0x380] sm:$0xff]
      %v2783 = vld [vmem:[%s626 + $0x388] sm:$0xff]
      %v2784 = vld [vmem:[%s626 + $0x398] sm:$0xff]
      %v2785 = vld [vmem:[%s626 + $0x3a0] sm:$0xff]
      %v2786 = vld [vmem:[%s626 + $0x3a8] sm:$0xff]
      %v2787 = vld [vmem:[%s626 + $0x3b0] sm:$0xff]
      %v2788 = vld [vmem:[%s626 + $0x3c0] sm:$0xff]
      %v2789 = vld [vmem:[%s626 + $0x3c8] sm:$0xff]
      %v2790 = vld [vmem:[%s626 + $0x3d0] sm:$0xff]
      %v2791 = vld [vmem:[%s626 + $0x3d8] sm:$0xff]
      %v2792 = vld [vmem:[%s626 + $0x3e8] sm:$0xff]
      %v2793 = vld [vmem:[%s626 + $0x3f0] sm:$0xff]
      %v2794 = vld [vmem:[%s626 + $0x3f8] sm:$0xff]
      %v2795 = vld [vmem:[%s626 + $0x400] sm:$0xff]
      %v2796 = vld [vmem:[%s626 + $0x410] sm:$0xff]
      %v2797 = vld [vmem:[%s626 + $0x418] sm:$0xff]
      %v2798 = vld [vmem:[%s626 + $0x420] sm:$0xff]
      %v2799 = vld [vmem:[%s626 + $0x428] sm:$0xff]
      %v2800 = vld [vmem:[%s626 + $0x438] sm:$0xff]
      %v2801 = vld [vmem:[%s626 + $0x440] sm:$0xff]
      %v2802 = vld [vmem:[%s626 + $0x448] sm:$0xff]
      %v2803 = vld [vmem:[%s626 + $0x450] sm:$0xff]
      %v2804 = vld [vmem:[%s626 + $0x460] sm:$0xff]
      %v2805 = vld [vmem:[%s626 + $0x468] sm:$0xff]
      %v2806 = vld [vmem:[%s626 + $0x470] sm:$0xff]
      %v2807 = vld [vmem:[%s626 + $0x478] sm:$0xff]
      %v2808 = vld [vmem:[%s626 + $0x488] sm:$0xff]
      %v2809 = vld [vmem:[%s626 + $0x490] sm:$0xff]
      %v2810 = vld [vmem:[%s626 + $0x498] sm:$0xff]
      %v2811 = vld [vmem:[%s626 + $0x4a0] sm:$0xff]
      %v2812 = vld [vmem:[%s626 + $0x4b0] sm:$0xff]
      %v2813 = vld [vmem:[%s626 + $0x4b8] sm:$0xff]
      %v2814 = vld [vmem:[%s626 + $0x4c0] sm:$0xff]
      %v2815 = vld [vmem:[%s626 + $0x4c8] sm:$0xff]
      %v2816 = vld [vmem:[%s626 + $0x4d8] sm:$0xff]
      %v2817 = vld [vmem:[%s626 + $0x4e0] sm:$0xff]
      %v2818 = vld [vmem:[%s626 + $0x4e8] sm:$0xff]
      %v2819 = vld [vmem:[%s626 + $0x4f0] sm:$0xff]
      %v2820 = vlaneseq
      %v2821 = vshrl.u32 %v2820, 7
      %v2822 = vsub.s32 0, %v2821
      %v2823 = vrot.slane %v1526, %v2822
      %v2824 = vmul.f32 %v2692, %v2823
      %v2825 = vmul.f32 %v2693, %v2823
      %v2826 = vmul.f32 %v2694, %v2823
      %v2827 = vmul.f32 %v2695, %v2823
      %v2828 = vmul.f32 %v2696, %v2823
      %v2829 = vmul.f32 %v2697, %v2823
      %v2830 = vmul.f32 %v2698, %v2823
      %v2831 = vmul.f32 %v2699, %v2823
      %v2832 = vmul.f32 %v2700, %v2823
      %v2833 = vmul.f32 %v2701, %v2823
      %v2834 = vmul.f32 %v2702, %v2823
      %v2835 = vmul.f32 %v2703, %v2823
      %v2836 = vmul.f32 %v2704, %v2823
      %v2837 = vmul.f32 %v2705, %v2823
      %v2838 = vmul.f32 %v2706, %v2823
      %v2839 = vmul.f32 %v2707, %v2823
      %v2840 = vmul.f32 %v2708, %v2823
      %v2841 = vmul.f32 %v2709, %v2823
      %v2842 = vmul.f32 %v2710, %v2823
      %v2843 = vmul.f32 %v2711, %v2823
      %v2844 = vmul.f32 %v2712, %v2823
      %v2845 = vmul.f32 %v2713, %v2823
      %v2846 = vmul.f32 %v2714, %v2823
      %v2847 = vmul.f32 %v2715, %v2823
      %v2848 = vmul.f32 %v2716, %v2823
      %v2849 = vmul.f32 %v2717, %v2823
      %v2850 = vmul.f32 %v2718, %v2823
      %v2851 = vmul.f32 %v2719, %v2823
      %v2852 = vmul.f32 %v2720, %v2823
      %v2853 = vmul.f32 %v2721, %v2823
      %v2854 = vmul.f32 %v2722, %v2823
      %v2855 = vmul.f32 %v2723, %v2823
      %v2856 = vmul.f32 %v2724, %v2823
      %v2857 = vmul.f32 %v2725, %v2823
      %v2858 = vmul.f32 %v2726, %v2823
      %v2859 = vmul.f32 %v2727, %v2823
      %v2860 = vmul.f32 %v2728, %v2823
      %v2861 = vmul.f32 %v2729, %v2823
      %v2862 = vmul.f32 %v2730, %v2823
      %v2863 = vmul.f32 %v2731, %v2823
      %v2864 = vmul.f32 %v2732, %v2823
      %v2865 = vmul.f32 %v2733, %v2823
      %v2866 = vmul.f32 %v2734, %v2823
      %v2867 = vmul.f32 %v2735, %v2823
      %v2868 = vmul.f32 %v2736, %v2823
      %v2869 = vmul.f32 %v2737, %v2823
      %v2870 = vmul.f32 %v2738, %v2823
      %v2871 = vmul.f32 %v2739, %v2823
      %v2872 = vmul.f32 %v2740, %v2823
      %v2873 = vmul.f32 %v2741, %v2823
      %v2874 = vmul.f32 %v2742, %v2823
      %v2875 = vmul.f32 %v2743, %v2823
      %v2876 = vmul.f32 %v2744, %v2823
      %v2877 = vmul.f32 %v2745, %v2823
      %v2878 = vmul.f32 %v2746, %v2823
      %v2879 = vmul.f32 %v2747, %v2823
      %v2880 = vmul.f32 %v2748, %v2823
      %v2881 = vmul.f32 %v2749, %v2823
      %v2882 = vmul.f32 %v2750, %v2823
      %v2883 = vmul.f32 %v2751, %v2823
      %v2884 = vmul.f32 %v2752, %v2823
      %v2885 = vmul.f32 %v2753, %v2823
      %v2886 = vmul.f32 %v2754, %v2823
      %v2887 = vmul.f32 %v2755, %v2823
      %v2888 = vmul.f32 %v2756, %v2823
      %v2889 = vmul.f32 %v2757, %v2823
      %v2890 = vmul.f32 %v2758, %v2823
      %v2891 = vmul.f32 %v2759, %v2823
      %v2892 = vmul.f32 %v2760, %v2823
      %v2893 = vmul.f32 %v2761, %v2823
      %v2894 = vmul.f32 %v2762, %v2823
      %v2895 = vmul.f32 %v2763, %v2823
      %v2896 = vmul.f32 %v2764, %v2823
      %v2897 = vmul.f32 %v2765, %v2823
      %v2898 = vmul.f32 %v2766, %v2823
      %v2899 = vmul.f32 %v2767, %v2823
      %v2900 = vmul.f32 %v2768, %v2823
      %v2901 = vmul.f32 %v2769, %v2823
      %v2902 = vmul.f32 %v2770, %v2823
      %v2903 = vmul.f32 %v2771, %v2823
      %v2904 = vmul.f32 %v2772, %v2823
      %v2905 = vmul.f32 %v2773, %v2823
      %v2906 = vmul.f32 %v2774, %v2823
      %v2907 = vmul.f32 %v2775, %v2823
      %v2908 = vmul.f32 %v2776, %v2823
      %v2909 = vmul.f32 %v2777, %v2823
      %v2910 = vmul.f32 %v2778, %v2823
      %v2911 = vmul.f32 %v2779, %v2823
      %v2912 = vmul.f32 %v2780, %v2823
      %v2913 = vmul.f32 %v2781, %v2823
      %v2914 = vmul.f32 %v2782, %v2823
      %v2915 = vmul.f32 %v2783, %v2823
      %v2916 = vmul.f32 %v2784, %v2823
      %v2917 = vmul.f32 %v2785, %v2823
      %v2918 = vmul.f32 %v2786, %v2823
      %v2919 = vmul.f32 %v2787, %v2823
      %v2920 = vmul.f32 %v2788, %v2823
      %v2921 = vmul.f32 %v2789, %v2823
      %v2922 = vmul.f32 %v2790, %v2823
      %v2923 = vmul.f32 %v2791, %v2823
      %v2924 = vmul.f32 %v2792, %v2823
      %v2925 = vmul.f32 %v2793, %v2823
      %v2926 = vmul.f32 %v2794, %v2823
      %v2927 = vmul.f32 %v2795, %v2823
      %v2928 = vmul.f32 %v2796, %v2823
      %v2929 = vmul.f32 %v2797, %v2823
      %v2930 = vmul.f32 %v2798, %v2823
      %v2931 = vmul.f32 %v2799, %v2823
      %v2932 = vmul.f32 %v2800, %v2823
      %v2933 = vmul.f32 %v2801, %v2823
      %v2934 = vmul.f32 %v2802, %v2823
      %v2935 = vmul.f32 %v2803, %v2823
      %v2936 = vmul.f32 %v2804, %v2823
      %v2937 = vmul.f32 %v2805, %v2823
      %v2938 = vmul.f32 %v2806, %v2823
      %v2939 = vmul.f32 %v2807, %v2823
      %v2940 = vmul.f32 %v2808, %v2823
      %v2941 = vmul.f32 %v2809, %v2823
      %v2942 = vmul.f32 %v2810, %v2823
      %v2943 = vmul.f32 %v2811, %v2823
      %v2944 = vmul.f32 %v2812, %v2823
      %v2945 = vmul.f32 %v2813, %v2823
      %v2946 = vmul.f32 %v2814, %v2823
      %v2947 = vmul.f32 %v2815, %v2823
      %v2948 = vmul.f32 %v2816, %v2823
      %v2949 = vmul.f32 %v2817, %v2823
      %v2950 = vmul.f32 %v2818, %v2823
      %v2951 = vmul.f32 %v2819, %v2823
      %v2952 = vadd.f32 %v2564, %v2824
      %v2953 = vadd.f32 %v2565, %v2825
      %v2954 = vadd.f32 %v2566, %v2826
      %v2955 = vadd.f32 %v2567, %v2827
      %v2956 = vadd.f32 %v2568, %v2828
      %v2957 = vadd.f32 %v2569, %v2829
      %v2958 = vadd.f32 %v2570, %v2830
      %v2959 = vadd.f32 %v2571, %v2831
      %v2960 = vadd.f32 %v2572, %v2832
      %v2961 = vadd.f32 %v2573, %v2833
      %v2962 = vadd.f32 %v2574, %v2834
      %v2963 = vadd.f32 %v2575, %v2835
      %v2964 = vadd.f32 %v2576, %v2836
      %v2965 = vadd.f32 %v2577, %v2837
      %v2966 = vadd.f32 %v2578, %v2838
      %v2967 = vadd.f32 %v2579, %v2839
      %v2968 = vadd.f32 %v2580, %v2840
      %v2969 = vadd.f32 %v2581, %v2841
      %v2970 = vadd.f32 %v2582, %v2842
      %v2971 = vadd.f32 %v2583, %v2843
      %v2972 = vadd.f32 %v2584, %v2844
      %v2973 = vadd.f32 %v2585, %v2845
      %v2974 = vadd.f32 %v2586, %v2846
      %v2975 = vadd.f32 %v2587, %v2847
      %v2976 = vadd.f32 %v2588, %v2848
      %v2977 = vadd.f32 %v2589, %v2849
      %v2978 = vadd.f32 %v2590, %v2850
      %v2979 = vadd.f32 %v2591, %v2851
      %v2980 = vadd.f32 %v2592, %v2852
      %v2981 = vadd.f32 %v2593, %v2853
      %v2982 = vadd.f32 %v2594, %v2854
      %v2983 = vadd.f32 %v2595, %v2855
      %v2984 = vadd.f32 %v2596, %v2856
      %v2985 = vadd.f32 %v2597, %v2857
      %v2986 = vadd.f32 %v2598, %v2858
      %v2987 = vadd.f32 %v2599, %v2859
      %v2988 = vadd.f32 %v2600, %v2860
      %v2989 = vadd.f32 %v2601, %v2861
      %v2990 = vadd.f32 %v2602, %v2862
      %v2991 = vadd.f32 %v2603, %v2863
      %v2992 = vadd.f32 %v2604, %v2864
      %v2993 = vadd.f32 %v2605, %v2865
      %v2994 = vadd.f32 %v2606, %v2866
      %v2995 = vadd.f32 %v2607, %v2867
      %v2996 = vadd.f32 %v2608, %v2868
      %v2997 = vadd.f32 %v2609, %v2869
      %v2998 = vadd.f32 %v2610, %v2870
      %v2999 = vadd.f32 %v2611, %v2871
      %v3000 = vadd.f32 %v2612, %v2872
      %v3001 = vadd.f32 %v2613, %v2873
      %v3002 = vadd.f32 %v2614, %v2874
      %v3003 = vadd.f32 %v2615, %v2875
      %v3004 = vadd.f32 %v2616, %v2876
      %v3005 = vadd.f32 %v2617, %v2877
      %v3006 = vadd.f32 %v2618, %v2878
      %v3007 = vadd.f32 %v2619, %v2879
      %v3008 = vadd.f32 %v2620, %v2880
      %v3009 = vadd.f32 %v2621, %v2881
      %v3010 = vadd.f32 %v2622, %v2882
      %v3011 = vadd.f32 %v2623, %v2883
      %v3012 = vadd.f32 %v2624, %v2884
      %v3013 = vadd.f32 %v2625, %v2885
      %v3014 = vadd.f32 %v2626, %v2886
      %v3015 = vadd.f32 %v2627, %v2887
      %v3016 = vadd.f32 %v2628, %v2888
      %v3017 = vadd.f32 %v2629, %v2889
      %v3018 = vadd.f32 %v2630, %v2890
      %v3019 = vadd.f32 %v2631, %v2891
      %v3020 = vadd.f32 %v2632, %v2892
      %v3021 = vadd.f32 %v2633, %v2893
      %v3022 = vadd.f32 %v2634, %v2894
      %v3023 = vadd.f32 %v2635, %v2895
      %v3024 = vadd.f32 %v2636, %v2896
      %v3025 = vadd.f32 %v2637, %v2897
      %v3026 = vadd.f32 %v2638, %v2898
      %v3027 = vadd.f32 %v2639, %v2899
      %v3028 = vadd.f32 %v2640, %v2900
      %v3029 = vadd.f32 %v2641, %v2901
      %v3030 = vadd.f32 %v2642, %v2902
      %v3031 = vadd.f32 %v2643, %v2903
      %v3032 = vadd.f32 %v2644, %v2904
      %v3033 = vadd.f32 %v2645, %v2905
      %v3034 = vadd.f32 %v2646, %v2906
      %v3035 = vadd.f32 %v2647, %v2907
      %v3036 = vadd.f32 %v2648, %v2908
      %v3037 = vadd.f32 %v2649, %v2909
      %v3038 = vadd.f32 %v2650, %v2910
      %v3039 = vadd.f32 %v2651, %v2911
      %v3040 = vadd.f32 %v2652, %v2912
      %v3041 = vadd.f32 %v2653, %v2913
      %v3042 = vadd.f32 %v2654, %v2914
      %v3043 = vadd.f32 %v2655, %v2915
      %v3044 = vadd.f32 %v2656, %v2916
      %v3045 = vadd.f32 %v2657, %v2917
      %v3046 = vadd.f32 %v2658, %v2918
      %v3047 = vadd.f32 %v2659, %v2919
      %v3048 = vadd.f32 %v2660, %v2920
      %v3049 = vadd.f32 %v2661, %v2921
      %v3050 = vadd.f32 %v2662, %v2922
      %v3051 = vadd.f32 %v2663, %v2923
      %v3052 = vadd.f32 %v2664, %v2924
      %v3053 = vadd.f32 %v2665, %v2925
      %v3054 = vadd.f32 %v2666, %v2926
      %v3055 = vadd.f32 %v2667, %v2927
      %v3056 = vadd.f32 %v2668, %v2928
      %v3057 = vadd.f32 %v2669, %v2929
      %v3058 = vadd.f32 %v2670, %v2930
      %v3059 = vadd.f32 %v2671, %v2931
      %v3060 = vadd.f32 %v2672, %v2932
      %v3061 = vadd.f32 %v2673, %v2933
      %v3062 = vadd.f32 %v2674, %v2934
      %v3063 = vadd.f32 %v2675, %v2935
      %v3064 = vadd.f32 %v2676, %v2936
      %v3065 = vadd.f32 %v2677, %v2937
      %v3066 = vadd.f32 %v2678, %v2938
      %v3067 = vadd.f32 %v2679, %v2939
      %v3068 = vadd.f32 %v2680, %v2940
      %v3069 = vadd.f32 %v2681, %v2941
      %v3070 = vadd.f32 %v2682, %v2942
      %v3071 = vadd.f32 %v2683, %v2943
      %v3072 = vadd.f32 %v2684, %v2944
      %v3073 = vadd.f32 %v2685, %v2945
      %v3074 = vadd.f32 %v2686, %v2946
      %v3075 = vadd.f32 %v2687, %v2947
      %v3076 = vadd.f32 %v2688, %v2948
      %v3077 = vadd.f32 %v2689, %v2949
      %v3078 = vadd.f32 %v2690, %v2950
      %v3079 = vadd.f32 %v2691, %v2951
      %v3080 = vld [vmem:[%s626 + $0x1] sm:$0xff]
      %v3081 = vld [vmem:[%s626 + $0x9] sm:$0xff]
      %v3082 = vld [vmem:[%s626 + $0x11] sm:$0xff]
      %v3083 = vld [vmem:[%s626 + $0x19] sm:$0xff]
      %v3084 = vld [vmem:[%s626 + $0x29] sm:$0xff]
      %v3085 = vld [vmem:[%s626 + $0x31] sm:$0xff]
      %v3086 = vld [vmem:[%s626 + $0x39] sm:$0xff]
      %v3087 = vld [vmem:[%s626 + $0x41] sm:$0xff]
      %v3088 = vld [vmem:[%s626 + $0x51] sm:$0xff]
      %v3089 = vld [vmem:[%s626 + $0x59] sm:$0xff]
      %v3090 = vld [vmem:[%s626 + $0x61] sm:$0xff]
      %v3091 = vld [vmem:[%s626 + $0x69] sm:$0xff]
      %v3092 = vld [vmem:[%s626 + $0x79] sm:$0xff]
      %v3093 = vld [vmem:[%s626 + $0x81] sm:$0xff]
      %v3094 = vld [vmem:[%s626 + $0x89] sm:$0xff]
      %v3095 = vld [vmem:[%s626 + $0x91] sm:$0xff]
      %v3096 = vld [vmem:[%s626 + $0xa1] sm:$0xff]
      %v3097 = vld [vmem:[%s626 + $0xa9] sm:$0xff]
      %v3098 = vld [vmem:[%s626 + $0xb1] sm:$0xff]
      %v3099 = vld [vmem:[%s626 + $0xb9] sm:$0xff]
      %v3100 = vld [vmem:[%s626 + $0xc9] sm:$0xff]
      %v3101 = vld [vmem:[%s626 + $0xd1] sm:$0xff]
      %v3102 = vld [vmem:[%s626 + $0xd9] sm:$0xff]
      %v3103 = vld [vmem:[%s626 + $0xe1] sm:$0xff]
      %v3104 = vld [vmem:[%s626 + $0xf1] sm:$0xff]
      %v3105 = vld [vmem:[%s626 + $0xf9] sm:$0xff]
      %v3106 = vld [vmem:[%s626 + $0x101] sm:$0xff]
      %v3107 = vld [vmem:[%s626 + $0x109] sm:$0xff]
      %v3108 = vld [vmem:[%s626 + $0x119] sm:$0xff]
      %v3109 = vld [vmem:[%s626 + $0x121] sm:$0xff]
      %v3110 = vld [vmem:[%s626 + $0x129] sm:$0xff]
      %v3111 = vld [vmem:[%s626 + $0x131] sm:$0xff]
      %v3112 = vld [vmem:[%s626 + $0x141] sm:$0xff]
      %v3113 = vld [vmem:[%s626 + $0x149] sm:$0xff]
      %v3114 = vld [vmem:[%s626 + $0x151] sm:$0xff]
      %v3115 = vld [vmem:[%s626 + $0x159] sm:$0xff]
      %v3116 = vld [vmem:[%s626 + $0x169] sm:$0xff]
      %v3117 = vld [vmem:[%s626 + $0x171] sm:$0xff]
      %v3118 = vld [vmem:[%s626 + $0x179] sm:$0xff]
      %v3119 = vld [vmem:[%s626 + $0x181] sm:$0xff]
      %v3120 = vld [vmem:[%s626 + $0x191] sm:$0xff]
      %v3121 = vld [vmem:[%s626 + $0x199] sm:$0xff]
      %v3122 = vld [vmem:[%s626 + $0x1a1] sm:$0xff]
      %v3123 = vld [vmem:[%s626 + $0x1a9] sm:$0xff]
      %v3124 = vld [vmem:[%s626 + $0x1b9] sm:$0xff]
      %v3125 = vld [vmem:[%s626 + $0x1c1] sm:$0xff]
      %v3126 = vld [vmem:[%s626 + $0x1c9] sm:$0xff]
      %v3127 = vld [vmem:[%s626 + $0x1d1] sm:$0xff]
      %v3128 = vld [vmem:[%s626 + $0x1e1] sm:$0xff]
      %v3129 = vld [vmem:[%s626 + $0x1e9] sm:$0xff]
      %v3130 = vld [vmem:[%s626 + $0x1f1] sm:$0xff]
      %v3131 = vld [vmem:[%s626 + $0x1f9] sm:$0xff]
      %v3132 = vld [vmem:[%s626 + $0x209] sm:$0xff]
      %v3133 = vld [vmem:[%s626 + $0x211] sm:$0xff]
      %v3134 = vld [vmem:[%s626 + $0x219] sm:$0xff]
      %v3135 = vld [vmem:[%s626 + $0x221] sm:$0xff]
      %v3136 = vld [vmem:[%s626 + $0x231] sm:$0xff]
      %v3137 = vld [vmem:[%s626 + $0x239] sm:$0xff]
      %v3138 = vld [vmem:[%s626 + $0x241] sm:$0xff]
      %v3139 = vld [vmem:[%s626 + $0x249] sm:$0xff]
      %v3140 = vld [vmem:[%s626 + $0x259] sm:$0xff]
      %v3141 = vld [vmem:[%s626 + $0x261] sm:$0xff]
      %v3142 = vld [vmem:[%s626 + $0x269] sm:$0xff]
      %v3143 = vld [vmem:[%s626 + $0x271] sm:$0xff]
      %v3144 = vld [vmem:[%s626 + $0x281] sm:$0xff]
      %v3145 = vld [vmem:[%s626 + $0x289] sm:$0xff]
      %v3146 = vld [vmem:[%s626 + $0x291] sm:$0xff]
      %v3147 = vld [vmem:[%s626 + $0x299] sm:$0xff]
      %v3148 = vld [vmem:[%s626 + $0x2a9] sm:$0xff]
      %v3149 = vld [vmem:[%s626 + $0x2b1] sm:$0xff]
      %v3150 = vld [vmem:[%s626 + $0x2b9] sm:$0xff]
      %v3151 = vld [vmem:[%s626 + $0x2c1] sm:$0xff]
      %v3152 = vld [vmem:[%s626 + $0x2d1] sm:$0xff]
      %v3153 = vld [vmem:[%s626 + $0x2d9] sm:$0xff]
      %v3154 = vld [vmem:[%s626 + $0x2e1] sm:$0xff]
      %v3155 = vld [vmem:[%s626 + $0x2e9] sm:$0xff]
      %v3156 = vld [vmem:[%s626 + $0x2f9] sm:$0xff]
      %v3157 = vld [vmem:[%s626 + $0x301] sm:$0xff]
      %v3158 = vld [vmem:[%s626 + $0x309] sm:$0xff]
      %v3159 = vld [vmem:[%s626 + $0x311] sm:$0xff]
      %v3160 = vld [vmem:[%s626 + $0x321] sm:$0xff]
      %v3161 = vld [vmem:[%s626 + $0x329] sm:$0xff]
      %v3162 = vld [vmem:[%s626 + $0x331] sm:$0xff]
      %v3163 = vld [vmem:[%s626 + $0x339] sm:$0xff]
      %v3164 = vld [vmem:[%s626 + $0x349] sm:$0xff]
      %v3165 = vld [vmem:[%s626 + $0x351] sm:$0xff]
      %v3166 = vld [vmem:[%s626 + $0x359] sm:$0xff]
      %v3167 = vld [vmem:[%s626 + $0x361] sm:$0xff]
      %v3168 = vld [vmem:[%s626 + $0x371] sm:$0xff]
      %v3169 = vld [vmem:[%s626 + $0x379] sm:$0xff]
      %v3170 = vld [vmem:[%s626 + $0x381] sm:$0xff]
      %v3171 = vld [vmem:[%s626 + $0x389] sm:$0xff]
      %v3172 = vld [vmem:[%s626 + $0x399] sm:$0xff]
      %v3173 = vld [vmem:[%s626 + $0x3a1] sm:$0xff]
      %v3174 = vld [vmem:[%s626 + $0x3a9] sm:$0xff]
      %v3175 = vld [vmem:[%s626 + $0x3b1] sm:$0xff]
      %v3176 = vld [vmem:[%s626 + $0x3c1] sm:$0xff]
      %v3177 = vld [vmem:[%s626 + $0x3c9] sm:$0xff]
      %v3178 = vld [vmem:[%s626 + $0x3d1] sm:$0xff]
      %v3179 = vld [vmem:[%s626 + $0x3d9] sm:$0xff]
      %v3180 = vld [vmem:[%s626 + $0x3e9] sm:$0xff]
      %v3181 = vld [vmem:[%s626 + $0x3f1] sm:$0xff]
      %v3182 = vld [vmem:[%s626 + $0x3f9] sm:$0xff]
      %v3183 = vld [vmem:[%s626 + $0x401] sm:$0xff]
      %v3184 = vld [vmem:[%s626 + $0x411] sm:$0xff]
      %v3185 = vld [vmem:[%s626 + $0x419] sm:$0xff]
      %v3186 = vld [vmem:[%s626 + $0x421] sm:$0xff]
      %v3187 = vld [vmem:[%s626 + $0x429] sm:$0xff]
      %v3188 = vld [vmem:[%s626 + $0x439] sm:$0xff]
      %v3189 = vld [vmem:[%s626 + $0x441] sm:$0xff]
      %v3190 = vld [vmem:[%s626 + $0x449] sm:$0xff]
      %v3191 = vld [vmem:[%s626 + $0x451] sm:$0xff]
      %v3192 = vld [vmem:[%s626 + $0x461] sm:$0xff]
      %v3193 = vld [vmem:[%s626 + $0x469] sm:$0xff]
      %v3194 = vld [vmem:[%s626 + $0x471] sm:$0xff]
      %v3195 = vld [vmem:[%s626 + $0x479] sm:$0xff]
      %v3196 = vld [vmem:[%s626 + $0x489] sm:$0xff]
      %v3197 = vld [vmem:[%s626 + $0x491] sm:$0xff]
      %v3198 = vld [vmem:[%s626 + $0x499] sm:$0xff]
      %v3199 = vld [vmem:[%s626 + $0x4a1] sm:$0xff]
      %v3200 = vld [vmem:[%s626 + $0x4b1] sm:$0xff]
      %v3201 = vld [vmem:[%s626 + $0x4b9] sm:$0xff]
      %v3202 = vld [vmem:[%s626 + $0x4c1] sm:$0xff]
      %v3203 = vld [vmem:[%s626 + $0x4c9] sm:$0xff]
      %v3204 = vld [vmem:[%s626 + $0x4d9] sm:$0xff]
      %v3205 = vld [vmem:[%s626 + $0x4e1] sm:$0xff]
      %v3206 = vld [vmem:[%s626 + $0x4e9] sm:$0xff]
      %v3207 = vld [vmem:[%s626 + $0x4f1] sm:$0xff]
      %v3208 = vlaneseq
      %v3209 = vshrl.u32 %v3208, 7
      %v3210 = vsub.s32 1, %v3209
      %v3211 = vrot.slane %v1526, %v3210
      %v3212 = vmul.f32 %v3080, %v3211
      %v3213 = vmul.f32 %v3081, %v3211
      %v3214 = vmul.f32 %v3082, %v3211
      %v3215 = vmul.f32 %v3083, %v3211
      %v3216 = vmul.f32 %v3084, %v3211
      %v3217 = vmul.f32 %v3085, %v3211
      %v3218 = vmul.f32 %v3086, %v3211
      %v3219 = vmul.f32 %v3087, %v3211
      %v3220 = vmul.f32 %v3088, %v3211
      %v3221 = vmul.f32 %v3089, %v3211
      %v3222 = vmul.f32 %v3090, %v3211
      %v3223 = vmul.f32 %v3091, %v3211
      %v3224 = vmul.f32 %v3092, %v3211
      %v3225 = vmul.f32 %v3093, %v3211
      %v3226 = vmul.f32 %v3094, %v3211
      %v3227 = vmul.f32 %v3095, %v3211
      %v3228 = vmul.f32 %v3096, %v3211
      %v3229 = vmul.f32 %v3097, %v3211
      %v3230 = vmul.f32 %v3098, %v3211
      %v3231 = vmul.f32 %v3099, %v3211
      %v3232 = vmul.f32 %v3100, %v3211
      %v3233 = vmul.f32 %v3101, %v3211
      %v3234 = vmul.f32 %v3102, %v3211
      %v3235 = vmul.f32 %v3103, %v3211
      %v3236 = vmul.f32 %v3104, %v3211
      %v3237 = vmul.f32 %v3105, %v3211
      %v3238 = vmul.f32 %v3106, %v3211
      %v3239 = vmul.f32 %v3107, %v3211
      %v3240 = vmul.f32 %v3108, %v3211
      %v3241 = vmul.f32 %v3109, %v3211
      %v3242 = vmul.f32 %v3110, %v3211
      %v3243 = vmul.f32 %v3111, %v3211
      %v3244 = vmul.f32 %v3112, %v3211
      %v3245 = vmul.f32 %v3113, %v3211
      %v3246 = vmul.f32 %v3114, %v3211
      %v3247 = vmul.f32 %v3115, %v3211
      %v3248 = vmul.f32 %v3116, %v3211
      %v3249 = vmul.f32 %v3117, %v3211
      %v3250 = vmul.f32 %v3118, %v3211
      %v3251 = vmul.f32 %v3119, %v3211
      %v3252 = vmul.f32 %v3120, %v3211
      %v3253 = vmul.f32 %v3121, %v3211
      %v3254 = vmul.f32 %v3122, %v3211
      %v3255 = vmul.f32 %v3123, %v3211
      %v3256 = vmul.f32 %v3124, %v3211
      %v3257 = vmul.f32 %v3125, %v3211
      %v3258 = vmul.f32 %v3126, %v3211
      %v3259 = vmul.f32 %v3127, %v3211
      %v3260 = vmul.f32 %v3128, %v3211
      %v3261 = vmul.f32 %v3129, %v3211
      %v3262 = vmul.f32 %v3130, %v3211
      %v3263 = vmul.f32 %v3131, %v3211
      %v3264 = vmul.f32 %v3132, %v3211
      %v3265 = vmul.f32 %v3133, %v3211
      %v3266 = vmul.f32 %v3134, %v3211
      %v3267 = vmul.f32 %v3135, %v3211
      %v3268 = vmul.f32 %v3136, %v3211
      %v3269 = vmul.f32 %v3137, %v3211
      %v3270 = vmul.f32 %v3138, %v3211
      %v3271 = vmul.f32 %v3139, %v3211
      %v3272 = vmul.f32 %v3140, %v3211
      %v3273 = vmul.f32 %v3141, %v3211
      %v3274 = vmul.f32 %v3142, %v3211
      %v3275 = vmul.f32 %v3143, %v3211
      %v3276 = vmul.f32 %v3144, %v3211
      %v3277 = vmul.f32 %v3145, %v3211
      %v3278 = vmul.f32 %v3146, %v3211
      %v3279 = vmul.f32 %v3147, %v3211
      %v3280 = vmul.f32 %v3148, %v3211
      %v3281 = vmul.f32 %v3149, %v3211
      %v3282 = vmul.f32 %v3150, %v3211
      %v3283 = vmul.f32 %v3151, %v3211
      %v3284 = vmul.f32 %v3152, %v3211
      %v3285 = vmul.f32 %v3153, %v3211
      %v3286 = vmul.f32 %v3154, %v3211
      %v3287 = vmul.f32 %v3155, %v3211
      %v3288 = vmul.f32 %v3156, %v3211
      %v3289 = vmul.f32 %v3157, %v3211
      %v3290 = vmul.f32 %v3158, %v3211
      %v3291 = vmul.f32 %v3159, %v3211
      %v3292 = vmul.f32 %v3160, %v3211
      %v3293 = vmul.f32 %v3161, %v3211
      %v3294 = vmul.f32 %v3162, %v3211
      %v3295 = vmul.f32 %v3163, %v3211
      %v3296 = vmul.f32 %v3164, %v3211
      %v3297 = vmul.f32 %v3165, %v3211
      %v3298 = vmul.f32 %v3166, %v3211
      %v3299 = vmul.f32 %v3167, %v3211
      %v3300 = vmul.f32 %v3168, %v3211
      %v3301 = vmul.f32 %v3169, %v3211
      %v3302 = vmul.f32 %v3170, %v3211
      %v3303 = vmul.f32 %v3171, %v3211
      %v3304 = vmul.f32 %v3172, %v3211
      %v3305 = vmul.f32 %v3173, %v3211
      %v3306 = vmul.f32 %v3174, %v3211
      %v3307 = vmul.f32 %v3175, %v3211
      %v3308 = vmul.f32 %v3176, %v3211
      %v3309 = vmul.f32 %v3177, %v3211
      %v3310 = vmul.f32 %v3178, %v3211
      %v3311 = vmul.f32 %v3179, %v3211
      %v3312 = vmul.f32 %v3180, %v3211
      %v3313 = vmul.f32 %v3181, %v3211
      %v3314 = vmul.f32 %v3182, %v3211
      %v3315 = vmul.f32 %v3183, %v3211
      %v3316 = vmul.f32 %v3184, %v3211
      %v3317 = vmul.f32 %v3185, %v3211
      %v3318 = vmul.f32 %v3186, %v3211
      %v3319 = vmul.f32 %v3187, %v3211
      %v3320 = vmul.f32 %v3188, %v3211
      %v3321 = vmul.f32 %v3189, %v3211
      %v3322 = vmul.f32 %v3190, %v3211
      %v3323 = vmul.f32 %v3191, %v3211
      %v3324 = vmul.f32 %v3192, %v3211
      %v3325 = vmul.f32 %v3193, %v3211
      %v3326 = vmul.f32 %v3194, %v3211
      %v3327 = vmul.f32 %v3195, %v3211
      %v3328 = vmul.f32 %v3196, %v3211
      %v3329 = vmul.f32 %v3197, %v3211
      %v3330 = vmul.f32 %v3198, %v3211
      %v3331 = vmul.f32 %v3199, %v3211
      %v3332 = vmul.f32 %v3200, %v3211
      %v3333 = vmul.f32 %v3201, %v3211
      %v3334 = vmul.f32 %v3202, %v3211
      %v3335 = vmul.f32 %v3203, %v3211
      %v3336 = vmul.f32 %v3204, %v3211
      %v3337 = vmul.f32 %v3205, %v3211
      %v3338 = vmul.f32 %v3206, %v3211
      %v3339 = vmul.f32 %v3207, %v3211
      %v3340 = vadd.f32 %v2952, %v3212
      %v3341 = vadd.f32 %v2953, %v3213
      %v3342 = vadd.f32 %v2954, %v3214
      %v3343 = vadd.f32 %v2955, %v3215
      %v3344 = vadd.f32 %v2956, %v3216
      %v3345 = vadd.f32 %v2957, %v3217
      %v3346 = vadd.f32 %v2958, %v3218
      %v3347 = vadd.f32 %v2959, %v3219
      %v3348 = vadd.f32 %v2960, %v3220
      %v3349 = vadd.f32 %v2961, %v3221
      %v3350 = vadd.f32 %v2962, %v3222
      %v3351 = vadd.f32 %v2963, %v3223
      %v3352 = vadd.f32 %v2964, %v3224
      %v3353 = vadd.f32 %v2965, %v3225
      %v3354 = vadd.f32 %v2966, %v3226
      %v3355 = vadd.f32 %v2967, %v3227
      %v3356 = vadd.f32 %v2968, %v3228
      %v3357 = vadd.f32 %v2969, %v3229
      %v3358 = vadd.f32 %v2970, %v3230
      %v3359 = vadd.f32 %v2971, %v3231
      %v3360 = vadd.f32 %v2972, %v3232
      %v3361 = vadd.f32 %v2973, %v3233
      %v3362 = vadd.f32 %v2974, %v3234
      %v3363 = vadd.f32 %v2975, %v3235
      %v3364 = vadd.f32 %v2976, %v3236
      %v3365 = vadd.f32 %v2977, %v3237
      %v3366 = vadd.f32 %v2978, %v3238
      %v3367 = vadd.f32 %v2979, %v3239
      %v3368 = vadd.f32 %v2980, %v3240
      %v3369 = vadd.f32 %v2981, %v3241
      %v3370 = vadd.f32 %v2982, %v3242
      %v3371 = vadd.f32 %v2983, %v3243
      %v3372 = vadd.f32 %v2984, %v3244
      %v3373 = vadd.f32 %v2985, %v3245
      %v3374 = vadd.f32 %v2986, %v3246
      %v3375 = vadd.f32 %v2987, %v3247
      %v3376 = vadd.f32 %v2988, %v3248
      %v3377 = vadd.f32 %v2989, %v3249
      %v3378 = vadd.f32 %v2990, %v3250
      %v3379 = vadd.f32 %v2991, %v3251
      %v3380 = vadd.f32 %v2992, %v3252
      %v3381 = vadd.f32 %v2993, %v3253
      %v3382 = vadd.f32 %v2994, %v3254
      %v3383 = vadd.f32 %v2995, %v3255
      %v3384 = vadd.f32 %v2996, %v3256
      %v3385 = vadd.f32 %v2997, %v3257
      %v3386 = vadd.f32 %v2998, %v3258
      %v3387 = vadd.f32 %v2999, %v3259
      %v3388 = vadd.f32 %v3000, %v3260
      %v3389 = vadd.f32 %v3001, %v3261
      %v3390 = vadd.f32 %v3002, %v3262
      %v3391 = vadd.f32 %v3003, %v3263
      %v3392 = vadd.f32 %v3004, %v3264
      %v3393 = vadd.f32 %v3005, %v3265
      %v3394 = vadd.f32 %v3006, %v3266
      %v3395 = vadd.f32 %v3007, %v3267
      %v3396 = vadd.f32 %v3008, %v3268
      %v3397 = vadd.f32 %v3009, %v3269
      %v3398 = vadd.f32 %v3010, %v3270
      %v3399 = vadd.f32 %v3011, %v3271
      %v3400 = vadd.f32 %v3012, %v3272
      %v3401 = vadd.f32 %v3013, %v3273
      %v3402 = vadd.f32 %v3014, %v3274
      %v3403 = vadd.f32 %v3015, %v3275
      %v3404 = vadd.f32 %v3016, %v3276
      %v3405 = vadd.f32 %v3017, %v3277
      %v3406 = vadd.f32 %v3018, %v3278
      %v3407 = vadd.f32 %v3019, %v3279
      %v3408 = vadd.f32 %v3020, %v3280
      %v3409 = vadd.f32 %v3021, %v3281
      %v3410 = vadd.f32 %v3022, %v3282
      %v3411 = vadd.f32 %v3023, %v3283
      %v3412 = vadd.f32 %v3024, %v3284
      %v3413 = vadd.f32 %v3025, %v3285
      %v3414 = vadd.f32 %v3026, %v3286
      %v3415 = vadd.f32 %v3027, %v3287
      %v3416 = vadd.f32 %v3028, %v3288
      %v3417 = vadd.f32 %v3029, %v3289
      %v3418 = vadd.f32 %v3030, %v3290
      %v3419 = vadd.f32 %v3031, %v3291
      %v3420 = vadd.f32 %v3032, %v3292
      %v3421 = vadd.f32 %v3033, %v3293
      %v3422 = vadd.f32 %v3034, %v3294
      %v3423 = vadd.f32 %v3035, %v3295
      %v3424 = vadd.f32 %v3036, %v3296
      %v3425 = vadd.f32 %v3037, %v3297
      %v3426 = vadd.f32 %v3038, %v3298
      %v3427 = vadd.f32 %v3039, %v3299
      %v3428 = vadd.f32 %v3040, %v3300
      %v3429 = vadd.f32 %v3041, %v3301
      %v3430 = vadd.f32 %v3042, %v3302
      %v3431 = vadd.f32 %v3043, %v3303
      %v3432 = vadd.f32 %v3044, %v3304
      %v3433 = vadd.f32 %v3045, %v3305
      %v3434 = vadd.f32 %v3046, %v3306
      %v3435 = vadd.f32 %v3047, %v3307
      %v3436 = vadd.f32 %v3048, %v3308
      %v3437 = vadd.f32 %v3049, %v3309
      %v3438 = vadd.f32 %v3050, %v3310
      %v3439 = vadd.f32 %v3051, %v3311
      %v3440 = vadd.f32 %v3052, %v3312
      %v3441 = vadd.f32 %v3053, %v3313
      %v3442 = vadd.f32 %v3054, %v3314
      %v3443 = vadd.f32 %v3055, %v3315
      %v3444 = vadd.f32 %v3056, %v3316
      %v3445 = vadd.f32 %v3057, %v3317
      %v3446 = vadd.f32 %v3058, %v3318
      %v3447 = vadd.f32 %v3059, %v3319
      %v3448 = vadd.f32 %v3060, %v3320
      %v3449 = vadd.f32 %v3061, %v3321
      %v3450 = vadd.f32 %v3062, %v3322
      %v3451 = vadd.f32 %v3063, %v3323
      %v3452 = vadd.f32 %v3064, %v3324
      %v3453 = vadd.f32 %v3065, %v3325
      %v3454 = vadd.f32 %v3066, %v3326
      %v3455 = vadd.f32 %v3067, %v3327
      %v3456 = vadd.f32 %v3068, %v3328
      %v3457 = vadd.f32 %v3069, %v3329
      %v3458 = vadd.f32 %v3070, %v3330
      %v3459 = vadd.f32 %v3071, %v3331
      %v3460 = vadd.f32 %v3072, %v3332
      %v3461 = vadd.f32 %v3073, %v3333
      %v3462 = vadd.f32 %v3074, %v3334
      %v3463 = vadd.f32 %v3075, %v3335
      %v3464 = vadd.f32 %v3076, %v3336
      %v3465 = vadd.f32 %v3077, %v3337
      %v3466 = vadd.f32 %v3078, %v3338
      %v3467 = vadd.f32 %v3079, %v3339
      %v3468 = vld [vmem:[%s626 + $0x2] sm:$0xff]
      %v3469 = vld [vmem:[%s626 + $0xa] sm:$0xff]
      %v3470 = vld [vmem:[%s626 + $0x12] sm:$0xff]
      %v3471 = vld [vmem:[%s626 + $0x1a] sm:$0xff]
      %v3472 = vld [vmem:[%s626 + $0x2a] sm:$0xff]
      %v3473 = vld [vmem:[%s626 + $0x32] sm:$0xff]
      %v3474 = vld [vmem:[%s626 + $0x3a] sm:$0xff]
      %v3475 = vld [vmem:[%s626 + $0x42] sm:$0xff]
      %v3476 = vld [vmem:[%s626 + $0x52] sm:$0xff]
      %v3477 = vld [vmem:[%s626 + $0x5a] sm:$0xff]
      %v3478 = vld [vmem:[%s626 + $0x62] sm:$0xff]
      %v3479 = vld [vmem:[%s626 + $0x6a] sm:$0xff]
      %v3480 = vld [vmem:[%s626 + $0x7a] sm:$0xff]
      %v3481 = vld [vmem:[%s626 + $0x82] sm:$0xff]
      %v3482 = vld [vmem:[%s626 + $0x8a] sm:$0xff]
      %v3483 = vld [vmem:[%s626 + $0x92] sm:$0xff]
      %v3484 = vld [vmem:[%s626 + $0xa2] sm:$0xff]
      %v3485 = vld [vmem:[%s626 + $0xaa] sm:$0xff]
      %v3486 = vld [vmem:[%s626 + $0xb2] sm:$0xff]
      %v3487 = vld [vmem:[%s626 + $0xba] sm:$0xff]
      %v3488 = vld [vmem:[%s626 + $0xca] sm:$0xff]
      %v3489 = vld [vmem:[%s626 + $0xd2] sm:$0xff]
      %v3490 = vld [vmem:[%s626 + $0xda] sm:$0xff]
      %v3491 = vld [vmem:[%s626 + $0xe2] sm:$0xff]
      %v3492 = vld [vmem:[%s626 + $0xf2] sm:$0xff]
      %v3493 = vld [vmem:[%s626 + $0xfa] sm:$0xff]
      %v3494 = vld [vmem:[%s626 + $0x102] sm:$0xff]
      %v3495 = vld [vmem:[%s626 + $0x10a] sm:$0xff]
      %v3496 = vld [vmem:[%s626 + $0x11a] sm:$0xff]
      %v3497 = vld [vmem:[%s626 + $0x122] sm:$0xff]
      %v3498 = vld [vmem:[%s626 + $0x12a] sm:$0xff]
      %v3499 = vld [vmem:[%s626 + $0x132] sm:$0xff]
      %v3500 = vld [vmem:[%s626 + $0x142] sm:$0xff]
      %v3501 = vld [vmem:[%s626 + $0x14a] sm:$0xff]
      %v3502 = vld [vmem:[%s626 + $0x152] sm:$0xff]
      %v3503 = vld [vmem:[%s626 + $0x15a] sm:$0xff]
      %v3504 = vld [vmem:[%s626 + $0x16a] sm:$0xff]
      %v3505 = vld [vmem:[%s626 + $0x172] sm:$0xff]
      %v3506 = vld [vmem:[%s626 + $0x17a] sm:$0xff]
      %v3507 = vld [vmem:[%s626 + $0x182] sm:$0xff]
      %v3508 = vld [vmem:[%s626 + $0x192] sm:$0xff]
      %v3509 = vld [vmem:[%s626 + $0x19a] sm:$0xff]
      %v3510 = vld [vmem:[%s626 + $0x1a2] sm:$0xff]
      %v3511 = vld [vmem:[%s626 + $0x1aa] sm:$0xff]
      %v3512 = vld [vmem:[%s626 + $0x1ba] sm:$0xff]
      %v3513 = vld [vmem:[%s626 + $0x1c2] sm:$0xff]
      %v3514 = vld [vmem:[%s626 + $0x1ca] sm:$0xff]
      %v3515 = vld [vmem:[%s626 + $0x1d2] sm:$0xff]
      %v3516 = vld [vmem:[%s626 + $0x1e2] sm:$0xff]
      %v3517 = vld [vmem:[%s626 + $0x1ea] sm:$0xff]
      %v3518 = vld [vmem:[%s626 + $0x1f2] sm:$0xff]
      %v3519 = vld [vmem:[%s626 + $0x1fa] sm:$0xff]
      %v3520 = vld [vmem:[%s626 + $0x20a] sm:$0xff]
      %v3521 = vld [vmem:[%s626 + $0x212] sm:$0xff]
      %v3522 = vld [vmem:[%s626 + $0x21a] sm:$0xff]
      %v3523 = vld [vmem:[%s626 + $0x222] sm:$0xff]
      %v3524 = vld [vmem:[%s626 + $0x232] sm:$0xff]
      %v3525 = vld [vmem:[%s626 + $0x23a] sm:$0xff]
      %v3526 = vld [vmem:[%s626 + $0x242] sm:$0xff]
      %v3527 = vld [vmem:[%s626 + $0x24a] sm:$0xff]
      %v3528 = vld [vmem:[%s626 + $0x25a] sm:$0xff]
      %v3529 = vld [vmem:[%s626 + $0x262] sm:$0xff]
      %v3530 = vld [vmem:[%s626 + $0x26a] sm:$0xff]
      %v3531 = vld [vmem:[%s626 + $0x272] sm:$0xff]
      %v3532 = vld [vmem:[%s626 + $0x282] sm:$0xff]
      %v3533 = vld [vmem:[%s626 + $0x28a] sm:$0xff]
      %v3534 = vld [vmem:[%s626 + $0x292] sm:$0xff]
      %v3535 = vld [vmem:[%s626 + $0x29a] sm:$0xff]
      %v3536 = vld [vmem:[%s626 + $0x2aa] sm:$0xff]
      %v3537 = vld [vmem:[%s626 + $0x2b2] sm:$0xff]
      %v3538 = vld [vmem:[%s626 + $0x2ba] sm:$0xff]
      %v3539 = vld [vmem:[%s626 + $0x2c2] sm:$0xff]
      %v3540 = vld [vmem:[%s626 + $0x2d2] sm:$0xff]
      %v3541 = vld [vmem:[%s626 + $0x2da] sm:$0xff]
      %v3542 = vld [vmem:[%s626 + $0x2e2] sm:$0xff]
      %v3543 = vld [vmem:[%s626 + $0x2ea] sm:$0xff]
      %v3544 = vld [vmem:[%s626 + $0x2fa] sm:$0xff]
      %v3545 = vld [vmem:[%s626 + $0x302] sm:$0xff]
      %v3546 = vld [vmem:[%s626 + $0x30a] sm:$0xff]
      %v3547 = vld [vmem:[%s626 + $0x312] sm:$0xff]
      %v3548 = vld [vmem:[%s626 + $0x322] sm:$0xff]
      %v3549 = vld [vmem:[%s626 + $0x32a] sm:$0xff]
      %v3550 = vld [vmem:[%s626 + $0x332] sm:$0xff]
      %v3551 = vld [vmem:[%s626 + $0x33a] sm:$0xff]
      %v3552 = vld [vmem:[%s626 + $0x34a] sm:$0xff]
      %v3553 = vld [vmem:[%s626 + $0x352] sm:$0xff]
      %v3554 = vld [vmem:[%s626 + $0x35a] sm:$0xff]
      %v3555 = vld [vmem:[%s626 + $0x362] sm:$0xff]
      %v3556 = vld [vmem:[%s626 + $0x372] sm:$0xff]
      %v3557 = vld [vmem:[%s626 + $0x37a] sm:$0xff]
      %v3558 = vld [vmem:[%s626 + $0x382] sm:$0xff]
      %v3559 = vld [vmem:[%s626 + $0x38a] sm:$0xff]
      %v3560 = vld [vmem:[%s626 + $0x39a] sm:$0xff]
      %v3561 = vld [vmem:[%s626 + $0x3a2] sm:$0xff]
      %v3562 = vld [vmem:[%s626 + $0x3aa] sm:$0xff]
      %v3563 = vld [vmem:[%s626 + $0x3b2] sm:$0xff]
      %v3564 = vld [vmem:[%s626 + $0x3c2] sm:$0xff]
      %v3565 = vld [vmem:[%s626 + $0x3ca] sm:$0xff]
      %v3566 = vld [vmem:[%s626 + $0x3d2] sm:$0xff]
      %v3567 = vld [vmem:[%s626 + $0x3da] sm:$0xff]
      %v3568 = vld [vmem:[%s626 + $0x3ea] sm:$0xff]
      %v3569 = vld [vmem:[%s626 + $0x3f2] sm:$0xff]
      %v3570 = vld [vmem:[%s626 + $0x3fa] sm:$0xff]
      %v3571 = vld [vmem:[%s626 + $0x402] sm:$0xff]
      %v3572 = vld [vmem:[%s626 + $0x412] sm:$0xff]
      %v3573 = vld [vmem:[%s626 + $0x41a] sm:$0xff]
      %v3574 = vld [vmem:[%s626 + $0x422] sm:$0xff]
      %v3575 = vld [vmem:[%s626 + $0x42a] sm:$0xff]
      %v3576 = vld [vmem:[%s626 + $0x43a] sm:$0xff]
      %v3577 = vld [vmem:[%s626 + $0x442] sm:$0xff]
      %v3578 = vld [vmem:[%s626 + $0x44a] sm:$0xff]
      %v3579 = vld [vmem:[%s626 + $0x452] sm:$0xff]
      %v3580 = vld [vmem:[%s626 + $0x462] sm:$0xff]
      %v3581 = vld [vmem:[%s626 + $0x46a] sm:$0xff]
      %v3582 = vld [vmem:[%s626 + $0x472] sm:$0xff]
      %v3583 = vld [vmem:[%s626 + $0x47a] sm:$0xff]
      %v3584 = vld [vmem:[%s626 + $0x48a] sm:$0xff]
      %v3585 = vld [vmem:[%s626 + $0x492] sm:$0xff]
      %v3586 = vld [vmem:[%s626 + $0x49a] sm:$0xff]
      %v3587 = vld [vmem:[%s626 + $0x4a2] sm:$0xff]
      %v3588 = vld [vmem:[%s626 + $0x4b2] sm:$0xff]
      %v3589 = vld [vmem:[%s626 + $0x4ba] sm:$0xff]
      %v3590 = vld [vmem:[%s626 + $0x4c2] sm:$0xff]
      %v3591 = vld [vmem:[%s626 + $0x4ca] sm:$0xff]
      %v3592 = vld [vmem:[%s626 + $0x4da] sm:$0xff]
      %v3593 = vld [vmem:[%s626 + $0x4e2] sm:$0xff]
      %v3594 = vld [vmem:[%s626 + $0x4ea] sm:$0xff]
      %v3595 = vld [vmem:[%s626 + $0x4f2] sm:$0xff]
      %v3596 = vlaneseq
      %v3597 = vshrl.u32 %v3596, 7
      %v3598 = vsub.s32 2, %v3597
      %v3599 = vrot.slane %v1526, %v3598
      %v3600 = vmul.f32 %v3468, %v3599
      %v3601 = vmul.f32 %v3469, %v3599
      %v3602 = vmul.f32 %v3470, %v3599
      %v3603 = vmul.f32 %v3471, %v3599
      %v3604 = vmul.f32 %v3472, %v3599
      %v3605 = vmul.f32 %v3473, %v3599
      %v3606 = vmul.f32 %v3474, %v3599
      %v3607 = vmul.f32 %v3475, %v3599
      %v3608 = vmul.f32 %v3476, %v3599
      %v3609 = vmul.f32 %v3477, %v3599
      %v3610 = vmul.f32 %v3478, %v3599
      %v3611 = vmul.f32 %v3479, %v3599
      %v3612 = vmul.f32 %v3480, %v3599
      %v3613 = vmul.f32 %v3481, %v3599
      %v3614 = vmul.f32 %v3482, %v3599
      %v3615 = vmul.f32 %v3483, %v3599
      %v3616 = vmul.f32 %v3484, %v3599
      %v3617 = vmul.f32 %v3485, %v3599
      %v3618 = vmul.f32 %v3486, %v3599
      %v3619 = vmul.f32 %v3487, %v3599
      %v3620 = vmul.f32 %v3488, %v3599
      %v3621 = vmul.f32 %v3489, %v3599
      %v3622 = vmul.f32 %v3490, %v3599
      %v3623 = vmul.f32 %v3491, %v3599
      %v3624 = vmul.f32 %v3492, %v3599
      %v3625 = vmul.f32 %v3493, %v3599
      %v3626 = vmul.f32 %v3494, %v3599
      %v3627 = vmul.f32 %v3495, %v3599
      %v3628 = vmul.f32 %v3496, %v3599
      %v3629 = vmul.f32 %v3497, %v3599
      %v3630 = vmul.f32 %v3498, %v3599
      %v3631 = vmul.f32 %v3499, %v3599
      %v3632 = vmul.f32 %v3500, %v3599
      %v3633 = vmul.f32 %v3501, %v3599
      %v3634 = vmul.f32 %v3502, %v3599
      %v3635 = vmul.f32 %v3503, %v3599
      %v3636 = vmul.f32 %v3504, %v3599
      %v3637 = vmul.f32 %v3505, %v3599
      %v3638 = vmul.f32 %v3506, %v3599
      %v3639 = vmul.f32 %v3507, %v3599
      %v3640 = vmul.f32 %v3508, %v3599
      %v3641 = vmul.f32 %v3509, %v3599
      %v3642 = vmul.f32 %v3510, %v3599
      %v3643 = vmul.f32 %v3511, %v3599
      %v3644 = vmul.f32 %v3512, %v3599
      %v3645 = vmul.f32 %v3513, %v3599
      %v3646 = vmul.f32 %v3514, %v3599
      %v3647 = vmul.f32 %v3515, %v3599
      %v3648 = vmul.f32 %v3516, %v3599
      %v3649 = vmul.f32 %v3517, %v3599
      %v3650 = vmul.f32 %v3518, %v3599
      %v3651 = vmul.f32 %v3519, %v3599
      %v3652 = vmul.f32 %v3520, %v3599
      %v3653 = vmul.f32 %v3521, %v3599
      %v3654 = vmul.f32 %v3522, %v3599
      %v3655 = vmul.f32 %v3523, %v3599
      %v3656 = vmul.f32 %v3524, %v3599
      %v3657 = vmul.f32 %v3525, %v3599
      %v3658 = vmul.f32 %v3526, %v3599
      %v3659 = vmul.f32 %v3527, %v3599
      %v3660 = vmul.f32 %v3528, %v3599
      %v3661 = vmul.f32 %v3529, %v3599
      %v3662 = vmul.f32 %v3530, %v3599
      %v3663 = vmul.f32 %v3531, %v3599
      %v3664 = vmul.f32 %v3532, %v3599
      %v3665 = vmul.f32 %v3533, %v3599
      %v3666 = vmul.f32 %v3534, %v3599
      %v3667 = vmul.f32 %v3535, %v3599
      %v3668 = vmul.f32 %v3536, %v3599
      %v3669 = vmul.f32 %v3537, %v3599
      %v3670 = vmul.f32 %v3538, %v3599
      %v3671 = vmul.f32 %v3539, %v3599
      %v3672 = vmul.f32 %v3540, %v3599
      %v3673 = vmul.f32 %v3541, %v3599
      %v3674 = vmul.f32 %v3542, %v3599
      %v3675 = vmul.f32 %v3543, %v3599
      %v3676 = vmul.f32 %v3544, %v3599
      %v3677 = vmul.f32 %v3545, %v3599
      %v3678 = vmul.f32 %v3546, %v3599
      %v3679 = vmul.f32 %v3547, %v3599
      %v3680 = vmul.f32 %v3548, %v3599
      %v3681 = vmul.f32 %v3549, %v3599
      %v3682 = vmul.f32 %v3550, %v3599
      %v3683 = vmul.f32 %v3551, %v3599
      %v3684 = vmul.f32 %v3552, %v3599
      %v3685 = vmul.f32 %v3553, %v3599
      %v3686 = vmul.f32 %v3554, %v3599
      %v3687 = vmul.f32 %v3555, %v3599
      %v3688 = vmul.f32 %v3556, %v3599
      %v3689 = vmul.f32 %v3557, %v3599
      %v3690 = vmul.f32 %v3558, %v3599
      %v3691 = vmul.f32 %v3559, %v3599
      %v3692 = vmul.f32 %v3560, %v3599
      %v3693 = vmul.f32 %v3561, %v3599
      %v3694 = vmul.f32 %v3562, %v3599
      %v3695 = vmul.f32 %v3563, %v3599
      %v3696 = vmul.f32 %v3564, %v3599
      %v3697 = vmul.f32 %v3565, %v3599
      %v3698 = vmul.f32 %v3566, %v3599
      %v3699 = vmul.f32 %v3567, %v3599
      %v3700 = vmul.f32 %v3568, %v3599
      %v3701 = vmul.f32 %v3569, %v3599
      %v3702 = vmul.f32 %v3570, %v3599
      %v3703 = vmul.f32 %v3571, %v3599
      %v3704 = vmul.f32 %v3572, %v3599
      %v3705 = vmul.f32 %v3573, %v3599
      %v3706 = vmul.f32 %v3574, %v3599
      %v3707 = vmul.f32 %v3575, %v3599
      %v3708 = vmul.f32 %v3576, %v3599
      %v3709 = vmul.f32 %v3577, %v3599
      %v3710 = vmul.f32 %v3578, %v3599
      %v3711 = vmul.f32 %v3579, %v3599
      %v3712 = vmul.f32 %v3580, %v3599
      %v3713 = vmul.f32 %v3581, %v3599
      %v3714 = vmul.f32 %v3582, %v3599
      %v3715 = vmul.f32 %v3583, %v3599
      %v3716 = vmul.f32 %v3584, %v3599
      %v3717 = vmul.f32 %v3585, %v3599
      %v3718 = vmul.f32 %v3586, %v3599
      %v3719 = vmul.f32 %v3587, %v3599
      %v3720 = vmul.f32 %v3588, %v3599
      %v3721 = vmul.f32 %v3589, %v3599
      %v3722 = vmul.f32 %v3590, %v3599
      %v3723 = vmul.f32 %v3591, %v3599
      %v3724 = vmul.f32 %v3592, %v3599
      %v3725 = vmul.f32 %v3593, %v3599
      %v3726 = vmul.f32 %v3594, %v3599
      %v3727 = vmul.f32 %v3595, %v3599
      %v3728 = vadd.f32 %v3340, %v3600
      %v3729 = vadd.f32 %v3341, %v3601
      %v3730 = vadd.f32 %v3342, %v3602
      %v3731 = vadd.f32 %v3343, %v3603
      %v3732 = vadd.f32 %v3344, %v3604
      %v3733 = vadd.f32 %v3345, %v3605
      %v3734 = vadd.f32 %v3346, %v3606
      %v3735 = vadd.f32 %v3347, %v3607
      %v3736 = vadd.f32 %v3348, %v3608
      %v3737 = vadd.f32 %v3349, %v3609
      %v3738 = vadd.f32 %v3350, %v3610
      %v3739 = vadd.f32 %v3351, %v3611
      %v3740 = vadd.f32 %v3352, %v3612
      %v3741 = vadd.f32 %v3353, %v3613
      %v3742 = vadd.f32 %v3354, %v3614
      %v3743 = vadd.f32 %v3355, %v3615
      %v3744 = vadd.f32 %v3356, %v3616
      %v3745 = vadd.f32 %v3357, %v3617
      %v3746 = vadd.f32 %v3358, %v3618
      %v3747 = vadd.f32 %v3359, %v3619
      %v3748 = vadd.f32 %v3360, %v3620
      %v3749 = vadd.f32 %v3361, %v3621
      %v3750 = vadd.f32 %v3362, %v3622
      %v3751 = vadd.f32 %v3363, %v3623
      %v3752 = vadd.f32 %v3364, %v3624
      %v3753 = vadd.f32 %v3365, %v3625
      %v3754 = vadd.f32 %v3366, %v3626
      %v3755 = vadd.f32 %v3367, %v3627
      %v3756 = vadd.f32 %v3368, %v3628
      %v3757 = vadd.f32 %v3369, %v3629
      %v3758 = vadd.f32 %v3370, %v3630
      %v3759 = vadd.f32 %v3371, %v3631
      %v3760 = vadd.f32 %v3372, %v3632
      %v3761 = vadd.f32 %v3373, %v3633
      %v3762 = vadd.f32 %v3374, %v3634
      %v3763 = vadd.f32 %v3375, %v3635
      %v3764 = vadd.f32 %v3376, %v3636
      %v3765 = vadd.f32 %v3377, %v3637
      %v3766 = vadd.f32 %v3378, %v3638
      %v3767 = vadd.f32 %v3379, %v3639
      %v3768 = vadd.f32 %v3380, %v3640
      %v3769 = vadd.f32 %v3381, %v3641
      %v3770 = vadd.f32 %v3382, %v3642
      %v3771 = vadd.f32 %v3383, %v3643
      %v3772 = vadd.f32 %v3384, %v3644
      %v3773 = vadd.f32 %v3385, %v3645
      %v3774 = vadd.f32 %v3386, %v3646
      %v3775 = vadd.f32 %v3387, %v3647
      %v3776 = vadd.f32 %v3388, %v3648
      %v3777 = vadd.f32 %v3389, %v3649
      %v3778 = vadd.f32 %v3390, %v3650
      %v3779 = vadd.f32 %v3391, %v3651
      %v3780 = vadd.f32 %v3392, %v3652
      %v3781 = vadd.f32 %v3393, %v3653
      %v3782 = vadd.f32 %v3394, %v3654
      %v3783 = vadd.f32 %v3395, %v3655
      %v3784 = vadd.f32 %v3396, %v3656
      %v3785 = vadd.f32 %v3397, %v3657
      %v3786 = vadd.f32 %v3398, %v3658
      %v3787 = vadd.f32 %v3399, %v3659
      %v3788 = vadd.f32 %v3400, %v3660
      %v3789 = vadd.f32 %v3401, %v3661
      %v3790 = vadd.f32 %v3402, %v3662
      %v3791 = vadd.f32 %v3403, %v3663
      %v3792 = vadd.f32 %v3404, %v3664
      %v3793 = vadd.f32 %v3405, %v3665
      %v3794 = vadd.f32 %v3406, %v3666
      %v3795 = vadd.f32 %v3407, %v3667
      %v3796 = vadd.f32 %v3408, %v3668
      %v3797 = vadd.f32 %v3409, %v3669
      %v3798 = vadd.f32 %v3410, %v3670
      %v3799 = vadd.f32 %v3411, %v3671
      %v3800 = vadd.f32 %v3412, %v3672
      %v3801 = vadd.f32 %v3413, %v3673
      %v3802 = vadd.f32 %v3414, %v3674
      %v3803 = vadd.f32 %v3415, %v3675
      %v3804 = vadd.f32 %v3416, %v3676
      %v3805 = vadd.f32 %v3417, %v3677
      %v3806 = vadd.f32 %v3418, %v3678
      %v3807 = vadd.f32 %v3419, %v3679
      %v3808 = vadd.f32 %v3420, %v3680
      %v3809 = vadd.f32 %v3421, %v3681
      %v3810 = vadd.f32 %v3422, %v3682
      %v3811 = vadd.f32 %v3423, %v3683
      %v3812 = vadd.f32 %v3424, %v3684
      %v3813 = vadd.f32 %v3425, %v3685
      %v3814 = vadd.f32 %v3426, %v3686
      %v3815 = vadd.f32 %v3427, %v3687
      %v3816 = vadd.f32 %v3428, %v3688
      %v3817 = vadd.f32 %v3429, %v3689
      %v3818 = vadd.f32 %v3430, %v3690
      %v3819 = vadd.f32 %v3431, %v3691
      %v3820 = vadd.f32 %v3432, %v3692
      %v3821 = vadd.f32 %v3433, %v3693
      %v3822 = vadd.f32 %v3434, %v3694
      %v3823 = vadd.f32 %v3435, %v3695
      %v3824 = vadd.f32 %v3436, %v3696
      %v3825 = vadd.f32 %v3437, %v3697
      %v3826 = vadd.f32 %v3438, %v3698
      %v3827 = vadd.f32 %v3439, %v3699
      %v3828 = vadd.f32 %v3440, %v3700
      %v3829 = vadd.f32 %v3441, %v3701
      %v3830 = vadd.f32 %v3442, %v3702
      %v3831 = vadd.f32 %v3443, %v3703
      %v3832 = vadd.f32 %v3444, %v3704
      %v3833 = vadd.f32 %v3445, %v3705
      %v3834 = vadd.f32 %v3446, %v3706
      %v3835 = vadd.f32 %v3447, %v3707
      %v3836 = vadd.f32 %v3448, %v3708
      %v3837 = vadd.f32 %v3449, %v3709
      %v3838 = vadd.f32 %v3450, %v3710
      %v3839 = vadd.f32 %v3451, %v3711
      %v3840 = vadd.f32 %v3452, %v3712
      %v3841 = vadd.f32 %v3453, %v3713
      %v3842 = vadd.f32 %v3454, %v3714
      %v3843 = vadd.f32 %v3455, %v3715
      %v3844 = vadd.f32 %v3456, %v3716
      %v3845 = vadd.f32 %v3457, %v3717
      %v3846 = vadd.f32 %v3458, %v3718
      %v3847 = vadd.f32 %v3459, %v3719
      %v3848 = vadd.f32 %v3460, %v3720
      %v3849 = vadd.f32 %v3461, %v3721
      %v3850 = vadd.f32 %v3462, %v3722
      %v3851 = vadd.f32 %v3463, %v3723
      %v3852 = vadd.f32 %v3464, %v3724
      %v3853 = vadd.f32 %v3465, %v3725
      %v3854 = vadd.f32 %v3466, %v3726
      %v3855 = vadd.f32 %v3467, %v3727
      %s3856 = scalar_lea.vmem [#allocation2], 80
      %v3857 = vld [vmem:[%s3856] sm:$0xff]
      %v3858 = vld [vmem:[%s3856 + $0x8] sm:$0xff]
      %v3859 = vld [vmem:[%s3856 + $0x10] sm:$0xff]
      %v3860 = vld [vmem:[%s3856 + $0x18] sm:$0xff]
      %v3861 = vld [vmem:[%s3856 + $0x28] sm:$0xff]
      %v3862 = vld [vmem:[%s3856 + $0x30] sm:$0xff]
      %v3863 = vld [vmem:[%s3856 + $0x38] sm:$0xff]
      %v3864 = vld [vmem:[%s3856 + $0x40] sm:$0xff]
      %v3865 = vld [vmem:[%s3856 + $0x50] sm:$0xff]
      %v3866 = vld [vmem:[%s3856 + $0x58] sm:$0xff]
      %v3867 = vld [vmem:[%s3856 + $0x60] sm:$0xff]
      %v3868 = vld [vmem:[%s3856 + $0x68] sm:$0xff]
      %v3869 = vld [vmem:[%s3856 + $0x78] sm:$0xff]
      %v3870 = vld [vmem:[%s3856 + $0x80] sm:$0xff]
      %v3871 = vld [vmem:[%s3856 + $0x88] sm:$0xff]
      %v3872 = vld [vmem:[%s3856 + $0x90] sm:$0xff]
      %v3873 = vld [vmem:[%s3856 + $0xa0] sm:$0xff]
      %v3874 = vld [vmem:[%s3856 + $0xa8] sm:$0xff]
      %v3875 = vld [vmem:[%s3856 + $0xb0] sm:$0xff]
      %v3876 = vld [vmem:[%s3856 + $0xb8] sm:$0xff]
      %v3877 = vld [vmem:[%s3856 + $0xc8] sm:$0xff]
      %v3878 = vld [vmem:[%s3856 + $0xd0] sm:$0xff]
      %v3879 = vld [vmem:[%s3856 + $0xd8] sm:$0xff]
      %v3880 = vld [vmem:[%s3856 + $0xe0] sm:$0xff]
      %v3881 = vld [vmem:[%s3856 + $0xf0] sm:$0xff]
      %v3882 = vld [vmem:[%s3856 + $0xf8] sm:$0xff]
      %v3883 = vld [vmem:[%s3856 + $0x100] sm:$0xff]
      %v3884 = vld [vmem:[%s3856 + $0x108] sm:$0xff]
      %v3885 = vld [vmem:[%s3856 + $0x118] sm:$0xff]
      %v3886 = vld [vmem:[%s3856 + $0x120] sm:$0xff]
      %v3887 = vld [vmem:[%s3856 + $0x128] sm:$0xff]
      %v3888 = vld [vmem:[%s3856 + $0x130] sm:$0xff]
      %v3889 = vld [vmem:[%s3856 + $0x140] sm:$0xff]
      %v3890 = vld [vmem:[%s3856 + $0x148] sm:$0xff]
      %v3891 = vld [vmem:[%s3856 + $0x150] sm:$0xff]
      %v3892 = vld [vmem:[%s3856 + $0x158] sm:$0xff]
      %v3893 = vld [vmem:[%s3856 + $0x168] sm:$0xff]
      %v3894 = vld [vmem:[%s3856 + $0x170] sm:$0xff]
      %v3895 = vld [vmem:[%s3856 + $0x178] sm:$0xff]
      %v3896 = vld [vmem:[%s3856 + $0x180] sm:$0xff]
      %v3897 = vld [vmem:[%s3856 + $0x190] sm:$0xff]
      %v3898 = vld [vmem:[%s3856 + $0x198] sm:$0xff]
      %v3899 = vld [vmem:[%s3856 + $0x1a0] sm:$0xff]
      %v3900 = vld [vmem:[%s3856 + $0x1a8] sm:$0xff]
      %v3901 = vld [vmem:[%s3856 + $0x1b8] sm:$0xff]
      %v3902 = vld [vmem:[%s3856 + $0x1c0] sm:$0xff]
      %v3903 = vld [vmem:[%s3856 + $0x1c8] sm:$0xff]
      %v3904 = vld [vmem:[%s3856 + $0x1d0] sm:$0xff]
      %v3905 = vld [vmem:[%s3856 + $0x1e0] sm:$0xff]
      %v3906 = vld [vmem:[%s3856 + $0x1e8] sm:$0xff]
      %v3907 = vld [vmem:[%s3856 + $0x1f0] sm:$0xff]
      %v3908 = vld [vmem:[%s3856 + $0x1f8] sm:$0xff]
      %v3909 = vld [vmem:[%s3856 + $0x208] sm:$0xff]
      %v3910 = vld [vmem:[%s3856 + $0x210] sm:$0xff]
      %v3911 = vld [vmem:[%s3856 + $0x218] sm:$0xff]
      %v3912 = vld [vmem:[%s3856 + $0x220] sm:$0xff]
      %v3913 = vld [vmem:[%s3856 + $0x230] sm:$0xff]
      %v3914 = vld [vmem:[%s3856 + $0x238] sm:$0xff]
      %v3915 = vld [vmem:[%s3856 + $0x240] sm:$0xff]
      %v3916 = vld [vmem:[%s3856 + $0x248] sm:$0xff]
      %v3917 = vld [vmem:[%s3856 + $0x258] sm:$0xff]
      %v3918 = vld [vmem:[%s3856 + $0x260] sm:$0xff]
      %v3919 = vld [vmem:[%s3856 + $0x268] sm:$0xff]
      %v3920 = vld [vmem:[%s3856 + $0x270] sm:$0xff]
      %v3921 = vld [vmem:[%s3856 + $0x280] sm:$0xff]
      %v3922 = vld [vmem:[%s3856 + $0x288] sm:$0xff]
      %v3923 = vld [vmem:[%s3856 + $0x290] sm:$0xff]
      %v3924 = vld [vmem:[%s3856 + $0x298] sm:$0xff]
      %v3925 = vld [vmem:[%s3856 + $0x2a8] sm:$0xff]
      %v3926 = vld [vmem:[%s3856 + $0x2b0] sm:$0xff]
      %v3927 = vld [vmem:[%s3856 + $0x2b8] sm:$0xff]
      %v3928 = vld [vmem:[%s3856 + $0x2c0] sm:$0xff]
      %v3929 = vld [vmem:[%s3856 + $0x2d0] sm:$0xff]
      %v3930 = vld [vmem:[%s3856 + $0x2d8] sm:$0xff]
      %v3931 = vld [vmem:[%s3856 + $0x2e0] sm:$0xff]
      %v3932 = vld [vmem:[%s3856 + $0x2e8] sm:$0xff]
      %v3933 = vld [vmem:[%s3856 + $0x2f8] sm:$0xff]
      %v3934 = vld [vmem:[%s3856 + $0x300] sm:$0xff]
      %v3935 = vld [vmem:[%s3856 + $0x308] sm:$0xff]
      %v3936 = vld [vmem:[%s3856 + $0x310] sm:$0xff]
      %v3937 = vld [vmem:[%s3856 + $0x320] sm:$0xff]
      %v3938 = vld [vmem:[%s3856 + $0x328] sm:$0xff]
      %v3939 = vld [vmem:[%s3856 + $0x330] sm:$0xff]
      %v3940 = vld [vmem:[%s3856 + $0x338] sm:$0xff]
      %v3941 = vld [vmem:[%s3856 + $0x348] sm:$0xff]
      %v3942 = vld [vmem:[%s3856 + $0x350] sm:$0xff]
      %v3943 = vld [vmem:[%s3856 + $0x358] sm:$0xff]
      %v3944 = vld [vmem:[%s3856 + $0x360] sm:$0xff]
      %v3945 = vld [vmem:[%s3856 + $0x370] sm:$0xff]
      %v3946 = vld [vmem:[%s3856 + $0x378] sm:$0xff]
      %v3947 = vld [vmem:[%s3856 + $0x380] sm:$0xff]
      %v3948 = vld [vmem:[%s3856 + $0x388] sm:$0xff]
      %v3949 = vld [vmem:[%s3856 + $0x398] sm:$0xff]
      %v3950 = vld [vmem:[%s3856 + $0x3a0] sm:$0xff]
      %v3951 = vld [vmem:[%s3856 + $0x3a8] sm:$0xff]
      %v3952 = vld [vmem:[%s3856 + $0x3b0] sm:$0xff]
      %v3953 = vld [vmem:[%s3856 + $0x3c0] sm:$0xff]
      %v3954 = vld [vmem:[%s3856 + $0x3c8] sm:$0xff]
      %v3955 = vld [vmem:[%s3856 + $0x3d0] sm:$0xff]
      %v3956 = vld [vmem:[%s3856 + $0x3d8] sm:$0xff]
      %v3957 = vld [vmem:[%s3856 + $0x3e8] sm:$0xff]
      %v3958 = vld [vmem:[%s3856 + $0x3f0] sm:$0xff]
      %v3959 = vld [vmem:[%s3856 + $0x3f8] sm:$0xff]
      %v3960 = vld [vmem:[%s3856 + $0x400] sm:$0xff]
      %v3961 = vld [vmem:[%s3856 + $0x410] sm:$0xff]
      %v3962 = vld [vmem:[%s3856 + $0x418] sm:$0xff]
      %v3963 = vld [vmem:[%s3856 + $0x420] sm:$0xff]
      %v3964 = vld [vmem:[%s3856 + $0x428] sm:$0xff]
      %v3965 = vld [vmem:[%s3856 + $0x438] sm:$0xff]
      %v3966 = vld [vmem:[%s3856 + $0x440] sm:$0xff]
      %v3967 = vld [vmem:[%s3856 + $0x448] sm:$0xff]
      %v3968 = vld [vmem:[%s3856 + $0x450] sm:$0xff]
      %v3969 = vld [vmem:[%s3856 + $0x460] sm:$0xff]
      %v3970 = vld [vmem:[%s3856 + $0x468] sm:$0xff]
      %v3971 = vld [vmem:[%s3856 + $0x470] sm:$0xff]
      %v3972 = vld [vmem:[%s3856 + $0x478] sm:$0xff]
      %v3973 = vld [vmem:[%s3856 + $0x488] sm:$0xff]
      %v3974 = vld [vmem:[%s3856 + $0x490] sm:$0xff]
      %v3975 = vld [vmem:[%s3856 + $0x498] sm:$0xff]
      %v3976 = vld [vmem:[%s3856 + $0x4a0] sm:$0xff]
      %v3977 = vld [vmem:[%s3856 + $0x4b0] sm:$0xff]
      %v3978 = vld [vmem:[%s3856 + $0x4b8] sm:$0xff]
      %v3979 = vld [vmem:[%s3856 + $0x4c0] sm:$0xff]
      %v3980 = vld [vmem:[%s3856 + $0x4c8] sm:$0xff]
      %v3981 = vld [vmem:[%s3856 + $0x4d8] sm:$0xff]
      %v3982 = vld [vmem:[%s3856 + $0x4e0] sm:$0xff]
      %v3983 = vld [vmem:[%s3856 + $0x4e8] sm:$0xff]
      %v3984 = vld [vmem:[%s3856 + $0x4f0] sm:$0xff]
      %v3985 = vlaneseq
      %v3986 = vshrl.u32 %v3985, 7
      %v3987 = vsub.s32 0, %v3986
      %v3988 = vrot.slane %v1527, %v3987
      %v3989 = vmul.f32 %v3857, %v3988
      %v3990 = vmul.f32 %v3858, %v3988
      %v3991 = vmul.f32 %v3859, %v3988
      %v3992 = vmul.f32 %v3860, %v3988
      %v3993 = vmul.f32 %v3861, %v3988
      %v3994 = vmul.f32 %v3862, %v3988
      %v3995 = vmul.f32 %v3863, %v3988
      %v3996 = vmul.f32 %v3864, %v3988
      %v3997 = vmul.f32 %v3865, %v3988
      %v3998 = vmul.f32 %v3866, %v3988
      %v3999 = vmul.f32 %v3867, %v3988
      %v4000 = vmul.f32 %v3868, %v3988
      %v4001 = vmul.f32 %v3869, %v3988
      %v4002 = vmul.f32 %v3870, %v3988
      %v4003 = vmul.f32 %v3871, %v3988
      %v4004 = vmul.f32 %v3872, %v3988
      %v4005 = vmul.f32 %v3873, %v3988
      %v4006 = vmul.f32 %v3874, %v3988
      %v4007 = vmul.f32 %v3875, %v3988
      %v4008 = vmul.f32 %v3876, %v3988
      %v4009 = vmul.f32 %v3877, %v3988
      %v4010 = vmul.f32 %v3878, %v3988
      %v4011 = vmul.f32 %v3879, %v3988
      %v4012 = vmul.f32 %v3880, %v3988
      %v4013 = vmul.f32 %v3881, %v3988
      %v4014 = vmul.f32 %v3882, %v3988
      %v4015 = vmul.f32 %v3883, %v3988
      %v4016 = vmul.f32 %v3884, %v3988
      %v4017 = vmul.f32 %v3885, %v3988
      %v4018 = vmul.f32 %v3886, %v3988
      %v4019 = vmul.f32 %v3887, %v3988
      %v4020 = vmul.f32 %v3888, %v3988
      %v4021 = vmul.f32 %v3889, %v3988
      %v4022 = vmul.f32 %v3890, %v3988
      %v4023 = vmul.f32 %v3891, %v3988
      %v4024 = vmul.f32 %v3892, %v3988
      %v4025 = vmul.f32 %v3893, %v3988
      %v4026 = vmul.f32 %v3894, %v3988
      %v4027 = vmul.f32 %v3895, %v3988
      %v4028 = vmul.f32 %v3896, %v3988
      %v4029 = vmul.f32 %v3897, %v3988
      %v4030 = vmul.f32 %v3898, %v3988
      %v4031 = vmul.f32 %v3899, %v3988
      %v4032 = vmul.f32 %v3900, %v3988
      %v4033 = vmul.f32 %v3901, %v3988
      %v4034 = vmul.f32 %v3902, %v3988
      %v4035 = vmul.f32 %v3903, %v3988
      %v4036 = vmul.f32 %v3904, %v3988
      %v4037 = vmul.f32 %v3905, %v3988
      %v4038 = vmul.f32 %v3906, %v3988
      %v4039 = vmul.f32 %v3907, %v3988
      %v4040 = vmul.f32 %v3908, %v3988
      %v4041 = vmul.f32 %v3909, %v3988
      %v4042 = vmul.f32 %v3910, %v3988
      %v4043 = vmul.f32 %v3911, %v3988
      %v4044 = vmul.f32 %v3912, %v3988
      %v4045 = vmul.f32 %v3913, %v3988
      %v4046 = vmul.f32 %v3914, %v3988
      %v4047 = vmul.f32 %v3915, %v3988
      %v4048 = vmul.f32 %v3916, %v3988
      %v4049 = vmul.f32 %v3917, %v3988
      %v4050 = vmul.f32 %v3918, %v3988
      %v4051 = vmul.f32 %v3919, %v3988
      %v4052 = vmul.f32 %v3920, %v3988
      %v4053 = vmul.f32 %v3921, %v3988
      %v4054 = vmul.f32 %v3922, %v3988
      %v4055 = vmul.f32 %v3923, %v3988
      %v4056 = vmul.f32 %v3924, %v3988
      %v4057 = vmul.f32 %v3925, %v3988
      %v4058 = vmul.f32 %v3926, %v3988
      %v4059 = vmul.f32 %v3927, %v3988
      %v4060 = vmul.f32 %v3928, %v3988
      %v4061 = vmul.f32 %v3929, %v3988
      %v4062 = vmul.f32 %v3930, %v3988
      %v4063 = vmul.f32 %v3931, %v3988
      %v4064 = vmul.f32 %v3932, %v3988
      %v4065 = vmul.f32 %v3933, %v3988
      %v4066 = vmul.f32 %v3934, %v3988
      %v4067 = vmul.f32 %v3935, %v3988
      %v4068 = vmul.f32 %v3936, %v3988
      %v4069 = vmul.f32 %v3937, %v3988
      %v4070 = vmul.f32 %v3938, %v3988
      %v4071 = vmul.f32 %v3939, %v3988
      %v4072 = vmul.f32 %v3940, %v3988
      %v4073 = vmul.f32 %v3941, %v3988
      %v4074 = vmul.f32 %v3942, %v3988
      %v4075 = vmul.f32 %v3943, %v3988
      %v4076 = vmul.f32 %v3944, %v3988
      %v4077 = vmul.f32 %v3945, %v3988
      %v4078 = vmul.f32 %v3946, %v3988
      %v4079 = vmul.f32 %v3947, %v3988
      %v4080 = vmul.f32 %v3948, %v3988
      %v4081 = vmul.f32 %v3949, %v3988
      %v4082 = vmul.f32 %v3950, %v3988
      %v4083 = vmul.f32 %v3951, %v3988
      %v4084 = vmul.f32 %v3952, %v3988
      %v4085 = vmul.f32 %v3953, %v3988
      %v4086 = vmul.f32 %v3954, %v3988
      %v4087 = vmul.f32 %v3955, %v3988
      %v4088 = vmul.f32 %v3956, %v3988
      %v4089 = vmul.f32 %v3957, %v3988
      %v4090 = vmul.f32 %v3958, %v3988
      %v4091 = vmul.f32 %v3959, %v3988
      %v4092 = vmul.f32 %v3960, %v3988
      %v4093 = vmul.f32 %v3961, %v3988
      %v4094 = vmul.f32 %v3962, %v3988
      %v4095 = vmul.f32 %v3963, %v3988
      %v4096 = vmul.f32 %v3964, %v3988
      %v4097 = vmul.f32 %v3965, %v3988
      %v4098 = vmul.f32 %v3966, %v3988
      %v4099 = vmul.f32 %v3967, %v3988
      %v4100 = vmul.f32 %v3968, %v3988
      %v4101 = vmul.f32 %v3969, %v3988
      %v4102 = vmul.f32 %v3970, %v3988
      %v4103 = vmul.f32 %v3971, %v3988
      %v4104 = vmul.f32 %v3972, %v3988
      %v4105 = vmul.f32 %v3973, %v3988
      %v4106 = vmul.f32 %v3974, %v3988
      %v4107 = vmul.f32 %v3975, %v3988
      %v4108 = vmul.f32 %v3976, %v3988
      %v4109 = vmul.f32 %v3977, %v3988
      %v4110 = vmul.f32 %v3978, %v3988
      %v4111 = vmul.f32 %v3979, %v3988
      %v4112 = vmul.f32 %v3980, %v3988
      %v4113 = vmul.f32 %v3981, %v3988
      %v4114 = vmul.f32 %v3982, %v3988
      %v4115 = vmul.f32 %v3983, %v3988
      %v4116 = vmul.f32 %v3984, %v3988
      %v4117 = vadd.f32 %v3728, %v3989
      %v4118 = vadd.f32 %v3729, %v3990
      %v4119 = vadd.f32 %v3730, %v3991
      %v4120 = vadd.f32 %v3731, %v3992
      %v4121 = vadd.f32 %v3732, %v3993
      %v4122 = vadd.f32 %v3733, %v3994
      %v4123 = vadd.f32 %v3734, %v3995
      %v4124 = vadd.f32 %v3735, %v3996
      %v4125 = vadd.f32 %v3736, %v3997
      %v4126 = vadd.f32 %v3737, %v3998
      %v4127 = vadd.f32 %v3738, %v3999
      %v4128 = vadd.f32 %v3739, %v4000
      %v4129 = vadd.f32 %v3740, %v4001
      %v4130 = vadd.f32 %v3741, %v4002
      %v4131 = vadd.f32 %v3742, %v4003
      %v4132 = vadd.f32 %v3743, %v4004
      %v4133 = vadd.f32 %v3744, %v4005
      %v4134 = vadd.f32 %v3745, %v4006
      %v4135 = vadd.f32 %v3746, %v4007
      %v4136 = vadd.f32 %v3747, %v4008
      %v4137 = vadd.f32 %v3748, %v4009
      %v4138 = vadd.f32 %v3749, %v4010
      %v4139 = vadd.f32 %v3750, %v4011
      %v4140 = vadd.f32 %v3751, %v4012
      %v4141 = vadd.f32 %v3752, %v4013
      %v4142 = vadd.f32 %v3753, %v4014
      %v4143 = vadd.f32 %v3754, %v4015
      %v4144 = vadd.f32 %v3755, %v4016
      %v4145 = vadd.f32 %v3756, %v4017
      %v4146 = vadd.f32 %v3757, %v4018
      %v4147 = vadd.f32 %v3758, %v4019
      %v4148 = vadd.f32 %v3759, %v4020
      %v4149 = vadd.f32 %v3760, %v4021
      %v4150 = vadd.f32 %v3761, %v4022
      %v4151 = vadd.f32 %v3762, %v4023
      %v4152 = vadd.f32 %v3763, %v4024
      %v4153 = vadd.f32 %v3764, %v4025
      %v4154 = vadd.f32 %v3765, %v4026
      %v4155 = vadd.f32 %v3766, %v4027
      %v4156 = vadd.f32 %v3767, %v4028
      %v4157 = vadd.f32 %v3768, %v4029
      %v4158 = vadd.f32 %v3769, %v4030
      %v4159 = vadd.f32 %v3770, %v4031
      %v4160 = vadd.f32 %v3771, %v4032
      %v4161 = vadd.f32 %v3772, %v4033
      %v4162 = vadd.f32 %v3773, %v4034
      %v4163 = vadd.f32 %v3774, %v4035
      %v4164 = vadd.f32 %v3775, %v4036
      %v4165 = vadd.f32 %v3776, %v4037
      %v4166 = vadd.f32 %v3777, %v4038
      %v4167 = vadd.f32 %v3778, %v4039
      %v4168 = vadd.f32 %v3779, %v4040
      %v4169 = vadd.f32 %v3780, %v4041
      %v4170 = vadd.f32 %v3781, %v4042
      %v4171 = vadd.f32 %v3782, %v4043
      %v4172 = vadd.f32 %v3783, %v4044
      %v4173 = vadd.f32 %v3784, %v4045
      %v4174 = vadd.f32 %v3785, %v4046
      %v4175 = vadd.f32 %v3786, %v4047
      %v4176 = vadd.f32 %v3787, %v4048
      %v4177 = vadd.f32 %v3788, %v4049
      %v4178 = vadd.f32 %v3789, %v4050
      %v4179 = vadd.f32 %v3790, %v4051
      %v4180 = vadd.f32 %v3791, %v4052
      %v4181 = vadd.f32 %v3792, %v4053
      %v4182 = vadd.f32 %v3793, %v4054
      %v4183 = vadd.f32 %v3794, %v4055
      %v4184 = vadd.f32 %v3795, %v4056
      %v4185 = vadd.f32 %v3796, %v4057
      %v4186 = vadd.f32 %v3797, %v4058
      %v4187 = vadd.f32 %v3798, %v4059
      %v4188 = vadd.f32 %v3799, %v4060
      %v4189 = vadd.f32 %v3800, %v4061
      %v4190 = vadd.f32 %v3801, %v4062
      %v4191 = vadd.f32 %v3802, %v4063
      %v4192 = vadd.f32 %v3803, %v4064
      %v4193 = vadd.f32 %v3804, %v4065
      %v4194 = vadd.f32 %v3805, %v4066
      %v4195 = vadd.f32 %v3806, %v4067
      %v4196 = vadd.f32 %v3807, %v4068
      %v4197 = vadd.f32 %v3808, %v4069
      %v4198 = vadd.f32 %v3809, %v4070
      %v4199 = vadd.f32 %v3810, %v4071
      %v4200 = vadd.f32 %v3811, %v4072
      %v4201 = vadd.f32 %v3812, %v4073
      %v4202 = vadd.f32 %v3813, %v4074
      %v4203 = vadd.f32 %v3814, %v4075
      %v4204 = vadd.f32 %v3815, %v4076
      %v4205 = vadd.f32 %v3816, %v4077
      %v4206 = vadd.f32 %v3817, %v4078
      %v4207 = vadd.f32 %v3818, %v4079
      %v4208 = vadd.f32 %v3819, %v4080
      %v4209 = vadd.f32 %v3820, %v4081
      %v4210 = vadd.f32 %v3821, %v4082
      %v4211 = vadd.f32 %v3822, %v4083
      %v4212 = vadd.f32 %v3823, %v4084
      %v4213 = vadd.f32 %v3824, %v4085
      %v4214 = vadd.f32 %v3825, %v4086
      %v4215 = vadd.f32 %v3826, %v4087
      %v4216 = vadd.f32 %v3827, %v4088
      %v4217 = vadd.f32 %v3828, %v4089
      %v4218 = vadd.f32 %v3829, %v4090
      %v4219 = vadd.f32 %v3830, %v4091
      %v4220 = vadd.f32 %v3831, %v4092
      %v4221 = vadd.f32 %v3832, %v4093
      %v4222 = vadd.f32 %v3833, %v4094
      %v4223 = vadd.f32 %v3834, %v4095
      %v4224 = vadd.f32 %v3835, %v4096
      %v4225 = vadd.f32 %v3836, %v4097
      %v4226 = vadd.f32 %v3837, %v4098
      %v4227 = vadd.f32 %v3838, %v4099
      %v4228 = vadd.f32 %v3839, %v4100
      %v4229 = vadd.f32 %v3840, %v4101
      %v4230 = vadd.f32 %v3841, %v4102
      %v4231 = vadd.f32 %v3842, %v4103
      %v4232 = vadd.f32 %v3843, %v4104
      %v4233 = vadd.f32 %v3844, %v4105
      %v4234 = vadd.f32 %v3845, %v4106
      %v4235 = vadd.f32 %v3846, %v4107
      %v4236 = vadd.f32 %v3847, %v4108
      %v4237 = vadd.f32 %v3848, %v4109
      %v4238 = vadd.f32 %v3849, %v4110
      %v4239 = vadd.f32 %v3850, %v4111
      %v4240 = vadd.f32 %v3851, %v4112
      %v4241 = vadd.f32 %v3852, %v4113
      %v4242 = vadd.f32 %v3853, %v4114
      %v4243 = vadd.f32 %v3854, %v4115
      %v4244 = vadd.f32 %v3855, %v4116
      %v4245 = vld [vmem:[%s3856 + $0x1] sm:$0xff]
      %v4246 = vld [vmem:[%s3856 + $0x9] sm:$0xff]
      %v4247 = vld [vmem:[%s3856 + $0x11] sm:$0xff]
      %v4248 = vld [vmem:[%s3856 + $0x19] sm:$0xff]
      %v4249 = vld [vmem:[%s3856 + $0x29] sm:$0xff]
      %v4250 = vld [vmem:[%s3856 + $0x31] sm:$0xff]
      %v4251 = vld [vmem:[%s3856 + $0x39] sm:$0xff]
      %v4252 = vld [vmem:[%s3856 + $0x41] sm:$0xff]
      %v4253 = vld [vmem:[%s3856 + $0x51] sm:$0xff]
      %v4254 = vld [vmem:[%s3856 + $0x59] sm:$0xff]
      %v4255 = vld [vmem:[%s3856 + $0x61] sm:$0xff]
      %v4256 = vld [vmem:[%s3856 + $0x69] sm:$0xff]
      %v4257 = vld [vmem:[%s3856 + $0x79] sm:$0xff]
      %v4258 = vld [vmem:[%s3856 + $0x81] sm:$0xff]
      %v4259 = vld [vmem:[%s3856 + $0x89] sm:$0xff]
      %v4260 = vld [vmem:[%s3856 + $0x91] sm:$0xff]
      %v4261 = vld [vmem:[%s3856 + $0xa1] sm:$0xff]
      %v4262 = vld [vmem:[%s3856 + $0xa9] sm:$0xff]
      %v4263 = vld [vmem:[%s3856 + $0xb1] sm:$0xff]
      %v4264 = vld [vmem:[%s3856 + $0xb9] sm:$0xff]
      %v4265 = vld [vmem:[%s3856 + $0xc9] sm:$0xff]
      %v4266 = vld [vmem:[%s3856 + $0xd1] sm:$0xff]
      %v4267 = vld [vmem:[%s3856 + $0xd9] sm:$0xff]
      %v4268 = vld [vmem:[%s3856 + $0xe1] sm:$0xff]
      %v4269 = vld [vmem:[%s3856 + $0xf1] sm:$0xff]
      %v4270 = vld [vmem:[%s3856 + $0xf9] sm:$0xff]
      %v4271 = vld [vmem:[%s3856 + $0x101] sm:$0xff]
      %v4272 = vld [vmem:[%s3856 + $0x109] sm:$0xff]
      %v4273 = vld [vmem:[%s3856 + $0x119] sm:$0xff]
      %v4274 = vld [vmem:[%s3856 + $0x121] sm:$0xff]
      %v4275 = vld [vmem:[%s3856 + $0x129] sm:$0xff]
      %v4276 = vld [vmem:[%s3856 + $0x131] sm:$0xff]
      %v4277 = vld [vmem:[%s3856 + $0x141] sm:$0xff]
      %v4278 = vld [vmem:[%s3856 + $0x149] sm:$0xff]
      %v4279 = vld [vmem:[%s3856 + $0x151] sm:$0xff]
      %v4280 = vld [vmem:[%s3856 + $0x159] sm:$0xff]
      %v4281 = vld [vmem:[%s3856 + $0x169] sm:$0xff]
      %v4282 = vld [vmem:[%s3856 + $0x171] sm:$0xff]
      %v4283 = vld [vmem:[%s3856 + $0x179] sm:$0xff]
      %v4284 = vld [vmem:[%s3856 + $0x181] sm:$0xff]
      %v4285 = vld [vmem:[%s3856 + $0x191] sm:$0xff]
      %v4286 = vld [vmem:[%s3856 + $0x199] sm:$0xff]
      %v4287 = vld [vmem:[%s3856 + $0x1a1] sm:$0xff]
      %v4288 = vld [vmem:[%s3856 + $0x1a9] sm:$0xff]
      %v4289 = vld [vmem:[%s3856 + $0x1b9] sm:$0xff]
      %v4290 = vld [vmem:[%s3856 + $0x1c1] sm:$0xff]
      %v4291 = vld [vmem:[%s3856 + $0x1c9] sm:$0xff]
      %v4292 = vld [vmem:[%s3856 + $0x1d1] sm:$0xff]
      %v4293 = vld [vmem:[%s3856 + $0x1e1] sm:$0xff]
      %v4294 = vld [vmem:[%s3856 + $0x1e9] sm:$0xff]
      %v4295 = vld [vmem:[%s3856 + $0x1f1] sm:$0xff]
      %v4296 = vld [vmem:[%s3856 + $0x1f9] sm:$0xff]
      %v4297 = vld [vmem:[%s3856 + $0x209] sm:$0xff]
      %v4298 = vld [vmem:[%s3856 + $0x211] sm:$0xff]
      %v4299 = vld [vmem:[%s3856 + $0x219] sm:$0xff]
      %v4300 = vld [vmem:[%s3856 + $0x221] sm:$0xff]
      %v4301 = vld [vmem:[%s3856 + $0x231] sm:$0xff]
      %v4302 = vld [vmem:[%s3856 + $0x239] sm:$0xff]
      %v4303 = vld [vmem:[%s3856 + $0x241] sm:$0xff]
      %v4304 = vld [vmem:[%s3856 + $0x249] sm:$0xff]
      %v4305 = vld [vmem:[%s3856 + $0x259] sm:$0xff]
      %v4306 = vld [vmem:[%s3856 + $0x261] sm:$0xff]
      %v4307 = vld [vmem:[%s3856 + $0x269] sm:$0xff]
      %v4308 = vld [vmem:[%s3856 + $0x271] sm:$0xff]
      %v4309 = vld [vmem:[%s3856 + $0x281] sm:$0xff]
      %v4310 = vld [vmem:[%s3856 + $0x289] sm:$0xff]
      %v4311 = vld [vmem:[%s3856 + $0x291] sm:$0xff]
      %v4312 = vld [vmem:[%s3856 + $0x299] sm:$0xff]
      %v4313 = vld [vmem:[%s3856 + $0x2a9] sm:$0xff]
      %v4314 = vld [vmem:[%s3856 + $0x2b1] sm:$0xff]
      %v4315 = vld [vmem:[%s3856 + $0x2b9] sm:$0xff]
      %v4316 = vld [vmem:[%s3856 + $0x2c1] sm:$0xff]
      %v4317 = vld [vmem:[%s3856 + $0x2d1] sm:$0xff]
      %v4318 = vld [vmem:[%s3856 + $0x2d9] sm:$0xff]
      %v4319 = vld [vmem:[%s3856 + $0x2e1] sm:$0xff]
      %v4320 = vld [vmem:[%s3856 + $0x2e9] sm:$0xff]
      %v4321 = vld [vmem:[%s3856 + $0x2f9] sm:$0xff]
      %v4322 = vld [vmem:[%s3856 + $0x301] sm:$0xff]
      %v4323 = vld [vmem:[%s3856 + $0x309] sm:$0xff]
      %v4324 = vld [vmem:[%s3856 + $0x311] sm:$0xff]
      %v4325 = vld [vmem:[%s3856 + $0x321] sm:$0xff]
      %v4326 = vld [vmem:[%s3856 + $0x329] sm:$0xff]
      %v4327 = vld [vmem:[%s3856 + $0x331] sm:$0xff]
      %v4328 = vld [vmem:[%s3856 + $0x339] sm:$0xff]
      %v4329 = vld [vmem:[%s3856 + $0x349] sm:$0xff]
      %v4330 = vld [vmem:[%s3856 + $0x351] sm:$0xff]
      %v4331 = vld [vmem:[%s3856 + $0x359] sm:$0xff]
      %v4332 = vld [vmem:[%s3856 + $0x361] sm:$0xff]
      %v4333 = vld [vmem:[%s3856 + $0x371] sm:$0xff]
      %v4334 = vld [vmem:[%s3856 + $0x379] sm:$0xff]
      %v4335 = vld [vmem:[%s3856 + $0x381] sm:$0xff]
      %v4336 = vld [vmem:[%s3856 + $0x389] sm:$0xff]
      %v4337 = vld [vmem:[%s3856 + $0x399] sm:$0xff]
      %v4338 = vld [vmem:[%s3856 + $0x3a1] sm:$0xff]
      %v4339 = vld [vmem:[%s3856 + $0x3a9] sm:$0xff]
      %v4340 = vld [vmem:[%s3856 + $0x3b1] sm:$0xff]
      %v4341 = vld [vmem:[%s3856 + $0x3c1] sm:$0xff]
      %v4342 = vld [vmem:[%s3856 + $0x3c9] sm:$0xff]
      %v4343 = vld [vmem:[%s3856 + $0x3d1] sm:$0xff]
      %v4344 = vld [vmem:[%s3856 + $0x3d9] sm:$0xff]
      %v4345 = vld [vmem:[%s3856 + $0x3e9] sm:$0xff]
      %v4346 = vld [vmem:[%s3856 + $0x3f1] sm:$0xff]
      %v4347 = vld [vmem:[%s3856 + $0x3f9] sm:$0xff]
      %v4348 = vld [vmem:[%s3856 + $0x401] sm:$0xff]
      %v4349 = vld [vmem:[%s3856 + $0x411] sm:$0xff]
      %v4350 = vld [vmem:[%s3856 + $0x419] sm:$0xff]
      %v4351 = vld [vmem:[%s3856 + $0x421] sm:$0xff]
      %v4352 = vld [vmem:[%s3856 + $0x429] sm:$0xff]
      %v4353 = vld [vmem:[%s3856 + $0x439] sm:$0xff]
      %v4354 = vld [vmem:[%s3856 + $0x441] sm:$0xff]
      %v4355 = vld [vmem:[%s3856 + $0x449] sm:$0xff]
      %v4356 = vld [vmem:[%s3856 + $0x451] sm:$0xff]
      %v4357 = vld [vmem:[%s3856 + $0x461] sm:$0xff]
      %v4358 = vld [vmem:[%s3856 + $0x469] sm:$0xff]
      %v4359 = vld [vmem:[%s3856 + $0x471] sm:$0xff]
      %v4360 = vld [vmem:[%s3856 + $0x479] sm:$0xff]
      %v4361 = vld [vmem:[%s3856 + $0x489] sm:$0xff]
      %v4362 = vld [vmem:[%s3856 + $0x491] sm:$0xff]
      %v4363 = vld [vmem:[%s3856 + $0x499] sm:$0xff]
      %v4364 = vld [vmem:[%s3856 + $0x4a1] sm:$0xff]
      %v4365 = vld [vmem:[%s3856 + $0x4b1] sm:$0xff]
      %v4366 = vld [vmem:[%s3856 + $0x4b9] sm:$0xff]
      %v4367 = vld [vmem:[%s3856 + $0x4c1] sm:$0xff]
      %v4368 = vld [vmem:[%s3856 + $0x4c9] sm:$0xff]
      %v4369 = vld [vmem:[%s3856 + $0x4d9] sm:$0xff]
      %v4370 = vld [vmem:[%s3856 + $0x4e1] sm:$0xff]
      %v4371 = vld [vmem:[%s3856 + $0x4e9] sm:$0xff]
      %v4372 = vld [vmem:[%s3856 + $0x4f1] sm:$0xff]
      %v4373 = vlaneseq
      %v4374 = vshrl.u32 %v4373, 7
      %v4375 = vsub.s32 1, %v4374
      %v4376 = vrot.slane %v1527, %v4375
      %v4377 = vmul.f32 %v4245, %v4376
      %v4378 = vmul.f32 %v4246, %v4376
      %v4379 = vmul.f32 %v4247, %v4376
      %v4380 = vmul.f32 %v4248, %v4376
      %v4381 = vmul.f32 %v4249, %v4376
      %v4382 = vmul.f32 %v4250, %v4376
      %v4383 = vmul.f32 %v4251, %v4376
      %v4384 = vmul.f32 %v4252, %v4376
      %v4385 = vmul.f32 %v4253, %v4376
      %v4386 = vmul.f32 %v4254, %v4376
      %v4387 = vmul.f32 %v4255, %v4376
      %v4388 = vmul.f32 %v4256, %v4376
      %v4389 = vmul.f32 %v4257, %v4376
      %v4390 = vmul.f32 %v4258, %v4376
      %v4391 = vmul.f32 %v4259, %v4376
      %v4392 = vmul.f32 %v4260, %v4376
      %v4393 = vmul.f32 %v4261, %v4376
      %v4394 = vmul.f32 %v4262, %v4376
      %v4395 = vmul.f32 %v4263, %v4376
      %v4396 = vmul.f32 %v4264, %v4376
      %v4397 = vmul.f32 %v4265, %v4376
      %v4398 = vmul.f32 %v4266, %v4376
      %v4399 = vmul.f32 %v4267, %v4376
      %v4400 = vmul.f32 %v4268, %v4376
      %v4401 = vmul.f32 %v4269, %v4376
      %v4402 = vmul.f32 %v4270, %v4376
      %v4403 = vmul.f32 %v4271, %v4376
      %v4404 = vmul.f32 %v4272, %v4376
      %v4405 = vmul.f32 %v4273, %v4376
      %v4406 = vmul.f32 %v4274, %v4376
      %v4407 = vmul.f32 %v4275, %v4376
      %v4408 = vmul.f32 %v4276, %v4376
      %v4409 = vmul.f32 %v4277, %v4376
      %v4410 = vmul.f32 %v4278, %v4376
      %v4411 = vmul.f32 %v4279, %v4376
      %v4412 = vmul.f32 %v4280, %v4376
      %v4413 = vmul.f32 %v4281, %v4376
      %v4414 = vmul.f32 %v4282, %v4376
      %v4415 = vmul.f32 %v4283, %v4376
      %v4416 = vmul.f32 %v4284, %v4376
      %v4417 = vmul.f32 %v4285, %v4376
      %v4418 = vmul.f32 %v4286, %v4376
      %v4419 = vmul.f32 %v4287, %v4376
      %v4420 = vmul.f32 %v4288, %v4376
      %v4421 = vmul.f32 %v4289, %v4376
      %v4422 = vmul.f32 %v4290, %v4376
      %v4423 = vmul.f32 %v4291, %v4376
      %v4424 = vmul.f32 %v4292, %v4376
      %v4425 = vmul.f32 %v4293, %v4376
      %v4426 = vmul.f32 %v4294, %v4376
      %v4427 = vmul.f32 %v4295, %v4376
      %v4428 = vmul.f32 %v4296, %v4376
      %v4429 = vmul.f32 %v4297, %v4376
      %v4430 = vmul.f32 %v4298, %v4376
      %v4431 = vmul.f32 %v4299, %v4376
      %v4432 = vmul.f32 %v4300, %v4376
      %v4433 = vmul.f32 %v4301, %v4376
      %v4434 = vmul.f32 %v4302, %v4376
      %v4435 = vmul.f32 %v4303, %v4376
      %v4436 = vmul.f32 %v4304, %v4376
      %v4437 = vmul.f32 %v4305, %v4376
      %v4438 = vmul.f32 %v4306, %v4376
      %v4439 = vmul.f32 %v4307, %v4376
      %v4440 = vmul.f32 %v4308, %v4376
      %v4441 = vmul.f32 %v4309, %v4376
      %v4442 = vmul.f32 %v4310, %v4376
      %v4443 = vmul.f32 %v4311, %v4376
      %v4444 = vmul.f32 %v4312, %v4376
      %v4445 = vmul.f32 %v4313, %v4376
      %v4446 = vmul.f32 %v4314, %v4376
      %v4447 = vmul.f32 %v4315, %v4376
      %v4448 = vmul.f32 %v4316, %v4376
      %v4449 = vmul.f32 %v4317, %v4376
      %v4450 = vmul.f32 %v4318, %v4376
      %v4451 = vmul.f32 %v4319, %v4376
      %v4452 = vmul.f32 %v4320, %v4376
      %v4453 = vmul.f32 %v4321, %v4376
      %v4454 = vmul.f32 %v4322, %v4376
      %v4455 = vmul.f32 %v4323, %v4376
      %v4456 = vmul.f32 %v4324, %v4376
      %v4457 = vmul.f32 %v4325, %v4376
      %v4458 = vmul.f32 %v4326, %v4376
      %v4459 = vmul.f32 %v4327, %v4376
      %v4460 = vmul.f32 %v4328, %v4376
      %v4461 = vmul.f32 %v4329, %v4376
      %v4462 = vmul.f32 %v4330, %v4376
      %v4463 = vmul.f32 %v4331, %v4376
      %v4464 = vmul.f32 %v4332, %v4376
      %v4465 = vmul.f32 %v4333, %v4376
      %v4466 = vmul.f32 %v4334, %v4376
      %v4467 = vmul.f32 %v4335, %v4376
      %v4468 = vmul.f32 %v4336, %v4376
      %v4469 = vmul.f32 %v4337, %v4376
      %v4470 = vmul.f32 %v4338, %v4376
      %v4471 = vmul.f32 %v4339, %v4376
      %v4472 = vmul.f32 %v4340, %v4376
      %v4473 = vmul.f32 %v4341, %v4376
      %v4474 = vmul.f32 %v4342, %v4376
      %v4475 = vmul.f32 %v4343, %v4376
      %v4476 = vmul.f32 %v4344, %v4376
      %v4477 = vmul.f32 %v4345, %v4376
      %v4478 = vmul.f32 %v4346, %v4376
      %v4479 = vmul.f32 %v4347, %v4376
      %v4480 = vmul.f32 %v4348, %v4376
      %v4481 = vmul.f32 %v4349, %v4376
      %v4482 = vmul.f32 %v4350, %v4376
      %v4483 = vmul.f32 %v4351, %v4376
      %v4484 = vmul.f32 %v4352, %v4376
      %v4485 = vmul.f32 %v4353, %v4376
      %v4486 = vmul.f32 %v4354, %v4376
      %v4487 = vmul.f32 %v4355, %v4376
      %v4488 = vmul.f32 %v4356, %v4376
      %v4489 = vmul.f32 %v4357, %v4376
      %v4490 = vmul.f32 %v4358, %v4376
      %v4491 = vmul.f32 %v4359, %v4376
      %v4492 = vmul.f32 %v4360, %v4376
      %v4493 = vmul.f32 %v4361, %v4376
      %v4494 = vmul.f32 %v4362, %v4376
      %v4495 = vmul.f32 %v4363, %v4376
      %v4496 = vmul.f32 %v4364, %v4376
      %v4497 = vmul.f32 %v4365, %v4376
      %v4498 = vmul.f32 %v4366, %v4376
      %v4499 = vmul.f32 %v4367, %v4376
      %v4500 = vmul.f32 %v4368, %v4376
      %v4501 = vmul.f32 %v4369, %v4376
      %v4502 = vmul.f32 %v4370, %v4376
      %v4503 = vmul.f32 %v4371, %v4376
      %v4504 = vmul.f32 %v4372, %v4376
      %v4505 = vadd.f32 %v4117, %v4377
      %v4506 = vadd.f32 %v4118, %v4378
      %v4507 = vadd.f32 %v4119, %v4379
      %v4508 = vadd.f32 %v4120, %v4380
      %v4509 = vadd.f32 %v4121, %v4381
      %v4510 = vadd.f32 %v4122, %v4382
      %v4511 = vadd.f32 %v4123, %v4383
      %v4512 = vadd.f32 %v4124, %v4384
      %v4513 = vadd.f32 %v4125, %v4385
      %v4514 = vadd.f32 %v4126, %v4386
      %v4515 = vadd.f32 %v4127, %v4387
      %v4516 = vadd.f32 %v4128, %v4388
      %v4517 = vadd.f32 %v4129, %v4389
      %v4518 = vadd.f32 %v4130, %v4390
      %v4519 = vadd.f32 %v4131, %v4391
      %v4520 = vadd.f32 %v4132, %v4392
      %v4521 = vadd.f32 %v4133, %v4393
      %v4522 = vadd.f32 %v4134, %v4394
      %v4523 = vadd.f32 %v4135, %v4395
      %v4524 = vadd.f32 %v4136, %v4396
      %v4525 = vadd.f32 %v4137, %v4397
      %v4526 = vadd.f32 %v4138, %v4398
      %v4527 = vadd.f32 %v4139, %v4399
      %v4528 = vadd.f32 %v4140, %v4400
      %v4529 = vadd.f32 %v4141, %v4401
      %v4530 = vadd.f32 %v4142, %v4402
      %v4531 = vadd.f32 %v4143, %v4403
      %v4532 = vadd.f32 %v4144, %v4404
      %v4533 = vadd.f32 %v4145, %v4405
      %v4534 = vadd.f32 %v4146, %v4406
      %v4535 = vadd.f32 %v4147, %v4407
      %v4536 = vadd.f32 %v4148, %v4408
      %v4537 = vadd.f32 %v4149, %v4409
      %v4538 = vadd.f32 %v4150, %v4410
      %v4539 = vadd.f32 %v4151, %v4411
      %v4540 = vadd.f32 %v4152, %v4412
      %v4541 = vadd.f32 %v4153, %v4413
      %v4542 = vadd.f32 %v4154, %v4414
      %v4543 = vadd.f32 %v4155, %v4415
      %v4544 = vadd.f32 %v4156, %v4416
      %v4545 = vadd.f32 %v4157, %v4417
      %v4546 = vadd.f32 %v4158, %v4418
      %v4547 = vadd.f32 %v4159, %v4419
      %v4548 = vadd.f32 %v4160, %v4420
      %v4549 = vadd.f32 %v4161, %v4421
      %v4550 = vadd.f32 %v4162, %v4422
      %v4551 = vadd.f32 %v4163, %v4423
      %v4552 = vadd.f32 %v4164, %v4424
      %v4553 = vadd.f32 %v4165, %v4425
      %v4554 = vadd.f32 %v4166, %v4426
      %v4555 = vadd.f32 %v4167, %v4427
      %v4556 = vadd.f32 %v4168, %v4428
      %v4557 = vadd.f32 %v4169, %v4429
      %v4558 = vadd.f32 %v4170, %v4430
      %v4559 = vadd.f32 %v4171, %v4431
      %v4560 = vadd.f32 %v4172, %v4432
      %v4561 = vadd.f32 %v4173, %v4433
      %v4562 = vadd.f32 %v4174, %v4434
      %v4563 = vadd.f32 %v4175, %v4435
      %v4564 = vadd.f32 %v4176, %v4436
      %v4565 = vadd.f32 %v4177, %v4437
      %v4566 = vadd.f32 %v4178, %v4438
      %v4567 = vadd.f32 %v4179, %v4439
      %v4568 = vadd.f32 %v4180, %v4440
      %v4569 = vadd.f32 %v4181, %v4441
      %v4570 = vadd.f32 %v4182, %v4442
      %v4571 = vadd.f32 %v4183, %v4443
      %v4572 = vadd.f32 %v4184, %v4444
      %v4573 = vadd.f32 %v4185, %v4445
      %v4574 = vadd.f32 %v4186, %v4446
      %v4575 = vadd.f32 %v4187, %v4447
      %v4576 = vadd.f32 %v4188, %v4448
      %v4577 = vadd.f32 %v4189, %v4449
      %v4578 = vadd.f32 %v4190, %v4450
      %v4579 = vadd.f32 %v4191, %v4451
      %v4580 = vadd.f32 %v4192, %v4452
      %v4581 = vadd.f32 %v4193, %v4453
      %v4582 = vadd.f32 %v4194, %v4454
      %v4583 = vadd.f32 %v4195, %v4455
      %v4584 = vadd.f32 %v4196, %v4456
      %v4585 = vadd.f32 %v4197, %v4457
      %v4586 = vadd.f32 %v4198, %v4458
      %v4587 = vadd.f32 %v4199, %v4459
      %v4588 = vadd.f32 %v4200, %v4460
      %v4589 = vadd.f32 %v4201, %v4461
      %v4590 = vadd.f32 %v4202, %v4462
      %v4591 = vadd.f32 %v4203, %v4463
      %v4592 = vadd.f32 %v4204, %v4464
      %v4593 = vadd.f32 %v4205, %v4465
      %v4594 = vadd.f32 %v4206, %v4466
      %v4595 = vadd.f32 %v4207, %v4467
      %v4596 = vadd.f32 %v4208, %v4468
      %v4597 = vadd.f32 %v4209, %v4469
      %v4598 = vadd.f32 %v4210, %v4470
      %v4599 = vadd.f32 %v4211, %v4471
      %v4600 = vadd.f32 %v4212, %v4472
      %v4601 = vadd.f32 %v4213, %v4473
      %v4602 = vadd.f32 %v4214, %v4474
      %v4603 = vadd.f32 %v4215, %v4475
      %v4604 = vadd.f32 %v4216, %v4476
      %v4605 = vadd.f32 %v4217, %v4477
      %v4606 = vadd.f32 %v4218, %v4478
      %v4607 = vadd.f32 %v4219, %v4479
      %v4608 = vadd.f32 %v4220, %v4480
      %v4609 = vadd.f32 %v4221, %v4481
      %v4610 = vadd.f32 %v4222, %v4482
      %v4611 = vadd.f32 %v4223, %v4483
      %v4612 = vadd.f32 %v4224, %v4484
      %v4613 = vadd.f32 %v4225, %v4485
      %v4614 = vadd.f32 %v4226, %v4486
      %v4615 = vadd.f32 %v4227, %v4487
      %v4616 = vadd.f32 %v4228, %v4488
      %v4617 = vadd.f32 %v4229, %v4489
      %v4618 = vadd.f32 %v4230, %v4490
      %v4619 = vadd.f32 %v4231, %v4491
      %v4620 = vadd.f32 %v4232, %v4492
      %v4621 = vadd.f32 %v4233, %v4493
      %v4622 = vadd.f32 %v4234, %v4494
      %v4623 = vadd.f32 %v4235, %v4495
      %v4624 = vadd.f32 %v4236, %v4496
      %v4625 = vadd.f32 %v4237, %v4497
      %v4626 = vadd.f32 %v4238, %v4498
      %v4627 = vadd.f32 %v4239, %v4499
      %v4628 = vadd.f32 %v4240, %v4500
      %v4629 = vadd.f32 %v4241, %v4501
      %v4630 = vadd.f32 %v4242, %v4502
      %v4631 = vadd.f32 %v4243, %v4503
      %v4632 = vadd.f32 %v4244, %v4504
      %v4633 = vld [vmem:[%s3856 + $0x2] sm:$0xff]
      %v4634 = vld [vmem:[%s3856 + $0xa] sm:$0xff]
      %v4635 = vld [vmem:[%s3856 + $0x12] sm:$0xff]
      %v4636 = vld [vmem:[%s3856 + $0x1a] sm:$0xff]
      %v4637 = vld [vmem:[%s3856 + $0x2a] sm:$0xff]
      %v4638 = vld [vmem:[%s3856 + $0x32] sm:$0xff]
      %v4639 = vld [vmem:[%s3856 + $0x3a] sm:$0xff]
      %v4640 = vld [vmem:[%s3856 + $0x42] sm:$0xff]
      %v4641 = vld [vmem:[%s3856 + $0x52] sm:$0xff]
      %v4642 = vld [vmem:[%s3856 + $0x5a] sm:$0xff]
      %v4643 = vld [vmem:[%s3856 + $0x62] sm:$0xff]
      %v4644 = vld [vmem:[%s3856 + $0x6a] sm:$0xff]
      %v4645 = vld [vmem:[%s3856 + $0x7a] sm:$0xff]
      %v4646 = vld [vmem:[%s3856 + $0x82] sm:$0xff]
      %v4647 = vld [vmem:[%s3856 + $0x8a] sm:$0xff]
      %v4648 = vld [vmem:[%s3856 + $0x92] sm:$0xff]
      %v4649 = vld [vmem:[%s3856 + $0xa2] sm:$0xff]
      %v4650 = vld [vmem:[%s3856 + $0xaa] sm:$0xff]
      %v4651 = vld [vmem:[%s3856 + $0xb2] sm:$0xff]
      %v4652 = vld [vmem:[%s3856 + $0xba] sm:$0xff]
      %v4653 = vld [vmem:[%s3856 + $0xca] sm:$0xff]
      %v4654 = vld [vmem:[%s3856 + $0xd2] sm:$0xff]
      %v4655 = vld [vmem:[%s3856 + $0xda] sm:$0xff]
      %v4656 = vld [vmem:[%s3856 + $0xe2] sm:$0xff]
      %v4657 = vld [vmem:[%s3856 + $0xf2] sm:$0xff]
      %v4658 = vld [vmem:[%s3856 + $0xfa] sm:$0xff]
      %v4659 = vld [vmem:[%s3856 + $0x102] sm:$0xff]
      %v4660 = vld [vmem:[%s3856 + $0x10a] sm:$0xff]
      %v4661 = vld [vmem:[%s3856 + $0x11a] sm:$0xff]
      %v4662 = vld [vmem:[%s3856 + $0x122] sm:$0xff]
      %v4663 = vld [vmem:[%s3856 + $0x12a] sm:$0xff]
      %v4664 = vld [vmem:[%s3856 + $0x132] sm:$0xff]
      %v4665 = vld [vmem:[%s3856 + $0x142] sm:$0xff]
      %v4666 = vld [vmem:[%s3856 + $0x14a] sm:$0xff]
      %v4667 = vld [vmem:[%s3856 + $0x152] sm:$0xff]
      %v4668 = vld [vmem:[%s3856 + $0x15a] sm:$0xff]
      %v4669 = vld [vmem:[%s3856 + $0x16a] sm:$0xff]
      %v4670 = vld [vmem:[%s3856 + $0x172] sm:$0xff]
      %v4671 = vld [vmem:[%s3856 + $0x17a] sm:$0xff]
      %v4672 = vld [vmem:[%s3856 + $0x182] sm:$0xff]
      %v4673 = vld [vmem:[%s3856 + $0x192] sm:$0xff]
      %v4674 = vld [vmem:[%s3856 + $0x19a] sm:$0xff]
      %v4675 = vld [vmem:[%s3856 + $0x1a2] sm:$0xff]
      %v4676 = vld [vmem:[%s3856 + $0x1aa] sm:$0xff]
      %v4677 = vld [vmem:[%s3856 + $0x1ba] sm:$0xff]
      %v4678 = vld [vmem:[%s3856 + $0x1c2] sm:$0xff]
      %v4679 = vld [vmem:[%s3856 + $0x1ca] sm:$0xff]
      %v4680 = vld [vmem:[%s3856 + $0x1d2] sm:$0xff]
      %v4681 = vld [vmem:[%s3856 + $0x1e2] sm:$0xff]
      %v4682 = vld [vmem:[%s3856 + $0x1ea] sm:$0xff]
      %v4683 = vld [vmem:[%s3856 + $0x1f2] sm:$0xff]
      %v4684 = vld [vmem:[%s3856 + $0x1fa] sm:$0xff]
      %v4685 = vld [vmem:[%s3856 + $0x20a] sm:$0xff]
      %v4686 = vld [vmem:[%s3856 + $0x212] sm:$0xff]
      %v4687 = vld [vmem:[%s3856 + $0x21a] sm:$0xff]
      %v4688 = vld [vmem:[%s3856 + $0x222] sm:$0xff]
      %v4689 = vld [vmem:[%s3856 + $0x232] sm:$0xff]
      %v4690 = vld [vmem:[%s3856 + $0x23a] sm:$0xff]
      %v4691 = vld [vmem:[%s3856 + $0x242] sm:$0xff]
      %v4692 = vld [vmem:[%s3856 + $0x24a] sm:$0xff]
      %v4693 = vld [vmem:[%s3856 + $0x25a] sm:$0xff]
      %v4694 = vld [vmem:[%s3856 + $0x262] sm:$0xff]
      %v4695 = vld [vmem:[%s3856 + $0x26a] sm:$0xff]
      %v4696 = vld [vmem:[%s3856 + $0x272] sm:$0xff]
      %v4697 = vld [vmem:[%s3856 + $0x282] sm:$0xff]
      %v4698 = vld [vmem:[%s3856 + $0x28a] sm:$0xff]
      %v4699 = vld [vmem:[%s3856 + $0x292] sm:$0xff]
      %v4700 = vld [vmem:[%s3856 + $0x29a] sm:$0xff]
      %v4701 = vld [vmem:[%s3856 + $0x2aa] sm:$0xff]
      %v4702 = vld [vmem:[%s3856 + $0x2b2] sm:$0xff]
      %v4703 = vld [vmem:[%s3856 + $0x2ba] sm:$0xff]
      %v4704 = vld [vmem:[%s3856 + $0x2c2] sm:$0xff]
      %v4705 = vld [vmem:[%s3856 + $0x2d2] sm:$0xff]
      %v4706 = vld [vmem:[%s3856 + $0x2da] sm:$0xff]
      %v4707 = vld [vmem:[%s3856 + $0x2e2] sm:$0xff]
      %v4708 = vld [vmem:[%s3856 + $0x2ea] sm:$0xff]
      %v4709 = vld [vmem:[%s3856 + $0x2fa] sm:$0xff]
      %v4710 = vld [vmem:[%s3856 + $0x302] sm:$0xff]
      %v4711 = vld [vmem:[%s3856 + $0x30a] sm:$0xff]
      %v4712 = vld [vmem:[%s3856 + $0x312] sm:$0xff]
      %v4713 = vld [vmem:[%s3856 + $0x322] sm:$0xff]
      %v4714 = vld [vmem:[%s3856 + $0x32a] sm:$0xff]
      %v4715 = vld [vmem:[%s3856 + $0x332] sm:$0xff]
      %v4716 = vld [vmem:[%s3856 + $0x33a] sm:$0xff]
      %v4717 = vld [vmem:[%s3856 + $0x34a] sm:$0xff]
      %v4718 = vld [vmem:[%s3856 + $0x352] sm:$0xff]
      %v4719 = vld [vmem:[%s3856 + $0x35a] sm:$0xff]
      %v4720 = vld [vmem:[%s3856 + $0x362] sm:$0xff]
      %v4721 = vld [vmem:[%s3856 + $0x372] sm:$0xff]
      %v4722 = vld [vmem:[%s3856 + $0x37a] sm:$0xff]
      %v4723 = vld [vmem:[%s3856 + $0x382] sm:$0xff]
      %v4724 = vld [vmem:[%s3856 + $0x38a] sm:$0xff]
      %v4725 = vld [vmem:[%s3856 + $0x39a] sm:$0xff]
      %v4726 = vld [vmem:[%s3856 + $0x3a2] sm:$0xff]
      %v4727 = vld [vmem:[%s3856 + $0x3aa] sm:$0xff]
      %v4728 = vld [vmem:[%s3856 + $0x3b2] sm:$0xff]
      %v4729 = vld [vmem:[%s3856 + $0x3c2] sm:$0xff]
      %v4730 = vld [vmem:[%s3856 + $0x3ca] sm:$0xff]
      %v4731 = vld [vmem:[%s3856 + $0x3d2] sm:$0xff]
      %v4732 = vld [vmem:[%s3856 + $0x3da] sm:$0xff]
      %v4733 = vld [vmem:[%s3856 + $0x3ea] sm:$0xff]
      %v4734 = vld [vmem:[%s3856 + $0x3f2] sm:$0xff]
      %v4735 = vld [vmem:[%s3856 + $0x3fa] sm:$0xff]
      %v4736 = vld [vmem:[%s3856 + $0x402] sm:$0xff]
      %v4737 = vld [vmem:[%s3856 + $0x412] sm:$0xff]
      %v4738 = vld [vmem:[%s3856 + $0x41a] sm:$0xff]
      %v4739 = vld [vmem:[%s3856 + $0x422] sm:$0xff]
      %v4740 = vld [vmem:[%s3856 + $0x42a] sm:$0xff]
      %v4741 = vld [vmem:[%s3856 + $0x43a] sm:$0xff]
      %v4742 = vld [vmem:[%s3856 + $0x442] sm:$0xff]
      %v4743 = vld [vmem:[%s3856 + $0x44a] sm:$0xff]
      %v4744 = vld [vmem:[%s3856 + $0x452] sm:$0xff]
      %v4745 = vld [vmem:[%s3856 + $0x462] sm:$0xff]
      %v4746 = vld [vmem:[%s3856 + $0x46a] sm:$0xff]
      %v4747 = vld [vmem:[%s3856 + $0x472] sm:$0xff]
      %v4748 = vld [vmem:[%s3856 + $0x47a] sm:$0xff]
      %v4749 = vld [vmem:[%s3856 + $0x48a] sm:$0xff]
      %v4750 = vld [vmem:[%s3856 + $0x492] sm:$0xff]
      %v4751 = vld [vmem:[%s3856 + $0x49a] sm:$0xff]
      %v4752 = vld [vmem:[%s3856 + $0x4a2] sm:$0xff]
      %v4753 = vld [vmem:[%s3856 + $0x4b2] sm:$0xff]
      %v4754 = vld [vmem:[%s3856 + $0x4ba] sm:$0xff]
      %v4755 = vld [vmem:[%s3856 + $0x4c2] sm:$0xff]
      %v4756 = vld [vmem:[%s3856 + $0x4ca] sm:$0xff]
      %v4757 = vld [vmem:[%s3856 + $0x4da] sm:$0xff]
      %v4758 = vld [vmem:[%s3856 + $0x4e2] sm:$0xff]
      %v4759 = vld [vmem:[%s3856 + $0x4ea] sm:$0xff]
      %v4760 = vld [vmem:[%s3856 + $0x4f2] sm:$0xff]
      %v4761 = vlaneseq
      %v4762 = vshrl.u32 %v4761, 7
      %v4763 = vsub.s32 2, %v4762
      %v4764 = vrot.slane %v1527, %v4763
      %v4765 = vmul.f32 %v4633, %v4764
      %v4766 = vmul.f32 %v4634, %v4764
      %v4767 = vmul.f32 %v4635, %v4764
      %v4768 = vmul.f32 %v4636, %v4764
      %v4769 = vmul.f32 %v4637, %v4764
      %v4770 = vmul.f32 %v4638, %v4764
      %v4771 = vmul.f32 %v4639, %v4764
      %v4772 = vmul.f32 %v4640, %v4764
      %v4773 = vmul.f32 %v4641, %v4764
      %v4774 = vmul.f32 %v4642, %v4764
      %v4775 = vmul.f32 %v4643, %v4764
      %v4776 = vmul.f32 %v4644, %v4764
      %v4777 = vmul.f32 %v4645, %v4764
      %v4778 = vmul.f32 %v4646, %v4764
      %v4779 = vmul.f32 %v4647, %v4764
      %v4780 = vmul.f32 %v4648, %v4764
      %v4781 = vmul.f32 %v4649, %v4764
      %v4782 = vmul.f32 %v4650, %v4764
      %v4783 = vmul.f32 %v4651, %v4764
      %v4784 = vmul.f32 %v4652, %v4764
      %v4785 = vmul.f32 %v4653, %v4764
      %v4786 = vmul.f32 %v4654, %v4764
      %v4787 = vmul.f32 %v4655, %v4764
      %v4788 = vmul.f32 %v4656, %v4764
      %v4789 = vmul.f32 %v4657, %v4764
      %v4790 = vmul.f32 %v4658, %v4764
      %v4791 = vmul.f32 %v4659, %v4764
      %v4792 = vmul.f32 %v4660, %v4764
      %v4793 = vmul.f32 %v4661, %v4764
      %v4794 = vmul.f32 %v4662, %v4764
      %v4795 = vmul.f32 %v4663, %v4764
      %v4796 = vmul.f32 %v4664, %v4764
      %v4797 = vmul.f32 %v4665, %v4764
      %v4798 = vmul.f32 %v4666, %v4764
      %v4799 = vmul.f32 %v4667, %v4764
      %v4800 = vmul.f32 %v4668, %v4764
      %v4801 = vmul.f32 %v4669, %v4764
      %v4802 = vmul.f32 %v4670, %v4764
      %v4803 = vmul.f32 %v4671, %v4764
      %v4804 = vmul.f32 %v4672, %v4764
      %v4805 = vmul.f32 %v4673, %v4764
      %v4806 = vmul.f32 %v4674, %v4764
      %v4807 = vmul.f32 %v4675, %v4764
      %v4808 = vmul.f32 %v4676, %v4764
      %v4809 = vmul.f32 %v4677, %v4764
      %v4810 = vmul.f32 %v4678, %v4764
      %v4811 = vmul.f32 %v4679, %v4764
      %v4812 = vmul.f32 %v4680, %v4764
      %v4813 = vmul.f32 %v4681, %v4764
      %v4814 = vmul.f32 %v4682, %v4764
      %v4815 = vmul.f32 %v4683, %v4764
      %v4816 = vmul.f32 %v4684, %v4764
      %v4817 = vmul.f32 %v4685, %v4764
      %v4818 = vmul.f32 %v4686, %v4764
      %v4819 = vmul.f32 %v4687, %v4764
      %v4820 = vmul.f32 %v4688, %v4764
      %v4821 = vmul.f32 %v4689, %v4764
      %v4822 = vmul.f32 %v4690, %v4764
      %v4823 = vmul.f32 %v4691, %v4764
      %v4824 = vmul.f32 %v4692, %v4764
      %v4825 = vmul.f32 %v4693, %v4764
      %v4826 = vmul.f32 %v4694, %v4764
      %v4827 = vmul.f32 %v4695, %v4764
      %v4828 = vmul.f32 %v4696, %v4764
      %v4829 = vmul.f32 %v4697, %v4764
      %v4830 = vmul.f32 %v4698, %v4764
      %v4831 = vmul.f32 %v4699, %v4764
      %v4832 = vmul.f32 %v4700, %v4764
      %v4833 = vmul.f32 %v4701, %v4764
      %v4834 = vmul.f32 %v4702, %v4764
      %v4835 = vmul.f32 %v4703, %v4764
      %v4836 = vmul.f32 %v4704, %v4764
      %v4837 = vmul.f32 %v4705, %v4764
      %v4838 = vmul.f32 %v4706, %v4764
      %v4839 = vmul.f32 %v4707, %v4764
      %v4840 = vmul.f32 %v4708, %v4764
      %v4841 = vmul.f32 %v4709, %v4764
      %v4842 = vmul.f32 %v4710, %v4764
      %v4843 = vmul.f32 %v4711, %v4764
      %v4844 = vmul.f32 %v4712, %v4764
      %v4845 = vmul.f32 %v4713, %v4764
      %v4846 = vmul.f32 %v4714, %v4764
      %v4847 = vmul.f32 %v4715, %v4764
      %v4848 = vmul.f32 %v4716, %v4764
      %v4849 = vmul.f32 %v4717, %v4764
      %v4850 = vmul.f32 %v4718, %v4764
      %v4851 = vmul.f32 %v4719, %v4764
      %v4852 = vmul.f32 %v4720, %v4764
      %v4853 = vmul.f32 %v4721, %v4764
      %v4854 = vmul.f32 %v4722, %v4764
      %v4855 = vmul.f32 %v4723, %v4764
      %v4856 = vmul.f32 %v4724, %v4764
      %v4857 = vmul.f32 %v4725, %v4764
      %v4858 = vmul.f32 %v4726, %v4764
      %v4859 = vmul.f32 %v4727, %v4764
      %v4860 = vmul.f32 %v4728, %v4764
      %v4861 = vmul.f32 %v4729, %v4764
      %v4862 = vmul.f32 %v4730, %v4764
      %v4863 = vmul.f32 %v4731, %v4764
      %v4864 = vmul.f32 %v4732, %v4764
      %v4865 = vmul.f32 %v4733, %v4764
      %v4866 = vmul.f32 %v4734, %v4764
      %v4867 = vmul.f32 %v4735, %v4764
      %v4868 = vmul.f32 %v4736, %v4764
      %v4869 = vmul.f32 %v4737, %v4764
      %v4870 = vmul.f32 %v4738, %v4764
      %v4871 = vmul.f32 %v4739, %v4764
      %v4872 = vmul.f32 %v4740, %v4764
      %v4873 = vmul.f32 %v4741, %v4764
      %v4874 = vmul.f32 %v4742, %v4764
      %v4875 = vmul.f32 %v4743, %v4764
      %v4876 = vmul.f32 %v4744, %v4764
      %v4877 = vmul.f32 %v4745, %v4764
      %v4878 = vmul.f32 %v4746, %v4764
      %v4879 = vmul.f32 %v4747, %v4764
      %v4880 = vmul.f32 %v4748, %v4764
      %v4881 = vmul.f32 %v4749, %v4764
      %v4882 = vmul.f32 %v4750, %v4764
      %v4883 = vmul.f32 %v4751, %v4764
      %v4884 = vmul.f32 %v4752, %v4764
      %v4885 = vmul.f32 %v4753, %v4764
      %v4886 = vmul.f32 %v4754, %v4764
      %v4887 = vmul.f32 %v4755, %v4764
      %v4888 = vmul.f32 %v4756, %v4764
      %v4889 = vmul.f32 %v4757, %v4764
      %v4890 = vmul.f32 %v4758, %v4764
      %v4891 = vmul.f32 %v4759, %v4764
      %v4892 = vmul.f32 %v4760, %v4764
      %v4893 = vadd.f32 %v4505, %v4765
      %v4894 = vadd.f32 %v4506, %v4766
      %v4895 = vadd.f32 %v4507, %v4767
      %v4896 = vadd.f32 %v4508, %v4768
      %v4897 = vadd.f32 %v4509, %v4769
      %v4898 = vadd.f32 %v4510, %v4770
      %v4899 = vadd.f32 %v4511, %v4771
      %v4900 = vadd.f32 %v4512, %v4772
      %v4901 = vadd.f32 %v4513, %v4773
      %v4902 = vadd.f32 %v4514, %v4774
      %v4903 = vadd.f32 %v4515, %v4775
      %v4904 = vadd.f32 %v4516, %v4776
      %v4905 = vadd.f32 %v4517, %v4777
      %v4906 = vadd.f32 %v4518, %v4778
      %v4907 = vadd.f32 %v4519, %v4779
      %v4908 = vadd.f32 %v4520, %v4780
      %v4909 = vadd.f32 %v4521, %v4781
      %v4910 = vadd.f32 %v4522, %v4782
      %v4911 = vadd.f32 %v4523, %v4783
      %v4912 = vadd.f32 %v4524, %v4784
      %v4913 = vadd.f32 %v4525, %v4785
      %v4914 = vadd.f32 %v4526, %v4786
      %v4915 = vadd.f32 %v4527, %v4787
      %v4916 = vadd.f32 %v4528, %v4788
      %v4917 = vadd.f32 %v4529, %v4789
      %v4918 = vadd.f32 %v4530, %v4790
      %v4919 = vadd.f32 %v4531, %v4791
      %v4920 = vadd.f32 %v4532, %v4792
      %v4921 = vadd.f32 %v4533, %v4793
      %v4922 = vadd.f32 %v4534, %v4794
      %v4923 = vadd.f32 %v4535, %v4795
      %v4924 = vadd.f32 %v4536, %v4796
      %v4925 = vadd.f32 %v4537, %v4797
      %v4926 = vadd.f32 %v4538, %v4798
      %v4927 = vadd.f32 %v4539, %v4799
      %v4928 = vadd.f32 %v4540, %v4800
      %v4929 = vadd.f32 %v4541, %v4801
      %v4930 = vadd.f32 %v4542, %v4802
      %v4931 = vadd.f32 %v4543, %v4803
      %v4932 = vadd.f32 %v4544, %v4804
      %v4933 = vadd.f32 %v4545, %v4805
      %v4934 = vadd.f32 %v4546, %v4806
      %v4935 = vadd.f32 %v4547, %v4807
      %v4936 = vadd.f32 %v4548, %v4808
      %v4937 = vadd.f32 %v4549, %v4809
      %v4938 = vadd.f32 %v4550, %v4810
      %v4939 = vadd.f32 %v4551, %v4811
      %v4940 = vadd.f32 %v4552, %v4812
      %v4941 = vadd.f32 %v4553, %v4813
      %v4942 = vadd.f32 %v4554, %v4814
      %v4943 = vadd.f32 %v4555, %v4815
      %v4944 = vadd.f32 %v4556, %v4816
      %v4945 = vadd.f32 %v4557, %v4817
      %v4946 = vadd.f32 %v4558, %v4818
      %v4947 = vadd.f32 %v4559, %v4819
      %v4948 = vadd.f32 %v4560, %v4820
      %v4949 = vadd.f32 %v4561, %v4821
      %v4950 = vadd.f32 %v4562, %v4822
      %v4951 = vadd.f32 %v4563, %v4823
      %v4952 = vadd.f32 %v4564, %v4824
      %v4953 = vadd.f32 %v4565, %v4825
      %v4954 = vadd.f32 %v4566, %v4826
      %v4955 = vadd.f32 %v4567, %v4827
      %v4956 = vadd.f32 %v4568, %v4828
      %v4957 = vadd.f32 %v4569, %v4829
      %v4958 = vadd.f32 %v4570, %v4830
      %v4959 = vadd.f32 %v4571, %v4831
      %v4960 = vadd.f32 %v4572, %v4832
      %v4961 = vadd.f32 %v4573, %v4833
      %v4962 = vadd.f32 %v4574, %v4834
      %v4963 = vadd.f32 %v4575, %v4835
      %v4964 = vadd.f32 %v4576, %v4836
      %v4965 = vadd.f32 %v4577, %v4837
      %v4966 = vadd.f32 %v4578, %v4838
      %v4967 = vadd.f32 %v4579, %v4839
      %v4968 = vadd.f32 %v4580, %v4840
      %v4969 = vadd.f32 %v4581, %v4841
      %v4970 = vadd.f32 %v4582, %v4842
      %v4971 = vadd.f32 %v4583, %v4843
      %v4972 = vadd.f32 %v4584, %v4844
      %v4973 = vadd.f32 %v4585, %v4845
      %v4974 = vadd.f32 %v4586, %v4846
      %v4975 = vadd.f32 %v4587, %v4847
      %v4976 = vadd.f32 %v4588, %v4848
      %v4977 = vadd.f32 %v4589, %v4849
      %v4978 = vadd.f32 %v4590, %v4850
      %v4979 = vadd.f32 %v4591, %v4851
      %v4980 = vadd.f32 %v4592, %v4852
      %v4981 = vadd.f32 %v4593, %v4853
      %v4982 = vadd.f32 %v4594, %v4854
      %v4983 = vadd.f32 %v4595, %v4855
      %v4984 = vadd.f32 %v4596, %v4856
      %v4985 = vadd.f32 %v4597, %v4857
      %v4986 = vadd.f32 %v4598, %v4858
      %v4987 = vadd.f32 %v4599, %v4859
      %v4988 = vadd.f32 %v4600, %v4860
      %v4989 = vadd.f32 %v4601, %v4861
      %v4990 = vadd.f32 %v4602, %v4862
      %v4991 = vadd.f32 %v4603, %v4863
      %v4992 = vadd.f32 %v4604, %v4864
      %v4993 = vadd.f32 %v4605, %v4865
      %v4994 = vadd.f32 %v4606, %v4866
      %v4995 = vadd.f32 %v4607, %v4867
      %v4996 = vadd.f32 %v4608, %v4868
      %v4997 = vadd.f32 %v4609, %v4869
      %v4998 = vadd.f32 %v4610, %v4870
      %v4999 = vadd.f32 %v4611, %v4871
      %v5000 = vadd.f32 %v4612, %v4872
      %v5001 = vadd.f32 %v4613, %v4873
      %v5002 = vadd.f32 %v4614, %v4874
      %v5003 = vadd.f32 %v4615, %v4875
      %v5004 = vadd.f32 %v4616, %v4876
      %v5005 = vadd.f32 %v4617, %v4877
      %v5006 = vadd.f32 %v4618, %v4878
      %v5007 = vadd.f32 %v4619, %v4879
      %v5008 = vadd.f32 %v4620, %v4880
      %v5009 = vadd.f32 %v4621, %v4881
      %v5010 = vadd.f32 %v4622, %v4882
      %v5011 = vadd.f32 %v4623, %v4883
      %v5012 = vadd.f32 %v4624, %v4884
      %v5013 = vadd.f32 %v4625, %v4885
      %v5014 = vadd.f32 %v4626, %v4886
      %v5015 = vadd.f32 %v4627, %v4887
      %v5016 = vadd.f32 %v4628, %v4888
      %v5017 = vadd.f32 %v4629, %v4889
      %v5018 = vadd.f32 %v4630, %v4890
      %v5019 = vadd.f32 %v4631, %v4891
      %v5020 = vadd.f32 %v4632, %v4892
      %v5021 = vld [vmem:[%s3] sm:$0x1]
      %v5023 = vlaneseq
      %v5024 = vshrl.u32 %v5023, 7
      %v5025 = vsub.s32 0, %v5024
      %v5026 = vrot.slane %v5021, %v5025
      %v5028 = vadd.f32 %v4893, %v5026
      %v5029 = vadd.f32 %v4894, %v5026
      %v5030 = vadd.f32 %v4895, %v5026
      %v5031 = vadd.f32 %v4896, %v5026
      %v5032 = vadd.f32 %v4897, %v5026
      %v5033 = vadd.f32 %v4898, %v5026
      %v5034 = vadd.f32 %v4899, %v5026
      %v5035 = vadd.f32 %v4900, %v5026
      %v5036 = vadd.f32 %v4901, %v5026
      %v5037 = vadd.f32 %v4902, %v5026
      %v5038 = vadd.f32 %v4903, %v5026
      %v5039 = vadd.f32 %v4904, %v5026
      %v5040 = vadd.f32 %v4905, %v5026
      %v5041 = vadd.f32 %v4906, %v5026
      %v5042 = vadd.f32 %v4907, %v5026
      %v5043 = vadd.f32 %v4908, %v5026
      %v5044 = vadd.f32 %v4909, %v5026
      %v5045 = vadd.f32 %v4910, %v5026
      %v5046 = vadd.f32 %v4911, %v5026
      %v5047 = vadd.f32 %v4912, %v5026
      %v5048 = vadd.f32 %v4913, %v5026
      %v5049 = vadd.f32 %v4914, %v5026
      %v5050 = vadd.f32 %v4915, %v5026
      %v5051 = vadd.f32 %v4916, %v5026
      %v5052 = vadd.f32 %v4917, %v5026
      %v5053 = vadd.f32 %v4918, %v5026
      %v5054 = vadd.f32 %v4919, %v5026
      %v5055 = vadd.f32 %v4920, %v5026
      %v5056 = vadd.f32 %v4921, %v5026
      %v5057 = vadd.f32 %v4922, %v5026
      %v5058 = vadd.f32 %v4923, %v5026
      %v5059 = vadd.f32 %v4924, %v5026
      %v5060 = vadd.f32 %v4925, %v5026
      %v5061 = vadd.f32 %v4926, %v5026
      %v5062 = vadd.f32 %v4927, %v5026
      %v5063 = vadd.f32 %v4928, %v5026
      %v5064 = vadd.f32 %v4929, %v5026
      %v5065 = vadd.f32 %v4930, %v5026
      %v5066 = vadd.f32 %v4931, %v5026
      %v5067 = vadd.f32 %v4932, %v5026
      %v5068 = vadd.f32 %v4933, %v5026
      %v5069 = vadd.f32 %v4934, %v5026
      %v5070 = vadd.f32 %v4935, %v5026
      %v5071 = vadd.f32 %v4936, %v5026
      %v5072 = vadd.f32 %v4937, %v5026
      %v5073 = vadd.f32 %v4938, %v5026
      %v5074 = vadd.f32 %v4939, %v5026
      %v5075 = vadd.f32 %v4940, %v5026
      %v5076 = vadd.f32 %v4941, %v5026
      %v5077 = vadd.f32 %v4942, %v5026
      %v5078 = vadd.f32 %v4943, %v5026
      %v5079 = vadd.f32 %v4944, %v5026
      %v5080 = vadd.f32 %v4945, %v5026
      %v5081 = vadd.f32 %v4946, %v5026
      %v5082 = vadd.f32 %v4947, %v5026
      %v5083 = vadd.f32 %v4948, %v5026
      %v5084 = vadd.f32 %v4949, %v5026
      %v5085 = vadd.f32 %v4950, %v5026
      %v5086 = vadd.f32 %v4951, %v5026
      %v5087 = vadd.f32 %v4952, %v5026
      %v5088 = vadd.f32 %v4953, %v5026
      %v5089 = vadd.f32 %v4954, %v5026
      %v5090 = vadd.f32 %v4955, %v5026
      %v5091 = vadd.f32 %v4956, %v5026
      %v5092 = vadd.f32 %v4957, %v5026
      %v5093 = vadd.f32 %v4958, %v5026
      %v5094 = vadd.f32 %v4959, %v5026
      %v5095 = vadd.f32 %v4960, %v5026
      %v5096 = vadd.f32 %v4961, %v5026
      %v5097 = vadd.f32 %v4962, %v5026
      %v5098 = vadd.f32 %v4963, %v5026
      %v5099 = vadd.f32 %v4964, %v5026
      %v5100 = vadd.f32 %v4965, %v5026
      %v5101 = vadd.f32 %v4966, %v5026
      %v5102 = vadd.f32 %v4967, %v5026
      %v5103 = vadd.f32 %v4968, %v5026
      %v5104 = vadd.f32 %v4969, %v5026
      %v5105 = vadd.f32 %v4970, %v5026
      %v5106 = vadd.f32 %v4971, %v5026
      %v5107 = vadd.f32 %v4972, %v5026
      %v5108 = vadd.f32 %v4973, %v5026
      %v5109 = vadd.f32 %v4974, %v5026
      %v5110 = vadd.f32 %v4975, %v5026
      %v5111 = vadd.f32 %v4976, %v5026
      %v5112 = vadd.f32 %v4977, %v5026
      %v5113 = vadd.f32 %v4978, %v5026
      %v5114 = vadd.f32 %v4979, %v5026
      %v5115 = vadd.f32 %v4980, %v5026
      %v5116 = vadd.f32 %v4981, %v5026
      %v5117 = vadd.f32 %v4982, %v5026
      %v5118 = vadd.f32 %v4983, %v5026
      %v5119 = vadd.f32 %v4984, %v5026
      %v5120 = vadd.f32 %v4985, %v5026
      %v5121 = vadd.f32 %v4986, %v5026
      %v5122 = vadd.f32 %v4987, %v5026
      %v5123 = vadd.f32 %v4988, %v5026
      %v5124 = vadd.f32 %v4989, %v5026
      %v5125 = vadd.f32 %v4990, %v5026
      %v5126 = vadd.f32 %v4991, %v5026
      %v5127 = vadd.f32 %v4992, %v5026
      %v5128 = vadd.f32 %v4993, %v5026
      %v5129 = vadd.f32 %v4994, %v5026
      %v5130 = vadd.f32 %v4995, %v5026
      %v5131 = vadd.f32 %v4996, %v5026
      %v5132 = vadd.f32 %v4997, %v5026
      %v5133 = vadd.f32 %v4998, %v5026
      %v5134 = vadd.f32 %v4999, %v5026
      %v5135 = vadd.f32 %v5000, %v5026
      %v5136 = vadd.f32 %v5001, %v5026
      %v5137 = vadd.f32 %v5002, %v5026
      %v5138 = vadd.f32 %v5003, %v5026
      %v5139 = vadd.f32 %v5004, %v5026
      %v5140 = vadd.f32 %v5005, %v5026
      %v5141 = vadd.f32 %v5006, %v5026
      %v5142 = vadd.f32 %v5007, %v5026
      %v5143 = vadd.f32 %v5008, %v5026
      %v5144 = vadd.f32 %v5009, %v5026
      %v5145 = vadd.f32 %v5010, %v5026
      %v5146 = vadd.f32 %v5011, %v5026
      %v5147 = vadd.f32 %v5012, %v5026
      %v5148 = vadd.f32 %v5013, %v5026
      %v5149 = vadd.f32 %v5014, %v5026
      %v5150 = vadd.f32 %v5015, %v5026
      %v5151 = vadd.f32 %v5016, %v5026
      %v5152 = vadd.f32 %v5017, %v5026
      %v5153 = vadd.f32 %v5018, %v5026
      %v5154 = vadd.f32 %v5019, %v5026
      %v5155 = vadd.f32 %v5020, %v5026
      %v5156 = vld [vmem:[%s4] sm:$0xff]
      %v5157 = vld [vmem:[%s5] sm:$0x1]
      %v5159 = vlaneseq
      %v5160 = vshrl.u32 %v5159, 7
      %v5161 = vsub.s32 0, %v5160
      %v5162 = vrot.slane %v5157, %v5161
      %v5165 = vsel %vm326, %v5028, 0
      %v5168 = vsel %vm326, %v5029, 0
      %v5171 = vsel %vm326, %v5030, 0
      %v5174 = vsel %vm326, %v5031, 0
      %v5177 = vsel %vm326, %v5032, 0
      %v5180 = vsel %vm326, %v5033, 0
      %v5183 = vsel %vm326, %v5034, 0
      %v5186 = vsel %vm326, %v5035, 0
      %v5189 = vsel %vm326, %v5036, 0
      %v5192 = vsel %vm326, %v5037, 0
      %v5195 = vsel %vm326, %v5038, 0
      %v5198 = vsel %vm326, %v5039, 0
      %v5201 = vsel %vm326, %v5040, 0
      %v5204 = vsel %vm326, %v5041, 0
      %v5207 = vsel %vm326, %v5042, 0
      %v5210 = vsel %vm326, %v5043, 0
      %v5213 = vsel %vm326, %v5044, 0
      %v5216 = vsel %vm326, %v5045, 0
      %v5219 = vsel %vm326, %v5046, 0
      %v5222 = vsel %vm326, %v5047, 0
      %v5225 = vsel %vm326, %v5048, 0
      %v5228 = vsel %vm326, %v5049, 0
      %v5231 = vsel %vm326, %v5050, 0
      %v5234 = vsel %vm326, %v5051, 0
      %v5237 = vsel %vm326, %v5052, 0
      %v5240 = vsel %vm326, %v5053, 0
      %v5243 = vsel %vm326, %v5054, 0
      %v5246 = vsel %vm326, %v5055, 0
      %v5249 = vsel %vm326, %v5056, 0
      %v5252 = vsel %vm326, %v5057, 0
      %v5255 = vsel %vm326, %v5058, 0
      %v5258 = vsel %vm326, %v5059, 0
      %v5261 = vsel %vm326, %v5060, 0
      %v5264 = vsel %vm326, %v5061, 0
      %v5267 = vsel %vm326, %v5062, 0
      %v5270 = vsel %vm326, %v5063, 0
      %v5273 = vsel %vm326, %v5064, 0
      %v5276 = vsel %vm326, %v5065, 0
      %v5279 = vsel %vm326, %v5066, 0
      %v5282 = vsel %vm326, %v5067, 0
      %v5285 = vsel %vm326, %v5068, 0
      %v5288 = vsel %vm326, %v5069, 0
      %v5291 = vsel %vm326, %v5070, 0
      %v5294 = vsel %vm326, %v5071, 0
      %v5297 = vsel %vm326, %v5072, 0
      %v5300 = vsel %vm326, %v5073, 0
      %v5303 = vsel %vm326, %v5074, 0
      %v5306 = vsel %vm326, %v5075, 0
      %v5309 = vsel %vm326, %v5076, 0
      %v5312 = vsel %vm326, %v5077, 0
      %v5315 = vsel %vm326, %v5078, 0
      %v5318 = vsel %vm326, %v5079, 0
      %v5321 = vsel %vm326, %v5080, 0
      %v5324 = vsel %vm326, %v5081, 0
      %v5327 = vsel %vm326, %v5082, 0
      %v5330 = vsel %vm326, %v5083, 0
      %v5333 = vsel %vm326, %v5084, 0
      %v5336 = vsel %vm326, %v5085, 0
      %v5339 = vsel %vm326, %v5086, 0
      %v5342 = vsel %vm326, %v5087, 0
      %v5345 = vsel %vm326, %v5088, 0
      %v5348 = vsel %vm326, %v5089, 0
      %v5351 = vsel %vm326, %v5090, 0
      %v5354 = vsel %vm326, %v5091, 0
      %v5357 = vsel %vm326, %v5092, 0
      %v5360 = vsel %vm326, %v5093, 0
      %v5363 = vsel %vm326, %v5094, 0
      %v5366 = vsel %vm326, %v5095, 0
      %v5369 = vsel %vm326, %v5096, 0
      %v5372 = vsel %vm326, %v5097, 0
      %v5375 = vsel %vm326, %v5098, 0
      %v5378 = vsel %vm326, %v5099, 0
      %v5381 = vsel %vm326, %v5100, 0
      %v5384 = vsel %vm326, %v5101, 0
      %v5387 = vsel %vm326, %v5102, 0
      %v5390 = vsel %vm326, %v5103, 0
      %v5393 = vsel %vm326, %v5104, 0
      %v5396 = vsel %vm326, %v5105, 0
      %v5399 = vsel %vm326, %v5106, 0
      %v5402 = vsel %vm326, %v5107, 0
      %v5405 = vsel %vm326, %v5108, 0
      %v5408 = vsel %vm326, %v5109, 0
      %v5411 = vsel %vm326, %v5110, 0
      %v5414 = vsel %vm326, %v5111, 0
      %v5417 = vsel %vm326, %v5112, 0
      %v5420 = vsel %vm326, %v5113, 0
      %v5423 = vsel %vm326, %v5114, 0
      %v5426 = vsel %vm326, %v5115, 0
      %v5429 = vsel %vm326, %v5116, 0
      %v5432 = vsel %vm326, %v5117, 0
      %v5435 = vsel %vm326, %v5118, 0
      %v5438 = vsel %vm326, %v5119, 0
      %v5441 = vsel %vm326, %v5120, 0
      %v5444 = vsel %vm326, %v5121, 0
      %v5447 = vsel %vm326, %v5122, 0
      %v5450 = vsel %vm326, %v5123, 0
      %v5453 = vsel %vm326, %v5124, 0
      %v5456 = vsel %vm326, %v5125, 0
      %v5459 = vsel %vm326, %v5126, 0
      %v5462 = vsel %vm326, %v5127, 0
      %v5465 = vsel %vm326, %v5128, 0
      %v5468 = vsel %vm326, %v5129, 0
      %v5471 = vsel %vm326, %v5130, 0
      %v5474 = vsel %vm326, %v5131, 0
      %v5477 = vsel %vm326, %v5132, 0
      %v5480 = vsel %vm326, %v5133, 0
      %v5483 = vsel %vm326, %v5134, 0
      %v5486 = vsel %vm326, %v5135, 0
      %v5489 = vsel %vm326, %v5136, 0
      %v5492 = vsel %vm326, %v5137, 0
      %v5495 = vsel %vm326, %v5138, 0
      %v5498 = vsel %vm326, %v5139, 0
      %v5501 = vsel %vm326, %v5140, 0
      %v5504 = vsel %vm326, %v5141, 0
      %v5507 = vsel %vm326, %v5142, 0
      %v5510 = vsel %vm326, %v5143, 0
      %v5513 = vsel %vm326, %v5144, 0
      %v5516 = vsel %vm326, %v5145, 0
      %v5519 = vsel %vm326, %v5146, 0
      %v5522 = vsel %vm326, %v5147, 0
      %v5525 = vsel %vm326, %v5148, 0
      %v5528 = vsel %vm326, %v5149, 0
      %v5531 = vsel %vm326, %v5150, 0
      %v5534 = vsel %vm326, %v5151, 0
      %v5537 = vsel %vm326, %v5152, 0
      %v5540 = vsel %vm326, %v5153, 0
      %v5543 = vsel %vm326, %v5154, 0
      %v5546 = vsel %vm326, %v5155, 0
      %5548 = vmatprep.subr.mxu0 0.0
      %5549 = vmatpush1.msra.mxu0 %v5156
      %5550 = vmatprep.subr.mxu0 0.0
      %5551 = vmatpush1.msra.mxu0 0.0
      %5552 = vmatprep.subr.mxu0 0.0
      %5553 = vmatpush1.msra.mxu0 0.0
      %5554 = vmatprep.subr.mxu0 0.0
      %5555 = vmatpush1.msra.mxu0 0.0
      %5556 = vmatprep.subr.mxu0 0.0
      %5557 = vmatpush1.msra.mxu0 0.0
      %5558 = vmatprep.subr.mxu0 0.0
      %5559 = vmatpush1.msra.mxu0 0.0
      %5560 = vmatprep.subr.mxu0 0.0
      %5561 = vmatpush1.msra.mxu0 0.0
      %5562 = vmatprep.subr.mxu0 0.0
      %5563 = vmatpush1.msra.mxu0 0.0
      %5564 = vmatprep.subr.mxu0 0.0
      %5565 = vmatpush1.msra.mxu0 0.0
      %5566 = vmatprep.subr.mxu0 0.0
      %5567 = vmatpush1.msra.mxu0 0.0
      %5568 = vmatprep.subr.mxu0 0.0
      %5569 = vmatpush1.msra.mxu0 0.0
      %5570 = vmatprep.subr.mxu0 0.0
      %5571 = vmatpush1.msra.mxu0 0.0
      %5572 = vmatprep.subr.mxu0 0.0
      %5573 = vmatpush1.msra.mxu0 0.0
      %5574 = vmatprep.subr.mxu0 0.0
      %5575 = vmatpush1.msra.mxu0 0.0
      %5576 = vmatprep.subr.mxu0 0.0
      %5577 = vmatpush1.msra.mxu0 0.0
      %5578 = vmatprep.subr.mxu0 0.0
      %5579 = vmatpush1.msra.mxu0 0.0
      %5580 = vmatprep.subr.mxu0 0.0
      %5581 = vmatpush1.msra.mxu0 0.0
      %5582 = vmatprep.subr.mxu0 0.0
      %5583 = vmatpush1.msra.mxu0 0.0
      %5584 = vmatprep.subr.mxu0 0.0
      %5585 = vmatpush1.msra.mxu0 0.0
      %5586 = vmatprep.subr.mxu0 0.0
      %5587 = vmatpush1.msra.mxu0 0.0
      %5588 = vmatprep.subr.mxu0 0.0
      %5589 = vmatpush1.msra.mxu0 0.0
      %5590 = vmatprep.subr.mxu0 0.0
      %5591 = vmatpush1.msra.mxu0 0.0
      %5592 = vmatprep.subr.mxu0 0.0
      %5593 = vmatpush1.msra.mxu0 0.0
      %5594 = vmatprep.subr.mxu0 0.0
      %5595 = vmatpush1.msra.mxu0 0.0
      %5596 = vmatprep.subr.mxu0 0.0
      %5597 = vmatpush1.msra.mxu0 0.0
      %5598 = vmatprep.subr.mxu0 0.0
      %5599 = vmatpush1.msra.mxu0 0.0
      %5600 = vmatprep.subr.mxu0 0.0
      %5601 = vmatpush1.msra.mxu0 0.0
      %5602 = vmatprep.subr.mxu0 0.0
      %5603 = vmatpush1.msra.mxu0 0.0
      %5604 = vmatprep.subr.mxu0 0.0
      %5605 = vmatpush1.msra.mxu0 0.0
      %5606 = vmatprep.subr.mxu0 0.0
      %5607 = vmatpush1.msra.mxu0 0.0
      %5608 = vmatprep.subr.mxu0 0.0
      %5609 = vmatpush1.msra.mxu0 0.0
      %5610 = vmatprep.subr.mxu0 0.0
      %5611 = vmatpush1.msra.mxu0 0.0
      %5612 = vmatprep.mubr.f32.mxu0 0.0
      %5613 = vmatmul.mubr.f32.gmra.mrb[0].mxu0 %v5165
      %v5614 = vpop.f32.mrb[0].mxu0
      %v5615 = vadd.f32 %v5162, %v5614
      %v5616 = vpop.f32.mrb[0].mxu0
      %5617 = vmatprep.mubr.f32.mxu0 0.0
      %5618 = vmatmul.mubr.f32.gmra.mrb[0].mxu0 %v5168
      %v5619 = vpop.f32.mrb[0].mxu0
      %v5620 = vadd.f32 %v5162, %v5619
      %v5621 = vpop.f32.mrb[0].mxu0
      %5622 = vmatprep.mubr.f32.mxu0 0.0
      %5623 = vmatmul.mubr.f32.gmra.mrb[0].mxu0 %v5171
      %v5624 = vpop.f32.mrb[0].mxu0
      %v5625 = vadd.f32 %v5162, %v5624
      %v5626 = vpop.f32.mrb[0].mxu0
      %5627 = vmatprep.mubr.f32.mxu0 0.0
      %5628 = vmatmul.mubr.f32.gmra.mrb[0].mxu0 %v5174
      %v5629 = vpop.f32.mrb[0].mxu0
      %v5630 = vadd.f32 %v5162, %v5629
      %v5631 = vpop.f32.mrb[0].mxu0
      %5632 = vmatprep.mubr.f32.mxu0 0.0
      %5633 = vmatmul.mubr.f32.gmra.mrb[0].mxu0 %v5177
      %v5634 = vpop.f32.mrb[0].mxu0
      %v5635 = vadd.f32 %v5162, %v5634
      %v5636 = vpop.f32.mrb[0].mxu0
      %5637 = vmatprep.mubr.f32.mxu0 0.0
      %5638 = vmatmul.mubr.f32.gmra.mrb[0].mxu0 %v5180
      %v5639 = vpop.f32.mrb[0].mxu0
      %v5640 = vadd.f32 %v5162, %v5639
      %v5641 = vpop.f32.mrb[0].mxu0
      %5642 = vmatprep.mubr.f32.mxu0 0.0
      %5643 = vmatmul.mubr.f32.gmra.mrb[0].mxu0 %v5183
      %v5644 = vpop.f32.mrb[0].mxu0
      %v5645 = vadd.f32 %v5162, %v5644
      %v5646 = vpop.f32.mrb[0].mxu0
      %5647 = vmatprep.mubr.f32.mxu0 0.0
      %5648 = vmatmul.mubr.f32.gmra.mrb[0].mxu0 %v5186
      %v5649 = vpop.f32.mrb[0].mxu0
      %v5650 = vadd.f32 %v5162, %v5649
      %v5651 = vpop.f32.mrb[0].mxu0
      %5652 = vmatprep.mubr.f32.mxu0 0.0
      %5653 = vmatmul.mubr.f32.gmra.mrb[0].mxu0 %v5189
      %v5654 = vpop.f32.mrb[0].mxu0
      %v5655 = vadd.f32 %v5162, %v5654
      %v5656 = vpop.f32.mrb[0].mxu0
      %5657 = vmatprep.mubr.f32.mxu0 0.0
      %5658 = vmatmul.mubr.f32.gmra.mrb[0].mxu0 %v5192
      %v5659 = vpop.f32.mrb[0].mxu0
      %v5660 = vadd.f32 %v5162, %v5659
      %v5661 = vpop.f32.mrb[0].mxu0
      %5662 = vmatprep.mubr.f32.mxu0 0.0
      %5663 = vmatmul.mubr.f32.gmra.mrb[0].mxu0 %v5195
      %v5664 = vpop.f32.mrb[0].mxu0
      %v5665 = vadd.f32 %v5162, %v5664
      %v5666 = vpop.f32.mrb[0].mxu0
      %5667 = vmatprep.mubr.f32.mxu0 0.0
      %5668 = vmatmul.mubr.f32.gmra.mrb[0].mxu0 %v5198
      %v5669 = vpop.f32.mrb[0].mxu0
      %v5670 = vadd.f32 %v5162, %v5669
      %v5671 = vpop.f32.mrb[0].mxu0
      %5672 = vmatprep.mubr.f32.mxu0 0.0
      %5673 = vmatmul.mubr.f32.gmra.mrb[0].mxu0 %v5201
      %v5674 = vpop.f32.mrb[0].mxu0
      %v5675 = vadd.f32 %v5162, %v5674
      %v5676 = vpop.f32.mrb[0].mxu0
      %5677 = vmatprep.mubr.f32.mxu0 0.0
      %5678 = vmatmul.mubr.f32.gmra.mrb[0].mxu0 %v5204
      %v5679 = vpop.f32.mrb[0].mxu0
      %v5680 = vadd.f32 %v5162, %v5679
      %v5681 = vpop.f32.mrb[0].mxu0
      %5682 = vmatprep.mubr.f32.mxu0 0.0
      %5683 = vmatmul.mubr.f32.gmra.mrb[0].mxu0 %v5207
      %v5684 = vpop.f32.mrb[0].mxu0
      %v5685 = vadd.f32 %v5162, %v5684
      %v5686 = vpop.f32.mrb[0].mxu0
      %5687 = vmatprep.mubr.f32.mxu0 0.0
      %5688 = vmatmul.mubr.f32.gmra.mrb[0].mxu0 %v5210
      %v5689 = vpop.f32.mrb[0].mxu0
      %v5690 = vadd.f32 %v5162, %v5689
      %v5691 = vpop.f32.mrb[0].mxu0
      %5692 = vmatprep.mubr.f32.mxu0 0.0
      %5693 = vmatmul.mubr.f32.gmra.mrb[0].mxu0 %v5213
      %v5694 = vpop.f32.mrb[0].mxu0
      %v5695 = vadd.f32 %v5162, %v5694
      %v5696 = vpop.f32.mrb[0].mxu0
      %5697 = vmatprep.mubr.f32.mxu0 0.0
      %5698 = vmatmul.mubr.f32.gmra.mrb[0].mxu0 %v5216
      %v5699 = vpop.f32.mrb[0].mxu0
      %v5700 = vadd.f32 %v5162, %v5699
      %v5701 = vpop.f32.mrb[0].mxu0
      %5702 = vmatprep.mubr.f32.mxu0 0.0
      %5703 = vmatmul.mubr.f32.gmra.mrb[0].mxu0 %v5219
      %v5704 = vpop.f32.mrb[0].mxu0
      %v5705 = vadd.f32 %v5162, %v5704
      %v5706 = vpop.f32.mrb[0].mxu0
      %5707 = vmatprep.mubr.f32.mxu0 0.0
      %5708 = vmatmul.mubr.f32.gmra.mrb[0].mxu0 %v5222
      %v5709 = vpop.f32.mrb[0].mxu0
      %v5710 = vadd.f32 %v5162, %v5709
      %v5711 = vpop.f32.mrb[0].mxu0
      %5712 = vmatprep.mubr.f32.mxu0 0.0
      %5713 = vmatmul.mubr.f32.gmra.mrb[0].mxu0 %v5225
      %v5714 = vpop.f32.mrb[0].mxu0
      %v5715 = vadd.f32 %v5162, %v5714
      %v5716 = vpop.f32.mrb[0].mxu0
      %5717 = vmatprep.mubr.f32.mxu0 0.0
      %5718 = vmatmul.mubr.f32.gmra.mrb[0].mxu0 %v5228
      %v5719 = vpop.f32.mrb[0].mxu0
      %v5720 = vadd.f32 %v5162, %v5719
      %v5721 = vpop.f32.mrb[0].mxu0
      %5722 = vmatprep.mubr.f32.mxu0 0.0
      %5723 = vmatmul.mubr.f32.gmra.mrb[0].mxu0 %v5231
      %v5724 = vpop.f32.mrb[0].mxu0
      %v5725 = vadd.f32 %v5162, %v5724
      %v5726 = vpop.f32.mrb[0].mxu0
      %5727 = vmatprep.mubr.f32.mxu0 0.0
      %5728 = vmatmul.mubr.f32.gmra.mrb[0].mxu0 %v5234
      %v5729 = vpop.f32.mrb[0].mxu0
      %v5730 = vadd.f32 %v5162, %v5729
      %v5731 = vpop.f32.mrb[0].mxu0
      %5732 = vmatprep.mubr.f32.mxu0 0.0
      %5733 = vmatmul.mubr.f32.gmra.mrb[0].mxu0 %v5237
      %v5734 = vpop.f32.mrb[0].mxu0
      %v5735 = vadd.f32 %v5162, %v5734
      %v5736 = vpop.f32.mrb[0].mxu0
      %5737 = vmatprep.mubr.f32.mxu0 0.0
      %5738 = vmatmul.mubr.f32.gmra.mrb[0].mxu0 %v5240
      %v5739 = vpop.f32.mrb[0].mxu0
      %v5740 = vadd.f32 %v5162, %v5739
      %v5741 = vpop.f32.mrb[0].mxu0
      %5742 = vmatprep.mubr.f32.mxu0 0.0
      %5743 = vmatmul.mubr.f32.gmra.mrb[0].mxu0 %v5243
      %v5744 = vpop.f32.mrb[0].mxu0
      %v5745 = vadd.f32 %v5162, %v5744
      %v5746 = vpop.f32.mrb[0].mxu0
      %5747 = vmatprep.mubr.f32.mxu0 0.0
      %5748 = vmatmul.mubr.f32.gmra.mrb[0].mxu0 %v5246
      %v5749 = vpop.f32.mrb[0].mxu0
      %v5750 = vadd.f32 %v5162, %v5749
      %v5751 = vpop.f32.mrb[0].mxu0
      %5752 = vmatprep.mubr.f32.mxu0 0.0
      %5753 = vmatmul.mubr.f32.gmra.mrb[0].mxu0 %v5249
      %v5754 = vpop.f32.mrb[0].mxu0
      %v5755 = vadd.f32 %v5162, %v5754
      %v5756 = vpop.f32.mrb[0].mxu0
      %5757 = vmatprep.mubr.f32.mxu0 0.0
      %5758 = vmatmul.mubr.f32.gmra.mrb[0].mxu0 %v5252
      %v5759 = vpop.f32.mrb[0].mxu0
      %v5760 = vadd.f32 %v5162, %v5759
      %v5761 = vpop.f32.mrb[0].mxu0
      %5762 = vmatprep.mubr.f32.mxu0 0.0
      %5763 = vmatmul.mubr.f32.gmra.mrb[0].mxu0 %v5255
      %v5764 = vpop.f32.mrb[0].mxu0
      %v5765 = vadd.f32 %v5162, %v5764
      %v5766 = vpop.f32.mrb[0].mxu0
      %5767 = vmatprep.mubr.f32.mxu0 0.0
      %5768 = vmatmul.mubr.f32.gmra.mrb[0].mxu0 %v5258
      %v5769 = vpop.f32.mrb[0].mxu0
      %v5770 = vadd.f32 %v5162, %v5769
      %v5771 = vpop.f32.mrb[0].mxu0
      %5772 = vmatprep.mubr.f32.mxu0 0.0
      %5773 = vmatmul.mubr.f32.gmra.mrb[0].mxu0 %v5261
      %v5774 = vpop.f32.mrb[0].mxu0
      %v5775 = vadd.f32 %v5162, %v5774
      %v5776 = vpop.f32.mrb[0].mxu0
      %5777 = vmatprep.mubr.f32.mxu0 0.0
      %5778 = vmatmul.mubr.f32.gmra.mrb[0].mxu0 %v5264
      %v5779 = vpop.f32.mrb[0].mxu0
      %v5780 = vadd.f32 %v5162, %v5779
      %v5781 = vpop.f32.mrb[0].mxu0
      %5782 = vmatprep.mubr.f32.mxu0 0.0
      %5783 = vmatmul.mubr.f32.gmra.mrb[0].mxu0 %v5267
      %v5784 = vpop.f32.mrb[0].mxu0
      %v5785 = vadd.f32 %v5162, %v5784
      %v5786 = vpop.f32.mrb[0].mxu0
      %5787 = vmatprep.mubr.f32.mxu0 0.0
      %5788 = vmatmul.mubr.f32.gmra.mrb[0].mxu0 %v5270
      %v5789 = vpop.f32.mrb[0].mxu0
      %v5790 = vadd.f32 %v5162, %v5789
      %v5791 = vpop.f32.mrb[0].mxu0
      %5792 = vmatprep.mubr.f32.mxu0 0.0
      %5793 = vmatmul.mubr.f32.gmra.mrb[0].mxu0 %v5273
      %v5794 = vpop.f32.mrb[0].mxu0
      %v5795 = vadd.f32 %v5162, %v5794
      %v5796 = vpop.f32.mrb[0].mxu0
      %5797 = vmatprep.mubr.f32.mxu0 0.0
      %5798 = vmatmul.mubr.f32.gmra.mrb[0].mxu0 %v5276
      %v5799 = vpop.f32.mrb[0].mxu0
      %v5800 = vadd.f32 %v5162, %v5799
      %v5801 = vpop.f32.mrb[0].mxu0
      %5802 = vmatprep.mubr.f32.mxu0 0.0
      %5803 = vmatmul.mubr.f32.gmra.mrb[0].mxu0 %v5279
      %v5804 = vpop.f32.mrb[0].mxu0
      %v5805 = vadd.f32 %v5162, %v5804
      %v5806 = vpop.f32.mrb[0].mxu0
      %5807 = vmatprep.mubr.f32.mxu0 0.0
      %5808 = vmatmul.mubr.f32.gmra.mrb[0].mxu0 %v5282
      %v5809 = vpop.f32.mrb[0].mxu0
      %v5810 = vadd.f32 %v5162, %v5809
      %v5811 = vpop.f32.mrb[0].mxu0
      %5812 = vmatprep.mubr.f32.mxu0 0.0
      %5813 = vmatmul.mubr.f32.gmra.mrb[0].mxu0 %v5285
      %v5814 = vpop.f32.mrb[0].mxu0
      %v5815 = vadd.f32 %v5162, %v5814
      %v5816 = vpop.f32.mrb[0].mxu0
      %5817 = vmatprep.mubr.f32.mxu0 0.0
      %5818 = vmatmul.mubr.f32.gmra.mrb[0].mxu0 %v5288
      %v5819 = vpop.f32.mrb[0].mxu0
      %v5820 = vadd.f32 %v5162, %v5819
      %v5821 = vpop.f32.mrb[0].mxu0
      %5822 = vmatprep.mubr.f32.mxu0 0.0
      %5823 = vmatmul.mubr.f32.gmra.mrb[0].mxu0 %v5291
      %v5824 = vpop.f32.mrb[0].mxu0
      %v5825 = vadd.f32 %v5162, %v5824
      %v5826 = vpop.f32.mrb[0].mxu0
      %5827 = vmatprep.mubr.f32.mxu0 0.0
      %5828 = vmatmul.mubr.f32.gmra.mrb[0].mxu0 %v5294
      %v5829 = vpop.f32.mrb[0].mxu0
      %v5830 = vadd.f32 %v5162, %v5829
      %v5831 = vpop.f32.mrb[0].mxu0
      %5832 = vmatprep.mubr.f32.mxu0 0.0
      %5833 = vmatmul.mubr.f32.gmra.mrb[0].mxu0 %v5297
      %v5834 = vpop.f32.mrb[0].mxu0
      %v5835 = vadd.f32 %v5162, %v5834
      %v5836 = vpop.f32.mrb[0].mxu0
      %5837 = vmatprep.mubr.f32.mxu0 0.0
      %5838 = vmatmul.mubr.f32.gmra.mrb[0].mxu0 %v5300
      %v5839 = vpop.f32.mrb[0].mxu0
      %v5840 = vadd.f32 %v5162, %v5839
      %v5841 = vpop.f32.mrb[0].mxu0
      %5842 = vmatprep.mubr.f32.mxu0 0.0
      %5843 = vmatmul.mubr.f32.gmra.mrb[0].mxu0 %v5303
      %v5844 = vpop.f32.mrb[0].mxu0
      %v5845 = vadd.f32 %v5162, %v5844
      %v5846 = vpop.f32.mrb[0].mxu0
      %5847 = vmatprep.mubr.f32.mxu0 0.0
      %5848 = vmatmul.mubr.f32.gmra.mrb[0].mxu0 %v5306
      %v5849 = vpop.f32.mrb[0].mxu0
      %v5850 = vadd.f32 %v5162, %v5849
      %v5851 = vpop.f32.mrb[0].mxu0
      %5852 = vmatprep.mubr.f32.mxu0 0.0
      %5853 = vmatmul.mubr.f32.gmra.mrb[0].mxu0 %v5309
      %v5854 = vpop.f32.mrb[0].mxu0
      %v5855 = vadd.f32 %v5162, %v5854
      %v5856 = vpop.f32.mrb[0].mxu0
      %5857 = vmatprep.mubr.f32.mxu0 0.0
      %5858 = vmatmul.mubr.f32.gmra.mrb[0].mxu0 %v5312
      %v5859 = vpop.f32.mrb[0].mxu0
      %v5860 = vadd.f32 %v5162, %v5859
      %v5861 = vpop.f32.mrb[0].mxu0
      %5862 = vmatprep.mubr.f32.mxu0 0.0
      %5863 = vmatmul.mubr.f32.gmra.mrb[0].mxu0 %v5315
      %v5864 = vpop.f32.mrb[0].mxu0
      %v5865 = vadd.f32 %v5162, %v5864
      %v5866 = vpop.f32.mrb[0].mxu0
      %5867 = vmatprep.mubr.f32.mxu0 0.0
      %5868 = vmatmul.mubr.f32.gmra.mrb[0].mxu0 %v5318
      %v5869 = vpop.f32.mrb[0].mxu0
      %v5870 = vadd.f32 %v5162, %v5869
      %v5871 = vpop.f32.mrb[0].mxu0
      %5872 = vmatprep.mubr.f32.mxu0 0.0
      %5873 = vmatmul.mubr.f32.gmra.mrb[0].mxu0 %v5321
      %v5874 = vpop.f32.mrb[0].mxu0
      %v5875 = vadd.f32 %v5162, %v5874
      %v5876 = vpop.f32.mrb[0].mxu0
      %5877 = vmatprep.mubr.f32.mxu0 0.0
      %5878 = vmatmul.mubr.f32.gmra.mrb[0].mxu0 %v5324
      %v5879 = vpop.f32.mrb[0].mxu0
      %v5880 = vadd.f32 %v5162, %v5879
      %v5881 = vpop.f32.mrb[0].mxu0
      %5882 = vmatprep.mubr.f32.mxu0 0.0
      %5883 = vmatmul.mubr.f32.gmra.mrb[0].mxu0 %v5327
      %v5884 = vpop.f32.mrb[0].mxu0
      %v5885 = vadd.f32 %v5162, %v5884
      %v5886 = vpop.f32.mrb[0].mxu0
      %5887 = vmatprep.mubr.f32.mxu0 0.0
      %5888 = vmatmul.mubr.f32.gmra.mrb[0].mxu0 %v5330
      %v5889 = vpop.f32.mrb[0].mxu0
      %v5890 = vadd.f32 %v5162, %v5889
      %v5891 = vpop.f32.mrb[0].mxu0
      %5892 = vmatprep.mubr.f32.mxu0 0.0
      %5893 = vmatmul.mubr.f32.gmra.mrb[0].mxu0 %v5333
      %v5894 = vpop.f32.mrb[0].mxu0
      %v5895 = vadd.f32 %v5162, %v5894
      %v5896 = vpop.f32.mrb[0].mxu0
      %5897 = vmatprep.mubr.f32.mxu0 0.0
      %5898 = vmatmul.mubr.f32.gmra.mrb[0].mxu0 %v5336
      %v5899 = vpop.f32.mrb[0].mxu0
      %v5900 = vadd.f32 %v5162, %v5899
      %v5901 = vpop.f32.mrb[0].mxu0
      %5902 = vmatprep.mubr.f32.mxu0 0.0
      %5903 = vmatmul.mubr.f32.gmra.mrb[0].mxu0 %v5339
      %v5904 = vpop.f32.mrb[0].mxu0
      %v5905 = vadd.f32 %v5162, %v5904
      %v5906 = vpop.f32.mrb[0].mxu0
      %5907 = vmatprep.mubr.f32.mxu0 0.0
      %5908 = vmatmul.mubr.f32.gmra.mrb[0].mxu0 %v5342
      %v5909 = vpop.f32.mrb[0].mxu0
      %v5910 = vadd.f32 %v5162, %v5909
      %v5911 = vpop.f32.mrb[0].mxu0
      %5912 = vmatprep.mubr.f32.mxu0 0.0
      %5913 = vmatmul.mubr.f32.gmra.mrb[0].mxu0 %v5345
      %v5914 = vpop.f32.mrb[0].mxu0
      %v5915 = vadd.f32 %v5162, %v5914
      %v5916 = vpop.f32.mrb[0].mxu0
      %5917 = vmatprep.mubr.f32.mxu0 0.0
      %5918 = vmatmul.mubr.f32.gmra.mrb[0].mxu0 %v5348
      %v5919 = vpop.f32.mrb[0].mxu0
      %v5920 = vadd.f32 %v5162, %v5919
      %v5921 = vpop.f32.mrb[0].mxu0
      %5922 = vmatprep.mubr.f32.mxu0 0.0
      %5923 = vmatmul.mubr.f32.gmra.mrb[0].mxu0 %v5351
      %v5924 = vpop.f32.mrb[0].mxu0
      %v5925 = vadd.f32 %v5162, %v5924
      %v5926 = vpop.f32.mrb[0].mxu0
      %5927 = vmatprep.mubr.f32.mxu0 0.0
      %5928 = vmatmul.mubr.f32.gmra.mrb[0].mxu0 %v5354
      %v5929 = vpop.f32.mrb[0].mxu0
      %v5930 = vadd.f32 %v5162, %v5929
      %v5931 = vpop.f32.mrb[0].mxu0
      %5932 = vmatprep.mubr.f32.mxu0 0.0
      %5933 = vmatmul.mubr.f32.gmra.mrb[0].mxu0 %v5357
      %v5934 = vpop.f32.mrb[0].mxu0
      %v5935 = vadd.f32 %v5162, %v5934
      %v5936 = vpop.f32.mrb[0].mxu0
      %5937 = vmatprep.mubr.f32.mxu0 0.0
      %5938 = vmatmul.mubr.f32.gmra.mrb[0].mxu0 %v5360
      %v5939 = vpop.f32.mrb[0].mxu0
      %v5940 = vadd.f32 %v5162, %v5939
      %v5941 = vpop.f32.mrb[0].mxu0
      %5942 = vmatprep.mubr.f32.mxu0 0.0
      %5943 = vmatmul.mubr.f32.gmra.mrb[0].mxu0 %v5363
      %v5944 = vpop.f32.mrb[0].mxu0
      %v5945 = vadd.f32 %v5162, %v5944
      %v5946 = vpop.f32.mrb[0].mxu0
      %5947 = vmatprep.mubr.f32.mxu0 0.0
      %5948 = vmatmul.mubr.f32.gmra.mrb[0].mxu0 %v5366
      %v5949 = vpop.f32.mrb[0].mxu0
      %v5950 = vadd.f32 %v5162, %v5949
      %v5951 = vpop.f32.mrb[0].mxu0
      %5952 = vmatprep.mubr.f32.mxu0 0.0
      %5953 = vmatmul.mubr.f32.gmra.mrb[0].mxu0 %v5369
      %v5954 = vpop.f32.mrb[0].mxu0
      %v5955 = vadd.f32 %v5162, %v5954
      %v5956 = vpop.f32.mrb[0].mxu0
      %5957 = vmatprep.mubr.f32.mxu0 0.0
      %5958 = vmatmul.mubr.f32.gmra.mrb[0].mxu0 %v5372
      %v5959 = vpop.f32.mrb[0].mxu0
      %v5960 = vadd.f32 %v5162, %v5959
      %v5961 = vpop.f32.mrb[0].mxu0
      %5962 = vmatprep.mubr.f32.mxu0 0.0
      %5963 = vmatmul.mubr.f32.gmra.mrb[0].mxu0 %v5375
      %v5964 = vpop.f32.mrb[0].mxu0
      %v5965 = vadd.f32 %v5162, %v5964
      %v5966 = vpop.f32.mrb[0].mxu0
      %5967 = vmatprep.mubr.f32.mxu0 0.0
      %5968 = vmatmul.mubr.f32.gmra.mrb[0].mxu0 %v5378
      %v5969 = vpop.f32.mrb[0].mxu0
      %v5970 = vadd.f32 %v5162, %v5969
      %v5971 = vpop.f32.mrb[0].mxu0
      %5972 = vmatprep.mubr.f32.mxu0 0.0
      %5973 = vmatmul.mubr.f32.gmra.mrb[0].mxu0 %v5381
      %v5974 = vpop.f32.mrb[0].mxu0
      %v5975 = vadd.f32 %v5162, %v5974
      %v5976 = vpop.f32.mrb[0].mxu0
      %5977 = vmatprep.mubr.f32.mxu0 0.0
      %5978 = vmatmul.mubr.f32.gmra.mrb[0].mxu0 %v5384
      %v5979 = vpop.f32.mrb[0].mxu0
      %v5980 = vadd.f32 %v5162, %v5979
      %v5981 = vpop.f32.mrb[0].mxu0
      %5982 = vmatprep.mubr.f32.mxu0 0.0
      %5983 = vmatmul.mubr.f32.gmra.mrb[0].mxu0 %v5387
      %v5984 = vpop.f32.mrb[0].mxu0
      %v5985 = vadd.f32 %v5162, %v5984
      %v5986 = vpop.f32.mrb[0].mxu0
      %5987 = vmatprep.mubr.f32.mxu0 0.0
      %5988 = vmatmul.mubr.f32.gmra.mrb[0].mxu0 %v5390
      %v5989 = vpop.f32.mrb[0].mxu0
      %v5990 = vadd.f32 %v5162, %v5989
      %v5991 = vpop.f32.mrb[0].mxu0
      %5992 = vmatprep.mubr.f32.mxu0 0.0
      %5993 = vmatmul.mubr.f32.gmra.mrb[0].mxu0 %v5393
      %v5994 = vpop.f32.mrb[0].mxu0
      %v5995 = vadd.f32 %v5162, %v5994
      %v5996 = vpop.f32.mrb[0].mxu0
      %5997 = vmatprep.mubr.f32.mxu0 0.0
      %5998 = vmatmul.mubr.f32.gmra.mrb[0].mxu0 %v5396
      %v5999 = vpop.f32.mrb[0].mxu0
      %v6000 = vadd.f32 %v5162, %v5999
      %v6001 = vpop.f32.mrb[0].mxu0
      %6002 = vmatprep.mubr.f32.mxu0 0.0
      %6003 = vmatmul.mubr.f32.gmra.mrb[0].mxu0 %v5399
      %v6004 = vpop.f32.mrb[0].mxu0
      %v6005 = vadd.f32 %v5162, %v6004
      %v6006 = vpop.f32.mrb[0].mxu0
      %6007 = vmatprep.mubr.f32.mxu0 0.0
      %6008 = vmatmul.mubr.f32.gmra.mrb[0].mxu0 %v5402
      %v6009 = vpop.f32.mrb[0].mxu0
      %v6010 = vadd.f32 %v5162, %v6009
      %v6011 = vpop.f32.mrb[0].mxu0
      %6012 = vmatprep.mubr.f32.mxu0 0.0
      %6013 = vmatmul.mubr.f32.gmra.mrb[0].mxu0 %v5405
      %v6014 = vpop.f32.mrb[0].mxu0
      %v6015 = vadd.f32 %v5162, %v6014
      %v6016 = vpop.f32.mrb[0].mxu0
      %6017 = vmatprep.mubr.f32.mxu0 0.0
      %6018 = vmatmul.mubr.f32.gmra.mrb[0].mxu0 %v5408
      %v6019 = vpop.f32.mrb[0].mxu0
      %v6020 = vadd.f32 %v5162, %v6019
      %v6021 = vpop.f32.mrb[0].mxu0
      %6022 = vmatprep.mubr.f32.mxu0 0.0
      %6023 = vmatmul.mubr.f32.gmra.mrb[0].mxu0 %v5411
      %v6024 = vpop.f32.mrb[0].mxu0
      %v6025 = vadd.f32 %v5162, %v6024
      %v6026 = vpop.f32.mrb[0].mxu0
      %6027 = vmatprep.mubr.f32.mxu0 0.0
      %6028 = vmatmul.mubr.f32.gmra.mrb[0].mxu0 %v5414
      %v6029 = vpop.f32.mrb[0].mxu0
      %v6030 = vadd.f32 %v5162, %v6029
      %v6031 = vpop.f32.mrb[0].mxu0
      %6032 = vmatprep.mubr.f32.mxu0 0.0
      %6033 = vmatmul.mubr.f32.gmra.mrb[0].mxu0 %v5417
      %v6034 = vpop.f32.mrb[0].mxu0
      %v6035 = vadd.f32 %v5162, %v6034
      %v6036 = vpop.f32.mrb[0].mxu0
      %6037 = vmatprep.mubr.f32.mxu0 0.0
      %6038 = vmatmul.mubr.f32.gmra.mrb[0].mxu0 %v5420
      %v6039 = vpop.f32.mrb[0].mxu0
      %v6040 = vadd.f32 %v5162, %v6039
      %v6041 = vpop.f32.mrb[0].mxu0
      %6042 = vmatprep.mubr.f32.mxu0 0.0
      %6043 = vmatmul.mubr.f32.gmra.mrb[0].mxu0 %v5423
      %v6044 = vpop.f32.mrb[0].mxu0
      %v6045 = vadd.f32 %v5162, %v6044
      %v6046 = vpop.f32.mrb[0].mxu0
      %6047 = vmatprep.mubr.f32.mxu0 0.0
      %6048 = vmatmul.mubr.f32.gmra.mrb[0].mxu0 %v5426
      %v6049 = vpop.f32.mrb[0].mxu0
      %v6050 = vadd.f32 %v5162, %v6049
      %v6051 = vpop.f32.mrb[0].mxu0
      %6052 = vmatprep.mubr.f32.mxu0 0.0
      %6053 = vmatmul.mubr.f32.gmra.mrb[0].mxu0 %v5429
      %v6054 = vpop.f32.mrb[0].mxu0
      %v6055 = vadd.f32 %v5162, %v6054
      %v6056 = vpop.f32.mrb[0].mxu0
      %6057 = vmatprep.mubr.f32.mxu0 0.0
      %6058 = vmatmul.mubr.f32.gmra.mrb[0].mxu0 %v5432
      %v6059 = vpop.f32.mrb[0].mxu0
      %v6060 = vadd.f32 %v5162, %v6059
      %v6061 = vpop.f32.mrb[0].mxu0
      %6062 = vmatprep.mubr.f32.mxu0 0.0
      %6063 = vmatmul.mubr.f32.gmra.mrb[0].mxu0 %v5435
      %v6064 = vpop.f32.mrb[0].mxu0
      %v6065 = vadd.f32 %v5162, %v6064
      %v6066 = vpop.f32.mrb[0].mxu0
      %6067 = vmatprep.mubr.f32.mxu0 0.0
      %6068 = vmatmul.mubr.f32.gmra.mrb[0].mxu0 %v5438
      %v6069 = vpop.f32.mrb[0].mxu0
      %v6070 = vadd.f32 %v5162, %v6069
      %v6071 = vpop.f32.mrb[0].mxu0
      %6072 = vmatprep.mubr.f32.mxu0 0.0
      %6073 = vmatmul.mubr.f32.gmra.mrb[0].mxu0 %v5441
      %v6074 = vpop.f32.mrb[0].mxu0
      %v6075 = vadd.f32 %v5162, %v6074
      %v6076 = vpop.f32.mrb[0].mxu0
      %6077 = vmatprep.mubr.f32.mxu0 0.0
      %6078 = vmatmul.mubr.f32.gmra.mrb[0].mxu0 %v5444
      %v6079 = vpop.f32.mrb[0].mxu0
      %v6080 = vadd.f32 %v5162, %v6079
      %v6081 = vpop.f32.mrb[0].mxu0
      %6082 = vmatprep.mubr.f32.mxu0 0.0
      %6083 = vmatmul.mubr.f32.gmra.mrb[0].mxu0 %v5447
      %v6084 = vpop.f32.mrb[0].mxu0
      %v6085 = vadd.f32 %v5162, %v6084
      %v6086 = vpop.f32.mrb[0].mxu0
      %6087 = vmatprep.mubr.f32.mxu0 0.0
      %6088 = vmatmul.mubr.f32.gmra.mrb[0].mxu0 %v5450
      %v6089 = vpop.f32.mrb[0].mxu0
      %v6090 = vadd.f32 %v5162, %v6089
      %v6091 = vpop.f32.mrb[0].mxu0
      %6092 = vmatprep.mubr.f32.mxu0 0.0
      %6093 = vmatmul.mubr.f32.gmra.mrb[0].mxu0 %v5453
      %v6094 = vpop.f32.mrb[0].mxu0
      %v6095 = vadd.f32 %v5162, %v6094
      %v6096 = vpop.f32.mrb[0].mxu0
      %6097 = vmatprep.mubr.f32.mxu0 0.0
      %6098 = vmatmul.mubr.f32.gmra.mrb[0].mxu0 %v5456
      %v6099 = vpop.f32.mrb[0].mxu0
      %v6100 = vadd.f32 %v5162, %v6099
      %v6101 = vpop.f32.mrb[0].mxu0
      %6102 = vmatprep.mubr.f32.mxu0 0.0
      %6103 = vmatmul.mubr.f32.gmra.mrb[0].mxu0 %v5459
      %v6104 = vpop.f32.mrb[0].mxu0
      %v6105 = vadd.f32 %v5162, %v6104
      %v6106 = vpop.f32.mrb[0].mxu0
      %6107 = vmatprep.mubr.f32.mxu0 0.0
      %6108 = vmatmul.mubr.f32.gmra.mrb[0].mxu0 %v5462
      %v6109 = vpop.f32.mrb[0].mxu0
      %v6110 = vadd.f32 %v5162, %v6109
      %v6111 = vpop.f32.mrb[0].mxu0
      %6112 = vmatprep.mubr.f32.mxu0 0.0
      %6113 = vmatmul.mubr.f32.gmra.mrb[0].mxu0 %v5465
      %v6114 = vpop.f32.mrb[0].mxu0
      %v6115 = vadd.f32 %v5162, %v6114
      %v6116 = vpop.f32.mrb[0].mxu0
      %6117 = vmatprep.mubr.f32.mxu0 0.0
      %6118 = vmatmul.mubr.f32.gmra.mrb[0].mxu0 %v5468
      %v6119 = vpop.f32.mrb[0].mxu0
      %v6120 = vadd.f32 %v5162, %v6119
      %v6121 = vpop.f32.mrb[0].mxu0
      %6122 = vmatprep.mubr.f32.mxu0 0.0
      %6123 = vmatmul.mubr.f32.gmra.mrb[0].mxu0 %v5471
      %v6124 = vpop.f32.mrb[0].mxu0
      %v6125 = vadd.f32 %v5162, %v6124
      %v6126 = vpop.f32.mrb[0].mxu0
      %6127 = vmatprep.mubr.f32.mxu0 0.0
      %6128 = vmatmul.mubr.f32.gmra.mrb[0].mxu0 %v5474
      %v6129 = vpop.f32.mrb[0].mxu0
      %v6130 = vadd.f32 %v5162, %v6129
      %v6131 = vpop.f32.mrb[0].mxu0
      %6132 = vmatprep.mubr.f32.mxu0 0.0
      %6133 = vmatmul.mubr.f32.gmra.mrb[0].mxu0 %v5477
      %v6134 = vpop.f32.mrb[0].mxu0
      %v6135 = vadd.f32 %v5162, %v6134
      %v6136 = vpop.f32.mrb[0].mxu0
      %6137 = vmatprep.mubr.f32.mxu0 0.0
      %6138 = vmatmul.mubr.f32.gmra.mrb[0].mxu0 %v5480
      %v6139 = vpop.f32.mrb[0].mxu0
      %v6140 = vadd.f32 %v5162, %v6139
      %v6141 = vpop.f32.mrb[0].mxu0
      %6142 = vmatprep.mubr.f32.mxu0 0.0
      %6143 = vmatmul.mubr.f32.gmra.mrb[0].mxu0 %v5483
      %v6144 = vpop.f32.mrb[0].mxu0
      %v6145 = vadd.f32 %v5162, %v6144
      %v6146 = vpop.f32.mrb[0].mxu0
      %6147 = vmatprep.mubr.f32.mxu0 0.0
      %6148 = vmatmul.mubr.f32.gmra.mrb[0].mxu0 %v5486
      %v6149 = vpop.f32.mrb[0].mxu0
      %v6150 = vadd.f32 %v5162, %v6149
      %v6151 = vpop.f32.mrb[0].mxu0
      %6152 = vmatprep.mubr.f32.mxu0 0.0
      %6153 = vmatmul.mubr.f32.gmra.mrb[0].mxu0 %v5489
      %v6154 = vpop.f32.mrb[0].mxu0
      %v6155 = vadd.f32 %v5162, %v6154
      %v6156 = vpop.f32.mrb[0].mxu0
      %6157 = vmatprep.mubr.f32.mxu0 0.0
      %6158 = vmatmul.mubr.f32.gmra.mrb[0].mxu0 %v5492
      %v6159 = vpop.f32.mrb[0].mxu0
      %v6160 = vadd.f32 %v5162, %v6159
      %v6161 = vpop.f32.mrb[0].mxu0
      %6162 = vmatprep.mubr.f32.mxu0 0.0
      %6163 = vmatmul.mubr.f32.gmra.mrb[0].mxu0 %v5495
      %v6164 = vpop.f32.mrb[0].mxu0
      %v6165 = vadd.f32 %v5162, %v6164
      %v6166 = vpop.f32.mrb[0].mxu0
      %6167 = vmatprep.mubr.f32.mxu0 0.0
      %6168 = vmatmul.mubr.f32.gmra.mrb[0].mxu0 %v5498
      %v6169 = vpop.f32.mrb[0].mxu0
      %v6170 = vadd.f32 %v5162, %v6169
      %v6171 = vpop.f32.mrb[0].mxu0
      %6172 = vmatprep.mubr.f32.mxu0 0.0
      %6173 = vmatmul.mubr.f32.gmra.mrb[0].mxu0 %v5501
      %v6174 = vpop.f32.mrb[0].mxu0
      %v6175 = vadd.f32 %v5162, %v6174
      %v6176 = vpop.f32.mrb[0].mxu0
      %6177 = vmatprep.mubr.f32.mxu0 0.0
      %6178 = vmatmul.mubr.f32.gmra.mrb[0].mxu0 %v5504
      %v6179 = vpop.f32.mrb[0].mxu0
      %v6180 = vadd.f32 %v5162, %v6179
      %v6181 = vpop.f32.mrb[0].mxu0
      %6182 = vmatprep.mubr.f32.mxu0 0.0
      %6183 = vmatmul.mubr.f32.gmra.mrb[0].mxu0 %v5507
      %v6184 = vpop.f32.mrb[0].mxu0
      %v6185 = vadd.f32 %v5162, %v6184
      %v6186 = vpop.f32.mrb[0].mxu0
      %6187 = vmatprep.mubr.f32.mxu0 0.0
      %6188 = vmatmul.mubr.f32.gmra.mrb[0].mxu0 %v5510
      %v6189 = vpop.f32.mrb[0].mxu0
      %v6190 = vadd.f32 %v5162, %v6189
      %v6191 = vpop.f32.mrb[0].mxu0
      %6192 = vmatprep.mubr.f32.mxu0 0.0
      %6193 = vmatmul.mubr.f32.gmra.mrb[0].mxu0 %v5513
      %v6194 = vpop.f32.mrb[0].mxu0
      %v6195 = vadd.f32 %v5162, %v6194
      %v6196 = vpop.f32.mrb[0].mxu0
      %6197 = vmatprep.mubr.f32.mxu0 0.0
      %6198 = vmatmul.mubr.f32.gmra.mrb[0].mxu0 %v5516
      %v6199 = vpop.f32.mrb[0].mxu0
      %v6200 = vadd.f32 %v5162, %v6199
      %v6201 = vpop.f32.mrb[0].mxu0
      %6202 = vmatprep.mubr.f32.mxu0 0.0
      %6203 = vmatmul.mubr.f32.gmra.mrb[0].mxu0 %v5519
      %v6204 = vpop.f32.mrb[0].mxu0
      %v6205 = vadd.f32 %v5162, %v6204
      %v6206 = vpop.f32.mrb[0].mxu0
      %6207 = vmatprep.mubr.f32.mxu0 0.0
      %6208 = vmatmul.mubr.f32.gmra.mrb[0].mxu0 %v5522
      %v6209 = vpop.f32.mrb[0].mxu0
      %v6210 = vadd.f32 %v5162, %v6209
      %v6211 = vpop.f32.mrb[0].mxu0
      %6212 = vmatprep.mubr.f32.mxu0 0.0
      %6213 = vmatmul.mubr.f32.gmra.mrb[0].mxu0 %v5525
      %v6214 = vpop.f32.mrb[0].mxu0
      %v6215 = vadd.f32 %v5162, %v6214
      %v6216 = vpop.f32.mrb[0].mxu0
      %6217 = vmatprep.mubr.f32.mxu0 0.0
      %6218 = vmatmul.mubr.f32.gmra.mrb[0].mxu0 %v5528
      %v6219 = vpop.f32.mrb[0].mxu0
      %v6220 = vadd.f32 %v5162, %v6219
      %v6221 = vpop.f32.mrb[0].mxu0
      %6222 = vmatprep.mubr.f32.mxu0 0.0
      %6223 = vmatmul.mubr.f32.gmra.mrb[0].mxu0 %v5531
      %v6224 = vpop.f32.mrb[0].mxu0
      %v6225 = vadd.f32 %v5162, %v6224
      %v6226 = vpop.f32.mrb[0].mxu0
      %6227 = vmatprep.mubr.f32.mxu0 0.0
      %6228 = vmatmul.mubr.f32.gmra.mrb[0].mxu0 %v5534
      %v6229 = vpop.f32.mrb[0].mxu0
      %v6230 = vadd.f32 %v5162, %v6229
      %v6231 = vpop.f32.mrb[0].mxu0
      %6232 = vmatprep.mubr.f32.mxu0 0.0
      %6233 = vmatmul.mubr.f32.gmra.mrb[0].mxu0 %v5537
      %v6234 = vpop.f32.mrb[0].mxu0
      %v6235 = vadd.f32 %v5162, %v6234
      %v6236 = vpop.f32.mrb[0].mxu0
      %6237 = vmatprep.mubr.f32.mxu0 0.0
      %6238 = vmatmul.mubr.f32.gmra.mrb[0].mxu0 %v5540
      %v6239 = vpop.f32.mrb[0].mxu0
      %v6240 = vadd.f32 %v5162, %v6239
      %v6241 = vpop.f32.mrb[0].mxu0
      %6242 = vmatprep.mubr.f32.mxu0 0.0
      %6243 = vmatmul.mubr.f32.gmra.mrb[0].mxu0 %v5543
      %v6244 = vpop.f32.mrb[0].mxu0
      %v6245 = vadd.f32 %v5162, %v6244
      %v6246 = vpop.f32.mrb[0].mxu0
      %6247 = vmatprep.mubr.f32.mxu0 0.0
      %6248 = vmatmul.mubr.f32.gmra.mrb[0].mxu0 %v5546
      %v6249 = vpop.f32.mrb[0].mxu0
      %v6250 = vadd.f32 %v5162, %v6249
      %v6251 = vpop.f32.mrb[0].mxu0
      %6252 = vdwg.mxu0
      %v6253 = vld [vmem:[%s6] sm:$0x1]
      %v6255 = vlaneseq
      %v6256 = vshrl.u32 %v6255, 7
      %v6257 = vsub.s32 0, %v6256
      %v6258 = vrot.slane %v6253, %v6257
      %v6260 = vmul.f32 %v5615, %v6258
      %v6261 = vmul.f32 %v5620, %v6258
      %v6262 = vmul.f32 %v5625, %v6258
      %v6263 = vmul.f32 %v5630, %v6258
      %v6264 = vmul.f32 %v5635, %v6258
      %v6265 = vmul.f32 %v5640, %v6258
      %v6266 = vmul.f32 %v5645, %v6258
      %v6267 = vmul.f32 %v5650, %v6258
      %v6268 = vmul.f32 %v5655, %v6258
      %v6269 = vmul.f32 %v5660, %v6258
      %v6270 = vmul.f32 %v5665, %v6258
      %v6271 = vmul.f32 %v5670, %v6258
      %v6272 = vmul.f32 %v5675, %v6258
      %v6273 = vmul.f32 %v5680, %v6258
      %v6274 = vmul.f32 %v5685, %v6258
      %v6275 = vmul.f32 %v5690, %v6258
      %v6276 = vmul.f32 %v5695, %v6258
      %v6277 = vmul.f32 %v5700, %v6258
      %v6278 = vmul.f32 %v5705, %v6258
      %v6279 = vmul.f32 %v5710, %v6258
      %v6280 = vmul.f32 %v5715, %v6258
      %v6281 = vmul.f32 %v5720, %v6258
      %v6282 = vmul.f32 %v5725, %v6258
      %v6283 = vmul.f32 %v5730, %v6258
      %v6284 = vmul.f32 %v5735, %v6258
      %v6285 = vmul.f32 %v5740, %v6258
      %v6286 = vmul.f32 %v5745, %v6258
      %v6287 = vmul.f32 %v5750, %v6258
      %v6288 = vmul.f32 %v5755, %v6258
      %v6289 = vmul.f32 %v5760, %v6258
      %v6290 = vmul.f32 %v5765, %v6258
      %v6291 = vmul.f32 %v5770, %v6258
      %v6292 = vmul.f32 %v5775, %v6258
      %v6293 = vmul.f32 %v5780, %v6258
      %v6294 = vmul.f32 %v5785, %v6258
      %v6295 = vmul.f32 %v5790, %v6258
      %v6296 = vmul.f32 %v5795, %v6258
      %v6297 = vmul.f32 %v5800, %v6258
      %v6298 = vmul.f32 %v5805, %v6258
      %v6299 = vmul.f32 %v5810, %v6258
      %v6300 = vmul.f32 %v5815, %v6258
      %v6301 = vmul.f32 %v5820, %v6258
      %v6302 = vmul.f32 %v5825, %v6258
      %v6303 = vmul.f32 %v5830, %v6258
      %v6304 = vmul.f32 %v5835, %v6258
      %v6305 = vmul.f32 %v5840, %v6258
      %v6306 = vmul.f32 %v5845, %v6258
      %v6307 = vmul.f32 %v5850, %v6258
      %v6308 = vmul.f32 %v5855, %v6258
      %v6309 = vmul.f32 %v5860, %v6258
      %v6310 = vmul.f32 %v5865, %v6258
      %v6311 = vmul.f32 %v5870, %v6258
      %v6312 = vmul.f32 %v5875, %v6258
      %v6313 = vmul.f32 %v5880, %v6258
      %v6314 = vmul.f32 %v5885, %v6258
      %v6315 = vmul.f32 %v5890, %v6258
      %v6316 = vmul.f32 %v5895, %v6258
      %v6317 = vmul.f32 %v5900, %v6258
      %v6318 = vmul.f32 %v5905, %v6258
      %v6319 = vmul.f32 %v5910, %v6258
      %v6320 = vmul.f32 %v5915, %v6258
      %v6321 = vmul.f32 %v5920, %v6258
      %v6322 = vmul.f32 %v5925, %v6258
      %v6323 = vmul.f32 %v5930, %v6258
      %v6324 = vmul.f32 %v5935, %v6258
      %v6325 = vmul.f32 %v5940, %v6258
      %v6326 = vmul.f32 %v5945, %v6258
      %v6327 = vmul.f32 %v5950, %v6258
      %v6328 = vmul.f32 %v5955, %v6258
      %v6329 = vmul.f32 %v5960, %v6258
      %v6330 = vmul.f32 %v5965, %v6258
      %v6331 = vmul.f32 %v5970, %v6258
      %v6332 = vmul.f32 %v5975, %v6258
      %v6333 = vmul.f32 %v5980, %v6258
      %v6334 = vmul.f32 %v5985, %v6258
      %v6335 = vmul.f32 %v5990, %v6258
      %v6336 = vmul.f32 %v5995, %v6258
      %v6337 = vmul.f32 %v6000, %v6258
      %v6338 = vmul.f32 %v6005, %v6258
      %v6339 = vmul.f32 %v6010, %v6258
      %v6340 = vmul.f32 %v6015, %v6258
      %v6341 = vmul.f32 %v6020, %v6258
      %v6342 = vmul.f32 %v6025, %v6258
      %v6343 = vmul.f32 %v6030, %v6258
      %v6344 = vmul.f32 %v6035, %v6258
      %v6345 = vmul.f32 %v6040, %v6258
      %v6346 = vmul.f32 %v6045, %v6258
      %v6347 = vmul.f32 %v6050, %v6258
      %v6348 = vmul.f32 %v6055, %v6258
      %v6349 = vmul.f32 %v6060, %v6258
      %v6350 = vmul.f32 %v6065, %v6258
      %v6351 = vmul.f32 %v6070, %v6258
      %v6352 = vmul.f32 %v6075, %v6258
      %v6353 = vmul.f32 %v6080, %v6258
      %v6354 = vmul.f32 %v6085, %v6258
      %v6355 = vmul.f32 %v6090, %v6258
      %v6356 = vmul.f32 %v6095, %v6258
      %v6357 = vmul.f32 %v6100, %v6258
      %v6358 = vmul.f32 %v6105, %v6258
      %v6359 = vmul.f32 %v6110, %v6258
      %v6360 = vmul.f32 %v6115, %v6258
      %v6361 = vmul.f32 %v6120, %v6258
      %v6362 = vmul.f32 %v6125, %v6258
      %v6363 = vmul.f32 %v6130, %v6258
      %v6364 = vmul.f32 %v6135, %v6258
      %v6365 = vmul.f32 %v6140, %v6258
      %v6366 = vmul.f32 %v6145, %v6258
      %v6367 = vmul.f32 %v6150, %v6258
      %v6368 = vmul.f32 %v6155, %v6258
      %v6369 = vmul.f32 %v6160, %v6258
      %v6370 = vmul.f32 %v6165, %v6258
      %v6371 = vmul.f32 %v6170, %v6258
      %v6372 = vmul.f32 %v6175, %v6258
      %v6373 = vmul.f32 %v6180, %v6258
      %v6374 = vmul.f32 %v6185, %v6258
      %v6375 = vmul.f32 %v6190, %v6258
      %v6376 = vmul.f32 %v6195, %v6258
      %v6377 = vmul.f32 %v6200, %v6258
      %v6378 = vmul.f32 %v6205, %v6258
      %v6379 = vmul.f32 %v6210, %v6258
      %v6380 = vmul.f32 %v6215, %v6258
      %v6381 = vmul.f32 %v6220, %v6258
      %v6382 = vmul.f32 %v6225, %v6258
      %v6383 = vmul.f32 %v6230, %v6258
      %v6384 = vmul.f32 %v6235, %v6258
      %v6385 = vmul.f32 %v6240, %v6258
      %v6386 = vmul.f32 %v6245, %v6258
      %v6387 = vmul.f32 %v6250, %v6258
      %v6388 = vld [vmem:[%s7] sm:$0x1]
      %v6390 = vlaneseq
      %v6391 = vshrl.u32 %v6390, 7
      %v6392 = vsub.s32 0, %v6391
      %v6393 = vrot.slane %v6388, %v6392
      %v6395 = vadd.f32 %v6260, %v6393
      %v6396 = vadd.f32 %v6261, %v6393
      %v6397 = vadd.f32 %v6262, %v6393
      %v6398 = vadd.f32 %v6263, %v6393
      %v6399 = vadd.f32 %v6264, %v6393
      %v6400 = vadd.f32 %v6265, %v6393
      %v6401 = vadd.f32 %v6266, %v6393
      %v6402 = vadd.f32 %v6267, %v6393
      %v6403 = vadd.f32 %v6268, %v6393
      %v6404 = vadd.f32 %v6269, %v6393
      %v6405 = vadd.f32 %v6270, %v6393
      %v6406 = vadd.f32 %v6271, %v6393
      %v6407 = vadd.f32 %v6272, %v6393
      %v6408 = vadd.f32 %v6273, %v6393
      %v6409 = vadd.f32 %v6274, %v6393
      %v6410 = vadd.f32 %v6275, %v6393
      %v6411 = vadd.f32 %v6276, %v6393
      %v6412 = vadd.f32 %v6277, %v6393
      %v6413 = vadd.f32 %v6278, %v6393
      %v6414 = vadd.f32 %v6279, %v6393
      %v6415 = vadd.f32 %v6280, %v6393
      %v6416 = vadd.f32 %v6281, %v6393
      %v6417 = vadd.f32 %v6282, %v6393
      %v6418 = vadd.f32 %v6283, %v6393
      %v6419 = vadd.f32 %v6284, %v6393
      %v6420 = vadd.f32 %v6285, %v6393
      %v6421 = vadd.f32 %v6286, %v6393
      %v6422 = vadd.f32 %v6287, %v6393
      %v6423 = vadd.f32 %v6288, %v6393
      %v6424 = vadd.f32 %v6289, %v6393
      %v6425 = vadd.f32 %v6290, %v6393
      %v6426 = vadd.f32 %v6291, %v6393
      %v6427 = vadd.f32 %v6292, %v6393
      %v6428 = vadd.f32 %v6293, %v6393
      %v6429 = vadd.f32 %v6294, %v6393
      %v6430 = vadd.f32 %v6295, %v6393
      %v6431 = vadd.f32 %v6296, %v6393
      %v6432 = vadd.f32 %v6297, %v6393
      %v6433 = vadd.f32 %v6298, %v6393
      %v6434 = vadd.f32 %v6299, %v6393
      %v6435 = vadd.f32 %v6300, %v6393
      %v6436 = vadd.f32 %v6301, %v6393
      %v6437 = vadd.f32 %v6302, %v6393
      %v6438 = vadd.f32 %v6303, %v6393
      %v6439 = vadd.f32 %v6304, %v6393
      %v6440 = vadd.f32 %v6305, %v6393
      %v6441 = vadd.f32 %v6306, %v6393
      %v6442 = vadd.f32 %v6307, %v6393
      %v6443 = vadd.f32 %v6308, %v6393
      %v6444 = vadd.f32 %v6309, %v6393
      %v6445 = vadd.f32 %v6310, %v6393
      %v6446 = vadd.f32 %v6311, %v6393
      %v6447 = vadd.f32 %v6312, %v6393
      %v6448 = vadd.f32 %v6313, %v6393
      %v6449 = vadd.f32 %v6314, %v6393
      %v6450 = vadd.f32 %v6315, %v6393
      %v6451 = vadd.f32 %v6316, %v6393
      %v6452 = vadd.f32 %v6317, %v6393
      %v6453 = vadd.f32 %v6318, %v6393
      %v6454 = vadd.f32 %v6319, %v6393
      %v6455 = vadd.f32 %v6320, %v6393
      %v6456 = vadd.f32 %v6321, %v6393
      %v6457 = vadd.f32 %v6322, %v6393
      %v6458 = vadd.f32 %v6323, %v6393
      %v6459 = vadd.f32 %v6324, %v6393
      %v6460 = vadd.f32 %v6325, %v6393
      %v6461 = vadd.f32 %v6326, %v6393
      %v6462 = vadd.f32 %v6327, %v6393
      %v6463 = vadd.f32 %v6328, %v6393
      %v6464 = vadd.f32 %v6329, %v6393
      %v6465 = vadd.f32 %v6330, %v6393
      %v6466 = vadd.f32 %v6331, %v6393
      %v6467 = vadd.f32 %v6332, %v6393
      %v6468 = vadd.f32 %v6333, %v6393
      %v6469 = vadd.f32 %v6334, %v6393
      %v6470 = vadd.f32 %v6335, %v6393
      %v6471 = vadd.f32 %v6336, %v6393
      %v6472 = vadd.f32 %v6337, %v6393
      %v6473 = vadd.f32 %v6338, %v6393
      %v6474 = vadd.f32 %v6339, %v6393
      %v6475 = vadd.f32 %v6340, %v6393
      %v6476 = vadd.f32 %v6341, %v6393
      %v6477 = vadd.f32 %v6342, %v6393
      %v6478 = vadd.f32 %v6343, %v6393
      %v6479 = vadd.f32 %v6344, %v6393
      %v6480 = vadd.f32 %v6345, %v6393
      %v6481 = vadd.f32 %v6346, %v6393
      %v6482 = vadd.f32 %v6347, %v6393
      %v6483 = vadd.f32 %v6348, %v6393
      %v6484 = vadd.f32 %v6349, %v6393
      %v6485 = vadd.f32 %v6350, %v6393
      %v6486 = vadd.f32 %v6351, %v6393
      %v6487 = vadd.f32 %v6352, %v6393
      %v6488 = vadd.f32 %v6353, %v6393
      %v6489 = vadd.f32 %v6354, %v6393
      %v6490 = vadd.f32 %v6355, %v6393
      %v6491 = vadd.f32 %v6356, %v6393
      %v6492 = vadd.f32 %v6357, %v6393
      %v6493 = vadd.f32 %v6358, %v6393
      %v6494 = vadd.f32 %v6359, %v6393
      %v6495 = vadd.f32 %v6360, %v6393
      %v6496 = vadd.f32 %v6361, %v6393
      %v6497 = vadd.f32 %v6362, %v6393
      %v6498 = vadd.f32 %v6363, %v6393
      %v6499 = vadd.f32 %v6364, %v6393
      %v6500 = vadd.f32 %v6365, %v6393
      %v6501 = vadd.f32 %v6366, %v6393
      %v6502 = vadd.f32 %v6367, %v6393
      %v6503 = vadd.f32 %v6368, %v6393
      %v6504 = vadd.f32 %v6369, %v6393
      %v6505 = vadd.f32 %v6370, %v6393
      %v6506 = vadd.f32 %v6371, %v6393
      %v6507 = vadd.f32 %v6372, %v6393
      %v6508 = vadd.f32 %v6373, %v6393
      %v6509 = vadd.f32 %v6374, %v6393
      %v6510 = vadd.f32 %v6375, %v6393
      %v6511 = vadd.f32 %v6376, %v6393
      %v6512 = vadd.f32 %v6377, %v6393
      %v6513 = vadd.f32 %v6378, %v6393
      %v6514 = vadd.f32 %v6379, %v6393
      %v6515 = vadd.f32 %v6380, %v6393
      %v6516 = vadd.f32 %v6381, %v6393
      %v6517 = vadd.f32 %v6382, %v6393
      %v6518 = vadd.f32 %v6383, %v6393
      %v6519 = vadd.f32 %v6384, %v6393
      %v6520 = vadd.f32 %v6385, %v6393
      %v6521 = vadd.f32 %v6386, %v6393
      %v6522 = vadd.f32 %v6387, %v6393
      %v6523 = vmax.f32 %v6395, 0.0
      %v6524 = vmax.f32 %v6396, 0.0
      %v6525 = vmax.f32 %v6397, 0.0
      %v6526 = vmax.f32 %v6398, 0.0
      %v6527 = vmax.f32 %v6399, 0.0
      %v6528 = vmax.f32 %v6400, 0.0
      %v6529 = vmax.f32 %v6401, 0.0
      %v6530 = vmax.f32 %v6402, 0.0
      %v6531 = vmax.f32 %v6403, 0.0
      %v6532 = vmax.f32 %v6404, 0.0
      %v6533 = vmax.f32 %v6405, 0.0
      %v6534 = vmax.f32 %v6406, 0.0
      %v6535 = vmax.f32 %v6407, 0.0
      %v6536 = vmax.f32 %v6408, 0.0
      %v6537 = vmax.f32 %v6409, 0.0
      %v6538 = vmax.f32 %v6410, 0.0
      %v6539 = vmax.f32 %v6411, 0.0
      %v6540 = vmax.f32 %v6412, 0.0
      %v6541 = vmax.f32 %v6413, 0.0
      %v6542 = vmax.f32 %v6414, 0.0
      %v6543 = vmax.f32 %v6415, 0.0
      %v6544 = vmax.f32 %v6416, 0.0
      %v6545 = vmax.f32 %v6417, 0.0
      %v6546 = vmax.f32 %v6418, 0.0
      %v6547 = vmax.f32 %v6419, 0.0
      %v6548 = vmax.f32 %v6420, 0.0
      %v6549 = vmax.f32 %v6421, 0.0
      %v6550 = vmax.f32 %v6422, 0.0
      %v6551 = vmax.f32 %v6423, 0.0
      %v6552 = vmax.f32 %v6424, 0.0
      %v6553 = vmax.f32 %v6425, 0.0
      %v6554 = vmax.f32 %v6426, 0.0
      %v6555 = vmax.f32 %v6427, 0.0
      %v6556 = vmax.f32 %v6428, 0.0
      %v6557 = vmax.f32 %v6429, 0.0
      %v6558 = vmax.f32 %v6430, 0.0
      %v6559 = vmax.f32 %v6431, 0.0
      %v6560 = vmax.f32 %v6432, 0.0
      %v6561 = vmax.f32 %v6433, 0.0
      %v6562 = vmax.f32 %v6434, 0.0
      %v6563 = vmax.f32 %v6435, 0.0
      %v6564 = vmax.f32 %v6436, 0.0
      %v6565 = vmax.f32 %v6437, 0.0
      %v6566 = vmax.f32 %v6438, 0.0
      %v6567 = vmax.f32 %v6439, 0.0
      %v6568 = vmax.f32 %v6440, 0.0
      %v6569 = vmax.f32 %v6441, 0.0
      %v6570 = vmax.f32 %v6442, 0.0
      %v6571 = vmax.f32 %v6443, 0.0
      %v6572 = vmax.f32 %v6444, 0.0
      %v6573 = vmax.f32 %v6445, 0.0
      %v6574 = vmax.f32 %v6446, 0.0
      %v6575 = vmax.f32 %v6447, 0.0
      %v6576 = vmax.f32 %v6448, 0.0
      %v6577 = vmax.f32 %v6449, 0.0
      %v6578 = vmax.f32 %v6450, 0.0
      %v6579 = vmax.f32 %v6451, 0.0
      %v6580 = vmax.f32 %v6452, 0.0
      %v6581 = vmax.f32 %v6453, 0.0
      %v6582 = vmax.f32 %v6454, 0.0
      %v6583 = vmax.f32 %v6455, 0.0
      %v6584 = vmax.f32 %v6456, 0.0
      %v6585 = vmax.f32 %v6457, 0.0
      %v6586 = vmax.f32 %v6458, 0.0
      %v6587 = vmax.f32 %v6459, 0.0
      %v6588 = vmax.f32 %v6460, 0.0
      %v6589 = vmax.f32 %v6461, 0.0
      %v6590 = vmax.f32 %v6462, 0.0
      %v6591 = vmax.f32 %v6463, 0.0
      %v6592 = vmax.f32 %v6464, 0.0
      %v6593 = vmax.f32 %v6465, 0.0
      %v6594 = vmax.f32 %v6466, 0.0
      %v6595 = vmax.f32 %v6467, 0.0
      %v6596 = vmax.f32 %v6468, 0.0
      %v6597 = vmax.f32 %v6469, 0.0
      %v6598 = vmax.f32 %v6470, 0.0
      %v6599 = vmax.f32 %v6471, 0.0
      %v6600 = vmax.f32 %v6472, 0.0
      %v6601 = vmax.f32 %v6473, 0.0
      %v6602 = vmax.f32 %v6474, 0.0
      %v6603 = vmax.f32 %v6475, 0.0
      %v6604 = vmax.f32 %v6476, 0.0
      %v6605 = vmax.f32 %v6477, 0.0
      %v6606 = vmax.f32 %v6478, 0.0
      %v6607 = vmax.f32 %v6479, 0.0
      %v6608 = vmax.f32 %v6480, 0.0
      %v6609 = vmax.f32 %v6481, 0.0
      %v6610 = vmax.f32 %v6482, 0.0
      %v6611 = vmax.f32 %v6483, 0.0
      %v6612 = vmax.f32 %v6484, 0.0
      %v6613 = vmax.f32 %v6485, 0.0
      %v6614 = vmax.f32 %v6486, 0.0
      %v6615 = vmax.f32 %v6487, 0.0
      %v6616 = vmax.f32 %v6488, 0.0
      %v6617 = vmax.f32 %v6489, 0.0
      %v6618 = vmax.f32 %v6490, 0.0
      %v6619 = vmax.f32 %v6491, 0.0
      %v6620 = vmax.f32 %v6492, 0.0
      %v6621 = vmax.f32 %v6493, 0.0
      %v6622 = vmax.f32 %v6494, 0.0
      %v6623 = vmax.f32 %v6495, 0.0
      %v6624 = vmax.f32 %v6496, 0.0
      %v6625 = vmax.f32 %v6497, 0.0
      %v6626 = vmax.f32 %v6498, 0.0
      %v6627 = vmax.f32 %v6499, 0.0
      %v6628 = vmax.f32 %v6500, 0.0
      %v6629 = vmax.f32 %v6501, 0.0
      %v6630 = vmax.f32 %v6502, 0.0
      %v6631 = vmax.f32 %v6503, 0.0
      %v6632 = vmax.f32 %v6504, 0.0
      %v6633 = vmax.f32 %v6505, 0.0
      %v6634 = vmax.f32 %v6506, 0.0
      %v6635 = vmax.f32 %v6507, 0.0
      %v6636 = vmax.f32 %v6508, 0.0
      %v6637 = vmax.f32 %v6509, 0.0
      %v6638 = vmax.f32 %v6510, 0.0
      %v6639 = vmax.f32 %v6511, 0.0
      %v6640 = vmax.f32 %v6512, 0.0
      %v6641 = vmax.f32 %v6513, 0.0
      %v6642 = vmax.f32 %v6514, 0.0
      %v6643 = vmax.f32 %v6515, 0.0
      %v6644 = vmax.f32 %v6516, 0.0
      %v6645 = vmax.f32 %v6517, 0.0
      %v6646 = vmax.f32 %v6518, 0.0
      %v6647 = vmax.f32 %v6519, 0.0
      %v6648 = vmax.f32 %v6520, 0.0
      %v6649 = vmax.f32 %v6521, 0.0
      %v6650 = vmax.f32 %v6522, 0.0
      %6651 = vst.msk [vmem:[%s325] sm:$0xff] %vm627, %v6523
      %6652 = vst.msk [vmem:[%s325 + $0x8] sm:$0xff] %vm627, %v6524
      %6653 = vst.msk [vmem:[%s325 + $0x10] sm:$0xff] %vm627, %v6525
      %6654 = vst.msk [vmem:[%s325 + $0x18] sm:$0xff] %vm627, %v6526
      %6655 = vst.msk [vmem:[%s325 + $0x20] sm:$0xff] %vm627, %v6527
      %6656 = vst.msk [vmem:[%s325 + $0x28] sm:$0xff] %vm627, %v6528
      %6657 = vst.msk [vmem:[%s325 + $0x30] sm:$0xff] %vm627, %v6529
      %6658 = vst.msk [vmem:[%s325 + $0x38] sm:$0xff] %vm627, %v6530
      %6659 = vst.msk [vmem:[%s325 + $0x40] sm:$0xff] %vm627, %v6531
      %6660 = vst.msk [vmem:[%s325 + $0x48] sm:$0xff] %vm627, %v6532
      %6661 = vst.msk [vmem:[%s325 + $0x50] sm:$0xff] %vm627, %v6533
      %6662 = vst.msk [vmem:[%s325 + $0x58] sm:$0xff] %vm627, %v6534
      %6663 = vst.msk [vmem:[%s325 + $0x60] sm:$0xff] %vm627, %v6535
      %6664 = vst.msk [vmem:[%s325 + $0x68] sm:$0xff] %vm627, %v6536
      %6665 = vst.msk [vmem:[%s325 + $0x70] sm:$0xff] %vm627, %v6537
      %6666 = vst.msk [vmem:[%s325 + $0x78] sm:$0xff] %vm627, %v6538
      %6667 = vst.msk [vmem:[%s325 + $0x80] sm:$0xff] %vm627, %v6539
      %6668 = vst.msk [vmem:[%s325 + $0x88] sm:$0xff] %vm627, %v6540
      %6669 = vst.msk [vmem:[%s325 + $0x90] sm:$0xff] %vm627, %v6541
      %6670 = vst.msk [vmem:[%s325 + $0x98] sm:$0xff] %vm627, %v6542
      %6671 = vst.msk [vmem:[%s325 + $0xa0] sm:$0xff] %vm627, %v6543
      %6672 = vst.msk [vmem:[%s325 + $0xa8] sm:$0xff] %vm627, %v6544
      %6673 = vst.msk [vmem:[%s325 + $0xb0] sm:$0xff] %vm627, %v6545
      %6674 = vst.msk [vmem:[%s325 + $0xb8] sm:$0xff] %vm627, %v6546
      %6675 = vst.msk [vmem:[%s325 + $0xc0] sm:$0xff] %vm627, %v6547
      %6676 = vst.msk [vmem:[%s325 + $0xc8] sm:$0xff] %vm627, %v6548
      %6677 = vst.msk [vmem:[%s325 + $0xd0] sm:$0xff] %vm627, %v6549
      %6678 = vst.msk [vmem:[%s325 + $0xd8] sm:$0xff] %vm627, %v6550
      %6679 = vst.msk [vmem:[%s325 + $0xe0] sm:$0xff] %vm627, %v6551
      %6680 = vst.msk [vmem:[%s325 + $0xe8] sm:$0xff] %vm627, %v6552
      %6681 = vst.msk [vmem:[%s325 + $0xf0] sm:$0xff] %vm627, %v6553
      %6682 = vst.msk [vmem:[%s325 + $0xf8] sm:$0xff] %vm627, %v6554
      %6683 = vst.msk [vmem:[%s325 + $0x100] sm:$0xff] %vm627, %v6555
      %6684 = vst.msk [vmem:[%s325 + $0x108] sm:$0xff] %vm627, %v6556
      %6685 = vst.msk [vmem:[%s325 + $0x110] sm:$0xff] %vm627, %v6557
      %6686 = vst.msk [vmem:[%s325 + $0x118] sm:$0xff] %vm627, %v6558
      %6687 = vst.msk [vmem:[%s325 + $0x120] sm:$0xff] %vm627, %v6559
      %6688 = vst.msk [vmem:[%s325 + $0x128] sm:$0xff] %vm627, %v6560
      %6689 = vst.msk [vmem:[%s325 + $0x130] sm:$0xff] %vm627, %v6561
      %6690 = vst.msk [vmem:[%s325 + $0x138] sm:$0xff] %vm627, %v6562
      %6691 = vst.msk [vmem:[%s325 + $0x140] sm:$0xff] %vm627, %v6563
      %6692 = vst.msk [vmem:[%s325 + $0x148] sm:$0xff] %vm627, %v6564
      %6693 = vst.msk [vmem:[%s325 + $0x150] sm:$0xff] %vm627, %v6565
      %6694 = vst.msk [vmem:[%s325 + $0x158] sm:$0xff] %vm627, %v6566
      %6695 = vst.msk [vmem:[%s325 + $0x160] sm:$0xff] %vm627, %v6567
      %6696 = vst.msk [vmem:[%s325 + $0x168] sm:$0xff] %vm627, %v6568
      %6697 = vst.msk [vmem:[%s325 + $0x170] sm:$0xff] %vm627, %v6569
      %6698 = vst.msk [vmem:[%s325 + $0x178] sm:$0xff] %vm627, %v6570
      %6699 = vst.msk [vmem:[%s325 + $0x180] sm:$0xff] %vm627, %v6571
      %6700 = vst.msk [vmem:[%s325 + $0x188] sm:$0xff] %vm627, %v6572
      %6701 = vst.msk [vmem:[%s325 + $0x190] sm:$0xff] %vm627, %v6573
      %6702 = vst.msk [vmem:[%s325 + $0x198] sm:$0xff] %vm627, %v6574
      %6703 = vst.msk [vmem:[%s325 + $0x1a0] sm:$0xff] %vm627, %v6575
      %6704 = vst.msk [vmem:[%s325 + $0x1a8] sm:$0xff] %vm627, %v6576
      %6705 = vst.msk [vmem:[%s325 + $0x1b0] sm:$0xff] %vm627, %v6577
      %6706 = vst.msk [vmem:[%s325 + $0x1b8] sm:$0xff] %vm627, %v6578
      %6707 = vst.msk [vmem:[%s325 + $0x1c0] sm:$0xff] %vm627, %v6579
      %6708 = vst.msk [vmem:[%s325 + $0x1c8] sm:$0xff] %vm627, %v6580
      %6709 = vst.msk [vmem:[%s325 + $0x1d0] sm:$0xff] %vm627, %v6581
      %6710 = vst.msk [vmem:[%s325 + $0x1d8] sm:$0xff] %vm627, %v6582
      %6711 = vst.msk [vmem:[%s325 + $0x1e0] sm:$0xff] %vm627, %v6583
      %6712 = vst.msk [vmem:[%s325 + $0x1e8] sm:$0xff] %vm627, %v6584
      %6713 = vst.msk [vmem:[%s325 + $0x1f0] sm:$0xff] %vm627, %v6585
      %6714 = vst.msk [vmem:[%s325 + $0x1f8] sm:$0xff] %vm627, %v6586
      %6715 = vst.msk [vmem:[%s325 + $0x200] sm:$0xff] %vm627, %v6587
      %6716 = vst.msk [vmem:[%s325 + $0x208] sm:$0xff] %vm627, %v6588
      %6717 = vst.msk [vmem:[%s325 + $0x210] sm:$0xff] %vm627, %v6589
      %6718 = vst.msk [vmem:[%s325 + $0x218] sm:$0xff] %vm627, %v6590
      %6719 = vst.msk [vmem:[%s325 + $0x220] sm:$0xff] %vm627, %v6591
      %6720 = vst.msk [vmem:[%s325 + $0x228] sm:$0xff] %vm627, %v6592
      %6721 = vst.msk [vmem:[%s325 + $0x230] sm:$0xff] %vm627, %v6593
      %6722 = vst.msk [vmem:[%s325 + $0x238] sm:$0xff] %vm627, %v6594
      %6723 = vst.msk [vmem:[%s325 + $0x240] sm:$0xff] %vm627, %v6595
      %6724 = vst.msk [vmem:[%s325 + $0x248] sm:$0xff] %vm627, %v6596
      %6725 = vst.msk [vmem:[%s325 + $0x250] sm:$0xff] %vm627, %v6597
      %6726 = vst.msk [vmem:[%s325 + $0x258] sm:$0xff] %vm627, %v6598
      %6727 = vst.msk [vmem:[%s325 + $0x260] sm:$0xff] %vm627, %v6599
      %6728 = vst.msk [vmem:[%s325 + $0x268] sm:$0xff] %vm627, %v6600
      %6729 = vst.msk [vmem:[%s325 + $0x270] sm:$0xff] %vm627, %v6601
      %6730 = vst.msk [vmem:[%s325 + $0x278] sm:$0xff] %vm627, %v6602
      %6731 = vst.msk [vmem:[%s325 + $0x280] sm:$0xff] %vm627, %v6603
      %6732 = vst.msk [vmem:[%s325 + $0x288] sm:$0xff] %vm627, %v6604
      %6733 = vst.msk [vmem:[%s325 + $0x290] sm:$0xff] %vm627, %v6605
      %6734 = vst.msk [vmem:[%s325 + $0x298] sm:$0xff] %vm627, %v6606
      %6735 = vst.msk [vmem:[%s325 + $0x2a0] sm:$0xff] %vm627, %v6607
      %6736 = vst.msk [vmem:[%s325 + $0x2a8] sm:$0xff] %vm627, %v6608
      %6737 = vst.msk [vmem:[%s325 + $0x2b0] sm:$0xff] %vm627, %v6609
      %6738 = vst.msk [vmem:[%s325 + $0x2b8] sm:$0xff] %vm627, %v6610
      %6739 = vst.msk [vmem:[%s325 + $0x2c0] sm:$0xff] %vm627, %v6611
      %6740 = vst.msk [vmem:[%s325 + $0x2c8] sm:$0xff] %vm627, %v6612
      %6741 = vst.msk [vmem:[%s325 + $0x2d0] sm:$0xff] %vm627, %v6613
      %6742 = vst.msk [vmem:[%s325 + $0x2d8] sm:$0xff] %vm627, %v6614
      %6743 = vst.msk [vmem:[%s325 + $0x2e0] sm:$0xff] %vm627, %v6615
      %6744 = vst.msk [vmem:[%s325 + $0x2e8] sm:$0xff] %vm627, %v6616
      %6745 = vst.msk [vmem:[%s325 + $0x2f0] sm:$0xff] %vm627, %v6617
      %6746 = vst.msk [vmem:[%s325 + $0x2f8] sm:$0xff] %vm627, %v6618
      %6747 = vst.msk [vmem:[%s325 + $0x300] sm:$0xff] %vm627, %v6619
      %6748 = vst.msk [vmem:[%s325 + $0x308] sm:$0xff] %vm627, %v6620
      %6749 = vst.msk [vmem:[%s325 + $0x310] sm:$0xff] %vm627, %v6621
      %6750 = vst.msk [vmem:[%s325 + $0x318] sm:$0xff] %vm627, %v6622
      %6751 = vst.msk [vmem:[%s325 + $0x320] sm:$0xff] %vm627, %v6623
      %6752 = vst.msk [vmem:[%s325 + $0x328] sm:$0xff] %vm627, %v6624
      %6753 = vst.msk [vmem:[%s325 + $0x330] sm:$0xff] %vm627, %v6625
      %6754 = vst.msk [vmem:[%s325 + $0x338] sm:$0xff] %vm627, %v6626
      %6755 = vst.msk [vmem:[%s325 + $0x340] sm:$0xff] %vm627, %v6627
      %6756 = vst.msk [vmem:[%s325 + $0x348] sm:$0xff] %vm627, %v6628
      %6757 = vst.msk [vmem:[%s325 + $0x350] sm:$0xff] %vm627, %v6629
      %6758 = vst.msk [vmem:[%s325 + $0x358] sm:$0xff] %vm627, %v6630
      %6759 = vst.msk [vmem:[%s325 + $0x360] sm:$0xff] %vm627, %v6631
      %6760 = vst.msk [vmem:[%s325 + $0x368] sm:$0xff] %vm627, %v6632
      %6761 = vst.msk [vmem:[%s325 + $0x370] sm:$0xff] %vm627, %v6633
      %6762 = vst.msk [vmem:[%s325 + $0x378] sm:$0xff] %vm627, %v6634
      %6763 = vst.msk [vmem:[%s325 + $0x380] sm:$0xff] %vm627, %v6635
      %6764 = vst.msk [vmem:[%s325 + $0x388] sm:$0xff] %vm627, %v6636
      %6765 = vst.msk [vmem:[%s325 + $0x390] sm:$0xff] %vm627, %v6637
      %6766 = vst.msk [vmem:[%s325 + $0x398] sm:$0xff] %vm627, %v6638
      %6767 = vst.msk [vmem:[%s325 + $0x3a0] sm:$0xff] %vm627, %v6639
      %6768 = vst.msk [vmem:[%s325 + $0x3a8] sm:$0xff] %vm627, %v6640
      %6769 = vst.msk [vmem:[%s325 + $0x3b0] sm:$0xff] %vm627, %v6641
      %6770 = vst.msk [vmem:[%s325 + $0x3b8] sm:$0xff] %vm627, %v6642
      %6771 = vst.msk [vmem:[%s325 + $0x3c0] sm:$0xff] %vm627, %v6643
      %6772 = vst.msk [vmem:[%s325 + $0x3c8] sm:$0xff] %vm627, %v6644
      %6773 = vst.msk [vmem:[%s325 + $0x3d0] sm:$0xff] %vm627, %v6645
      %6774 = vst.msk [vmem:[%s325 + $0x3d8] sm:$0xff] %vm627, %v6646
      %6775 = vst.msk [vmem:[%s325 + $0x3e0] sm:$0xff] %vm627, %v6647
      %6776 = vst.msk [vmem:[%s325 + $0x3e8] sm:$0xff] %vm627, %v6648
      %6777 = vst.msk [vmem:[%s325 + $0x3f0] sm:$0xff] %vm627, %v6649
      %6778 = vst.msk [vmem:[%s325 + $0x3f8] sm:$0xff] %vm627, %v6650
      %p6779 = scmp.lt.s32.totalorder %s19, 3
      %s6780 = scalar_select %p6779, %s19, 3
      %s6781 = smul.addr %s6780, 128
      %s6782 = smul.addr %s6781, 8
      %s6783 = scalar_lea.vmem %s8, %s6782
      // Predicated region
      $region53: #{efficient_upsample_forward.3} parent=51 // pred_check
        %p6784 = pneg %p215
      $region54: #{efficient_upsample_forward.3} parent=51 // pred_check_branch
        %6786 = sbr.rel (%p6784) target = $region56
      $region55: #{efficient_upsample_forward.3} parent=51 // pred_region
        _
      $region56: #{efficient_upsample_forward.3} parent=51 // pred_fallthru
        _
    $region52: #{efficient_upsample_forward.3} parent=5 // pred_fallthru
      _
    %p6787 = scmp.le.s32.totalorder 2, %s14
    // Predicated region
    $region57: #{efficient_upsample_forward.3} parent=5 // pred_check
      %p6788 = pneg %p6787
    $region58: #{efficient_upsample_forward.3} parent=5 // pred_check_branch
      %6790 = sbr.rel (%p6788) target = $region60
    $region59: #{efficient_upsample_forward.3} parent=5 // pred_region
      %s6791 = ssub.s32 %s14, 2
      // Predicated region
      $region61: #{efficient_upsample_forward.3} parent=59 // pred_check
        %p6792 = pneg %p221
      $region62: #{efficient_upsample_forward.3} parent=59 // pred_check_branch
        %6794 = sbr.rel (%p6792) target = $region64
      $region63: #{efficient_upsample_forward.3} parent=59 // pred_region
        %p6795 = scmp.lt.s32.totalorder %s20, 3
        %s6796 = scalar_select %p6795, %s20, 3
        %s6797 = smul.addr %s6796, 128
        %s6798 = smul.addr %s6797, 8
        %s6799 = scalar_lea.vmem %s8, %s6798
      $region64: #{efficient_upsample_forward.3} parent=59 // pred_fallthru
        _
    $region60: #{efficient_upsample_forward.3} parent=5 // pred_fallthru
      _
  $region6: #{efficient_upsample_forward.3} parent=0 // loop_footer
    %s18 = sadd.s32 1, %s14
  $region7: #{efficient_upsample_forward.3} parent=0 // loop_footer_branch
    %13 = sbr.rel target = $region3
  $region8: #{efficient_upsample_forward.3} parent=0 // loop_exit
    _

</llo_original>
